<compile_context>
chip_gen: v7x
topology: tpu7x:2x2x1
jax: 0.10.0
libtpu: 0.0.40
codegen_flags: <defaults>
</compile_context>

<pallas_src>
import functools

import jax
import jax.numpy as jnp
from jax.experimental import pallas as pl
from jax.experimental.pallas import tpu as pltpu


# ----------------------------------------------------------------------------
# Fused Pallas kernel: the whole FactorInceptionB block for one image.
# ----------------------------------------------------------------------------
def _fused_inception_b_kernel(
    x_ref,                       # (1, H, W, Cin)
    wh_ref, bh_ref,              # fused [redu1|redu2|redu3]: (Cin, c1+c3a+c5a), (1, .)
    w1_ref, b1_ref,              # conv1 (1,n): (n*c3a, c3b), (1, c3b)
    w2_ref, b2_ref,              # conv2 (n,1): (n*c3b, c3b), (1, c3b)
    w3_ref, b3_ref,              # conv3 (1,n): (n*c5a, c3b), (1, c3b)
    w4_ref, b4_ref,              # conv4 (n,1)
    w5_ref, b5_ref,              # conv5 (1,n)
    w6_ref, b6_ref,              # conv6 (n,1)
    wp_ref, bp_ref,              # redu4: (Cin, cpool), (1, cpool)
    o_ref,                       # (1, H, W, c1 + c3b + c3b + cpool)
    *, n, pad, c1, c3a, c5a, use_bf16,
):
    x = x_ref[0]                 # (H, W, Cin)
    H, W, Cin = x.shape
    HW = H * W

    def mm(a, b):
        if use_bf16:             # v6e/v7x fast MXU path; accumulation stays f32
            a = a.astype(jnp.bfloat16)
            b = b.astype(jnp.bfloat16)
        return jnp.dot(a, b, preferred_element_type=jnp.float32)

    # ---- fused branch heads: [redu1 | redu2 | redu3] in ONE MXU matmul ------
    xm = x.reshape(HW, Cin)
    head = jnp.maximum(mm(xm, wh_ref[...]) + bh_ref[...], 0.0)   # (HW, c1+c3a+c5a)
    x1 = head[:, :c1]                                            # branch 1 output
    x2 = head[:, c1:c1 + c3a].reshape(H, W, c3a)
    x3 = head[:, c1 + c3a:c1 + c3a + c5a].reshape(H, W, c5a)

    # ---- (1,n)/(n,1) conv + bias + ReLU, reflect padded, im2col formulation --
    def conv1d_relu(v, w_ref2, b_ref2, axis):
        C = v.shape[-1]
        L = v.shape[axis]

        def col(i):
            sl = [slice(None)] * 3
            sl[axis] = slice(i, i + 1)
            return v[tuple(sl)]

        # reflect padding (no edge repeat), matching torch padding_mode='reflect'
        left = [col(p) for p in range(pad, 0, -1)]
        right = [col(L - 1 - p) for p in range(1, pad + 1)]
        vp = jnp.concatenate(left + [v] + right, axis=axis)      # length L + 2*pad

        taps = []
        for k in range(n):                                       # im2col: K = n*C
            sl = [slice(None)] * 3
            sl[axis] = slice(k, k + L)
            taps.append(vp[tuple(sl)])
        cols = jnp.concatenate(taps, axis=-1)                    # (H, W, n*C)

        y = mm(cols.reshape(HW, n * C), w_ref2[...]) + b_ref2[...]
        return jnp.maximum(y, 0.0).reshape(H, W, -1)

    # branch 2: (1,n) along W then (n,1) along H -- all in VMEM
    x2 = conv1d_relu(x2, w1_ref, b1_ref, axis=1)
    x2 = conv1d_relu(x2, w2_ref, b2_ref, axis=0)

    # branch 3: (1,n)(n,1)(1,n)(n,1)
    x3 = conv1d_relu(x3, w3_ref, b3_ref, axis=1)
    x3 = conv1d_relu(x3, w4_ref, b4_ref, axis=0)
    x3 = conv1d_relu(x3, w5_ref, b5_ref, axis=1)
    x3 = conv1d_relu(x3, w6_ref, b6_ref, axis=0)

    # ---- branch 4: 3x3 max pool (stride 1, pad 1) fused with redu4 1x1 + ReLU
    neg_h = jnp.full((1, W, Cin), -jnp.inf, dtype=x.dtype)
    xh = jnp.concatenate([neg_h, x, neg_h], axis=0)              # (H+2, W, Cin)
    neg_w = jnp.full((H + 2, 1, Cin), -jnp.inf, dtype=x.dtype)
    xp = jnp.concatenate([neg_w, xh, neg_w], axis=1)             # (H+2, W+2, Cin)
    pooled = xp[0:H, 0:W, :]
    for dh in range(3):
        for dw in range(3):
            if dh == 0 and dw == 0:
                continue
            pooled = jnp.maximum(pooled, xp[dh:dh + H, dw:dw + W, :])
    x4 = jnp.maximum(mm(pooled.reshape(HW, Cin), wp_ref[...]) + bp_ref[...], 0.0)

    # ---- channel concat (torch dim=1), single write of the full channel dim --
    out = jnp.concatenate(
        [x1, x2.reshape(HW, -1), x3.reshape(HW, -1), x4], axis=-1)
    o_ref[0] = out.reshape(H, W, -1).astype(o_ref.dtype)


# ----------------------------------------------------------------------------
# Forward wrapper (layout glue + one pallas_call)
# ----------------------------------------------------------------------------
def factor_inception_b_forward(x_nchw, params, *, use_bf16_matmul=False):
    pad = 3                                   # fixed padding=(.,3)/(3,.) in the module
    n = params["conv1_w"].shape[0]
    assert n == 2 * pad + 1, "fused kernel assumes the spatial-preserving n=7 / pad=3 config"
    assert params["conv3_w"].shape[1] == params["redu3_w"].shape[1], \
        "reference module requires dims_5[0] == dims_3[0]"

    x = jnp.transpose(x_nchw, (0, 2, 3, 1)).astype(jnp.float32)  # NCHW -> NHWC
    N, H, W, Cin = x.shape

    c1 = params["redu1_w"].shape[1]
    c3a = params["redu2_w"].shape[1]
    c5a = params["redu3_w"].shape[1]
    c3b = params["conv2_w"].shape[2]          # branch-2 output channels
    c3c = params["conv6_w"].shape[2]          # branch-3 output channels
    cpool = params["redu4_w"].shape[1]
    c_total = c1 + c3b + c3c + cpool

    # Fuse the three shared-input 1x1 convs into one weight / bias.
    w_head = jnp.concatenate(
        [params["redu1_w"], params["redu2_w"], params["redu3_w"]], axis=1)
    b_head = jnp.concatenate(
        [params["redu1_b"], params["redu2_b"], params["redu3_b"]])[None]

    def im2col_w(w):                           # (n, Cin, Cout) -> (n*Cin, Cout)
        return w.reshape(-1, w.shape[-1])

    weight_args = [
        w_head, b_head,
        im2col_w(params["conv1_w"]), params["conv1_b"][None],
        im2col_w(params["conv2_w"]), params["conv2_b"][None],
        im2col_w(params["conv3_w"]), params["conv3_b"][None],
        im2col_w(params["conv4_w"]), params["conv4_b"][None],
        im2col_w(params["conv5_w"]), params["conv5_b"][None],
        im2col_w(params["conv6_w"]), params["conv6_b"][None],
        params["redu4_w"], params["redu4_b"][None],
    ]

    kernel = functools.partial(
        _fused_inception_b_kernel,
        n=n, pad=pad, c1=c1, c3a=c3a, c5a=c5a, use_bf16=use_bf16_matmul)

    in_specs = [pl.BlockSpec((1, H, W, Cin), lambda i: (i, 0, 0, 0))]
    in_specs += [pl.BlockSpec(w.shape, lambda i: (0, 0)) for w in weight_args]

    out = pl.pallas_call(
        kernel,
        grid=(N,),
        in_specs=in_specs,
        out_specs=pl.BlockSpec((1, H, W, c_total), lambda i: (i, 0, 0, 0)),
        out_shape=jax.ShapeDtypeStruct((N, H, W, c_total), jnp.float32),
        compiler_params=pltpu.CompilerParams(
            dimension_semantics=("parallel",),      # shards images across TCs on v7x
            vmem_limit_bytes=32 * 1024 * 1024),
    )(x, *weight_args)

    return jnp.transpose(out, (0, 3, 1, 2))          # NHWC -> NCHW


# ----------------------------------------------------------------------------
# Parameter init (matches the torch module's shapes / semantics)
# ----------------------------------------------------------------------------
def init_params(key, dim_in, dim_1, dims_3, dims_5, dim_pool, n):
    assert dims_5[0] == dims_3[0], "reference module only type-checks when dims_5[0] == dims_3[0]"
    keys = jax.random.split(key, 10)

    def conv1x1(k, cin, cout):
        kw, kb = jax.random.split(k)
        return (0.1 * jax.random.normal(kw, (cin, cout), jnp.float32),
                0.1 * jax.random.normal(kb, (cout,), jnp.float32))

    def conv1d(k, cin, cout, taps):
        kw, kb = jax.random.split(k)
        return (0.1 * jax.random.normal(kw, (taps, cin, cout), jnp.float32),
                0.1 * jax.random.normal(kb, (cout,), jnp.float32))

    p = {}
    p["redu1_w"], p["redu1_b"] = conv1x1(keys[0], dim_in, dim_1)
    p["redu2_w"], p["redu2_b"] = conv1x1(keys[1], dim_in, dims_3[0])
    p["conv1_w"], p["conv1_b"] = conv1d(keys[2], dims_3[0], dims_3[1], n)
    p["conv2_w"], p["conv2_b"] = conv1d(keys[3], dims_3[1], dims_3[1], n)
    p["redu3_w"], p["redu3_b"] = conv1x1(keys[4], dim_in, dims_5[0])
    p["conv3_w"], p["conv3_b"] = conv1d(keys[5], dims_3[0], dims_3[1], n)
    p["conv4_w"], p["conv4_b"] = conv1d(keys[6], dims_3[1], dims_3[1], n)
    p["conv5_w"], p["conv5_b"] = conv1d(keys[7], dims_3[1], dims_3[1], n)
    p["conv6_w"], p["conv6_b"] = conv1d(keys[8], dims_3[1], dims_3[1], n)
    p["redu4_w"], p["redu4_b"] = conv1x1(keys[9], dim_in, dim_pool)
    return p


# ----------------------------------------------------------------------------
# Pure-JAX (XLA) reference for a numerical cross-check
# ----------------------------------------------------------------------------
def _reference_forward(x_nchw, params, pad=3):
    hi = jax.lax.Precision.HIGHEST
    x = jnp.transpose(x_nchw, (0, 2, 3, 1))  # NHWC

    def conv1x1(v, w, b):
        return jnp.maximum(jnp.einsum("nhwc,cd->nhwd", v, w, precision=hi) + b, 0.0)

    def conv1d(v, w, b, axis):               # axis: 1 (H) or 2 (W) in NHWC
        padw = [(0, 0)] * 4
        padw[axis] = (pad, pad)
        vp = jnp.pad(v, padw, mode="reflect")
        rhs = w[None] if axis == 2 else w[:, None]   # (1,n,Cin,Cout) / (n,1,Cin,Cout)
        y = jax.lax.conv_general_dilated(
            vp, rhs, window_strides=(1, 1), padding="VALID",
            dimension_numbers=("NHWC", "HWIO", "NHWC"), precision=hi)
        return jnp.maximum(y + b, 0.0)

    x1 = conv1x1(x, params["redu1_w"], params["redu1_b"])
    x2 = conv1x1(x, params["redu2_w"], params["redu2_b"])
    x2 = conv1d(x2, params["conv1_w"], params["conv1_b"], axis=2)
    x2 = conv1d(x2, params["conv2_w"], params["conv2_b"], axis=1)
    x3 = conv1x1(x, params["redu3_w"], params["redu3_b"])
    x3 = conv1d(x3, params["conv3_w"], params["conv3_b"], axis=2)
    x3 = conv1d(x3, params["conv4_w"], params["conv4_b"], axis=1)
    x3 = conv1d(x3, params["conv5_w"], params["conv5_b"], axis=2)
    x3 = conv1d(x3, params["conv6_w"], params["conv6_b"], axis=1)
    x4 = jax.lax.reduce_window(x, -jnp.inf, jax.lax.max,
                               (1, 3, 3, 1), (1, 1, 1, 1),
                               [(0, 0), (1, 1), (1, 1), (0, 0)])
    x4 = conv1x1(x4, params["redu4_w"], params["redu4_b"])
    out = jnp.concatenate([x1, x2, x3, x4], axis=-1)
    return jnp.transpose(out, (0, 3, 1, 2))


if __name__ == "__main__":
    # Small deterministic config. n=7 with pad=3 preserves spatial dims (paper's
    # Figure 6 block); dims_5[0] == dims_3[0] so the reference forward is valid.
    N, dim_in, H, W = 2, 4, 16, 16
    dim_1, dims_3, dims_5, dim_pool, n = 8, (8, 8), (8, 8), 8, 7

    key = jax.random.PRNGKey(0)
    pkey, xkey = jax.random.split(key)
    params = init_params(pkey, dim_in, dim_1, dims_3, dims_5, dim_pool, n)
    x = jax.random.normal(xkey, (N, dim_in, H, W), jnp.float32)

    # use_bf16_matmul=True is the faster v6e/v7x MXU path; keep f32 by default to
    # match the torch module's numerics.
    fwd = jax.jit(factor_inception_b_forward)
    y = fwd(x, params)
    jax.block_until_ready(y)

    expected_c = dim_1 + dims_3[1] + dims_3[1] + dim_pool
    assert y.shape == (N, expected_c, H, W), y.shape
    assert y.dtype == jnp.float32

    y_ref = _reference_forward(x, params)
    max_err = float(jnp.max(jnp.abs(y - y_ref)))
    assert jnp.allclose(y, y_ref, rtol=2e-2, atol=2e-2), f"max abs err = {max_err}"

    print("KERNEL_OK")
</pallas_src>

<mosaic_0001>
module attributes {stable_mosaic.version = 11 : i64} {
  func.func @_fused_inception_b_kernel(%arg0: i32, %arg1: memref<1x16x16x4xf32, #tpu.memory_space<vmem>>, %arg2: memref<4x24xf32, #tpu.memory_space<vmem>>, %arg3: memref<1x24xf32, #tpu.memory_space<vmem>>, %arg4: memref<56x8xf32, #tpu.memory_space<vmem>>, %arg5: memref<1x8xf32, #tpu.memory_space<vmem>>, %arg6: memref<56x8xf32, #tpu.memory_space<vmem>>, %arg7: memref<1x8xf32, #tpu.memory_space<vmem>>, %arg8: memref<56x8xf32, #tpu.memory_space<vmem>>, %arg9: memref<1x8xf32, #tpu.memory_space<vmem>>, %arg10: memref<56x8xf32, #tpu.memory_space<vmem>>, %arg11: memref<1x8xf32, #tpu.memory_space<vmem>>, %arg12: memref<56x8xf32, #tpu.memory_space<vmem>>, %arg13: memref<1x8xf32, #tpu.memory_space<vmem>>, %arg14: memref<56x8xf32, #tpu.memory_space<vmem>>, %arg15: memref<1x8xf32, #tpu.memory_space<vmem>>, %arg16: memref<4x8xf32, #tpu.memory_space<vmem>>, %arg17: memref<1x8xf32, #tpu.memory_space<vmem>>, %arg18: memref<1x16x16x32xf32, #tpu.memory_space<vmem>>) attributes {dimension_semantics = [#tpu.dimension_semantics<parallel>], iteration_bounds = array<i64: 2>, scalar_prefetch = 0 : i64, scratch_operands = 0 : i64, tpu.core_type = #tpu.core_type<tc>, window_params = [{transform_indices = @transform_0, window_bounds = array<i64: 1, 16, 16, 4>}, {pipeline_mode = #tpu.pipeline_mode<synchronous>, transform_indices = @transform_1, window_bounds = array<i64: 4, 24>}, {pipeline_mode = #tpu.pipeline_mode<synchronous>, transform_indices = @transform_2, window_bounds = array<i64: 1, 24>}, {pipeline_mode = #tpu.pipeline_mode<synchronous>, transform_indices = @transform_3, window_bounds = array<i64: 56, 8>}, {pipeline_mode = #tpu.pipeline_mode<synchronous>, transform_indices = @transform_4, window_bounds = array<i64: 1, 8>}, {pipeline_mode = #tpu.pipeline_mode<synchronous>, transform_indices = @transform_5, window_bounds = array<i64: 56, 8>}, {pipeline_mode = #tpu.pipeline_mode<synchronous>, transform_indices = @transform_6, window_bounds = array<i64: 1, 8>}, {pipeline_mode = #tpu.pipeline_mode<synchronous>, transform_indices = @transform_7, window_bounds = array<i64: 56, 8>}, {pipeline_mode = #tpu.pipeline_mode<synchronous>, transform_indices = @transform_8, window_bounds = array<i64: 1, 8>}, {pipeline_mode = #tpu.pipeline_mode<synchronous>, transform_indices = @transform_9, window_bounds = array<i64: 56, 8>}, {pipeline_mode = #tpu.pipeline_mode<synchronous>, transform_indices = @transform_10, window_bounds = array<i64: 1, 8>}, {pipeline_mode = #tpu.pipeline_mode<synchronous>, transform_indices = @transform_11, window_bounds = array<i64: 56, 8>}, {pipeline_mode = #tpu.pipeline_mode<synchronous>, transform_indices = @transform_12, window_bounds = array<i64: 1, 8>}, {pipeline_mode = #tpu.pipeline_mode<synchronous>, transform_indices = @transform_13, window_bounds = array<i64: 56, 8>}, {pipeline_mode = #tpu.pipeline_mode<synchronous>, transform_indices = @transform_14, window_bounds = array<i64: 1, 8>}, {pipeline_mode = #tpu.pipeline_mode<synchronous>, transform_indices = @transform_15, window_bounds = array<i64: 4, 8>}, {pipeline_mode = #tpu.pipeline_mode<synchronous>, transform_indices = @transform_16, window_bounds = array<i64: 1, 8>}, {transform_indices = @transform_17, window_bounds = array<i64: 1, 16, 16, 32>}]} {
    %c0 = arith.constant 0 : index
    %c0_0 = arith.constant 0 : index
    %c0_1 = arith.constant 0 : index
    %c0_2 = arith.constant 0 : index
    %0 = vector.load %arg1[%c0, %c0_0, %c0_1, %c0_2] : memref<1x16x16x4xf32, #tpu.memory_space<vmem>>, vector<1x16x16x4xf32>
    %1 = vector.shape_cast %0 : vector<1x16x16x4xf32> to vector<16x16x4xf32>
    %2 = vector.shape_cast %1 : vector<16x16x4xf32> to vector<256x4xf32>
    %c0_3 = arith.constant 0 : index
    %c0_4 = arith.constant 0 : index
    %3 = vector.load %arg2[%c0_3, %c0_4] : memref<4x24xf32, #tpu.memory_space<vmem>>, vector<4x24xf32>
    %cst = arith.constant dense<0.000000e+00> : vector<256x24xf32>
    %4 = tpu.matmul %2, %3, %cst {dimension_numbers = #tpu.dot_dimension_numbers<[1], [0], [0], [1], [0, 0, 1, 1], [], []>} : vector<256x4xf32>, vector<4x24xf32>, vector<256x24xf32> -> vector<256x24xf32>
    %c0_5 = arith.constant 0 : index
    %c0_6 = arith.constant 0 : index
    %5 = vector.load %arg3[%c0_5, %c0_6] : memref<1x24xf32, #tpu.memory_space<vmem>>, vector<1x24xf32>
    %6 = vector.broadcast %5 : vector<1x24xf32> to vector<256x24xf32>
    %7 = arith.addf %4, %6 : vector<256x24xf32>
    %cst_7 = arith.constant 0.000000e+00 : f32
    %8 = vector.broadcast %cst_7 : f32 to vector<256x24xf32>
    %9 = arith.maximumf %7, %8 : vector<256x24xf32>
    %10 = vector.extract_strided_slice %9 {offsets = [0, 0], sizes = [256, 8], strides = [1, 1]} : vector<256x24xf32> to vector<256x8xf32>
    %11 = vector.extract_strided_slice %9 {offsets = [0, 8], sizes = [256, 8], strides = [1, 1]} : vector<256x24xf32> to vector<256x8xf32>
    %12 = vector.shape_cast %11 : vector<256x8xf32> to vector<16x16x8xf32>
    %13 = vector.extract_strided_slice %9 {offsets = [0, 16], sizes = [256, 8], strides = [1, 1]} : vector<256x24xf32> to vector<256x8xf32>
    %14 = vector.shape_cast %13 : vector<256x8xf32> to vector<16x16x8xf32>
    %15 = vector.extract_strided_slice %12 {offsets = [0, 3, 0], sizes = [16, 1, 8], strides = [1, 1, 1]} : vector<16x16x8xf32> to vector<16x1x8xf32>
    %16 = vector.extract_strided_slice %12 {offsets = [0, 2, 0], sizes = [16, 1, 8], strides = [1, 1, 1]} : vector<16x16x8xf32> to vector<16x1x8xf32>
    %17 = vector.extract_strided_slice %12 {offsets = [0, 1, 0], sizes = [16, 1, 8], strides = [1, 1, 1]} : vector<16x16x8xf32> to vector<16x1x8xf32>
    %18 = vector.extract_strided_slice %12 {offsets = [0, 14, 0], sizes = [16, 1, 8], strides = [1, 1, 1]} : vector<16x16x8xf32> to vector<16x1x8xf32>
    %19 = vector.extract_strided_slice %12 {offsets = [0, 13, 0], sizes = [16, 1, 8], strides = [1, 1, 1]} : vector<16x16x8xf32> to vector<16x1x8xf32>
    %20 = vector.extract_strided_slice %12 {offsets = [0, 12, 0], sizes = [16, 1, 8], strides = [1, 1, 1]} : vector<16x16x8xf32> to vector<16x1x8xf32>
    %21 = tpu.concatenate %15, %16, %17, %12, %18, %19, %20 in 1 : vector<16x1x8xf32>, vector<16x1x8xf32>, vector<16x1x8xf32>, vector<16x16x8xf32>, vector<16x1x8xf32>, vector<16x1x8xf32>, vector<16x1x8xf32> -> vector<16x22x8xf32>
    %22 = vector.extract_strided_slice %21 {offsets = [0, 0, 0], sizes = [16, 16, 8], strides = [1, 1, 1]} : vector<16x22x8xf32> to vector<16x16x8xf32>
    %23 = vector.extract_strided_slice %21 {offsets = [0, 1, 0], sizes = [16, 16, 8], strides = [1, 1, 1]} : vector<16x22x8xf32> to vector<16x16x8xf32>
    %24 = vector.extract_strided_slice %21 {offsets = [0, 2, 0], sizes = [16, 16, 8], strides = [1, 1, 1]} : vector<16x22x8xf32> to vector<16x16x8xf32>
    %25 = vector.extract_strided_slice %21 {offsets = [0, 3, 0], sizes = [16, 16, 8], strides = [1, 1, 1]} : vector<16x22x8xf32> to vector<16x16x8xf32>
    %26 = vector.extract_strided_slice %21 {offsets = [0, 4, 0], sizes = [16, 16, 8], strides = [1, 1, 1]} : vector<16x22x8xf32> to vector<16x16x8xf32>
    %27 = vector.extract_strided_slice %21 {offsets = [0, 5, 0], sizes = [16, 16, 8], strides = [1, 1, 1]} : vector<16x22x8xf32> to vector<16x16x8xf32>
    %28 = vector.extract_strided_slice %21 {offsets = [0, 6, 0], sizes = [16, 16, 8], strides = [1, 1, 1]} : vector<16x22x8xf32> to vector<16x16x8xf32>
    %29 = tpu.concatenate %22, %23, %24, %25, %26, %27, %28 in 2 : vector<16x16x8xf32>, vector<16x16x8xf32>, vector<16x16x8xf32>, vector<16x16x8xf32>, vector<16x16x8xf32>, vector<16x16x8xf32>, vector<16x16x8xf32> -> vector<16x16x56xf32>
    %30 = vector.shape_cast %29 : vector<16x16x56xf32> to vector<256x56xf32>
    %c0_8 = arith.constant 0 : index
    %c0_9 = arith.constant 0 : index
    %31 = vector.load %arg4[%c0_8, %c0_9] : memref<56x8xf32, #tpu.memory_space<vmem>>, vector<56x8xf32>
    %cst_10 = arith.constant dense<0.000000e+00> : vector<256x8xf32>
    %32 = tpu.matmul %30, %31, %cst_10 {dimension_numbers = #tpu.dot_dimension_numbers<[1], [0], [0], [1], [0, 0, 1, 1], [], []>} : vector<256x56xf32>, vector<56x8xf32>, vector<256x8xf32> -> vector<256x8xf32>
    %c0_11 = arith.constant 0 : index
    %c0_12 = arith.constant 0 : index
    %33 = vector.load %arg5[%c0_11, %c0_12] : memref<1x8xf32, #tpu.memory_space<vmem>>, vector<1x8xf32>
    %34 = vector.broadcast %33 : vector<1x8xf32> to vector<256x8xf32>
    %35 = arith.addf %32, %34 : vector<256x8xf32>
    %cst_13 = arith.constant 0.000000e+00 : f32
    %36 = vector.broadcast %cst_13 : f32 to vector<256x8xf32>
    %37 = arith.maximumf %35, %36 : vector<256x8xf32>
    %38 = vector.shape_cast %37 : vector<256x8xf32> to vector<16x16x8xf32>
    %39 = vector.extract_strided_slice %38 {offsets = [3, 0, 0], sizes = [1, 16, 8], strides = [1, 1, 1]} : vector<16x16x8xf32> to vector<1x16x8xf32>
    %40 = vector.extract_strided_slice %38 {offsets = [2, 0, 0], sizes = [1, 16, 8], strides = [1, 1, 1]} : vector<16x16x8xf32> to vector<1x16x8xf32>
    %41 = vector.extract_strided_slice %38 {offsets = [1, 0, 0], sizes = [1, 16, 8], strides = [1, 1, 1]} : vector<16x16x8xf32> to vector<1x16x8xf32>
    %42 = vector.extract_strided_slice %38 {offsets = [14, 0, 0], sizes = [1, 16, 8], strides = [1, 1, 1]} : vector<16x16x8xf32> to vector<1x16x8xf32>
    %43 = vector.extract_strided_slice %38 {offsets = [13, 0, 0], sizes = [1, 16, 8], strides = [1, 1, 1]} : vector<16x16x8xf32> to vector<1x16x8xf32>
    %44 = vector.extract_strided_slice %38 {offsets = [12, 0, 0], sizes = [1, 16, 8], strides = [1, 1, 1]} : vector<16x16x8xf32> to vector<1x16x8xf32>
    %45 = tpu.concatenate %39, %40, %41, %38, %42, %43, %44 in 0 : vector<1x16x8xf32>, vector<1x16x8xf32>, vector<1x16x8xf32>, vector<16x16x8xf32>, vector<1x16x8xf32>, vector<1x16x8xf32>, vector<1x16x8xf32> -> vector<22x16x8xf32>
    %46 = vector.extract_strided_slice %45 {offsets = [0, 0, 0], sizes = [16, 16, 8], strides = [1, 1, 1]} : vector<22x16x8xf32> to vector<16x16x8xf32>
    %47 = vector.extract_strided_slice %45 {offsets = [1, 0, 0], sizes = [16, 16, 8], strides = [1, 1, 1]} : vector<22x16x8xf32> to vector<16x16x8xf32>
    %48 = vector.extract_strided_slice %45 {offsets = [2, 0, 0], sizes = [16, 16, 8], strides = [1, 1, 1]} : vector<22x16x8xf32> to vector<16x16x8xf32>
    %49 = vector.extract_strided_slice %45 {offsets = [3, 0, 0], sizes = [16, 16, 8], strides = [1, 1, 1]} : vector<22x16x8xf32> to vector<16x16x8xf32>
    %50 = vector.extract_strided_slice %45 {offsets = [4, 0, 0], sizes = [16, 16, 8], strides = [1, 1, 1]} : vector<22x16x8xf32> to vector<16x16x8xf32>
    %51 = vector.extract_strided_slice %45 {offsets = [5, 0, 0], sizes = [16, 16, 8], strides = [1, 1, 1]} : vector<22x16x8xf32> to vector<16x16x8xf32>
    %52 = vector.extract_strided_slice %45 {offsets = [6, 0, 0], sizes = [16, 16, 8], strides = [1, 1, 1]} : vector<22x16x8xf32> to vector<16x16x8xf32>
    %53 = tpu.concatenate %46, %47, %48, %49, %50, %51, %52 in 2 : vector<16x16x8xf32>, vector<16x16x8xf32>, vector<16x16x8xf32>, vector<16x16x8xf32>, vector<16x16x8xf32>, vector<16x16x8xf32>, vector<16x16x8xf32> -> vector<16x16x56xf32>
    %54 = vector.shape_cast %53 : vector<16x16x56xf32> to vector<256x56xf32>
    %c0_14 = arith.constant 0 : index
    %c0_15 = arith.constant 0 : index
    %55 = vector.load %arg6[%c0_14, %c0_15] : memref<56x8xf32, #tpu.memory_space<vmem>>, vector<56x8xf32>
    %cst_16 = arith.constant dense<0.000000e+00> : vector<256x8xf32>
    %56 = tpu.matmul %54, %55, %cst_16 {dimension_numbers = #tpu.dot_dimension_numbers<[1], [0], [0], [1], [0, 0, 1, 1], [], []>} : vector<256x56xf32>, vector<56x8xf32>, vector<256x8xf32> -> vector<256x8xf32>
    %c0_17 = arith.constant 0 : index
    %c0_18 = arith.constant 0 : index
    %57 = vector.load %arg7[%c0_17, %c0_18] : memref<1x8xf32, #tpu.memory_space<vmem>>, vector<1x8xf32>
    %58 = vector.broadcast %57 : vector<1x8xf32> to vector<256x8xf32>
    %59 = arith.addf %56, %58 : vector<256x8xf32>
    %cst_19 = arith.constant 0.000000e+00 : f32
    %60 = vector.broadcast %cst_19 : f32 to vector<256x8xf32>
    %61 = arith.maximumf %59, %60 : vector<256x8xf32>
    %62 = vector.shape_cast %61 : vector<256x8xf32> to vector<16x16x8xf32>
    %63 = vector.extract_strided_slice %14 {offsets = [0, 3, 0], sizes = [16, 1, 8], strides = [1, 1, 1]} : vector<16x16x8xf32> to vector<16x1x8xf32>
    %64 = vector.extract_strided_slice %14 {offsets = [0, 2, 0], sizes = [16, 1, 8], strides = [1, 1, 1]} : vector<16x16x8xf32> to vector<16x1x8xf32>
    %65 = vector.extract_strided_slice %14 {offsets = [0, 1, 0], sizes = [16, 1, 8], strides = [1, 1, 1]} : vector<16x16x8xf32> to vector<16x1x8xf32>
    %66 = vector.extract_strided_slice %14 {offsets = [0, 14, 0], sizes = [16, 1, 8], strides = [1, 1, 1]} : vector<16x16x8xf32> to vector<16x1x8xf32>
    %67 = vector.extract_strided_slice %14 {offsets = [0, 13, 0], sizes = [16, 1, 8], strides = [1, 1, 1]} : vector<16x16x8xf32> to vector<16x1x8xf32>
    %68 = vector.extract_strided_slice %14 {offsets = [0, 12, 0], sizes = [16, 1, 8], strides = [1, 1, 1]} : vector<16x16x8xf32> to vector<16x1x8xf32>
    %69 = tpu.concatenate %63, %64, %65, %14, %66, %67, %68 in 1 : vector<16x1x8xf32>, vector<16x1x8xf32>, vector<16x1x8xf32>, vector<16x16x8xf32>, vector<16x1x8xf32>, vector<16x1x8xf32>, vector<16x1x8xf32> -> vector<16x22x8xf32>
    %70 = vector.extract_strided_slice %69 {offsets = [0, 0, 0], sizes = [16, 16, 8], strides = [1, 1, 1]} : vector<16x22x8xf32> to vector<16x16x8xf32>
    %71 = vector.extract_strided_slice %69 {offsets = [0, 1, 0], sizes = [16, 16, 8], strides = [1, 1, 1]} : vector<16x22x8xf32> to vector<16x16x8xf32>
    %72 = vector.extract_strided_slice %69 {offsets = [0, 2, 0], sizes = [16, 16, 8], strides = [1, 1, 1]} : vector<16x22x8xf32> to vector<16x16x8xf32>
    %73 = vector.extract_strided_slice %69 {offsets = [0, 3, 0], sizes = [16, 16, 8], strides = [1, 1, 1]} : vector<16x22x8xf32> to vector<16x16x8xf32>
    %74 = vector.extract_strided_slice %69 {offsets = [0, 4, 0], sizes = [16, 16, 8], strides = [1, 1, 1]} : vector<16x22x8xf32> to vector<16x16x8xf32>
    %75 = vector.extract_strided_slice %69 {offsets = [0, 5, 0], sizes = [16, 16, 8], strides = [1, 1, 1]} : vector<16x22x8xf32> to vector<16x16x8xf32>
    %76 = vector.extract_strided_slice %69 {offsets = [0, 6, 0], sizes = [16, 16, 8], strides = [1, 1, 1]} : vector<16x22x8xf32> to vector<16x16x8xf32>
    %77 = tpu.concatenate %70, %71, %72, %73, %74, %75, %76 in 2 : vector<16x16x8xf32>, vector<16x16x8xf32>, vector<16x16x8xf32>, vector<16x16x8xf32>, vector<16x16x8xf32>, vector<16x16x8xf32>, vector<16x16x8xf32> -> vector<16x16x56xf32>
    %78 = vector.shape_cast %77 : vector<16x16x56xf32> to vector<256x56xf32>
    %c0_20 = arith.constant 0 : index
    %c0_21 = arith.constant 0 : index
    %79 = vector.load %arg8[%c0_20, %c0_21] : memref<56x8xf32, #tpu.memory_space<vmem>>, vector<56x8xf32>
    %cst_22 = arith.constant dense<0.000000e+00> : vector<256x8xf32>
    %80 = tpu.matmul %78, %79, %cst_22 {dimension_numbers = #tpu.dot_dimension_numbers<[1], [0], [0], [1], [0, 0, 1, 1], [], []>} : vector<256x56xf32>, vector<56x8xf32>, vector<256x8xf32> -> vector<256x8xf32>
    %c0_23 = arith.constant 0 : index
    %c0_24 = arith.constant 0 : index
    %81 = vector.load %arg9[%c0_23, %c0_24] : memref<1x8xf32, #tpu.memory_space<vmem>>, vector<1x8xf32>
    %82 = vector.broadcast %81 : vector<1x8xf32> to vector<256x8xf32>
    %83 = arith.addf %80, %82 : vector<256x8xf32>
    %cst_25 = arith.constant 0.000000e+00 : f32
    %84 = vector.broadcast %cst_25 : f32 to vector<256x8xf32>
    %85 = arith.maximumf %83, %84 : vector<256x8xf32>
    %86 = vector.shape_cast %85 : vector<256x8xf32> to vector<16x16x8xf32>
    %87 = vector.extract_strided_slice %86 {offsets = [3, 0, 0], sizes = [1, 16, 8], strides = [1, 1, 1]} : vector<16x16x8xf32> to vector<1x16x8xf32>
    %88 = vector.extract_strided_slice %86 {offsets = [2, 0, 0], sizes = [1, 16, 8], strides = [1, 1, 1]} : vector<16x16x8xf32> to vector<1x16x8xf32>
    %89 = vector.extract_strided_slice %86 {offsets = [1, 0, 0], sizes = [1, 16, 8], strides = [1, 1, 1]} : vector<16x16x8xf32> to vector<1x16x8xf32>
    %90 = vector.extract_strided_slice %86 {offsets = [14, 0, 0], sizes = [1, 16, 8], strides = [1, 1, 1]} : vector<16x16x8xf32> to vector<1x16x8xf32>
    %91 = vector.extract_strided_slice %86 {offsets = [13, 0, 0], sizes = [1, 16, 8], strides = [1, 1, 1]} : vector<16x16x8xf32> to vector<1x16x8xf32>
    %92 = vector.extract_strided_slice %86 {offsets = [12, 0, 0], sizes = [1, 16, 8], strides = [1, 1, 1]} : vector<16x16x8xf32> to vector<1x16x8xf32>
    %93 = tpu.concatenate %87, %88, %89, %86, %90, %91, %92 in 0 : vector<1x16x8xf32>, vector<1x16x8xf32>, vector<1x16x8xf32>, vector<16x16x8xf32>, vector<1x16x8xf32>, vector<1x16x8xf32>, vector<1x16x8xf32> -> vector<22x16x8xf32>
    %94 = vector.extract_strided_slice %93 {offsets = [0, 0, 0], sizes = [16, 16, 8], strides = [1, 1, 1]} : vector<22x16x8xf32> to vector<16x16x8xf32>
    %95 = vector.extract_strided_slice %93 {offsets = [1, 0, 0], sizes = [16, 16, 8], strides = [1, 1, 1]} : vector<22x16x8xf32> to vector<16x16x8xf32>
    %96 = vector.extract_strided_slice %93 {offsets = [2, 0, 0], sizes = [16, 16, 8], strides = [1, 1, 1]} : vector<22x16x8xf32> to vector<16x16x8xf32>
    %97 = vector.extract_strided_slice %93 {offsets = [3, 0, 0], sizes = [16, 16, 8], strides = [1, 1, 1]} : vector<22x16x8xf32> to vector<16x16x8xf32>
    %98 = vector.extract_strided_slice %93 {offsets = [4, 0, 0], sizes = [16, 16, 8], strides = [1, 1, 1]} : vector<22x16x8xf32> to vector<16x16x8xf32>
    %99 = vector.extract_strided_slice %93 {offsets = [5, 0, 0], sizes = [16, 16, 8], strides = [1, 1, 1]} : vector<22x16x8xf32> to vector<16x16x8xf32>
    %100 = vector.extract_strided_slice %93 {offsets = [6, 0, 0], sizes = [16, 16, 8], strides = [1, 1, 1]} : vector<22x16x8xf32> to vector<16x16x8xf32>
    %101 = tpu.concatenate %94, %95, %96, %97, %98, %99, %100 in 2 : vector<16x16x8xf32>, vector<16x16x8xf32>, vector<16x16x8xf32>, vector<16x16x8xf32>, vector<16x16x8xf32>, vector<16x16x8xf32>, vector<16x16x8xf32> -> vector<16x16x56xf32>
    %102 = vector.shape_cast %101 : vector<16x16x56xf32> to vector<256x56xf32>
    %c0_26 = arith.constant 0 : index
    %c0_27 = arith.constant 0 : index
    %103 = vector.load %arg10[%c0_26, %c0_27] : memref<56x8xf32, #tpu.memory_space<vmem>>, vector<56x8xf32>
    %cst_28 = arith.constant dense<0.000000e+00> : vector<256x8xf32>
    %104 = tpu.matmul %102, %103, %cst_28 {dimension_numbers = #tpu.dot_dimension_numbers<[1], [0], [0], [1], [0, 0, 1, 1], [], []>} : vector<256x56xf32>, vector<56x8xf32>, vector<256x8xf32> -> vector<256x8xf32>
    %c0_29 = arith.constant 0 : index
    %c0_30 = arith.constant 0 : index
    %105 = vector.load %arg11[%c0_29, %c0_30] : memref<1x8xf32, #tpu.memory_space<vmem>>, vector<1x8xf32>
    %106 = vector.broadcast %105 : vector<1x8xf32> to vector<256x8xf32>
    %107 = arith.addf %104, %106 : vector<256x8xf32>
    %cst_31 = arith.constant 0.000000e+00 : f32
    %108 = vector.broadcast %cst_31 : f32 to vector<256x8xf32>
    %109 = arith.maximumf %107, %108 : vector<256x8xf32>
    %110 = vector.shape_cast %109 : vector<256x8xf32> to vector<16x16x8xf32>
    %111 = vector.extract_strided_slice %110 {offsets = [0, 3, 0], sizes = [16, 1, 8], strides = [1, 1, 1]} : vector<16x16x8xf32> to vector<16x1x8xf32>
    %112 = vector.extract_strided_slice %110 {offsets = [0, 2, 0], sizes = [16, 1, 8], strides = [1, 1, 1]} : vector<16x16x8xf32> to vector<16x1x8xf32>
    %113 = vector.extract_strided_slice %110 {offsets = [0, 1, 0], sizes = [16, 1, 8], strides = [1, 1, 1]} : vector<16x16x8xf32> to vector<16x1x8xf32>
    %114 = vector.extract_strided_slice %110 {offsets = [0, 14, 0], sizes = [16, 1, 8], strides = [1, 1, 1]} : vector<16x16x8xf32> to vector<16x1x8xf32>
    %115 = vector.extract_strided_slice %110 {offsets = [0, 13, 0], sizes = [16, 1, 8], strides = [1, 1, 1]} : vector<16x16x8xf32> to vector<16x1x8xf32>
    %116 = vector.extract_strided_slice %110 {offsets = [0, 12, 0], sizes = [16, 1, 8], strides = [1, 1, 1]} : vector<16x16x8xf32> to vector<16x1x8xf32>
    %117 = tpu.concatenate %111, %112, %113, %110, %114, %115, %116 in 1 : vector<16x1x8xf32>, vector<16x1x8xf32>, vector<16x1x8xf32>, vector<16x16x8xf32>, vector<16x1x8xf32>, vector<16x1x8xf32>, vector<16x1x8xf32> -> vector<16x22x8xf32>
    %118 = vector.extract_strided_slice %117 {offsets = [0, 0, 0], sizes = [16, 16, 8], strides = [1, 1, 1]} : vector<16x22x8xf32> to vector<16x16x8xf32>
    %119 = vector.extract_strided_slice %117 {offsets = [0, 1, 0], sizes = [16, 16, 8], strides = [1, 1, 1]} : vector<16x22x8xf32> to vector<16x16x8xf32>
    %120 = vector.extract_strided_slice %117 {offsets = [0, 2, 0], sizes = [16, 16, 8], strides = [1, 1, 1]} : vector<16x22x8xf32> to vector<16x16x8xf32>
    %121 = vector.extract_strided_slice %117 {offsets = [0, 3, 0], sizes = [16, 16, 8], strides = [1, 1, 1]} : vector<16x22x8xf32> to vector<16x16x8xf32>
    %122 = vector.extract_strided_slice %117 {offsets = [0, 4, 0], sizes = [16, 16, 8], strides = [1, 1, 1]} : vector<16x22x8xf32> to vector<16x16x8xf32>
    %123 = vector.extract_strided_slice %117 {offsets = [0, 5, 0], sizes = [16, 16, 8], strides = [1, 1, 1]} : vector<16x22x8xf32> to vector<16x16x8xf32>
    %124 = vector.extract_strided_slice %117 {offsets = [0, 6, 0], sizes = [16, 16, 8], strides = [1, 1, 1]} : vector<16x22x8xf32> to vector<16x16x8xf32>
    %125 = tpu.concatenate %118, %119, %120, %121, %122, %123, %124 in 2 : vector<16x16x8xf32>, vector<16x16x8xf32>, vector<16x16x8xf32>, vector<16x16x8xf32>, vector<16x16x8xf32>, vector<16x16x8xf32>, vector<16x16x8xf32> -> vector<16x16x56xf32>
    %126 = vector.shape_cast %125 : vector<16x16x56xf32> to vector<256x56xf32>
    %c0_32 = arith.constant 0 : index
    %c0_33 = arith.constant 0 : index
    %127 = vector.load %arg12[%c0_32, %c0_33] : memref<56x8xf32, #tpu.memory_space<vmem>>, vector<56x8xf32>
    %cst_34 = arith.constant dense<0.000000e+00> : vector<256x8xf32>
    %128 = tpu.matmul %126, %127, %cst_34 {dimension_numbers = #tpu.dot_dimension_numbers<[1], [0], [0], [1], [0, 0, 1, 1], [], []>} : vector<256x56xf32>, vector<56x8xf32>, vector<256x8xf32> -> vector<256x8xf32>
    %c0_35 = arith.constant 0 : index
    %c0_36 = arith.constant 0 : index
    %129 = vector.load %arg13[%c0_35, %c0_36] : memref<1x8xf32, #tpu.memory_space<vmem>>, vector<1x8xf32>
    %130 = vector.broadcast %129 : vector<1x8xf32> to vector<256x8xf32>
    %131 = arith.addf %128, %130 : vector<256x8xf32>
    %cst_37 = arith.constant 0.000000e+00 : f32
    %132 = vector.broadcast %cst_37 : f32 to vector<256x8xf32>
    %133 = arith.maximumf %131, %132 : vector<256x8xf32>
    %134 = vector.shape_cast %133 : vector<256x8xf32> to vector<16x16x8xf32>
    %135 = vector.extract_strided_slice %134 {offsets = [3, 0, 0], sizes = [1, 16, 8], strides = [1, 1, 1]} : vector<16x16x8xf32> to vector<1x16x8xf32>
    %136 = vector.extract_strided_slice %134 {offsets = [2, 0, 0], sizes = [1, 16, 8], strides = [1, 1, 1]} : vector<16x16x8xf32> to vector<1x16x8xf32>
    %137 = vector.extract_strided_slice %134 {offsets = [1, 0, 0], sizes = [1, 16, 8], strides = [1, 1, 1]} : vector<16x16x8xf32> to vector<1x16x8xf32>
    %138 = vector.extract_strided_slice %134 {offsets = [14, 0, 0], sizes = [1, 16, 8], strides = [1, 1, 1]} : vector<16x16x8xf32> to vector<1x16x8xf32>
    %139 = vector.extract_strided_slice %134 {offsets = [13, 0, 0], sizes = [1, 16, 8], strides = [1, 1, 1]} : vector<16x16x8xf32> to vector<1x16x8xf32>
    %140 = vector.extract_strided_slice %134 {offsets = [12, 0, 0], sizes = [1, 16, 8], strides = [1, 1, 1]} : vector<16x16x8xf32> to vector<1x16x8xf32>
    %141 = tpu.concatenate %135, %136, %137, %134, %138, %139, %140 in 0 : vector<1x16x8xf32>, vector<1x16x8xf32>, vector<1x16x8xf32>, vector<16x16x8xf32>, vector<1x16x8xf32>, vector<1x16x8xf32>, vector<1x16x8xf32> -> vector<22x16x8xf32>
    %142 = vector.extract_strided_slice %141 {offsets = [0, 0, 0], sizes = [16, 16, 8], strides = [1, 1, 1]} : vector<22x16x8xf32> to vector<16x16x8xf32>
    %143 = vector.extract_strided_slice %141 {offsets = [1, 0, 0], sizes = [16, 16, 8], strides = [1, 1, 1]} : vector<22x16x8xf32> to vector<16x16x8xf32>
    %144 = vector.extract_strided_slice %141 {offsets = [2, 0, 0], sizes = [16, 16, 8], strides = [1, 1, 1]} : vector<22x16x8xf32> to vector<16x16x8xf32>
    %145 = vector.extract_strided_slice %141 {offsets = [3, 0, 0], sizes = [16, 16, 8], strides = [1, 1, 1]} : vector<22x16x8xf32> to vector<16x16x8xf32>
    %146 = vector.extract_strided_slice %141 {offsets = [4, 0, 0], sizes = [16, 16, 8], strides = [1, 1, 1]} : vector<22x16x8xf32> to vector<16x16x8xf32>
    %147 = vector.extract_strided_slice %141 {offsets = [5, 0, 0], sizes = [16, 16, 8], strides = [1, 1, 1]} : vector<22x16x8xf32> to vector<16x16x8xf32>
    %148 = vector.extract_strided_slice %141 {offsets = [6, 0, 0], sizes = [16, 16, 8], strides = [1, 1, 1]} : vector<22x16x8xf32> to vector<16x16x8xf32>
    %149 = tpu.concatenate %142, %143, %144, %145, %146, %147, %148 in 2 : vector<16x16x8xf32>, vector<16x16x8xf32>, vector<16x16x8xf32>, vector<16x16x8xf32>, vector<16x16x8xf32>, vector<16x16x8xf32>, vector<16x16x8xf32> -> vector<16x16x56xf32>
    %150 = vector.shape_cast %149 : vector<16x16x56xf32> to vector<256x56xf32>
    %c0_38 = arith.constant 0 : index
    %c0_39 = arith.constant 0 : index
    %151 = vector.load %arg14[%c0_38, %c0_39] : memref<56x8xf32, #tpu.memory_space<vmem>>, vector<56x8xf32>
    %cst_40 = arith.constant dense<0.000000e+00> : vector<256x8xf32>
    %152 = tpu.matmul %150, %151, %cst_40 {dimension_numbers = #tpu.dot_dimension_numbers<[1], [0], [0], [1], [0, 0, 1, 1], [], []>} : vector<256x56xf32>, vector<56x8xf32>, vector<256x8xf32> -> vector<256x8xf32>
    %c0_41 = arith.constant 0 : index
    %c0_42 = arith.constant 0 : index
    %153 = vector.load %arg15[%c0_41, %c0_42] : memref<1x8xf32, #tpu.memory_space<vmem>>, vector<1x8xf32>
    %154 = vector.broadcast %153 : vector<1x8xf32> to vector<256x8xf32>
    %155 = arith.addf %152, %154 : vector<256x8xf32>
    %cst_43 = arith.constant 0.000000e+00 : f32
    %156 = vector.broadcast %cst_43 : f32 to vector<256x8xf32>
    %157 = arith.maximumf %155, %156 : vector<256x8xf32>
    %158 = vector.shape_cast %157 : vector<256x8xf32> to vector<16x16x8xf32>
    %cst_44 = arith.constant 0xFF800000 : f32
    %159 = vector.broadcast %cst_44 : f32 to vector<1x16x4xf32>
    %160 = tpu.concatenate %159, %1, %159 in 0 : vector<1x16x4xf32>, vector<16x16x4xf32>, vector<1x16x4xf32> -> vector<18x16x4xf32>
    %cst_45 = arith.constant 0xFF800000 : f32
    %161 = vector.broadcast %cst_45 : f32 to vector<18x1x4xf32>
    %162 = tpu.concatenate %161, %160, %161 in 1 : vector<18x1x4xf32>, vector<18x16x4xf32>, vector<18x1x4xf32> -> vector<18x18x4xf32>
    %163 = vector.extract_strided_slice %162 {offsets = [0, 0, 0], sizes = [16, 16, 4], strides = [1, 1, 1]} : vector<18x18x4xf32> to vector<16x16x4xf32>
    %164 = vector.extract_strided_slice %162 {offsets = [0, 1, 0], sizes = [16, 16, 4], strides = [1, 1, 1]} : vector<18x18x4xf32> to vector<16x16x4xf32>
    %165 = arith.maximumf %163, %164 : vector<16x16x4xf32>
    %166 = vector.extract_strided_slice %162 {offsets = [0, 2, 0], sizes = [16, 16, 4], strides = [1, 1, 1]} : vector<18x18x4xf32> to vector<16x16x4xf32>
    %167 = arith.maximumf %165, %166 : vector<16x16x4xf32>
    %168 = vector.extract_strided_slice %162 {offsets = [1, 0, 0], sizes = [16, 16, 4], strides = [1, 1, 1]} : vector<18x18x4xf32> to vector<16x16x4xf32>
    %169 = arith.maximumf %167, %168 : vector<16x16x4xf32>
    %170 = vector.extract_strided_slice %162 {offsets = [1, 1, 0], sizes = [16, 16, 4], strides = [1, 1, 1]} : vector<18x18x4xf32> to vector<16x16x4xf32>
    %171 = arith.maximumf %169, %170 : vector<16x16x4xf32>
    %172 = vector.extract_strided_slice %162 {offsets = [1, 2, 0], sizes = [16, 16, 4], strides = [1, 1, 1]} : vector<18x18x4xf32> to vector<16x16x4xf32>
    %173 = arith.maximumf %171, %172 : vector<16x16x4xf32>
    %174 = vector.extract_strided_slice %162 {offsets = [2, 0, 0], sizes = [16, 16, 4], strides = [1, 1, 1]} : vector<18x18x4xf32> to vector<16x16x4xf32>
    %175 = arith.maximumf %173, %174 : vector<16x16x4xf32>
    %176 = vector.extract_strided_slice %162 {offsets = [2, 1, 0], sizes = [16, 16, 4], strides = [1, 1, 1]} : vector<18x18x4xf32> to vector<16x16x4xf32>
    %177 = arith.maximumf %175, %176 : vector<16x16x4xf32>
    %178 = vector.extract_strided_slice %162 {offsets = [2, 2, 0], sizes = [16, 16, 4], strides = [1, 1, 1]} : vector<18x18x4xf32> to vector<16x16x4xf32>
    %179 = arith.maximumf %177, %178 : vector<16x16x4xf32>
    %180 = vector.shape_cast %179 : vector<16x16x4xf32> to vector<256x4xf32>
    %c0_46 = arith.constant 0 : index
    %c0_47 = arith.constant 0 : index
    %181 = vector.load %arg16[%c0_46, %c0_47] : memref<4x8xf32, #tpu.memory_space<vmem>>, vector<4x8xf32>
    %cst_48 = arith.constant dense<0.000000e+00> : vector<256x8xf32>
    %182 = tpu.matmul %180, %181, %cst_48 {dimension_numbers = #tpu.dot_dimension_numbers<[1], [0], [0], [1], [0, 0, 1, 1], [], []>} : vector<256x4xf32>, vector<4x8xf32>, vector<256x8xf32> -> vector<256x8xf32>
    %c0_49 = arith.constant 0 : index
    %c0_50 = arith.constant 0 : index
    %183 = vector.load %arg17[%c0_49, %c0_50] : memref<1x8xf32, #tpu.memory_space<vmem>>, vector<1x8xf32>
    %184 = vector.broadcast %183 : vector<1x8xf32> to vector<256x8xf32>
    %185 = arith.addf %182, %184 : vector<256x8xf32>
    %cst_51 = arith.constant 0.000000e+00 : f32
    %186 = vector.broadcast %cst_51 : f32 to vector<256x8xf32>
    %187 = arith.maximumf %185, %186 : vector<256x8xf32>
    %188 = vector.shape_cast %62 : vector<16x16x8xf32> to vector<256x8xf32>
    %189 = vector.shape_cast %158 : vector<16x16x8xf32> to vector<256x8xf32>
    %190 = tpu.concatenate %10, %188, %189, %187 in 1 : vector<256x8xf32>, vector<256x8xf32>, vector<256x8xf32>, vector<256x8xf32> -> vector<256x32xf32>
    %191 = vector.shape_cast %190 : vector<256x32xf32> to vector<16x16x32xf32>
    %c0_52 = arith.constant 0 : index
    %c0_53 = arith.constant 0 : index
    %c0_54 = arith.constant 0 : index
    %c0_55 = arith.constant 0 : index
    %192 = vector.load %arg18[%c0_52, %c0_53, %c0_54, %c0_55] : memref<1x16x16x32xf32, #tpu.memory_space<vmem>>, vector<1x16x16x32xf32>
    %193 = vector.shape_cast %192 : vector<1x16x16x32xf32> to vector<16x16x32xf32>
    %194 = vector.shape_cast %191 : vector<16x16x32xf32> to vector<1x16x16x32xf32>
    tpu.vector_store %arg18[%c0_52, %c0_53, %c0_54, %c0_55], %194 {strides = array<i32>} : memref<1x16x16x32xf32, #tpu.memory_space<vmem>>, vector<1x16x16x32xf32>,
    return
  }
  func.func @transform_0(%arg0: i32) -> (i32, i32, i32, i32) {
    %c0_i32 = arith.constant 0 : i32
    %c0_i32_0 = arith.constant 0 : i32
    %c0_i32_1 = arith.constant 0 : i32
    %c0_i32_2 = arith.constant 0 : i32
    return %arg0, %c0_i32, %c0_i32_0, %c0_i32_1 : i32, i32, i32, i32
  }
  func.func @transform_1(%arg0: i32) -> (i32, i32) {
    %c0_i32 = arith.constant 0 : i32
    %c0_i32_0 = arith.constant 0 : i32
    %c0_i32_1 = arith.constant 0 : i32
    return %c0_i32, %c0_i32_0 : i32, i32
  }
  func.func @transform_2(%arg0: i32) -> (i32, i32) {
    %c0_i32 = arith.constant 0 : i32
    %c0_i32_0 = arith.constant 0 : i32
    %c0_i32_1 = arith.constant 0 : i32
    return %c0_i32, %c0_i32_0 : i32, i32
  }
  func.func @transform_3(%arg0: i32) -> (i32, i32) {
    %c0_i32 = arith.constant 0 : i32
    %c0_i32_0 = arith.constant 0 : i32
    %c0_i32_1 = arith.constant 0 : i32
    return %c0_i32, %c0_i32_0 : i32, i32
  }
  func.func @transform_4(%arg0: i32) -> (i32, i32) {
    %c0_i32 = arith.constant 0 : i32
    %c0_i32_0 = arith.constant 0 : i32
    %c0_i32_1 = arith.constant 0 : i32
    return %c0_i32, %c0_i32_0 : i32, i32
  }
  func.func @transform_5(%arg0: i32) -> (i32, i32) {
    %c0_i32 = arith.constant 0 : i32
    %c0_i32_0 = arith.constant 0 : i32
    %c0_i32_1 = arith.constant 0 : i32
    return %c0_i32, %c0_i32_0 : i32, i32
  }
  func.func @transform_6(%arg0: i32) -> (i32, i32) {
    %c0_i32 = arith.constant 0 : i32
    %c0_i32_0 = arith.constant 0 : i32
    %c0_i32_1 = arith.constant 0 : i32
    return %c0_i32, %c0_i32_0 : i32, i32
  }
  func.func @transform_7(%arg0: i32) -> (i32, i32) {
    %c0_i32 = arith.constant 0 : i32
    %c0_i32_0 = arith.constant 0 : i32
    %c0_i32_1 = arith.constant 0 : i32
    return %c0_i32, %c0_i32_0 : i32, i32
  }
  func.func @transform_8(%arg0: i32) -> (i32, i32) {
    %c0_i32 = arith.constant 0 : i32
    %c0_i32_0 = arith.constant 0 : i32
    %c0_i32_1 = arith.constant 0 : i32
    return %c0_i32, %c0_i32_0 : i32, i32
  }
  func.func @transform_9(%arg0: i32) -> (i32, i32) {
    %c0_i32 = arith.constant 0 : i32
    %c0_i32_0 = arith.constant 0 : i32
    %c0_i32_1 = arith.constant 0 : i32
    return %c0_i32, %c0_i32_0 : i32, i32
  }
  func.func @transform_10(%arg0: i32) -> (i32, i32) {
    %c0_i32 = arith.constant 0 : i32
    %c0_i32_0 = arith.constant 0 : i32
    %c0_i32_1 = arith.constant 0 : i32
    return %c0_i32, %c0_i32_0 : i32, i32
  }
  func.func @transform_11(%arg0: i32) -> (i32, i32) {
    %c0_i32 = arith.constant 0 : i32
    %c0_i32_0 = arith.constant 0 : i32
    %c0_i32_1 = arith.constant 0 : i32
    return %c0_i32, %c0_i32_0 : i32, i32
  }
  func.func @transform_12(%arg0: i32) -> (i32, i32) {
    %c0_i32 = arith.constant 0 : i32
    %c0_i32_0 = arith.constant 0 : i32
    %c0_i32_1 = arith.constant 0 : i32
    return %c0_i32, %c0_i32_0 : i32, i32
  }
  func.func @transform_13(%arg0: i32) -> (i32, i32) {
    %c0_i32 = arith.constant 0 : i32
    %c0_i32_0 = arith.constant 0 : i32
    %c0_i32_1 = arith.constant 0 : i32
    return %c0_i32, %c0_i32_0 : i32, i32
  }
  func.func @transform_14(%arg0: i32) -> (i32, i32) {
    %c0_i32 = arith.constant 0 : i32
    %c0_i32_0 = arith.constant 0 : i32
    %c0_i32_1 = arith.constant 0 : i32
    return %c0_i32, %c0_i32_0 : i32, i32
  }
  func.func @transform_15(%arg0: i32) -> (i32, i32) {
    %c0_i32 = arith.constant 0 : i32
    %c0_i32_0 = arith.constant 0 : i32
    %c0_i32_1 = arith.constant 0 : i32
    return %c0_i32, %c0_i32_0 : i32, i32
  }
  func.func @transform_16(%arg0: i32) -> (i32, i32) {
    %c0_i32 = arith.constant 0 : i32
    %c0_i32_0 = arith.constant 0 : i32
    %c0_i32_1 = arith.constant 0 : i32
    return %c0_i32, %c0_i32_0 : i32, i32
  }
  func.func @transform_17(%arg0: i32) -> (i32, i32, i32, i32) {
    %c0_i32 = arith.constant 0 : i32
    %c0_i32_0 = arith.constant 0 : i32
    %c0_i32_1 = arith.constant 0 : i32
    %c0_i32_2 = arith.constant 0 : i32
    return %arg0, %c0_i32, %c0_i32_0, %c0_i32_1 : i32, i32, i32, i32
  }
}

</mosaic_0001>

<llo_original>
// kernel: factor_inception_b_forward.1
$region0: #{factor_inception_b_forward.1}
  #allocation0 [shape = 'u32[]', space=smem, size = 0x4, offset = 0x4, fixed_abs, tag = 'smem constant byte address 0x4 - core index']
  #allocation1 [shape = 'u32[144,128]{1,0:T(1,128)}', space=vmem, size = 0x12000, scoped, tag = 'internal scratch']
  %s0 = inlined_call_operand.vmem [shape: f32[2,16,16,4], index: 0, kind: input, shape index: {}]
  %s1 = inlined_call_operand.vmem [shape: f32[4,24], index: 1, kind: input, shape index: {}]
  %s2 = inlined_call_operand.vmem [shape: f32[1,24], index: 2, kind: input, shape index: {}]
  %s3 = inlined_call_operand.vmem [shape: f32[56,8], index: 3, kind: input, shape index: {}]
  %s4 = inlined_call_operand.vmem [shape: f32[1,8], index: 4, kind: input, shape index: {}]
  %s5 = inlined_call_operand.vmem [shape: f32[56,8], index: 5, kind: input, shape index: {}]
  %s6 = inlined_call_operand.vmem [shape: f32[1,8], index: 6, kind: input, shape index: {}]
  %s7 = inlined_call_operand.vmem [shape: f32[56,8], index: 7, kind: input, shape index: {}]
  %s8 = inlined_call_operand.vmem [shape: f32[1,8], index: 8, kind: input, shape index: {}]
  %s9 = inlined_call_operand.vmem [shape: f32[56,8], index: 9, kind: input, shape index: {}]
  %s10 = inlined_call_operand.vmem [shape: f32[1,8], index: 10, kind: input, shape index: {}]
  %s11 = inlined_call_operand.vmem [shape: f32[56,8], index: 11, kind: input, shape index: {}]
  %s12 = inlined_call_operand.vmem [shape: f32[1,8], index: 12, kind: input, shape index: {}]
  %s13 = inlined_call_operand.vmem [shape: f32[56,8], index: 13, kind: input, shape index: {}]
  %s14 = inlined_call_operand.vmem [shape: f32[1,8], index: 14, kind: input, shape index: {}]
  %s15 = inlined_call_operand.vmem [shape: f32[4,8], index: 15, kind: input, shape index: {}]
  %s16 = inlined_call_operand.vmem [shape: f32[1,8], index: 16, kind: input, shape index: {}]
  %s17 = inlined_call_operand.hbm [shape: f32[2,16,16,32], index: 17, kind: output, shape index: {}]
  %s18 = sld [smem:[#allocation0]]
  $region101: #{factor_inception_b_forward.1} parent=0
    _
  %s20 = ssub.s32 1, %s18
  %s21 = scalar_select 0, %s20, %s18
  $region1: #{factor_inception_b_forward.1} parent=0
    #allocation2 [shape = 'u8[262144]{0}', space=vmem, size = 0x40000, scoped, tag = 'output window, operand 0']
    #allocation3 [shape = 's32[2]{0}', space=sflag, size = 0x8, scoped, tag = 'scoped memory for factor_inception_b_forward.1']
    %22 = vsyncpa [#allocation3], 0
    %s23 = scalar_lea.sflag [#allocation3], 1
    %24 = vsyncpa %s23, 0
    loop: start=0, step=1, limit=4
    $region2: #{factor_inception_b_forward.1} parent=1 // loop_pre_header
      _
    $region3: #{factor_inception_b_forward.1} parent=1 // loop_header
      %s26 = sphi 0, %s30
      %p27 = scmp.ge.s32.totalorder %s26, 4
      %s36 = sphi 0, %s38
      %s39 = sphi 0, %s36
      %s40 = sphi 0, %s39
      %s56 = sphi 0, %s40
      %s60 = sphi 0, %s60
      %s62 = sphi 0, %s60
      %s63 = sphi 0, %s62
      %s77 = sphi 0, %s63
      %s81 = sphi 0, %s81
      %s83 = sphi 0, %s81
      %s84 = sphi 0, %s83
      %s98 = sphi 0, %s84
      %s102 = sphi 0, %s102
      %s104 = sphi 0, %s102
      %s105 = sphi 0, %s104
      %s119 = sphi 0, %s105
      %s123 = sphi 0, %s123
      %s125 = sphi 0, %s123
      %s126 = sphi 0, %s125
      %s140 = sphi 0, %s126
      %s144 = sphi 0, %s144
      %s146 = sphi 0, %s144
      %s147 = sphi 0, %s146
      %s161 = sphi 0, %s147
      %s165 = sphi 0, %s165
      %s167 = sphi 0, %s165
      %s168 = sphi 0, %s167
      %s182 = sphi 0, %s168
      %s186 = sphi 0, %s186
      %s188 = sphi 0, %s186
      %s189 = sphi 0, %s188
      %s203 = sphi 0, %s189
      %s207 = sphi 0, %s207
      %s209 = sphi 0, %s207
      %s210 = sphi 0, %s209
      %s224 = sphi 0, %s210
      %s228 = sphi 0, %s228
      %s230 = sphi 0, %s228
      %s231 = sphi 0, %s230
      %s245 = sphi 0, %s231
      %s249 = sphi 0, %s249
      %s251 = sphi 0, %s249
      %s252 = sphi 0, %s251
      %s266 = sphi 0, %s252
      %s270 = sphi 0, %s270
      %s272 = sphi 0, %s270
      %s273 = sphi 0, %s272
      %s287 = sphi 0, %s273
      %s291 = sphi 0, %s291
      %s293 = sphi 0, %s291
      %s294 = sphi 0, %s293
      %s308 = sphi 0, %s294
      %s312 = sphi 0, %s312
      %s314 = sphi 0, %s312
      %s315 = sphi 0, %s314
      %s329 = sphi 0, %s315
      %s333 = sphi 0, %s333
      %s335 = sphi 0, %s333
      %s336 = sphi 0, %s335
      %s350 = sphi 0, %s336
      %s354 = sphi 0, %s354
      %s356 = sphi 0, %s354
      %s357 = sphi 0, %s356
      %s371 = sphi 0, %s357
      %s375 = sphi 0, %s375
      %s377 = sphi 0, %s375
      %s378 = sphi 0, %s377
      %s392 = sphi 0, %s378
      %s398 = sphi 0, %s400
      %s401 = sphi 0, %s398
      %s402 = sphi 0, %s401
      %s418 = sphi 0, %s402
    $region4: #{factor_inception_b_forward.1} parent=1 // loop_header_branch
      %29 = sbr.rel (%p27) target = $region8
    $region5: #{factor_inception_b_forward.1} parent=1 // loop_body
      %s31 = ssub.s32 %s26, 1
      %s32 = ssub.s32 %s26, 2
      %s33 = sadd.s32 %s26, 1
      %s34 = ssub.s32 %s26, %s33
      %p35 = scmp.eq.s32.totalorder %s34, 0
      %s37 = sadd.s32 %s36, 1
      %s38 = scalar_select %p35, %s36, %s37
      %p41 = pneg %p35
      %p42 = scmp.eq.s32.totalorder %s26, 1
      %p43 = por %p41, %p42
      %p44 = scmp.ne.s32.totalorder %s36, %s39
      %p45 = scmp.eq.s32.totalorder %s26, 0
      %p46 = por %p44, %p45
      %p47 = scmp.ne.s32.totalorder %s36, %s39
      %p48 = scmp.eq.s32.totalorder %s31, 1
      %p49 = por %p47, %p48
      %p50 = scmp.ne.s32.totalorder %s39, %s40
      %p51 = scmp.eq.s32.totalorder %s31, 0
      %p52 = por %p50, %p51
      %p53 = scmp.ne.s32.totalorder %s39, %s40
      %p54 = scmp.eq.s32.totalorder %s32, 1
      %p55 = por %p53, %p54
      %p57 = scmp.ne.s32.totalorder %s40, %s56
      %p58 = scmp.eq.s32.totalorder %s32, 0
      %p59 = por %p57, %p58
      %s61 = sadd.s32 %s60, 1
      %p64 = scmp.eq.s32.totalorder %s26, 1
      %p65 = scmp.ne.s32.totalorder %s60, %s62
      %p66 = scmp.eq.s32.totalorder %s26, 0
      %p67 = por %p65, %p66
      %p68 = scmp.ne.s32.totalorder %s60, %s62
      %p69 = scmp.eq.s32.totalorder %s31, 1
      %p70 = por %p68, %p69
      %p71 = scmp.ne.s32.totalorder %s62, %s63
      %p72 = scmp.eq.s32.totalorder %s31, 0
      %p73 = por %p71, %p72
      %p74 = scmp.ne.s32.totalorder %s62, %s63
      %p75 = scmp.eq.s32.totalorder %s32, 1
      %p76 = por %p74, %p75
      %p78 = scmp.ne.s32.totalorder %s63, %s77
      %p79 = scmp.eq.s32.totalorder %s32, 0
      %p80 = por %p78, %p79
      %s82 = sadd.s32 %s81, 1
      %p85 = scmp.eq.s32.totalorder %s26, 1
      %p86 = scmp.ne.s32.totalorder %s81, %s83
      %p87 = scmp.eq.s32.totalorder %s26, 0
      %p88 = por %p86, %p87
      %p89 = scmp.ne.s32.totalorder %s81, %s83
      %p90 = scmp.eq.s32.totalorder %s31, 1
      %p91 = por %p89, %p90
      %p92 = scmp.ne.s32.totalorder %s83, %s84
      %p93 = scmp.eq.s32.totalorder %s31, 0
      %p94 = por %p92, %p93
      %p95 = scmp.ne.s32.totalorder %s83, %s84
      %p96 = scmp.eq.s32.totalorder %s32, 1
      %p97 = por %p95, %p96
      %p99 = scmp.ne.s32.totalorder %s84, %s98
      %p100 = scmp.eq.s32.totalorder %s32, 0
      %p101 = por %p99, %p100
      %s103 = sadd.s32 %s102, 1
      %p106 = scmp.eq.s32.totalorder %s26, 1
      %p107 = scmp.ne.s32.totalorder %s102, %s104
      %p108 = scmp.eq.s32.totalorder %s26, 0
      %p109 = por %p107, %p108
      %p110 = scmp.ne.s32.totalorder %s102, %s104
      %p111 = scmp.eq.s32.totalorder %s31, 1
      %p112 = por %p110, %p111
      %p113 = scmp.ne.s32.totalorder %s104, %s105
      %p114 = scmp.eq.s32.totalorder %s31, 0
      %p115 = por %p113, %p114
      %p116 = scmp.ne.s32.totalorder %s104, %s105
      %p117 = scmp.eq.s32.totalorder %s32, 1
      %p118 = por %p116, %p117
      %p120 = scmp.ne.s32.totalorder %s105, %s119
      %p121 = scmp.eq.s32.totalorder %s32, 0
      %p122 = por %p120, %p121
      %s124 = sadd.s32 %s123, 1
      %p127 = scmp.eq.s32.totalorder %s26, 1
      %p128 = scmp.ne.s32.totalorder %s123, %s125
      %p129 = scmp.eq.s32.totalorder %s26, 0
      %p130 = por %p128, %p129
      %p131 = scmp.ne.s32.totalorder %s123, %s125
      %p132 = scmp.eq.s32.totalorder %s31, 1
      %p133 = por %p131, %p132
      %p134 = scmp.ne.s32.totalorder %s125, %s126
      %p135 = scmp.eq.s32.totalorder %s31, 0
      %p136 = por %p134, %p135
      %p137 = scmp.ne.s32.totalorder %s125, %s126
      %p138 = scmp.eq.s32.totalorder %s32, 1
      %p139 = por %p137, %p138
      %p141 = scmp.ne.s32.totalorder %s126, %s140
      %p142 = scmp.eq.s32.totalorder %s32, 0
      %p143 = por %p141, %p142
      %s145 = sadd.s32 %s144, 1
      %p148 = scmp.eq.s32.totalorder %s26, 1
      %p149 = scmp.ne.s32.totalorder %s144, %s146
      %p150 = scmp.eq.s32.totalorder %s26, 0
      %p151 = por %p149, %p150
      %p152 = scmp.ne.s32.totalorder %s144, %s146
      %p153 = scmp.eq.s32.totalorder %s31, 1
      %p154 = por %p152, %p153
      %p155 = scmp.ne.s32.totalorder %s146, %s147
      %p156 = scmp.eq.s32.totalorder %s31, 0
      %p157 = por %p155, %p156
      %p158 = scmp.ne.s32.totalorder %s146, %s147
      %p159 = scmp.eq.s32.totalorder %s32, 1
      %p160 = por %p158, %p159
      %p162 = scmp.ne.s32.totalorder %s147, %s161
      %p163 = scmp.eq.s32.totalorder %s32, 0
      %p164 = por %p162, %p163
      %s166 = sadd.s32 %s165, 1
      %p169 = scmp.eq.s32.totalorder %s26, 1
      %p170 = scmp.ne.s32.totalorder %s165, %s167
      %p171 = scmp.eq.s32.totalorder %s26, 0
      %p172 = por %p170, %p171
      %p173 = scmp.ne.s32.totalorder %s165, %s167
      %p174 = scmp.eq.s32.totalorder %s31, 1
      %p175 = por %p173, %p174
      %p176 = scmp.ne.s32.totalorder %s167, %s168
      %p177 = scmp.eq.s32.totalorder %s31, 0
      %p178 = por %p176, %p177
      %p179 = scmp.ne.s32.totalorder %s167, %s168
      %p180 = scmp.eq.s32.totalorder %s32, 1
      %p181 = por %p179, %p180
      %p183 = scmp.ne.s32.totalorder %s168, %s182
      %p184 = scmp.eq.s32.totalorder %s32, 0
      %p185 = por %p183, %p184
      %s187 = sadd.s32 %s186, 1
      %p190 = scmp.eq.s32.totalorder %s26, 1
      %p191 = scmp.ne.s32.totalorder %s186, %s188
      %p192 = scmp.eq.s32.totalorder %s26, 0
      %p193 = por %p191, %p192
      %p194 = scmp.ne.s32.totalorder %s186, %s188
      %p195 = scmp.eq.s32.totalorder %s31, 1
      %p196 = por %p194, %p195
      %p197 = scmp.ne.s32.totalorder %s188, %s189
      %p198 = scmp.eq.s32.totalorder %s31, 0
      %p199 = por %p197, %p198
      %p200 = scmp.ne.s32.totalorder %s188, %s189
      %p201 = scmp.eq.s32.totalorder %s32, 1
      %p202 = por %p200, %p201
      %p204 = scmp.ne.s32.totalorder %s189, %s203
      %p205 = scmp.eq.s32.totalorder %s32, 0
      %p206 = por %p204, %p205
      %s208 = sadd.s32 %s207, 1
      %p211 = scmp.eq.s32.totalorder %s26, 1
      %p212 = scmp.ne.s32.totalorder %s207, %s209
      %p213 = scmp.eq.s32.totalorder %s26, 0
      %p214 = por %p212, %p213
      %p215 = scmp.ne.s32.totalorder %s207, %s209
      %p216 = scmp.eq.s32.totalorder %s31, 1
      %p217 = por %p215, %p216
      %p218 = scmp.ne.s32.totalorder %s209, %s210
      %p219 = scmp.eq.s32.totalorder %s31, 0
      %p220 = por %p218, %p219
      %p221 = scmp.ne.s32.totalorder %s209, %s210
      %p222 = scmp.eq.s32.totalorder %s32, 1
      %p223 = por %p221, %p222
      %p225 = scmp.ne.s32.totalorder %s210, %s224
      %p226 = scmp.eq.s32.totalorder %s32, 0
      %p227 = por %p225, %p226
      %s229 = sadd.s32 %s228, 1
      %p232 = scmp.eq.s32.totalorder %s26, 1
      %p233 = scmp.ne.s32.totalorder %s228, %s230
      %p234 = scmp.eq.s32.totalorder %s26, 0
      %p235 = por %p233, %p234
      %p236 = scmp.ne.s32.totalorder %s228, %s230
      %p237 = scmp.eq.s32.totalorder %s31, 1
      %p238 = por %p236, %p237
      %p239 = scmp.ne.s32.totalorder %s230, %s231
      %p240 = scmp.eq.s32.totalorder %s31, 0
      %p241 = por %p239, %p240
      %p242 = scmp.ne.s32.totalorder %s230, %s231
      %p243 = scmp.eq.s32.totalorder %s32, 1
      %p244 = por %p242, %p243
      %p246 = scmp.ne.s32.totalorder %s231, %s245
      %p247 = scmp.eq.s32.totalorder %s32, 0
      %p248 = por %p246, %p247
      %s250 = sadd.s32 %s249, 1
      %p253 = scmp.eq.s32.totalorder %s26, 1
      %p254 = scmp.ne.s32.totalorder %s249, %s251
      %p255 = scmp.eq.s32.totalorder %s26, 0
      %p256 = por %p254, %p255
      %p257 = scmp.ne.s32.totalorder %s249, %s251
      %p258 = scmp.eq.s32.totalorder %s31, 1
      %p259 = por %p257, %p258
      %p260 = scmp.ne.s32.totalorder %s251, %s252
      %p261 = scmp.eq.s32.totalorder %s31, 0
      %p262 = por %p260, %p261
      %p263 = scmp.ne.s32.totalorder %s251, %s252
      %p264 = scmp.eq.s32.totalorder %s32, 1
      %p265 = por %p263, %p264
      %p267 = scmp.ne.s32.totalorder %s252, %s266
      %p268 = scmp.eq.s32.totalorder %s32, 0
      %p269 = por %p267, %p268
      %s271 = sadd.s32 %s270, 1
      %p274 = scmp.eq.s32.totalorder %s26, 1
      %p275 = scmp.ne.s32.totalorder %s270, %s272
      %p276 = scmp.eq.s32.totalorder %s26, 0
      %p277 = por %p275, %p276
      %p278 = scmp.ne.s32.totalorder %s270, %s272
      %p279 = scmp.eq.s32.totalorder %s31, 1
      %p280 = por %p278, %p279
      %p281 = scmp.ne.s32.totalorder %s272, %s273
      %p282 = scmp.eq.s32.totalorder %s31, 0
      %p283 = por %p281, %p282
      %p284 = scmp.ne.s32.totalorder %s272, %s273
      %p285 = scmp.eq.s32.totalorder %s32, 1
      %p286 = por %p284, %p285
      %p288 = scmp.ne.s32.totalorder %s273, %s287
      %p289 = scmp.eq.s32.totalorder %s32, 0
      %p290 = por %p288, %p289
      %s292 = sadd.s32 %s291, 1
      %p295 = scmp.eq.s32.totalorder %s26, 1
      %p296 = scmp.ne.s32.totalorder %s291, %s293
      %p297 = scmp.eq.s32.totalorder %s26, 0
      %p298 = por %p296, %p297
      %p299 = scmp.ne.s32.totalorder %s291, %s293
      %p300 = scmp.eq.s32.totalorder %s31, 1
      %p301 = por %p299, %p300
      %p302 = scmp.ne.s32.totalorder %s293, %s294
      %p303 = scmp.eq.s32.totalorder %s31, 0
      %p304 = por %p302, %p303
      %p305 = scmp.ne.s32.totalorder %s293, %s294
      %p306 = scmp.eq.s32.totalorder %s32, 1
      %p307 = por %p305, %p306
      %p309 = scmp.ne.s32.totalorder %s294, %s308
      %p310 = scmp.eq.s32.totalorder %s32, 0
      %p311 = por %p309, %p310
      %s313 = sadd.s32 %s312, 1
      %p316 = scmp.eq.s32.totalorder %s26, 1
      %p317 = scmp.ne.s32.totalorder %s312, %s314
      %p318 = scmp.eq.s32.totalorder %s26, 0
      %p319 = por %p317, %p318
      %p320 = scmp.ne.s32.totalorder %s312, %s314
      %p321 = scmp.eq.s32.totalorder %s31, 1
      %p322 = por %p320, %p321
      %p323 = scmp.ne.s32.totalorder %s314, %s315
      %p324 = scmp.eq.s32.totalorder %s31, 0
      %p325 = por %p323, %p324
      %p326 = scmp.ne.s32.totalorder %s314, %s315
      %p327 = scmp.eq.s32.totalorder %s32, 1
      %p328 = por %p326, %p327
      %p330 = scmp.ne.s32.totalorder %s315, %s329
      %p331 = scmp.eq.s32.totalorder %s32, 0
      %p332 = por %p330, %p331
      %s334 = sadd.s32 %s333, 1
      %p337 = scmp.eq.s32.totalorder %s26, 1
      %p338 = scmp.ne.s32.totalorder %s333, %s335
      %p339 = scmp.eq.s32.totalorder %s26, 0
      %p340 = por %p338, %p339
      %p341 = scmp.ne.s32.totalorder %s333, %s335
      %p342 = scmp.eq.s32.totalorder %s31, 1
      %p343 = por %p341, %p342
      %p344 = scmp.ne.s32.totalorder %s335, %s336
      %p345 = scmp.eq.s32.totalorder %s31, 0
      %p346 = por %p344, %p345
      %p347 = scmp.ne.s32.totalorder %s335, %s336
      %p348 = scmp.eq.s32.totalorder %s32, 1
      %p349 = por %p347, %p348
      %p351 = scmp.ne.s32.totalorder %s336, %s350
      %p352 = scmp.eq.s32.totalorder %s32, 0
      %p353 = por %p351, %p352
      %s355 = sadd.s32 %s354, 1
      %p358 = scmp.eq.s32.totalorder %s26, 1
      %p359 = scmp.ne.s32.totalorder %s354, %s356
      %p360 = scmp.eq.s32.totalorder %s26, 0
      %p361 = por %p359, %p360
      %p362 = scmp.ne.s32.totalorder %s354, %s356
      %p363 = scmp.eq.s32.totalorder %s31, 1
      %p364 = por %p362, %p363
      %p365 = scmp.ne.s32.totalorder %s356, %s357
      %p366 = scmp.eq.s32.totalorder %s31, 0
      %p367 = por %p365, %p366
      %p368 = scmp.ne.s32.totalorder %s356, %s357
      %p369 = scmp.eq.s32.totalorder %s32, 1
      %p370 = por %p368, %p369
      %p372 = scmp.ne.s32.totalorder %s357, %s371
      %p373 = scmp.eq.s32.totalorder %s32, 0
      %p374 = por %p372, %p373
      %s376 = sadd.s32 %s375, 1
      %p379 = scmp.eq.s32.totalorder %s26, 1
      %p380 = scmp.ne.s32.totalorder %s375, %s377
      %p381 = scmp.eq.s32.totalorder %s26, 0
      %p382 = por %p380, %p381
      %p383 = scmp.ne.s32.totalorder %s375, %s377
      %p384 = scmp.eq.s32.totalorder %s31, 1
      %p385 = por %p383, %p384
      %p386 = scmp.ne.s32.totalorder %s377, %s378
      %p387 = scmp.eq.s32.totalorder %s31, 0
      %p388 = por %p386, %p387
      %p389 = scmp.ne.s32.totalorder %s377, %s378
      %p390 = scmp.eq.s32.totalorder %s32, 1
      %p391 = por %p389, %p390
      %p393 = scmp.ne.s32.totalorder %s378, %s392
      %p394 = scmp.eq.s32.totalorder %s32, 0
      %p395 = por %p393, %p394
      %s396 = ssub.s32 %s26, %s33
      %p397 = scmp.eq.s32.totalorder %s396, 0
      %s399 = sadd.s32 %s398, 1
      %s400 = scalar_select %p397, %s398, %s399
      %p403 = pneg %p397
      %p404 = scmp.eq.s32.totalorder %s26, 1
      %p405 = por %p403, %p404
      %p406 = scmp.ne.s32.totalorder %s398, %s401
      %p407 = scmp.eq.s32.totalorder %s26, 0
      %p408 = por %p406, %p407
      %p409 = scmp.ne.s32.totalorder %s398, %s401
      %p410 = scmp.eq.s32.totalorder %s31, 1
      %p411 = por %p409, %p410
      %p412 = scmp.ne.s32.totalorder %s401, %s402
      %p413 = scmp.eq.s32.totalorder %s31, 0
      %p414 = por %p412, %p413
      %p415 = scmp.ne.s32.totalorder %s401, %s402
      %p416 = scmp.eq.s32.totalorder %s32, 1
      %p417 = por %p415, %p416
      %p419 = scmp.ne.s32.totalorder %s402, %s418
      %p420 = scmp.eq.s32.totalorder %s32, 0
      %p421 = por %p419, %p420
      %p422 = scmp.le.s32.totalorder 1, %s26
      %p423 = scmp.lt.s32.totalorder %s26, 3
      %p424 = pnand %p422, %p423
      %p425 = pneg %p424
      // Predicated region
      $region9: #{factor_inception_b_forward.1} parent=5 // pred_check
        _
      $region10: #{factor_inception_b_forward.1} parent=5 // pred_check_branch
        %427 = sbr.rel (%p424) target = $region12
      $region11: #{factor_inception_b_forward.1} parent=5 // pred_region
        %s428 = ssub.s32 %s26, 1
        // Predicated region
        $region13: #{factor_inception_b_forward.1} parent=11 // pred_check
          %p429 = pneg %p73
        $region14: #{factor_inception_b_forward.1} parent=11 // pred_check_branch
          %431 = sbr.rel (%p429) target = $region16
        $region15: #{factor_inception_b_forward.1} parent=11 // pred_region
          _
        $region16: #{factor_inception_b_forward.1} parent=11 // pred_fallthru
          _
        // Predicated region
        $region17: #{factor_inception_b_forward.1} parent=11 // pred_check
          %p432 = pneg %p94
        $region18: #{factor_inception_b_forward.1} parent=11 // pred_check_branch
          %434 = sbr.rel (%p432) target = $region20
        $region19: #{factor_inception_b_forward.1} parent=11 // pred_region
          _
        $region20: #{factor_inception_b_forward.1} parent=11 // pred_fallthru
          _
        // Predicated region
        $region21: #{factor_inception_b_forward.1} parent=11 // pred_check
          %p435 = pneg %p115
        $region22: #{factor_inception_b_forward.1} parent=11 // pred_check_branch
          %437 = sbr.rel (%p435) target = $region24
        $region23: #{factor_inception_b_forward.1} parent=11 // pred_region
          _
        $region24: #{factor_inception_b_forward.1} parent=11 // pred_fallthru
          _
        // Predicated region
        $region25: #{factor_inception_b_forward.1} parent=11 // pred_check
          %p438 = pneg %p136
        $region26: #{factor_inception_b_forward.1} parent=11 // pred_check_branch
          %440 = sbr.rel (%p438) target = $region28
        $region27: #{factor_inception_b_forward.1} parent=11 // pred_region
          _
        $region28: #{factor_inception_b_forward.1} parent=11 // pred_fallthru
          _
        // Predicated region
        $region29: #{factor_inception_b_forward.1} parent=11 // pred_check
          %p441 = pneg %p157
        $region30: #{factor_inception_b_forward.1} parent=11 // pred_check_branch
          %443 = sbr.rel (%p441) target = $region32
        $region31: #{factor_inception_b_forward.1} parent=11 // pred_region
          _
        $region32: #{factor_inception_b_forward.1} parent=11 // pred_fallthru
          _
        // Predicated region
        $region33: #{factor_inception_b_forward.1} parent=11 // pred_check
          %p444 = pneg %p178
        $region34: #{factor_inception_b_forward.1} parent=11 // pred_check_branch
          %446 = sbr.rel (%p444) target = $region36
        $region35: #{factor_inception_b_forward.1} parent=11 // pred_region
          _
        $region36: #{factor_inception_b_forward.1} parent=11 // pred_fallthru
          _
        // Predicated region
        $region37: #{factor_inception_b_forward.1} parent=11 // pred_check
          %p447 = pneg %p199
        $region38: #{factor_inception_b_forward.1} parent=11 // pred_check_branch
          %449 = sbr.rel (%p447) target = $region40
        $region39: #{factor_inception_b_forward.1} parent=11 // pred_region
          _
        $region40: #{factor_inception_b_forward.1} parent=11 // pred_fallthru
          _
        // Predicated region
        $region41: #{factor_inception_b_forward.1} parent=11 // pred_check
          %p450 = pneg %p220
        $region42: #{factor_inception_b_forward.1} parent=11 // pred_check_branch
          %452 = sbr.rel (%p450) target = $region44
        $region43: #{factor_inception_b_forward.1} parent=11 // pred_region
          _
        $region44: #{factor_inception_b_forward.1} parent=11 // pred_fallthru
          _
        // Predicated region
        $region45: #{factor_inception_b_forward.1} parent=11 // pred_check
          %p453 = pneg %p241
        $region46: #{factor_inception_b_forward.1} parent=11 // pred_check_branch
          %455 = sbr.rel (%p453) target = $region48
        $region47: #{factor_inception_b_forward.1} parent=11 // pred_region
          _
        $region48: #{factor_inception_b_forward.1} parent=11 // pred_fallthru
          _
        // Predicated region
        $region49: #{factor_inception_b_forward.1} parent=11 // pred_check
          %p456 = pneg %p262
        $region50: #{factor_inception_b_forward.1} parent=11 // pred_check_branch
          %458 = sbr.rel (%p456) target = $region52
        $region51: #{factor_inception_b_forward.1} parent=11 // pred_region
          _
        $region52: #{factor_inception_b_forward.1} parent=11 // pred_fallthru
          _
        // Predicated region
        $region53: #{factor_inception_b_forward.1} parent=11 // pred_check
          %p459 = pneg %p283
        $region54: #{factor_inception_b_forward.1} parent=11 // pred_check_branch
          %461 = sbr.rel (%p459) target = $region56
        $region55: #{factor_inception_b_forward.1} parent=11 // pred_region
          _
        $region56: #{factor_inception_b_forward.1} parent=11 // pred_fallthru
          _
        // Predicated region
        $region57: #{factor_inception_b_forward.1} parent=11 // pred_check
          %p462 = pneg %p304
        $region58: #{factor_inception_b_forward.1} parent=11 // pred_check_branch
          %464 = sbr.rel (%p462) target = $region60
        $region59: #{factor_inception_b_forward.1} parent=11 // pred_region
          _
        $region60: #{factor_inception_b_forward.1} parent=11 // pred_fallthru
          _
        // Predicated region
        $region61: #{factor_inception_b_forward.1} parent=11 // pred_check
          %p465 = pneg %p325
        $region62: #{factor_inception_b_forward.1} parent=11 // pred_check_branch
          %467 = sbr.rel (%p465) target = $region64
        $region63: #{factor_inception_b_forward.1} parent=11 // pred_region
          _
        $region64: #{factor_inception_b_forward.1} parent=11 // pred_fallthru
          _
        // Predicated region
        $region65: #{factor_inception_b_forward.1} parent=11 // pred_check
          %p468 = pneg %p346
        $region66: #{factor_inception_b_forward.1} parent=11 // pred_check_branch
          %470 = sbr.rel (%p468) target = $region68
        $region67: #{factor_inception_b_forward.1} parent=11 // pred_region
          _
        $region68: #{factor_inception_b_forward.1} parent=11 // pred_fallthru
          _
        // Predicated region
        $region69: #{factor_inception_b_forward.1} parent=11 // pred_check
          %p471 = pneg %p367
        $region70: #{factor_inception_b_forward.1} parent=11 // pred_check_branch
          %473 = sbr.rel (%p471) target = $region72
        $region71: #{factor_inception_b_forward.1} parent=11 // pred_region
          _
        $region72: #{factor_inception_b_forward.1} parent=11 // pred_fallthru
          _
        // Predicated region
        $region73: #{factor_inception_b_forward.1} parent=11 // pred_check
          %p474 = pneg %p388
        $region74: #{factor_inception_b_forward.1} parent=11 // pred_check_branch
          %476 = sbr.rel (%p474) target = $region76
        $region75: #{factor_inception_b_forward.1} parent=11 // pred_region
          _
        $region76: #{factor_inception_b_forward.1} parent=11 // pred_fallthru
          _
      $region12: #{factor_inception_b_forward.1} parent=5 // pred_fallthru
        _
      %p477 = scmp.lt.s32.totalorder %s26, 2
      // Predicated region
      $region77: #{factor_inception_b_forward.1} parent=5 // pred_check
        %p478 = pneg %p477
      $region78: #{factor_inception_b_forward.1} parent=5 // pred_check_branch
        %480 = sbr.rel (%p478) target = $region80
      $region79: #{factor_inception_b_forward.1} parent=5 // pred_region
        // Predicated region
        $region81: #{factor_inception_b_forward.1} parent=79 // pred_check
          %p481 = pneg %p46
        $region82: #{factor_inception_b_forward.1} parent=79 // pred_check_branch
          %483 = sbr.rel (%p481) target = $region84
        $region83: #{factor_inception_b_forward.1} parent=79 // pred_region
          %p484 = scmp.lt.s32.totalorder %s26, 1
          %s485 = scalar_select %p484, %s26, 1
          %s486 = smul.addr %s485, 32
          %s487 = smul.addr %s486, 8
          %s488 = scalar_lea.vmem %s0, %s487
        $region84: #{factor_inception_b_forward.1} parent=79 // pred_fallthru
          _
      $region80: #{factor_inception_b_forward.1} parent=5 // pred_fallthru
        _
      %p489 = scmp.le.s32.totalorder 1, %s26
      %p490 = scmp.lt.s32.totalorder %s26, 3
      %p491 = pnand %p489, %p490
      %p492 = pneg %p491
      // Predicated region
      $region85: #{factor_inception_b_forward.1} parent=5 // pred_check
        _
      $region86: #{factor_inception_b_forward.1} parent=5 // pred_check_branch
        %494 = sbr.rel (%p491) target = $region88
      $region87: #{factor_inception_b_forward.1} parent=5 // pred_region
        %s495 = ssub.s32 %s26, 1
        %p496 = scmp.lt.s32.totalorder %s31, 1
        %s497 = scalar_select %p496, %s31, 1
        %s498 = smul.addr %s497, 32
        %s499 = smul.addr %s498, 8
        %s500 = scalar_lea.vmem %s0, %s499
        %p501 = pneg %p52
        %p502 = pneg %p49
        %p503 = pneg %p73
        %p504 = pneg %p70
        %p505 = pneg %p94
        %p506 = pneg %p91
        %p507 = pneg %p115
        %p508 = pneg %p112
        %p509 = pneg %p136
        %p510 = pneg %p133
        %p511 = pneg %p157
        %p512 = pneg %p154
        %p513 = pneg %p178
        %p514 = pneg %p175
        %p515 = pneg %p199
        %p516 = pneg %p196
        %p517 = pneg %p220
        %p518 = pneg %p217
        %p519 = pneg %p241
        %p520 = pneg %p238
        %p521 = pneg %p262
        %p522 = pneg %p259
        %p523 = pneg %p283
        %p524 = pneg %p280
        %p525 = pneg %p304
        %p526 = pneg %p301
        %p527 = pneg %p325
        %p528 = pneg %p322
        %p529 = pneg %p346
        %p530 = pneg %p343
        %p531 = pneg %p367
        %p532 = pneg %p364
        %p533 = pneg %p388
        %p534 = pneg %p385
        %p535 = pneg %p414
        %p536 = pneg %p411
        %s537 = sand.u32 %s401, 1
        %s538 = scalar_lea.sflag [#allocation3], %s537
        %s539 = sand.u32 %s401, 1
        %s540 = smul.addr %s539, 256
        %s541 = scalar_lea.vmem [#allocation2], %s540
        %p542 = scmp.lt.s32.totalorder %s31, 1
        %s543 = scalar_select %p542, %s31, 1
        %s544 = smul.addr %s543, 32
        %s545 = smul.addr %s544, 8
        %s546 = scalar_lea.vmem %s0, %s545
        %v547 = vld [vmem:[%s546] sm:$0xff]
        %v548 = vld [vmem:[%s546 + $0x8] sm:$0xff]
        %v549 = vld [vmem:[%s546 + $0x10] sm:$0xff]
        %v550 = vld [vmem:[%s546 + $0x18] sm:$0xff]
        %v551 = vld [vmem:[%s546 + $0x20] sm:$0xff]
        %v552 = vld [vmem:[%s546 + $0x28] sm:$0xff]
        %v553 = vld [vmem:[%s546 + $0x30] sm:$0xff]
        %v554 = vld [vmem:[%s546 + $0x38] sm:$0xff]
        %v555 = vld [vmem:[%s546 + $0x40] sm:$0xff]
        %v556 = vld [vmem:[%s546 + $0x48] sm:$0xff]
        %v557 = vld [vmem:[%s546 + $0x50] sm:$0xff]
        %v558 = vld [vmem:[%s546 + $0x58] sm:$0xff]
        %v559 = vld [vmem:[%s546 + $0x60] sm:$0xff]
        %v560 = vld [vmem:[%s546 + $0x68] sm:$0xff]
        %v561 = vld [vmem:[%s546 + $0x70] sm:$0xff]
        %v562 = vld [vmem:[%s546 + $0x78] sm:$0xff]
        %v563 = vld [vmem:[%s546 + $0x80] sm:$0xff]
        %v564 = vld [vmem:[%s546 + $0x88] sm:$0xff]
        %v565 = vld [vmem:[%s546 + $0x90] sm:$0xff]
        %v566 = vld [vmem:[%s546 + $0x98] sm:$0xff]
        %v567 = vld [vmem:[%s546 + $0xa0] sm:$0xff]
        %v568 = vld [vmem:[%s546 + $0xa8] sm:$0xff]
        %v569 = vld [vmem:[%s546 + $0xb0] sm:$0xff]
        %v570 = vld [vmem:[%s546 + $0xb8] sm:$0xff]
        %v571 = vld [vmem:[%s546 + $0xc0] sm:$0xff]
        %v572 = vld [vmem:[%s546 + $0xc8] sm:$0xff]
        %v573 = vld [vmem:[%s546 + $0xd0] sm:$0xff]
        %v574 = vld [vmem:[%s546 + $0xd8] sm:$0xff]
        %v575 = vld [vmem:[%s546 + $0xe0] sm:$0xff]
        %v576 = vld [vmem:[%s546 + $0xe8] sm:$0xff]
        %v577 = vld [vmem:[%s546 + $0xf0] sm:$0xff]
        %v578 = vld [vmem:[%s546 + $0xf8] sm:$0xff]
        %v579 = vld [vmem:[%s1] sm:$0xf]
        %v580 = vld [vmem:[%s2] sm:$0x1]
        %v582 = vlaneseq
        %v583 = vshrl.u32 %v582, 7
        %v584 = vsub.s32 0, %v583
        %v585 = vrot.slane %v580, %v584
        %vm587 = vcmask 31744
        %v589 = vsel %vm587, %v547, 0
        %v592 = vsel %vm587, %v548, 0
        %v595 = vsel %vm587, %v549, 0
        %v598 = vsel %vm587, %v550, 0
        %v601 = vsel %vm587, %v551, 0
        %v604 = vsel %vm587, %v552, 0
        %v607 = vsel %vm587, %v553, 0
        %v610 = vsel %vm587, %v554, 0
        %v613 = vsel %vm587, %v555, 0
        %v616 = vsel %vm587, %v556, 0
        %v619 = vsel %vm587, %v557, 0
        %v622 = vsel %vm587, %v558, 0
        %v625 = vsel %vm587, %v559, 0
        %v628 = vsel %vm587, %v560, 0
        %v631 = vsel %vm587, %v561, 0
        %v634 = vsel %vm587, %v562, 0
        %v637 = vsel %vm587, %v563, 0
        %v640 = vsel %vm587, %v564, 0
        %v643 = vsel %vm587, %v565, 0
        %v646 = vsel %vm587, %v566, 0
        %v649 = vsel %vm587, %v567, 0
        %v652 = vsel %vm587, %v568, 0
        %v655 = vsel %vm587, %v569, 0
        %v658 = vsel %vm587, %v570, 0
        %v661 = vsel %vm587, %v571, 0
        %v664 = vsel %vm587, %v572, 0
        %v667 = vsel %vm587, %v573, 0
        %v670 = vsel %vm587, %v574, 0
        %v673 = vsel %vm587, %v575, 0
        %v676 = vsel %vm587, %v576, 0
        %v679 = vsel %vm587, %v577, 0
        %v682 = vsel %vm587, %v578, 0
        %vm684 = vcmask 1043456
        %v686 = vsel %vm684, %v579, 0
        %688 = vmatprep.subr.mxu0 0.0
        %689 = vmatpush1.msra.mxu0 %v686
        %690 = vmatprep.subr.mxu0 0.0
        %691 = vmatpush1.msra.mxu0 0.0
        %692 = vmatprep.subr.mxu0 0.0
        %693 = vmatpush1.msra.mxu0 0.0
        %694 = vmatprep.subr.mxu0 0.0
        %695 = vmatpush1.msra.mxu0 0.0
        %696 = vmatprep.subr.mxu0 0.0
        %697 = vmatpush1.msra.mxu0 0.0
        %698 = vmatprep.subr.mxu0 0.0
        %699 = vmatpush1.msra.mxu0 0.0
        %700 = vmatprep.subr.mxu0 0.0
        %701 = vmatpush1.msra.mxu0 0.0
        %702 = vmatprep.subr.mxu0 0.0
        %703 = vmatpush1.msra.mxu0 0.0
        %704 = vmatprep.subr.mxu0 0.0
        %705 = vmatpush1.msra.mxu0 0.0
        %706 = vmatprep.subr.mxu0 0.0
        %707 = vmatpush1.msra.mxu0 0.0
        %708 = vmatprep.subr.mxu0 0.0
        %709 = vmatpush1.msra.mxu0 0.0
        %710 = vmatprep.subr.mxu0 0.0
        %711 = vmatpush1.msra.mxu0 0.0
        %712 = vmatprep.subr.mxu0 0.0
        %713 = vmatpush1.msra.mxu0 0.0
        %714 = vmatprep.subr.mxu0 0.0
        %715 = vmatpush1.msra.mxu0 0.0
        %716 = vmatprep.subr.mxu0 0.0
        %717 = vmatpush1.msra.mxu0 0.0
        %718 = vmatprep.subr.mxu0 0.0
        %719 = vmatpush1.msra.mxu0 0.0
        %720 = vmatprep.subr.mxu0 0.0
        %721 = vmatpush1.msra.mxu0 0.0
        %722 = vmatprep.subr.mxu0 0.0
        %723 = vmatpush1.msra.mxu0 0.0
        %724 = vmatprep.subr.mxu0 0.0
        %725 = vmatpush1.msra.mxu0 0.0
        %726 = vmatprep.subr.mxu0 0.0
        %727 = vmatpush1.msra.mxu0 0.0
        %728 = vmatprep.subr.mxu0 0.0
        %729 = vmatpush1.msra.mxu0 0.0
        %730 = vmatprep.subr.mxu0 0.0
        %731 = vmatpush1.msra.mxu0 0.0
        %732 = vmatprep.subr.mxu0 0.0
        %733 = vmatpush1.msra.mxu0 0.0
        %734 = vmatprep.subr.mxu0 0.0
        %735 = vmatpush1.msra.mxu0 0.0
        %736 = vmatprep.subr.mxu0 0.0
        %737 = vmatpush1.msra.mxu0 0.0
        %738 = vmatprep.subr.mxu0 0.0
        %739 = vmatpush1.msra.mxu0 0.0
        %740 = vmatprep.subr.mxu0 0.0
        %741 = vmatpush1.msra.mxu0 0.0
        %742 = vmatprep.subr.mxu0 0.0
        %743 = vmatpush1.msra.mxu0 0.0
        %744 = vmatprep.subr.mxu0 0.0
        %745 = vmatpush1.msra.mxu0 0.0
        %746 = vmatprep.subr.mxu0 0.0
        %747 = vmatpush1.msra.mxu0 0.0
        %748 = vmatprep.subr.mxu0 0.0
        %749 = vmatpush1.msra.mxu0 0.0
        %750 = vmatprep.subr.mxu0 0.0
        %751 = vmatpush1.msra.mxu0 0.0
        %752 = vmatprep.mubr.f32.mxu0 0.0
        %753 = vmatmul.mubr.f32.gmra.mrb[0].mxu0 %v589
        %v754 = vpop.f32.mrb[0].mxu0
        %v755 = vadd.f32 %v585, %v754
        %v756 = vpop.f32.mrb[0].mxu0
        %757 = vmatprep.mubr.f32.mxu0 0.0
        %758 = vmatmul.mubr.f32.gmra.mrb[0].mxu0 %v592
        %v759 = vpop.f32.mrb[0].mxu0
        %v760 = vadd.f32 %v585, %v759
        %v761 = vpop.f32.mrb[0].mxu0
        %762 = vmatprep.mubr.f32.mxu0 0.0
        %763 = vmatmul.mubr.f32.gmra.mrb[0].mxu0 %v595
        %v764 = vpop.f32.mrb[0].mxu0
        %v765 = vadd.f32 %v585, %v764
        %v766 = vpop.f32.mrb[0].mxu0
        %767 = vmatprep.mubr.f32.mxu0 0.0
        %768 = vmatmul.mubr.f32.gmra.mrb[0].mxu0 %v598
        %v769 = vpop.f32.mrb[0].mxu0
        %v770 = vadd.f32 %v585, %v769
        %v771 = vpop.f32.mrb[0].mxu0
        %772 = vmatprep.mubr.f32.mxu0 0.0
        %773 = vmatmul.mubr.f32.gmra.mrb[0].mxu0 %v601
        %v774 = vpop.f32.mrb[0].mxu0
        %v775 = vadd.f32 %v585, %v774
        %v776 = vpop.f32.mrb[0].mxu0
        %777 = vmatprep.mubr.f32.mxu0 0.0
        %778 = vmatmul.mubr.f32.gmra.mrb[0].mxu0 %v604
        %v779 = vpop.f32.mrb[0].mxu0
        %v780 = vadd.f32 %v585, %v779
        %v781 = vpop.f32.mrb[0].mxu0
        %782 = vmatprep.mubr.f32.mxu0 0.0
        %783 = vmatmul.mubr.f32.gmra.mrb[0].mxu0 %v607
        %v784 = vpop.f32.mrb[0].mxu0
        %v785 = vadd.f32 %v585, %v784
        %v786 = vpop.f32.mrb[0].mxu0
        %787 = vmatprep.mubr.f32.mxu0 0.0
        %788 = vmatmul.mubr.f32.gmra.mrb[0].mxu0 %v610
        %v789 = vpop.f32.mrb[0].mxu0
        %v790 = vadd.f32 %v585, %v789
        %v791 = vpop.f32.mrb[0].mxu0
        %792 = vmatprep.mubr.f32.mxu0 0.0
        %793 = vmatmul.mubr.f32.gmra.mrb[0].mxu0 %v613
        %v794 = vpop.f32.mrb[0].mxu0
        %v795 = vadd.f32 %v585, %v794
        %v796 = vpop.f32.mrb[0].mxu0
        %797 = vmatprep.mubr.f32.mxu0 0.0
        %798 = vmatmul.mubr.f32.gmra.mrb[0].mxu0 %v616
        %v799 = vpop.f32.mrb[0].mxu0
        %v800 = vadd.f32 %v585, %v799
        %v801 = vpop.f32.mrb[0].mxu0
        %802 = vmatprep.mubr.f32.mxu0 0.0
        %803 = vmatmul.mubr.f32.gmra.mrb[0].mxu0 %v619
        %v804 = vpop.f32.mrb[0].mxu0
        %v805 = vadd.f32 %v585, %v804
        %v806 = vpop.f32.mrb[0].mxu0
        %807 = vmatprep.mubr.f32.mxu0 0.0
        %808 = vmatmul.mubr.f32.gmra.mrb[0].mxu0 %v622
        %v809 = vpop.f32.mrb[0].mxu0
        %v810 = vadd.f32 %v585, %v809
        %v811 = vpop.f32.mrb[0].mxu0
        %812 = vmatprep.mubr.f32.mxu0 0.0
        %813 = vmatmul.mubr.f32.gmra.mrb[0].mxu0 %v625
        %v814 = vpop.f32.mrb[0].mxu0
        %v815 = vadd.f32 %v585, %v814
        %v816 = vpop.f32.mrb[0].mxu0
        %817 = vmatprep.mubr.f32.mxu0 0.0
        %818 = vmatmul.mubr.f32.gmra.mrb[0].mxu0 %v628
        %v819 = vpop.f32.mrb[0].mxu0
        %v820 = vadd.f32 %v585, %v819
        %v821 = vpop.f32.mrb[0].mxu0
        %822 = vmatprep.mubr.f32.mxu0 0.0
        %823 = vmatmul.mubr.f32.gmra.mrb[0].mxu0 %v631
        %v824 = vpop.f32.mrb[0].mxu0
        %v825 = vadd.f32 %v585, %v824
        %v826 = vpop.f32.mrb[0].mxu0
        %827 = vmatprep.mubr.f32.mxu0 0.0
        %828 = vmatmul.mubr.f32.gmra.mrb[0].mxu0 %v634
        %v829 = vpop.f32.mrb[0].mxu0
        %v830 = vadd.f32 %v585, %v829
        %v831 = vpop.f32.mrb[0].mxu0
        %832 = vmatprep.mubr.f32.mxu0 0.0
        %833 = vmatmul.mubr.f32.gmra.mrb[0].mxu0 %v637
        %v834 = vpop.f32.mrb[0].mxu0
        %v835 = vadd.f32 %v585, %v834
        %v836 = vpop.f32.mrb[0].mxu0
        %837 = vmatprep.mubr.f32.mxu0 0.0
        %838 = vmatmul.mubr.f32.gmra.mrb[0].mxu0 %v640
        %v839 = vpop.f32.mrb[0].mxu0
        %v840 = vadd.f32 %v585, %v839
        %v841 = vpop.f32.mrb[0].mxu0
        %842 = vmatprep.mubr.f32.mxu0 0.0
        %843 = vmatmul.mubr.f32.gmra.mrb[0].mxu0 %v643
        %v844 = vpop.f32.mrb[0].mxu0
        %v845 = vadd.f32 %v585, %v844
        %v846 = vpop.f32.mrb[0].mxu0
        %847 = vmatprep.mubr.f32.mxu0 0.0
        %848 = vmatmul.mubr.f32.gmra.mrb[0].mxu0 %v646
        %v849 = vpop.f32.mrb[0].mxu0
        %v850 = vadd.f32 %v585, %v849
        %v851 = vpop.f32.mrb[0].mxu0
        %852 = vmatprep.mubr.f32.mxu0 0.0
        %853 = vmatmul.mubr.f32.gmra.mrb[0].mxu0 %v649
        %v854 = vpop.f32.mrb[0].mxu0
        %v855 = vadd.f32 %v585, %v854
        %v856 = vpop.f32.mrb[0].mxu0
        %857 = vmatprep.mubr.f32.mxu0 0.0
        %858 = vmatmul.mubr.f32.gmra.mrb[0].mxu0 %v652
        %v859 = vpop.f32.mrb[0].mxu0
        %v860 = vadd.f32 %v585, %v859
        %v861 = vpop.f32.mrb[0].mxu0
        %862 = vmatprep.mubr.f32.mxu0 0.0
        %863 = vmatmul.mubr.f32.gmra.mrb[0].mxu0 %v655
        %v864 = vpop.f32.mrb[0].mxu0
        %v865 = vadd.f32 %v585, %v864
        %v866 = vpop.f32.mrb[0].mxu0
        %867 = vmatprep.mubr.f32.mxu0 0.0
        %868 = vmatmul.mubr.f32.gmra.mrb[0].mxu0 %v658
        %v869 = vpop.f32.mrb[0].mxu0
        %v870 = vadd.f32 %v585, %v869
        %v871 = vpop.f32.mrb[0].mxu0
        %872 = vmatprep.mubr.f32.mxu0 0.0
        %873 = vmatmul.mubr.f32.gmra.mrb[0].mxu0 %v661
        %v874 = vpop.f32.mrb[0].mxu0
        %v875 = vadd.f32 %v585, %v874
        %v876 = vpop.f32.mrb[0].mxu0
        %877 = vmatprep.mubr.f32.mxu0 0.0
        %878 = vmatmul.mubr.f32.gmra.mrb[0].mxu0 %v664
        %v879 = vpop.f32.mrb[0].mxu0
        %v880 = vadd.f32 %v585, %v879
        %v881 = vpop.f32.mrb[0].mxu0
        %882 = vmatprep.mubr.f32.mxu0 0.0
        %883 = vmatmul.mubr.f32.gmra.mrb[0].mxu0 %v667
        %v884 = vpop.f32.mrb[0].mxu0
        %v885 = vadd.f32 %v585, %v884
        %v886 = vpop.f32.mrb[0].mxu0
        %887 = vmatprep.mubr.f32.mxu0 0.0
        %888 = vmatmul.mubr.f32.gmra.mrb[0].mxu0 %v670
        %v889 = vpop.f32.mrb[0].mxu0
        %v890 = vadd.f32 %v585, %v889
        %v891 = vpop.f32.mrb[0].mxu0
        %892 = vmatprep.mubr.f32.mxu0 0.0
        %893 = vmatmul.mubr.f32.gmra.mrb[0].mxu0 %v673
        %v894 = vpop.f32.mrb[0].mxu0
        %v895 = vadd.f32 %v585, %v894
        %v896 = vpop.f32.mrb[0].mxu0
        %897 = vmatprep.mubr.f32.mxu0 0.0
        %898 = vmatmul.mubr.f32.gmra.mrb[0].mxu0 %v676
        %v899 = vpop.f32.mrb[0].mxu0
        %v900 = vadd.f32 %v585, %v899
        %v901 = vpop.f32.mrb[0].mxu0
        %902 = vmatprep.mubr.f32.mxu0 0.0
        %903 = vmatmul.mubr.f32.gmra.mrb[0].mxu0 %v679
        %v904 = vpop.f32.mrb[0].mxu0
        %v905 = vadd.f32 %v585, %v904
        %v906 = vpop.f32.mrb[0].mxu0
        %907 = vmatprep.mubr.f32.mxu0 0.0
        %908 = vmatmul.mubr.f32.gmra.mrb[0].mxu0 %v682
        %v909 = vpop.f32.mrb[0].mxu0
        %v910 = vadd.f32 %v585, %v909
        %v911 = vpop.f32.mrb[0].mxu0
        %912 = vdwg.mxu0
        %v913 = vmax.f32 %v755, 0.0
        %v914 = vmax.f32 %v760, 0.0
        %v915 = vmax.f32 %v765, 0.0
        %v916 = vmax.f32 %v770, 0.0
        %v917 = vmax.f32 %v775, 0.0
        %v918 = vmax.f32 %v780, 0.0
        %v919 = vmax.f32 %v785, 0.0
        %v920 = vmax.f32 %v790, 0.0
        %v921 = vmax.f32 %v795, 0.0
        %v922 = vmax.f32 %v800, 0.0
        %v923 = vmax.f32 %v805, 0.0
        %v924 = vmax.f32 %v810, 0.0
        %v925 = vmax.f32 %v815, 0.0
        %v926 = vmax.f32 %v820, 0.0
        %v927 = vmax.f32 %v825, 0.0
        %v928 = vmax.f32 %v830, 0.0
        %v929 = vmax.f32 %v835, 0.0
        %v930 = vmax.f32 %v840, 0.0
        %v931 = vmax.f32 %v845, 0.0
        %v932 = vmax.f32 %v850, 0.0
        %v933 = vmax.f32 %v855, 0.0
        %v934 = vmax.f32 %v860, 0.0
        %v935 = vmax.f32 %v865, 0.0
        %v936 = vmax.f32 %v870, 0.0
        %v937 = vmax.f32 %v875, 0.0
        %v938 = vmax.f32 %v880, 0.0
        %v939 = vmax.f32 %v885, 0.0
        %v940 = vmax.f32 %v890, 0.0
        %v941 = vmax.f32 %v895, 0.0
        %v942 = vmax.f32 %v900, 0.0
        %v943 = vmax.f32 %v905, 0.0
        %v944 = vmax.f32 %v910, 0.0
        %v961 = vrot.slane %v913, 3
        %v962 = vrot.slane %v915, 3
        %v963 = vrot.slane %v917, 3
        %v964 = vrot.slane %v919, 3
        %v965 = vrot.slane %v921, 3
        %v966 = vrot.slane %v923, 3
        %v967 = vrot.slane %v925, 3
        %v968 = vrot.slane %v927, 3
        %v969 = vrot.slane %v929, 3
        %v970 = vrot.slane %v931, 3
        %v971 = vrot.slane %v933, 3
        %v972 = vrot.slane %v935, 3
        %v973 = vrot.slane %v937, 3
        %v974 = vrot.slane %v939, 3
        %v975 = vrot.slane %v941, 3
        %v976 = vrot.slane %v943, 3
        %v993 = vrot.slane %v913, 1
        %v994 = vrot.slane %v915, 1
        %v995 = vrot.slane %v917, 1
        %v996 = vrot.slane %v919, 1
        %v997 = vrot.slane %v921, 1
        %v998 = vrot.slane %v923, 1
        %v999 = vrot.slane %v925, 1
        %v1000 = vrot.slane %v927, 1
        %v1001 = vrot.slane %v929, 1
        %v1002 = vrot.slane %v931, 1
        %v1003 = vrot.slane %v933, 1
        %v1004 = vrot.slane %v935, 1
        %v1005 = vrot.slane %v937, 1
        %v1006 = vrot.slane %v939, 1
        %v1007 = vrot.slane %v941, 1
        %v1008 = vrot.slane %v943, 1
        %v1025 = vrot.slane %v913, 7
        %v1026 = vrot.slane %v915, 7
        %v1027 = vrot.slane %v917, 7
        %v1028 = vrot.slane %v919, 7
        %v1029 = vrot.slane %v921, 7
        %v1030 = vrot.slane %v923, 7
        %v1031 = vrot.slane %v925, 7
        %v1032 = vrot.slane %v927, 7
        %v1033 = vrot.slane %v929, 7
        %v1034 = vrot.slane %v931, 7
        %v1035 = vrot.slane %v933, 7
        %v1036 = vrot.slane %v935, 7
        %v1037 = vrot.slane %v937, 7
        %v1038 = vrot.slane %v939, 7
        %v1039 = vrot.slane %v941, 7
        %v1040 = vrot.slane %v943, 7
        %vm1073 = vcmask 1042432
        %v1074 = vrot.slane %v913, 5
        %v1075 = vrot.slane %v914, 5
        %v1076 = vsel %vm1073, %v1074, %v1075
        %v1077 = vrot.slane %v915, 5
        %v1078 = vrot.slane %v916, 5
        %v1079 = vsel %vm1073, %v1077, %v1078
        %v1080 = vrot.slane %v917, 5
        %v1081 = vrot.slane %v918, 5
        %v1082 = vsel %vm1073, %v1080, %v1081
        %v1083 = vrot.slane %v919, 5
        %v1084 = vrot.slane %v920, 5
        %v1085 = vsel %vm1073, %v1083, %v1084
        %v1086 = vrot.slane %v921, 5
        %v1087 = vrot.slane %v922, 5
        %v1088 = vsel %vm1073, %v1086, %v1087
        %v1089 = vrot.slane %v923, 5
        %v1090 = vrot.slane %v924, 5
        %v1091 = vsel %vm1073, %v1089, %v1090
        %v1092 = vrot.slane %v925, 5
        %v1093 = vrot.slane %v926, 5
        %v1094 = vsel %vm1073, %v1092, %v1093
        %v1095 = vrot.slane %v927, 5
        %v1096 = vrot.slane %v928, 5
        %v1097 = vsel %vm1073, %v1095, %v1096
        %v1098 = vrot.slane %v929, 5
        %v1099 = vrot.slane %v930, 5
        %v1100 = vsel %vm1073, %v1098, %v1099
        %v1101 = vrot.slane %v931, 5
        %v1102 = vrot.slane %v932, 5
        %v1103 = vsel %vm1073, %v1101, %v1102
        %v1104 = vrot.slane %v933, 5
        %v1105 = vrot.slane %v934, 5
        %v1106 = vsel %vm1073, %v1104, %v1105
        %v1107 = vrot.slane %v935, 5
        %v1108 = vrot.slane %v936, 5
        %v1109 = vsel %vm1073, %v1107, %v1108
        %v1110 = vrot.slane %v937, 5
        %v1111 = vrot.slane %v938, 5
        %v1112 = vsel %vm1073, %v1110, %v1111
        %v1113 = vrot.slane %v939, 5
        %v1114 = vrot.slane %v940, 5
        %v1115 = vsel %vm1073, %v1113, %v1114
        %v1116 = vrot.slane %v941, 5
        %v1117 = vrot.slane %v942, 5
        %v1118 = vsel %vm1073, %v1116, %v1117
        %v1119 = vrot.slane %v943, 5
        %v1120 = vrot.slane %v944, 5
        %v1121 = vsel %vm1073, %v1119, %v1120
        %v1154 = vrot.slane %v914, 3
        %v1155 = vrot.slane %v916, 3
        %v1156 = vrot.slane %v918, 3
        %v1157 = vrot.slane %v920, 3
        %v1158 = vrot.slane %v922, 3
        %v1159 = vrot.slane %v924, 3
        %v1160 = vrot.slane %v926, 3
        %v1161 = vrot.slane %v928, 3
        %v1162 = vrot.slane %v930, 3
        %v1163 = vrot.slane %v932, 3
        %v1164 = vrot.slane %v934, 3
        %v1165 = vrot.slane %v936, 3
        %v1166 = vrot.slane %v938, 3
        %v1167 = vrot.slane %v940, 3
        %v1168 = vrot.slane %v942, 3
        %v1169 = vrot.slane %v944, 3
        %v1186 = vrot.slane %v914, 1
        %v1187 = vrot.slane %v916, 1
        %v1188 = vrot.slane %v918, 1
        %v1189 = vrot.slane %v920, 1
        %v1190 = vrot.slane %v922, 1
        %v1191 = vrot.slane %v924, 1
        %v1192 = vrot.slane %v926, 1
        %v1193 = vrot.slane %v928, 1
        %v1194 = vrot.slane %v930, 1
        %v1195 = vrot.slane %v932, 1
        %v1196 = vrot.slane %v934, 1
        %v1197 = vrot.slane %v936, 1
        %v1198 = vrot.slane %v938, 1
        %v1199 = vrot.slane %v940, 1
        %v1200 = vrot.slane %v942, 1
        %v1201 = vrot.slane %v944, 1
        %v1218 = vrot.slane %v914, 7
        %v1219 = vrot.slane %v916, 7
        %v1220 = vrot.slane %v918, 7
        %v1221 = vrot.slane %v920, 7
        %v1222 = vrot.slane %v922, 7
        %v1223 = vrot.slane %v924, 7
        %v1224 = vrot.slane %v926, 7
        %v1225 = vrot.slane %v928, 7
        %v1226 = vrot.slane %v930, 7
        %v1227 = vrot.slane %v932, 7
        %v1228 = vrot.slane %v934, 7
        %v1229 = vrot.slane %v936, 7
        %v1230 = vrot.slane %v938, 7
        %v1231 = vrot.slane %v940, 7
        %v1232 = vrot.slane %v942, 7
        %v1233 = vrot.slane %v944, 7
        %vm1250 = vcmask 1040384
        %v1251 = vsel %vm1250, %v961, %v993
        %v1252 = vsel %vm1250, %v962, %v994
        %v1253 = vsel %vm1250, %v963, %v995
        %v1254 = vsel %vm1250, %v964, %v996
        %v1255 = vsel %vm1250, %v965, %v997
        %v1256 = vsel %vm1250, %v966, %v998
        %v1257 = vsel %vm1250, %v967, %v999
        %v1258 = vsel %vm1250, %v968, %v1000
        %v1259 = vsel %vm1250, %v969, %v1001
        %v1260 = vsel %vm1250, %v970, %v1002
        %v1261 = vsel %vm1250, %v971, %v1003
        %v1262 = vsel %vm1250, %v972, %v1004
        %v1263 = vsel %vm1250, %v973, %v1005
        %v1264 = vsel %vm1250, %v974, %v1006
        %v1265 = vsel %vm1250, %v975, %v1007
        %v1266 = vsel %vm1250, %v976, %v1008
        %vm1267 = vcmask 1041408
        %v1268 = vsel %vm1267, %v1251, %v1025
        %v1269 = vsel %vm1267, %v1252, %v1026
        %v1270 = vsel %vm1267, %v1253, %v1027
        %v1271 = vsel %vm1267, %v1254, %v1028
        %v1272 = vsel %vm1267, %v1255, %v1029
        %v1273 = vsel %vm1267, %v1256, %v1030
        %v1274 = vsel %vm1267, %v1257, %v1031
        %v1275 = vsel %vm1267, %v1258, %v1032
        %v1276 = vsel %vm1267, %v1259, %v1033
        %v1277 = vsel %vm1267, %v1260, %v1034
        %v1278 = vsel %vm1267, %v1261, %v1035
        %v1279 = vsel %vm1267, %v1262, %v1036
        %v1280 = vsel %vm1267, %v1263, %v1037
        %v1281 = vsel %vm1267, %v1264, %v1038
        %v1282 = vsel %vm1267, %v1265, %v1039
        %v1283 = vsel %vm1267, %v1266, %v1040
        %v1284 = vsel %vm1073, %v1268, %v1074
        %v1285 = vsel %vm1073, %v1269, %v1077
        %v1286 = vsel %vm1073, %v1270, %v1080
        %v1287 = vsel %vm1073, %v1271, %v1083
        %v1288 = vsel %vm1073, %v1272, %v1086
        %v1289 = vsel %vm1073, %v1273, %v1089
        %v1290 = vsel %vm1073, %v1274, %v1092
        %v1291 = vsel %vm1073, %v1275, %v1095
        %v1292 = vsel %vm1073, %v1276, %v1098
        %v1293 = vsel %vm1073, %v1277, %v1101
        %v1294 = vsel %vm1073, %v1278, %v1104
        %v1295 = vsel %vm1073, %v1279, %v1107
        %v1296 = vsel %vm1073, %v1280, %v1110
        %v1297 = vsel %vm1073, %v1281, %v1113
        %v1298 = vsel %vm1073, %v1282, %v1116
        %v1299 = vsel %vm1073, %v1283, %v1119
        %v1300 = vsel %vm1073, %v1075, %v1154
        %v1301 = vsel %vm1073, %v1078, %v1155
        %v1302 = vsel %vm1073, %v1081, %v1156
        %v1303 = vsel %vm1073, %v1084, %v1157
        %v1304 = vsel %vm1073, %v1087, %v1158
        %v1305 = vsel %vm1073, %v1090, %v1159
        %v1306 = vsel %vm1073, %v1093, %v1160
        %v1307 = vsel %vm1073, %v1096, %v1161
        %v1308 = vsel %vm1073, %v1099, %v1162
        %v1309 = vsel %vm1073, %v1102, %v1163
        %v1310 = vsel %vm1073, %v1105, %v1164
        %v1311 = vsel %vm1073, %v1108, %v1165
        %v1312 = vsel %vm1073, %v1111, %v1166
        %v1313 = vsel %vm1073, %v1114, %v1167
        %v1314 = vsel %vm1073, %v1117, %v1168
        %v1315 = vsel %vm1073, %v1120, %v1169
        %v1316 = vsel %vm684, %v1300, %v1186
        %v1317 = vsel %vm684, %v1301, %v1187
        %v1318 = vsel %vm684, %v1302, %v1188
        %v1319 = vsel %vm684, %v1303, %v1189
        %v1320 = vsel %vm684, %v1304, %v1190
        %v1321 = vsel %vm684, %v1305, %v1191
        %v1322 = vsel %vm684, %v1306, %v1192
        %v1323 = vsel %vm684, %v1307, %v1193
        %v1324 = vsel %vm684, %v1308, %v1194
        %v1325 = vsel %vm684, %v1309, %v1195
        %v1326 = vsel %vm684, %v1310, %v1196
        %v1327 = vsel %vm684, %v1311, %v1197
        %v1328 = vsel %vm684, %v1312, %v1198
        %v1329 = vsel %vm684, %v1313, %v1199
        %v1330 = vsel %vm684, %v1314, %v1200
        %v1331 = vsel %vm684, %v1315, %v1201
        %vm1332 = vcmask 1044480
        %v1333 = vsel %vm1332, %v1316, %v1218
        %v1334 = vsel %vm1332, %v1317, %v1219
        %v1335 = vsel %vm1332, %v1318, %v1220
        %v1336 = vsel %vm1332, %v1319, %v1221
        %v1337 = vsel %vm1332, %v1320, %v1222
        %v1338 = vsel %vm1332, %v1321, %v1223
        %v1339 = vsel %vm1332, %v1322, %v1224
        %v1340 = vsel %vm1332, %v1323, %v1225
        %v1341 = vsel %vm1332, %v1324, %v1226
        %v1342 = vsel %vm1332, %v1325, %v1227
        %v1343 = vsel %vm1332, %v1326, %v1228
        %v1344 = vsel %vm1332, %v1327, %v1229
        %v1345 = vsel %vm1332, %v1328, %v1230
        %v1346 = vsel %vm1332, %v1329, %v1231
        %v1347 = vsel %vm1332, %v1330, %v1232
        %v1348 = vsel %vm1332, %v1331, %v1233
        %1365 = vrot.lane.b32.xlu0 %v1284, 120
        %v1366 = vpop.permute.xlu0 %1365
        %1367 = vrot.lane.b32.xlu0 %v1076, 120
        %v1368 = vpop.permute.xlu0 %1367
        %1369 = vrot.lane.b32.xlu0 %v1285, 120
        %v1370 = vpop.permute.xlu0 %1369
        %1371 = vrot.lane.b32.xlu0 %v1079, 120
        %v1372 = vpop.permute.xlu0 %1371
        %1373 = vrot.lane.b32.xlu0 %v1286, 120
        %v1374 = vpop.permute.xlu0 %1373
        %1375 = vrot.lane.b32.xlu0 %v1082, 120
        %v1376 = vpop.permute.xlu0 %1375
        %1377 = vrot.lane.b32.xlu0 %v1287, 120
        %v1378 = vpop.permute.xlu0 %1377
        %1379 = vrot.lane.b32.xlu0 %v1085, 120
        %v1380 = vpop.permute.xlu0 %1379
        %1381 = vrot.lane.b32.xlu0 %v1288, 120
        %v1382 = vpop.permute.xlu0 %1381
        %1383 = vrot.lane.b32.xlu0 %v1088, 120
        %v1384 = vpop.permute.xlu0 %1383
        %1385 = vrot.lane.b32.xlu0 %v1289, 120
        %v1386 = vpop.permute.xlu0 %1385
        %1387 = vrot.lane.b32.xlu0 %v1091, 120
        %v1388 = vpop.permute.xlu0 %1387
        %1389 = vrot.lane.b32.xlu0 %v1290, 120
        %v1390 = vpop.permute.xlu0 %1389
        %1391 = vrot.lane.b32.xlu0 %v1094, 120
        %v1392 = vpop.permute.xlu0 %1391
        %1393 = vrot.lane.b32.xlu0 %v1291, 120
        %v1394 = vpop.permute.xlu0 %1393
        %1395 = vrot.lane.b32.xlu0 %v1097, 120
        %v1396 = vpop.permute.xlu0 %1395
        %1397 = vrot.lane.b32.xlu0 %v1292, 120
        %v1398 = vpop.permute.xlu0 %1397
        %1399 = vrot.lane.b32.xlu0 %v1100, 120
        %v1400 = vpop.permute.xlu0 %1399
        %1401 = vrot.lane.b32.xlu0 %v1293, 120
        %v1402 = vpop.permute.xlu0 %1401
        %1403 = vrot.lane.b32.xlu0 %v1103, 120
        %v1404 = vpop.permute.xlu0 %1403
        %1405 = vrot.lane.b32.xlu0 %v1294, 120
        %v1406 = vpop.permute.xlu0 %1405
        %1407 = vrot.lane.b32.xlu0 %v1106, 120
        %v1408 = vpop.permute.xlu0 %1407
        %1409 = vrot.lane.b32.xlu0 %v1295, 120
        %v1410 = vpop.permute.xlu0 %1409
        %1411 = vrot.lane.b32.xlu0 %v1109, 120
        %v1412 = vpop.permute.xlu0 %1411
        %1413 = vrot.lane.b32.xlu0 %v1296, 120
        %v1414 = vpop.permute.xlu0 %1413
        %1415 = vrot.lane.b32.xlu0 %v1112, 120
        %v1416 = vpop.permute.xlu0 %1415
        %1417 = vrot.lane.b32.xlu0 %v1297, 120
        %v1418 = vpop.permute.xlu0 %1417
        %1419 = vrot.lane.b32.xlu0 %v1115, 120
        %v1420 = vpop.permute.xlu0 %1419
        %1421 = vrot.lane.b32.xlu0 %v1298, 120
        %v1422 = vpop.permute.xlu0 %1421
        %1423 = vrot.lane.b32.xlu0 %v1118, 120
        %v1424 = vpop.permute.xlu0 %1423
        %1425 = vrot.lane.b32.xlu0 %v1299, 120
        %v1426 = vpop.permute.xlu0 %1425
        %1427 = vrot.lane.b32.xlu0 %v1121, 120
        %v1428 = vpop.permute.xlu0 %1427
        %vm1477 = vcmask 1046528
        %v1478 = vrot.slane %v1284, 1
        %v1479 = vrot.slane %v1076, 1
        %v1480 = vsel %vm1477, %v1478, %v1479
        %v1481 = vrot.slane %v1333, 1
        %v1482 = vsel %vm1477, %v1479, %v1481
        %v1483 = vrot.slane %v1285, 1
        %v1484 = vrot.slane %v1079, 1
        %v1485 = vsel %vm1477, %v1483, %v1484
        %v1486 = vrot.slane %v1334, 1
        %v1487 = vsel %vm1477, %v1484, %v1486
        %v1488 = vrot.slane %v1286, 1
        %v1489 = vrot.slane %v1082, 1
        %v1490 = vsel %vm1477, %v1488, %v1489
        %v1491 = vrot.slane %v1335, 1
        %v1492 = vsel %vm1477, %v1489, %v1491
        %v1493 = vrot.slane %v1287, 1
        %v1494 = vrot.slane %v1085, 1
        %v1495 = vsel %vm1477, %v1493, %v1494
        %v1496 = vrot.slane %v1336, 1
        %v1497 = vsel %vm1477, %v1494, %v1496
        %v1498 = vrot.slane %v1288, 1
        %v1499 = vrot.slane %v1088, 1
        %v1500 = vsel %vm1477, %v1498, %v1499
        %v1501 = vrot.slane %v1337, 1
        %v1502 = vsel %vm1477, %v1499, %v1501
        %v1503 = vrot.slane %v1289, 1
        %v1504 = vrot.slane %v1091, 1
        %v1505 = vsel %vm1477, %v1503, %v1504
        %v1506 = vrot.slane %v1338, 1
        %v1507 = vsel %vm1477, %v1504, %v1506
        %v1508 = vrot.slane %v1290, 1
        %v1509 = vrot.slane %v1094, 1
        %v1510 = vsel %vm1477, %v1508, %v1509
        %v1511 = vrot.slane %v1339, 1
        %v1512 = vsel %vm1477, %v1509, %v1511
        %v1513 = vrot.slane %v1291, 1
        %v1514 = vrot.slane %v1097, 1
        %v1515 = vsel %vm1477, %v1513, %v1514
        %v1516 = vrot.slane %v1340, 1
        %v1517 = vsel %vm1477, %v1514, %v1516
        %v1518 = vrot.slane %v1292, 1
        %v1519 = vrot.slane %v1100, 1
        %v1520 = vsel %vm1477, %v1518, %v1519
        %v1521 = vrot.slane %v1341, 1
        %v1522 = vsel %vm1477, %v1519, %v1521
        %v1523 = vrot.slane %v1293, 1
        %v1524 = vrot.slane %v1103, 1
        %v1525 = vsel %vm1477, %v1523, %v1524
        %v1526 = vrot.slane %v1342, 1
        %v1527 = vsel %vm1477, %v1524, %v1526
        %v1528 = vrot.slane %v1294, 1
        %v1529 = vrot.slane %v1106, 1
        %v1530 = vsel %vm1477, %v1528, %v1529
        %v1531 = vrot.slane %v1343, 1
        %v1532 = vsel %vm1477, %v1529, %v1531
        %v1533 = vrot.slane %v1295, 1
        %v1534 = vrot.slane %v1109, 1
        %v1535 = vsel %vm1477, %v1533, %v1534
        %v1536 = vrot.slane %v1344, 1
        %v1537 = vsel %vm1477, %v1534, %v1536
        %v1538 = vrot.slane %v1296, 1
        %v1539 = vrot.slane %v1112, 1
        %v1540 = vsel %vm1477, %v1538, %v1539
        %v1541 = vrot.slane %v1345, 1
        %v1542 = vsel %vm1477, %v1539, %v1541
        %v1543 = vrot.slane %v1297, 1
        %v1544 = vrot.slane %v1115, 1
        %v1545 = vsel %vm1477, %v1543, %v1544
        %v1546 = vrot.slane %v1346, 1
        %v1547 = vsel %vm1477, %v1544, %v1546
        %v1548 = vrot.slane %v1298, 1
        %v1549 = vrot.slane %v1118, 1
        %v1550 = vsel %vm1477, %v1548, %v1549
        %v1551 = vrot.slane %v1347, 1
        %v1552 = vsel %vm1477, %v1549, %v1551
        %v1553 = vrot.slane %v1299, 1
        %v1554 = vrot.slane %v1121, 1
        %v1555 = vsel %vm1477, %v1553, %v1554
        %v1556 = vrot.slane %v1348, 1
        %v1557 = vsel %vm1477, %v1554, %v1556
        %vm1590 = vcmask 1045504
        %v1591 = vrot.slane %v1284, 2
        %v1592 = vrot.slane %v1076, 2
        %v1593 = vsel %vm1590, %v1591, %v1592
        %v1594 = vrot.slane %v1333, 2
        %v1595 = vsel %vm1590, %v1592, %v1594
        %v1596 = vrot.slane %v1285, 2
        %v1597 = vrot.slane %v1079, 2
        %v1598 = vsel %vm1590, %v1596, %v1597
        %v1599 = vrot.slane %v1334, 2
        %v1600 = vsel %vm1590, %v1597, %v1599
        %v1601 = vrot.slane %v1286, 2
        %v1602 = vrot.slane %v1082, 2
        %v1603 = vsel %vm1590, %v1601, %v1602
        %v1604 = vrot.slane %v1335, 2
        %v1605 = vsel %vm1590, %v1602, %v1604
        %v1606 = vrot.slane %v1287, 2
        %v1607 = vrot.slane %v1085, 2
        %v1608 = vsel %vm1590, %v1606, %v1607
        %v1609 = vrot.slane %v1336, 2
        %v1610 = vsel %vm1590, %v1607, %v1609
        %v1611 = vrot.slane %v1288, 2
        %v1612 = vrot.slane %v1088, 2
        %v1613 = vsel %vm1590, %v1611, %v1612
        %v1614 = vrot.slane %v1337, 2
        %v1615 = vsel %vm1590, %v1612, %v1614
        %v1616 = vrot.slane %v1289, 2
        %v1617 = vrot.slane %v1091, 2
        %v1618 = vsel %vm1590, %v1616, %v1617
        %v1619 = vrot.slane %v1338, 2
        %v1620 = vsel %vm1590, %v1617, %v1619
        %v1621 = vrot.slane %v1290, 2
        %v1622 = vrot.slane %v1094, 2
        %v1623 = vsel %vm1590, %v1621, %v1622
        %v1624 = vrot.slane %v1339, 2
        %v1625 = vsel %vm1590, %v1622, %v1624
        %v1626 = vrot.slane %v1291, 2
        %v1627 = vrot.slane %v1097, 2
        %v1628 = vsel %vm1590, %v1626, %v1627
        %v1629 = vrot.slane %v1340, 2
        %v1630 = vsel %vm1590, %v1627, %v1629
        %v1631 = vrot.slane %v1292, 2
        %v1632 = vrot.slane %v1100, 2
        %v1633 = vsel %vm1590, %v1631, %v1632
        %v1634 = vrot.slane %v1341, 2
        %v1635 = vsel %vm1590, %v1632, %v1634
        %v1636 = vrot.slane %v1293, 2
        %v1637 = vrot.slane %v1103, 2
        %v1638 = vsel %vm1590, %v1636, %v1637
        %v1639 = vrot.slane %v1342, 2
        %v1640 = vsel %vm1590, %v1637, %v1639
        %v1641 = vrot.slane %v1294, 2
        %v1642 = vrot.slane %v1106, 2
        %v1643 = vsel %vm1590, %v1641, %v1642
        %v1644 = vrot.slane %v1343, 2
        %v1645 = vsel %vm1590, %v1642, %v1644
        %v1646 = vrot.slane %v1295, 2
        %v1647 = vrot.slane %v1109, 2
        %v1648 = vsel %vm1590, %v1646, %v1647
        %v1649 = vrot.slane %v1344, 2
        %v1650 = vsel %vm1590, %v1647, %v1649
        %v1651 = vrot.slane %v1296, 2
        %v1652 = vrot.slane %v1112, 2
        %v1653 = vsel %vm1590, %v1651, %v1652
        %v1654 = vrot.slane %v1345, 2
        %v1655 = vsel %vm1590, %v1652, %v1654
        %v1656 = vrot.slane %v1297, 2
        %v1657 = vrot.slane %v1115, 2
        %v1658 = vsel %vm1590, %v1656, %v1657
        %v1659 = vrot.slane %v1346, 2
        %v1660 = vsel %vm1590, %v1657, %v1659
        %v1661 = vrot.slane %v1298, 2
        %v1662 = vrot.slane %v1118, 2
        %v1663 = vsel %vm1590, %v1661, %v1662
        %v1664 = vrot.slane %v1347, 2
        %v1665 = vsel %vm1590, %v1662, %v1664
        %v1666 = vrot.slane %v1299, 2
        %v1667 = vrot.slane %v1121, 2
        %v1668 = vsel %vm1590, %v1666, %v1667
        %v1669 = vrot.slane %v1348, 2
        %v1670 = vsel %vm1590, %v1667, %v1669
        %1671 = vrot.lane.b32.xlu0 %v1593, 8
        %v1672 = vpop.permute.xlu0 %1671
        %1673 = vrot.lane.b32.xlu0 %v1595, 8
        %v1674 = vpop.permute.xlu0 %1673
        %1675 = vrot.lane.b32.xlu0 %v1598, 8
        %v1676 = vpop.permute.xlu0 %1675
        %1677 = vrot.lane.b32.xlu0 %v1600, 8
        %v1678 = vpop.permute.xlu0 %1677
        %1679 = vrot.lane.b32.xlu0 %v1603, 8
        %v1680 = vpop.permute.xlu0 %1679
        %1681 = vrot.lane.b32.xlu0 %v1605, 8
        %v1682 = vpop.permute.xlu0 %1681
        %1683 = vrot.lane.b32.xlu0 %v1608, 8
        %v1684 = vpop.permute.xlu0 %1683
        %1685 = vrot.lane.b32.xlu0 %v1610, 8
        %v1686 = vpop.permute.xlu0 %1685
        %1687 = vrot.lane.b32.xlu0 %v1613, 8
        %v1688 = vpop.permute.xlu0 %1687
        %1689 = vrot.lane.b32.xlu0 %v1615, 8
        %v1690 = vpop.permute.xlu0 %1689
        %1691 = vrot.lane.b32.xlu0 %v1618, 8
        %v1692 = vpop.permute.xlu0 %1691
        %1693 = vrot.lane.b32.xlu0 %v1620, 8
        %v1694 = vpop.permute.xlu0 %1693
        %1695 = vrot.lane.b32.xlu0 %v1623, 8
        %v1696 = vpop.permute.xlu0 %1695
        %1697 = vrot.lane.b32.xlu0 %v1625, 8
        %v1698 = vpop.permute.xlu0 %1697
        %1699 = vrot.lane.b32.xlu0 %v1628, 8
        %v1700 = vpop.permute.xlu0 %1699
        %1701 = vrot.lane.b32.xlu0 %v1630, 8
        %v1702 = vpop.permute.xlu0 %1701
        %1703 = vrot.lane.b32.xlu0 %v1633, 8
        %v1704 = vpop.permute.xlu0 %1703
        %1705 = vrot.lane.b32.xlu0 %v1635, 8
        %v1706 = vpop.permute.xlu0 %1705
        %1707 = vrot.lane.b32.xlu0 %v1638, 8
        %v1708 = vpop.permute.xlu0 %1707
        %1709 = vrot.lane.b32.xlu0 %v1640, 8
        %v1710 = vpop.permute.xlu0 %1709
        %1711 = vrot.lane.b32.xlu0 %v1643, 8
        %v1712 = vpop.permute.xlu0 %1711
        %1713 = vrot.lane.b32.xlu0 %v1645, 8
        %v1714 = vpop.permute.xlu0 %1713
        %1715 = vrot.lane.b32.xlu0 %v1648, 8
        %v1716 = vpop.permute.xlu0 %1715
        %1717 = vrot.lane.b32.xlu0 %v1650, 8
        %v1718 = vpop.permute.xlu0 %1717
        %1719 = vrot.lane.b32.xlu0 %v1653, 8
        %v1720 = vpop.permute.xlu0 %1719
        %1721 = vrot.lane.b32.xlu0 %v1655, 8
        %v1722 = vpop.permute.xlu0 %1721
        %1723 = vrot.lane.b32.xlu0 %v1658, 8
        %v1724 = vpop.permute.xlu0 %1723
        %1725 = vrot.lane.b32.xlu0 %v1660, 8
        %v1726 = vpop.permute.xlu0 %1725
        %1727 = vrot.lane.b32.xlu0 %v1663, 8
        %v1728 = vpop.permute.xlu0 %1727
        %1729 = vrot.lane.b32.xlu0 %v1665, 8
        %v1730 = vpop.permute.xlu0 %1729
        %1731 = vrot.lane.b32.xlu0 %v1668, 8
        %v1732 = vpop.permute.xlu0 %1731
        %1733 = vrot.lane.b32.xlu0 %v1670, 8
        %v1734 = vpop.permute.xlu0 %1733
        %v1767 = vrot.slane %v1284, 3
        %v1768 = vrot.slane %v1076, 3
        %v1769 = vsel %vm1332, %v1767, %v1768
        %v1770 = vrot.slane %v1333, 3
        %v1771 = vsel %vm1332, %v1768, %v1770
        %v1772 = vrot.slane %v1285, 3
        %v1773 = vrot.slane %v1079, 3
        %v1774 = vsel %vm1332, %v1772, %v1773
        %v1775 = vrot.slane %v1334, 3
        %v1776 = vsel %vm1332, %v1773, %v1775
        %v1777 = vrot.slane %v1286, 3
        %v1778 = vrot.slane %v1082, 3
        %v1779 = vsel %vm1332, %v1777, %v1778
        %v1780 = vrot.slane %v1335, 3
        %v1781 = vsel %vm1332, %v1778, %v1780
        %v1782 = vrot.slane %v1287, 3
        %v1783 = vrot.slane %v1085, 3
        %v1784 = vsel %vm1332, %v1782, %v1783
        %v1785 = vrot.slane %v1336, 3
        %v1786 = vsel %vm1332, %v1783, %v1785
        %v1787 = vrot.slane %v1288, 3
        %v1788 = vrot.slane %v1088, 3
        %v1789 = vsel %vm1332, %v1787, %v1788
        %v1790 = vrot.slane %v1337, 3
        %v1791 = vsel %vm1332, %v1788, %v1790
        %v1792 = vrot.slane %v1289, 3
        %v1793 = vrot.slane %v1091, 3
        %v1794 = vsel %vm1332, %v1792, %v1793
        %v1795 = vrot.slane %v1338, 3
        %v1796 = vsel %vm1332, %v1793, %v1795
        %v1797 = vrot.slane %v1290, 3
        %v1798 = vrot.slane %v1094, 3
        %v1799 = vsel %vm1332, %v1797, %v1798
        %v1800 = vrot.slane %v1339, 3
        %v1801 = vsel %vm1332, %v1798, %v1800
        %v1802 = vrot.slane %v1291, 3
        %v1803 = vrot.slane %v1097, 3
        %v1804 = vsel %vm1332, %v1802, %v1803
        %v1805 = vrot.slane %v1340, 3
        %v1806 = vsel %vm1332, %v1803, %v1805
        %v1807 = vrot.slane %v1292, 3
        %v1808 = vrot.slane %v1100, 3
        %v1809 = vsel %vm1332, %v1807, %v1808
        %v1810 = vrot.slane %v1341, 3
        %v1811 = vsel %vm1332, %v1808, %v1810
        %v1812 = vrot.slane %v1293, 3
        %v1813 = vrot.slane %v1103, 3
        %v1814 = vsel %vm1332, %v1812, %v1813
        %v1815 = vrot.slane %v1342, 3
        %v1816 = vsel %vm1332, %v1813, %v1815
        %v1817 = vrot.slane %v1294, 3
        %v1818 = vrot.slane %v1106, 3
        %v1819 = vsel %vm1332, %v1817, %v1818
        %v1820 = vrot.slane %v1343, 3
        %v1821 = vsel %vm1332, %v1818, %v1820
        %v1822 = vrot.slane %v1295, 3
        %v1823 = vrot.slane %v1109, 3
        %v1824 = vsel %vm1332, %v1822, %v1823
        %v1825 = vrot.slane %v1344, 3
        %v1826 = vsel %vm1332, %v1823, %v1825
        %v1827 = vrot.slane %v1296, 3
        %v1828 = vrot.slane %v1112, 3
        %v1829 = vsel %vm1332, %v1827, %v1828
        %v1830 = vrot.slane %v1345, 3
        %v1831 = vsel %vm1332, %v1828, %v1830
        %v1832 = vrot.slane %v1297, 3
        %v1833 = vrot.slane %v1115, 3
        %v1834 = vsel %vm1332, %v1832, %v1833
        %v1835 = vrot.slane %v1346, 3
        %v1836 = vsel %vm1332, %v1833, %v1835
        %v1837 = vrot.slane %v1298, 3
        %v1838 = vrot.slane %v1118, 3
        %v1839 = vsel %vm1332, %v1837, %v1838
        %v1840 = vrot.slane %v1347, 3
        %v1841 = vsel %vm1332, %v1838, %v1840
        %v1842 = vrot.slane %v1299, 3
        %v1843 = vrot.slane %v1121, 3
        %v1844 = vsel %vm1332, %v1842, %v1843
        %v1845 = vrot.slane %v1348, 3
        %v1846 = vsel %vm1332, %v1843, %v1845
        %1847 = vrot.lane.b32.xlu0 %v1769, 16
        %v1848 = vpop.permute.xlu0 %1847
        %1849 = vrot.lane.b32.xlu0 %v1771, 16
        %v1850 = vpop.permute.xlu0 %1849
        %1851 = vrot.lane.b32.xlu0 %v1774, 16
        %v1852 = vpop.permute.xlu0 %1851
        %1853 = vrot.lane.b32.xlu0 %v1776, 16
        %v1854 = vpop.permute.xlu0 %1853
        %1855 = vrot.lane.b32.xlu0 %v1779, 16
        %v1856 = vpop.permute.xlu0 %1855
        %1857 = vrot.lane.b32.xlu0 %v1781, 16
        %v1858 = vpop.permute.xlu0 %1857
        %1859 = vrot.lane.b32.xlu0 %v1784, 16
        %v1860 = vpop.permute.xlu0 %1859
        %1861 = vrot.lane.b32.xlu0 %v1786, 16
        %v1862 = vpop.permute.xlu0 %1861
        %1863 = vrot.lane.b32.xlu0 %v1789, 16
        %v1864 = vpop.permute.xlu0 %1863
        %1865 = vrot.lane.b32.xlu0 %v1791, 16
        %v1866 = vpop.permute.xlu0 %1865
        %1867 = vrot.lane.b32.xlu0 %v1794, 16
        %v1868 = vpop.permute.xlu0 %1867
        %1869 = vrot.lane.b32.xlu0 %v1796, 16
        %v1870 = vpop.permute.xlu0 %1869
        %1871 = vrot.lane.b32.xlu0 %v1799, 16
        %v1872 = vpop.permute.xlu0 %1871
        %1873 = vrot.lane.b32.xlu0 %v1801, 16
        %v1874 = vpop.permute.xlu0 %1873
        %1875 = vrot.lane.b32.xlu0 %v1804, 16
        %v1876 = vpop.permute.xlu0 %1875
        %1877 = vrot.lane.b32.xlu0 %v1806, 16
        %v1878 = vpop.permute.xlu0 %1877
        %1879 = vrot.lane.b32.xlu0 %v1809, 16
        %v1880 = vpop.permute.xlu0 %1879
        %1881 = vrot.lane.b32.xlu0 %v1811, 16
        %v1882 = vpop.permute.xlu0 %1881
        %1883 = vrot.lane.b32.xlu0 %v1814, 16
        %v1884 = vpop.permute.xlu0 %1883
        %1885 = vrot.lane.b32.xlu0 %v1816, 16
        %v1886 = vpop.permute.xlu0 %1885
        %1887 = vrot.lane.b32.xlu0 %v1819, 16
        %v1888 = vpop.permute.xlu0 %1887
        %1889 = vrot.lane.b32.xlu0 %v1821, 16
        %v1890 = vpop.permute.xlu0 %1889
        %1891 = vrot.lane.b32.xlu0 %v1824, 16
        %v1892 = vpop.permute.xlu0 %1891
        %1893 = vrot.lane.b32.xlu0 %v1826, 16
        %v1894 = vpop.permute.xlu0 %1893
        %1895 = vrot.lane.b32.xlu0 %v1829, 16
        %v1896 = vpop.permute.xlu0 %1895
        %1897 = vrot.lane.b32.xlu0 %v1831, 16
        %v1898 = vpop.permute.xlu0 %1897
        %1899 = vrot.lane.b32.xlu0 %v1834, 16
        %v1900 = vpop.permute.xlu0 %1899
        %1901 = vrot.lane.b32.xlu0 %v1836, 16
        %v1902 = vpop.permute.xlu0 %1901
        %1903 = vrot.lane.b32.xlu0 %v1839, 16
        %v1904 = vpop.permute.xlu0 %1903
        %1905 = vrot.lane.b32.xlu0 %v1841, 16
        %v1906 = vpop.permute.xlu0 %1905
        %1907 = vrot.lane.b32.xlu0 %v1844, 16
        %v1908 = vpop.permute.xlu0 %1907
        %1909 = vrot.lane.b32.xlu0 %v1846, 16
        %v1910 = vpop.permute.xlu0 %1909
        %v1943 = vrot.slane %v1284, 4
        %v1944 = vrot.slane %v1076, 4
        %v1945 = vsel %vm684, %v1943, %v1944
        %v1946 = vrot.slane %v1333, 4
        %v1947 = vsel %vm684, %v1944, %v1946
        %v1948 = vrot.slane %v1285, 4
        %v1949 = vrot.slane %v1079, 4
        %v1950 = vsel %vm684, %v1948, %v1949
        %v1951 = vrot.slane %v1334, 4
        %v1952 = vsel %vm684, %v1949, %v1951
        %v1953 = vrot.slane %v1286, 4
        %v1954 = vrot.slane %v1082, 4
        %v1955 = vsel %vm684, %v1953, %v1954
        %v1956 = vrot.slane %v1335, 4
        %v1957 = vsel %vm684, %v1954, %v1956
        %v1958 = vrot.slane %v1287, 4
        %v1959 = vrot.slane %v1085, 4
        %v1960 = vsel %vm684, %v1958, %v1959
        %v1961 = vrot.slane %v1336, 4
        %v1962 = vsel %vm684, %v1959, %v1961
        %v1963 = vrot.slane %v1288, 4
        %v1964 = vrot.slane %v1088, 4
        %v1965 = vsel %vm684, %v1963, %v1964
        %v1966 = vrot.slane %v1337, 4
        %v1967 = vsel %vm684, %v1964, %v1966
        %v1968 = vrot.slane %v1289, 4
        %v1969 = vrot.slane %v1091, 4
        %v1970 = vsel %vm684, %v1968, %v1969
        %v1971 = vrot.slane %v1338, 4
        %v1972 = vsel %vm684, %v1969, %v1971
        %v1973 = vrot.slane %v1290, 4
        %v1974 = vrot.slane %v1094, 4
        %v1975 = vsel %vm684, %v1973, %v1974
        %v1976 = vrot.slane %v1339, 4
        %v1977 = vsel %vm684, %v1974, %v1976
        %v1978 = vrot.slane %v1291, 4
        %v1979 = vrot.slane %v1097, 4
        %v1980 = vsel %vm684, %v1978, %v1979
        %v1981 = vrot.slane %v1340, 4
        %v1982 = vsel %vm684, %v1979, %v1981
        %v1983 = vrot.slane %v1292, 4
        %v1984 = vrot.slane %v1100, 4
        %v1985 = vsel %vm684, %v1983, %v1984
        %v1986 = vrot.slane %v1341, 4
        %v1987 = vsel %vm684, %v1984, %v1986
        %v1988 = vrot.slane %v1293, 4
        %v1989 = vrot.slane %v1103, 4
        %v1990 = vsel %vm684, %v1988, %v1989
        %v1991 = vrot.slane %v1342, 4
        %v1992 = vsel %vm684, %v1989, %v1991
        %v1993 = vrot.slane %v1294, 4
        %v1994 = vrot.slane %v1106, 4
        %v1995 = vsel %vm684, %v1993, %v1994
        %v1996 = vrot.slane %v1343, 4
        %v1997 = vsel %vm684, %v1994, %v1996
        %v1998 = vrot.slane %v1295, 4
        %v1999 = vrot.slane %v1109, 4
        %v2000 = vsel %vm684, %v1998, %v1999
        %v2001 = vrot.slane %v1344, 4
        %v2002 = vsel %vm684, %v1999, %v2001
        %v2003 = vrot.slane %v1296, 4
        %v2004 = vrot.slane %v1112, 4
        %v2005 = vsel %vm684, %v2003, %v2004
        %v2006 = vrot.slane %v1345, 4
        %v2007 = vsel %vm684, %v2004, %v2006
        %v2008 = vrot.slane %v1297, 4
        %v2009 = vrot.slane %v1115, 4
        %v2010 = vsel %vm684, %v2008, %v2009
        %v2011 = vrot.slane %v1346, 4
        %v2012 = vsel %vm684, %v2009, %v2011
        %v2013 = vrot.slane %v1298, 4
        %v2014 = vrot.slane %v1118, 4
        %v2015 = vsel %vm684, %v2013, %v2014
        %v2016 = vrot.slane %v1347, 4
        %v2017 = vsel %vm684, %v2014, %v2016
        %v2018 = vrot.slane %v1299, 4
        %v2019 = vrot.slane %v1121, 4
        %v2020 = vsel %vm684, %v2018, %v2019
        %v2021 = vrot.slane %v1348, 4
        %v2022 = vsel %vm684, %v2019, %v2021
        %2023 = vrot.lane.b32.xlu0 %v1945, 24
        %v2024 = vpop.permute.xlu0 %2023
        %2025 = vrot.lane.b32.xlu0 %v1947, 24
        %v2026 = vpop.permute.xlu0 %2025
        %2027 = vrot.lane.b32.xlu0 %v1950, 24
        %v2028 = vpop.permute.xlu0 %2027
        %2029 = vrot.lane.b32.xlu0 %v1952, 24
        %v2030 = vpop.permute.xlu0 %2029
        %2031 = vrot.lane.b32.xlu0 %v1955, 24
        %v2032 = vpop.permute.xlu0 %2031
        %2033 = vrot.lane.b32.xlu0 %v1957, 24
        %v2034 = vpop.permute.xlu0 %2033
        %2035 = vrot.lane.b32.xlu0 %v1960, 24
        %v2036 = vpop.permute.xlu0 %2035
        %2037 = vrot.lane.b32.xlu0 %v1962, 24
        %v2038 = vpop.permute.xlu0 %2037
        %2039 = vrot.lane.b32.xlu0 %v1965, 24
        %v2040 = vpop.permute.xlu0 %2039
        %2041 = vrot.lane.b32.xlu0 %v1967, 24
        %v2042 = vpop.permute.xlu0 %2041
        %2043 = vrot.lane.b32.xlu0 %v1970, 24
        %v2044 = vpop.permute.xlu0 %2043
        %2045 = vrot.lane.b32.xlu0 %v1972, 24
        %v2046 = vpop.permute.xlu0 %2045
        %2047 = vrot.lane.b32.xlu0 %v1975, 24
        %v2048 = vpop.permute.xlu0 %2047
        %2049 = vrot.lane.b32.xlu0 %v1977, 24
        %v2050 = vpop.permute.xlu0 %2049
        %2051 = vrot.lane.b32.xlu0 %v1980, 24
        %v2052 = vpop.permute.xlu0 %2051
        %2053 = vrot.lane.b32.xlu0 %v1982, 24
        %v2054 = vpop.permute.xlu0 %2053
        %2055 = vrot.lane.b32.xlu0 %v1985, 24
        %v2056 = vpop.permute.xlu0 %2055
        %2057 = vrot.lane.b32.xlu0 %v1987, 24
        %v2058 = vpop.permute.xlu0 %2057
        %2059 = vrot.lane.b32.xlu0 %v1990, 24
        %v2060 = vpop.permute.xlu0 %2059
        %2061 = vrot.lane.b32.xlu0 %v1992, 24
        %v2062 = vpop.permute.xlu0 %2061
        %2063 = vrot.lane.b32.xlu0 %v1995, 24
        %v2064 = vpop.permute.xlu0 %2063
        %2065 = vrot.lane.b32.xlu0 %v1997, 24
        %v2066 = vpop.permute.xlu0 %2065
        %2067 = vrot.lane.b32.xlu0 %v2000, 24
        %v2068 = vpop.permute.xlu0 %2067
        %2069 = vrot.lane.b32.xlu0 %v2002, 24
        %v2070 = vpop.permute.xlu0 %2069
        %2071 = vrot.lane.b32.xlu0 %v2005, 24
        %v2072 = vpop.permute.xlu0 %2071
        %2073 = vrot.lane.b32.xlu0 %v2007, 24
        %v2074 = vpop.permute.xlu0 %2073
        %2075 = vrot.lane.b32.xlu0 %v2010, 24
        %v2076 = vpop.permute.xlu0 %2075
        %2077 = vrot.lane.b32.xlu0 %v2012, 24
        %v2078 = vpop.permute.xlu0 %2077
        %2079 = vrot.lane.b32.xlu0 %v2015, 24
        %v2080 = vpop.permute.xlu0 %2079
        %2081 = vrot.lane.b32.xlu0 %v2017, 24
        %v2082 = vpop.permute.xlu0 %2081
        %2083 = vrot.lane.b32.xlu0 %v2020, 24
        %v2084 = vpop.permute.xlu0 %2083
        %2085 = vrot.lane.b32.xlu0 %v2022, 24
        %v2086 = vpop.permute.xlu0 %2085
        %v2119 = vrot.slane %v1284, 5
        %v2120 = vrot.slane %v1076, 5
        %v2121 = vsel %vm1073, %v2119, %v2120
        %v2122 = vrot.slane %v1333, 5
        %v2123 = vsel %vm1073, %v2120, %v2122
        %v2124 = vrot.slane %v1285, 5
        %v2125 = vrot.slane %v1079, 5
        %v2126 = vsel %vm1073, %v2124, %v2125
        %v2127 = vrot.slane %v1334, 5
        %v2128 = vsel %vm1073, %v2125, %v2127
        %v2129 = vrot.slane %v1286, 5
        %v2130 = vrot.slane %v1082, 5
        %v2131 = vsel %vm1073, %v2129, %v2130
        %v2132 = vrot.slane %v1335, 5
        %v2133 = vsel %vm1073, %v2130, %v2132
        %v2134 = vrot.slane %v1287, 5
        %v2135 = vrot.slane %v1085, 5
        %v2136 = vsel %vm1073, %v2134, %v2135
        %v2137 = vrot.slane %v1336, 5
        %v2138 = vsel %vm1073, %v2135, %v2137
        %v2139 = vrot.slane %v1288, 5
        %v2140 = vrot.slane %v1088, 5
        %v2141 = vsel %vm1073, %v2139, %v2140
        %v2142 = vrot.slane %v1337, 5
        %v2143 = vsel %vm1073, %v2140, %v2142
        %v2144 = vrot.slane %v1289, 5
        %v2145 = vrot.slane %v1091, 5
        %v2146 = vsel %vm1073, %v2144, %v2145
        %v2147 = vrot.slane %v1338, 5
        %v2148 = vsel %vm1073, %v2145, %v2147
        %v2149 = vrot.slane %v1290, 5
        %v2150 = vrot.slane %v1094, 5
        %v2151 = vsel %vm1073, %v2149, %v2150
        %v2152 = vrot.slane %v1339, 5
        %v2153 = vsel %vm1073, %v2150, %v2152
        %v2154 = vrot.slane %v1291, 5
        %v2155 = vrot.slane %v1097, 5
        %v2156 = vsel %vm1073, %v2154, %v2155
        %v2157 = vrot.slane %v1340, 5
        %v2158 = vsel %vm1073, %v2155, %v2157
        %v2159 = vrot.slane %v1292, 5
        %v2160 = vrot.slane %v1100, 5
        %v2161 = vsel %vm1073, %v2159, %v2160
        %v2162 = vrot.slane %v1341, 5
        %v2163 = vsel %vm1073, %v2160, %v2162
        %v2164 = vrot.slane %v1293, 5
        %v2165 = vrot.slane %v1103, 5
        %v2166 = vsel %vm1073, %v2164, %v2165
        %v2167 = vrot.slane %v1342, 5
        %v2168 = vsel %vm1073, %v2165, %v2167
        %v2169 = vrot.slane %v1294, 5
        %v2170 = vrot.slane %v1106, 5
        %v2171 = vsel %vm1073, %v2169, %v2170
        %v2172 = vrot.slane %v1343, 5
        %v2173 = vsel %vm1073, %v2170, %v2172
        %v2174 = vrot.slane %v1295, 5
        %v2175 = vrot.slane %v1109, 5
        %v2176 = vsel %vm1073, %v2174, %v2175
        %v2177 = vrot.slane %v1344, 5
        %v2178 = vsel %vm1073, %v2175, %v2177
        %v2179 = vrot.slane %v1296, 5
        %v2180 = vrot.slane %v1112, 5
        %v2181 = vsel %vm1073, %v2179, %v2180
        %v2182 = vrot.slane %v1345, 5
        %v2183 = vsel %vm1073, %v2180, %v2182
        %v2184 = vrot.slane %v1297, 5
        %v2185 = vrot.slane %v1115, 5
        %v2186 = vsel %vm1073, %v2184, %v2185
        %v2187 = vrot.slane %v1346, 5
        %v2188 = vsel %vm1073, %v2185, %v2187
        %v2189 = vrot.slane %v1298, 5
        %v2190 = vrot.slane %v1118, 5
        %v2191 = vsel %vm1073, %v2189, %v2190
        %v2192 = vrot.slane %v1347, 5
        %v2193 = vsel %vm1073, %v2190, %v2192
        %v2194 = vrot.slane %v1299, 5
        %v2195 = vrot.slane %v1121, 5
        %v2196 = vsel %vm1073, %v2194, %v2195
        %v2197 = vrot.slane %v1348, 5
        %v2198 = vsel %vm1073, %v2195, %v2197
        %2199 = vrot.lane.b32.xlu0 %v2121, 32
        %v2200 = vpop.permute.xlu0 %2199
        %2201 = vrot.lane.b32.xlu0 %v2123, 32
        %v2202 = vpop.permute.xlu0 %2201
        %2203 = vrot.lane.b32.xlu0 %v2126, 32
        %v2204 = vpop.permute.xlu0 %2203
        %2205 = vrot.lane.b32.xlu0 %v2128, 32
        %v2206 = vpop.permute.xlu0 %2205
        %2207 = vrot.lane.b32.xlu0 %v2131, 32
        %v2208 = vpop.permute.xlu0 %2207
        %2209 = vrot.lane.b32.xlu0 %v2133, 32
        %v2210 = vpop.permute.xlu0 %2209
        %2211 = vrot.lane.b32.xlu0 %v2136, 32
        %v2212 = vpop.permute.xlu0 %2211
        %2213 = vrot.lane.b32.xlu0 %v2138, 32
        %v2214 = vpop.permute.xlu0 %2213
        %2215 = vrot.lane.b32.xlu0 %v2141, 32
        %v2216 = vpop.permute.xlu0 %2215
        %2217 = vrot.lane.b32.xlu0 %v2143, 32
        %v2218 = vpop.permute.xlu0 %2217
        %2219 = vrot.lane.b32.xlu0 %v2146, 32
        %v2220 = vpop.permute.xlu0 %2219
        %2221 = vrot.lane.b32.xlu0 %v2148, 32
        %v2222 = vpop.permute.xlu0 %2221
        %2223 = vrot.lane.b32.xlu0 %v2151, 32
        %v2224 = vpop.permute.xlu0 %2223
        %2225 = vrot.lane.b32.xlu0 %v2153, 32
        %v2226 = vpop.permute.xlu0 %2225
        %2227 = vrot.lane.b32.xlu0 %v2156, 32
        %v2228 = vpop.permute.xlu0 %2227
        %2229 = vrot.lane.b32.xlu0 %v2158, 32
        %v2230 = vpop.permute.xlu0 %2229
        %2231 = vrot.lane.b32.xlu0 %v2161, 32
        %v2232 = vpop.permute.xlu0 %2231
        %2233 = vrot.lane.b32.xlu0 %v2163, 32
        %v2234 = vpop.permute.xlu0 %2233
        %2235 = vrot.lane.b32.xlu0 %v2166, 32
        %v2236 = vpop.permute.xlu0 %2235
        %2237 = vrot.lane.b32.xlu0 %v2168, 32
        %v2238 = vpop.permute.xlu0 %2237
        %2239 = vrot.lane.b32.xlu0 %v2171, 32
        %v2240 = vpop.permute.xlu0 %2239
        %2241 = vrot.lane.b32.xlu0 %v2173, 32
        %v2242 = vpop.permute.xlu0 %2241
        %2243 = vrot.lane.b32.xlu0 %v2176, 32
        %v2244 = vpop.permute.xlu0 %2243
        %2245 = vrot.lane.b32.xlu0 %v2178, 32
        %v2246 = vpop.permute.xlu0 %2245
        %2247 = vrot.lane.b32.xlu0 %v2181, 32
        %v2248 = vpop.permute.xlu0 %2247
        %2249 = vrot.lane.b32.xlu0 %v2183, 32
        %v2250 = vpop.permute.xlu0 %2249
        %2251 = vrot.lane.b32.xlu0 %v2186, 32
        %v2252 = vpop.permute.xlu0 %2251
        %2253 = vrot.lane.b32.xlu0 %v2188, 32
        %v2254 = vpop.permute.xlu0 %2253
        %2255 = vrot.lane.b32.xlu0 %v2191, 32
        %v2256 = vpop.permute.xlu0 %2255
        %2257 = vrot.lane.b32.xlu0 %v2193, 32
        %v2258 = vpop.permute.xlu0 %2257
        %2259 = vrot.lane.b32.xlu0 %v2196, 32
        %v2260 = vpop.permute.xlu0 %2259
        %2261 = vrot.lane.b32.xlu0 %v2198, 32
        %v2262 = vpop.permute.xlu0 %2261
        %v2295 = vrot.slane %v1284, 6
        %v2296 = vrot.slane %v1076, 6
        %v2297 = vsel %vm1267, %v2295, %v2296
        %v2298 = vrot.slane %v1333, 6
        %v2299 = vsel %vm1267, %v2296, %v2298
        %v2300 = vrot.slane %v1285, 6
        %v2301 = vrot.slane %v1079, 6
        %v2302 = vsel %vm1267, %v2300, %v2301
        %v2303 = vrot.slane %v1334, 6
        %v2304 = vsel %vm1267, %v2301, %v2303
        %v2305 = vrot.slane %v1286, 6
        %v2306 = vrot.slane %v1082, 6
        %v2307 = vsel %vm1267, %v2305, %v2306
        %v2308 = vrot.slane %v1335, 6
        %v2309 = vsel %vm1267, %v2306, %v2308
        %v2310 = vrot.slane %v1287, 6
        %v2311 = vrot.slane %v1085, 6
        %v2312 = vsel %vm1267, %v2310, %v2311
        %v2313 = vrot.slane %v1336, 6
        %v2314 = vsel %vm1267, %v2311, %v2313
        %v2315 = vrot.slane %v1288, 6
        %v2316 = vrot.slane %v1088, 6
        %v2317 = vsel %vm1267, %v2315, %v2316
        %v2318 = vrot.slane %v1337, 6
        %v2319 = vsel %vm1267, %v2316, %v2318
        %v2320 = vrot.slane %v1289, 6
        %v2321 = vrot.slane %v1091, 6
        %v2322 = vsel %vm1267, %v2320, %v2321
        %v2323 = vrot.slane %v1338, 6
        %v2324 = vsel %vm1267, %v2321, %v2323
        %v2325 = vrot.slane %v1290, 6
        %v2326 = vrot.slane %v1094, 6
        %v2327 = vsel %vm1267, %v2325, %v2326
        %v2328 = vrot.slane %v1339, 6
        %v2329 = vsel %vm1267, %v2326, %v2328
        %v2330 = vrot.slane %v1291, 6
        %v2331 = vrot.slane %v1097, 6
        %v2332 = vsel %vm1267, %v2330, %v2331
        %v2333 = vrot.slane %v1340, 6
        %v2334 = vsel %vm1267, %v2331, %v2333
        %v2335 = vrot.slane %v1292, 6
        %v2336 = vrot.slane %v1100, 6
        %v2337 = vsel %vm1267, %v2335, %v2336
        %v2338 = vrot.slane %v1341, 6
        %v2339 = vsel %vm1267, %v2336, %v2338
        %v2340 = vrot.slane %v1293, 6
        %v2341 = vrot.slane %v1103, 6
        %v2342 = vsel %vm1267, %v2340, %v2341
        %v2343 = vrot.slane %v1342, 6
        %v2344 = vsel %vm1267, %v2341, %v2343
        %v2345 = vrot.slane %v1294, 6
        %v2346 = vrot.slane %v1106, 6
        %v2347 = vsel %vm1267, %v2345, %v2346
        %v2348 = vrot.slane %v1343, 6
        %v2349 = vsel %vm1267, %v2346, %v2348
        %v2350 = vrot.slane %v1295, 6
        %v2351 = vrot.slane %v1109, 6
        %v2352 = vsel %vm1267, %v2350, %v2351
        %v2353 = vrot.slane %v1344, 6
        %v2354 = vsel %vm1267, %v2351, %v2353
        %v2355 = vrot.slane %v1296, 6
        %v2356 = vrot.slane %v1112, 6
        %v2357 = vsel %vm1267, %v2355, %v2356
        %v2358 = vrot.slane %v1345, 6
        %v2359 = vsel %vm1267, %v2356, %v2358
        %v2360 = vrot.slane %v1297, 6
        %v2361 = vrot.slane %v1115, 6
        %v2362 = vsel %vm1267, %v2360, %v2361
        %v2363 = vrot.slane %v1346, 6
        %v2364 = vsel %vm1267, %v2361, %v2363
        %v2365 = vrot.slane %v1298, 6
        %v2366 = vrot.slane %v1118, 6
        %v2367 = vsel %vm1267, %v2365, %v2366
        %v2368 = vrot.slane %v1347, 6
        %v2369 = vsel %vm1267, %v2366, %v2368
        %v2370 = vrot.slane %v1299, 6
        %v2371 = vrot.slane %v1121, 6
        %v2372 = vsel %vm1267, %v2370, %v2371
        %v2373 = vrot.slane %v1348, 6
        %v2374 = vsel %vm1267, %v2371, %v2373
        %2375 = vrot.lane.b32.xlu0 %v2297, 40
        %v2376 = vpop.permute.xlu0 %2375
        %2377 = vrot.lane.b32.xlu0 %v2299, 40
        %v2378 = vpop.permute.xlu0 %2377
        %2379 = vrot.lane.b32.xlu0 %v2302, 40
        %v2380 = vpop.permute.xlu0 %2379
        %2381 = vrot.lane.b32.xlu0 %v2304, 40
        %v2382 = vpop.permute.xlu0 %2381
        %2383 = vrot.lane.b32.xlu0 %v2307, 40
        %v2384 = vpop.permute.xlu0 %2383
        %2385 = vrot.lane.b32.xlu0 %v2309, 40
        %v2386 = vpop.permute.xlu0 %2385
        %2387 = vrot.lane.b32.xlu0 %v2312, 40
        %v2388 = vpop.permute.xlu0 %2387
        %2389 = vrot.lane.b32.xlu0 %v2314, 40
        %v2390 = vpop.permute.xlu0 %2389
        %2391 = vrot.lane.b32.xlu0 %v2317, 40
        %v2392 = vpop.permute.xlu0 %2391
        %2393 = vrot.lane.b32.xlu0 %v2319, 40
        %v2394 = vpop.permute.xlu0 %2393
        %2395 = vrot.lane.b32.xlu0 %v2322, 40
        %v2396 = vpop.permute.xlu0 %2395
        %2397 = vrot.lane.b32.xlu0 %v2324, 40
        %v2398 = vpop.permute.xlu0 %2397
        %2399 = vrot.lane.b32.xlu0 %v2327, 40
        %v2400 = vpop.permute.xlu0 %2399
        %2401 = vrot.lane.b32.xlu0 %v2329, 40
        %v2402 = vpop.permute.xlu0 %2401
        %2403 = vrot.lane.b32.xlu0 %v2332, 40
        %v2404 = vpop.permute.xlu0 %2403
        %2405 = vrot.lane.b32.xlu0 %v2334, 40
        %v2406 = vpop.permute.xlu0 %2405
        %2407 = vrot.lane.b32.xlu0 %v2337, 40
        %v2408 = vpop.permute.xlu0 %2407
        %2409 = vrot.lane.b32.xlu0 %v2339, 40
        %v2410 = vpop.permute.xlu0 %2409
        %2411 = vrot.lane.b32.xlu0 %v2342, 40
        %v2412 = vpop.permute.xlu0 %2411
        %2413 = vrot.lane.b32.xlu0 %v2344, 40
        %v2414 = vpop.permute.xlu0 %2413
        %2415 = vrot.lane.b32.xlu0 %v2347, 40
        %v2416 = vpop.permute.xlu0 %2415
        %2417 = vrot.lane.b32.xlu0 %v2349, 40
        %v2418 = vpop.permute.xlu0 %2417
        %2419 = vrot.lane.b32.xlu0 %v2352, 40
        %v2420 = vpop.permute.xlu0 %2419
        %2421 = vrot.lane.b32.xlu0 %v2354, 40
        %v2422 = vpop.permute.xlu0 %2421
        %2423 = vrot.lane.b32.xlu0 %v2357, 40
        %v2424 = vpop.permute.xlu0 %2423
        %2425 = vrot.lane.b32.xlu0 %v2359, 40
        %v2426 = vpop.permute.xlu0 %2425
        %2427 = vrot.lane.b32.xlu0 %v2362, 40
        %v2428 = vpop.permute.xlu0 %2427
        %2429 = vrot.lane.b32.xlu0 %v2364, 40
        %v2430 = vpop.permute.xlu0 %2429
        %2431 = vrot.lane.b32.xlu0 %v2367, 40
        %v2432 = vpop.permute.xlu0 %2431
        %2433 = vrot.lane.b32.xlu0 %v2369, 40
        %v2434 = vpop.permute.xlu0 %2433
        %2435 = vrot.lane.b32.xlu0 %v2372, 40
        %v2436 = vpop.permute.xlu0 %2435
        %2437 = vrot.lane.b32.xlu0 %v2374, 40
        %v2438 = vpop.permute.xlu0 %2437
        %vm2471 = vcmask 64512
        %v2472 = vsel %vm2471, %v1366, %v1480
        %v2473 = vsel %vm2471, %v1368, %v1482
        %v2474 = vsel %vm2471, %v1370, %v1485
        %v2475 = vsel %vm2471, %v1372, %v1487
        %v2476 = vsel %vm2471, %v1374, %v1490
        %v2477 = vsel %vm2471, %v1376, %v1492
        %v2478 = vsel %vm2471, %v1378, %v1495
        %v2479 = vsel %vm2471, %v1380, %v1497
        %v2480 = vsel %vm2471, %v1382, %v1500
        %v2481 = vsel %vm2471, %v1384, %v1502
        %v2482 = vsel %vm2471, %v1386, %v1505
        %v2483 = vsel %vm2471, %v1388, %v1507
        %v2484 = vsel %vm2471, %v1390, %v1510
        %v2485 = vsel %vm2471, %v1392, %v1512
        %v2486 = vsel %vm2471, %v1394, %v1515
        %v2487 = vsel %vm2471, %v1396, %v1517
        %v2488 = vsel %vm2471, %v1398, %v1520
        %v2489 = vsel %vm2471, %v1400, %v1522
        %v2490 = vsel %vm2471, %v1402, %v1525
        %v2491 = vsel %vm2471, %v1404, %v1527
        %v2492 = vsel %vm2471, %v1406, %v1530
        %v2493 = vsel %vm2471, %v1408, %v1532
        %v2494 = vsel %vm2471, %v1410, %v1535
        %v2495 = vsel %vm2471, %v1412, %v1537
        %v2496 = vsel %vm2471, %v1414, %v1540
        %v2497 = vsel %vm2471, %v1416, %v1542
        %v2498 = vsel %vm2471, %v1418, %v1545
        %v2499 = vsel %vm2471, %v1420, %v1547
        %v2500 = vsel %vm2471, %v1422, %v1550
        %v2501 = vsel %vm2471, %v1424, %v1552
        %v2502 = vsel %vm2471, %v1426, %v1555
        %v2503 = vsel %vm2471, %v1428, %v1557
        %vm2504 = vcmask 130048
        %v2505 = vsel %vm2504, %v2472, %v1672
        %v2506 = vsel %vm2504, %v2473, %v1674
        %v2507 = vsel %vm2504, %v2474, %v1676
        %v2508 = vsel %vm2504, %v2475, %v1678
        %v2509 = vsel %vm2504, %v2476, %v1680
        %v2510 = vsel %vm2504, %v2477, %v1682
        %v2511 = vsel %vm2504, %v2478, %v1684
        %v2512 = vsel %vm2504, %v2479, %v1686
        %v2513 = vsel %vm2504, %v2480, %v1688
        %v2514 = vsel %vm2504, %v2481, %v1690
        %v2515 = vsel %vm2504, %v2482, %v1692
        %v2516 = vsel %vm2504, %v2483, %v1694
        %v2517 = vsel %vm2504, %v2484, %v1696
        %v2518 = vsel %vm2504, %v2485, %v1698
        %v2519 = vsel %vm2504, %v2486, %v1700
        %v2520 = vsel %vm2504, %v2487, %v1702
        %v2521 = vsel %vm2504, %v2488, %v1704
        %v2522 = vsel %vm2504, %v2489, %v1706
        %v2523 = vsel %vm2504, %v2490, %v1708
        %v2524 = vsel %vm2504, %v2491, %v1710
        %v2525 = vsel %vm2504, %v2492, %v1712
        %v2526 = vsel %vm2504, %v2493, %v1714
        %v2527 = vsel %vm2504, %v2494, %v1716
        %v2528 = vsel %vm2504, %v2495, %v1718
        %v2529 = vsel %vm2504, %v2496, %v1720
        %v2530 = vsel %vm2504, %v2497, %v1722
        %v2531 = vsel %vm2504, %v2498, %v1724
        %v2532 = vsel %vm2504, %v2499, %v1726
        %v2533 = vsel %vm2504, %v2500, %v1728
        %v2534 = vsel %vm2504, %v2501, %v1730
        %v2535 = vsel %vm2504, %v2502, %v1732
        %v2536 = vsel %vm2504, %v2503, %v1734
        %vm2537 = vcmask 195584
        %v2538 = vsel %vm2537, %v2505, %v1848
        %v2539 = vsel %vm2537, %v2506, %v1850
        %v2540 = vsel %vm2537, %v2507, %v1852
        %v2541 = vsel %vm2537, %v2508, %v1854
        %v2542 = vsel %vm2537, %v2509, %v1856
        %v2543 = vsel %vm2537, %v2510, %v1858
        %v2544 = vsel %vm2537, %v2511, %v1860
        %v2545 = vsel %vm2537, %v2512, %v1862
        %v2546 = vsel %vm2537, %v2513, %v1864
        %v2547 = vsel %vm2537, %v2514, %v1866
        %v2548 = vsel %vm2537, %v2515, %v1868
        %v2549 = vsel %vm2537, %v2516, %v1870
        %v2550 = vsel %vm2537, %v2517, %v1872
        %v2551 = vsel %vm2537, %v2518, %v1874
        %v2552 = vsel %vm2537, %v2519, %v1876
        %v2553 = vsel %vm2537, %v2520, %v1878
        %v2554 = vsel %vm2537, %v2521, %v1880
        %v2555 = vsel %vm2537, %v2522, %v1882
        %v2556 = vsel %vm2537, %v2523, %v1884
        %v2557 = vsel %vm2537, %v2524, %v1886
        %v2558 = vsel %vm2537, %v2525, %v1888
        %v2559 = vsel %vm2537, %v2526, %v1890
        %v2560 = vsel %vm2537, %v2527, %v1892
        %v2561 = vsel %vm2537, %v2528, %v1894
        %v2562 = vsel %vm2537, %v2529, %v1896
        %v2563 = vsel %vm2537, %v2530, %v1898
        %v2564 = vsel %vm2537, %v2531, %v1900
        %v2565 = vsel %vm2537, %v2532, %v1902
        %v2566 = vsel %vm2537, %v2533, %v1904
        %v2567 = vsel %vm2537, %v2534, %v1906
        %v2568 = vsel %vm2537, %v2535, %v1908
        %v2569 = vsel %vm2537, %v2536, %v1910
        %vm2570 = vcmask 261120
        %v2571 = vsel %vm2570, %v2538, %v2024
        %v2572 = vsel %vm2570, %v2539, %v2026
        %v2573 = vsel %vm2570, %v2540, %v2028
        %v2574 = vsel %vm2570, %v2541, %v2030
        %v2575 = vsel %vm2570, %v2542, %v2032
        %v2576 = vsel %vm2570, %v2543, %v2034
        %v2577 = vsel %vm2570, %v2544, %v2036
        %v2578 = vsel %vm2570, %v2545, %v2038
        %v2579 = vsel %vm2570, %v2546, %v2040
        %v2580 = vsel %vm2570, %v2547, %v2042
        %v2581 = vsel %vm2570, %v2548, %v2044
        %v2582 = vsel %vm2570, %v2549, %v2046
        %v2583 = vsel %vm2570, %v2550, %v2048
        %v2584 = vsel %vm2570, %v2551, %v2050
        %v2585 = vsel %vm2570, %v2552, %v2052
        %v2586 = vsel %vm2570, %v2553, %v2054
        %v2587 = vsel %vm2570, %v2554, %v2056
        %v2588 = vsel %vm2570, %v2555, %v2058
        %v2589 = vsel %vm2570, %v2556, %v2060
        %v2590 = vsel %vm2570, %v2557, %v2062
        %v2591 = vsel %vm2570, %v2558, %v2064
        %v2592 = vsel %vm2570, %v2559, %v2066
        %v2593 = vsel %vm2570, %v2560, %v2068
        %v2594 = vsel %vm2570, %v2561, %v2070
        %v2595 = vsel %vm2570, %v2562, %v2072
        %v2596 = vsel %vm2570, %v2563, %v2074
        %v2597 = vsel %vm2570, %v2564, %v2076
        %v2598 = vsel %vm2570, %v2565, %v2078
        %v2599 = vsel %vm2570, %v2566, %v2080
        %v2600 = vsel %vm2570, %v2567, %v2082
        %v2601 = vsel %vm2570, %v2568, %v2084
        %v2602 = vsel %vm2570, %v2569, %v2086
        %vm2603 = vcmask 326656
        %v2604 = vsel %vm2603, %v2571, %v2200
        %v2605 = vsel %vm2603, %v2572, %v2202
        %v2606 = vsel %vm2603, %v2573, %v2204
        %v2607 = vsel %vm2603, %v2574, %v2206
        %v2608 = vsel %vm2603, %v2575, %v2208
        %v2609 = vsel %vm2603, %v2576, %v2210
        %v2610 = vsel %vm2603, %v2577, %v2212
        %v2611 = vsel %vm2603, %v2578, %v2214
        %v2612 = vsel %vm2603, %v2579, %v2216
        %v2613 = vsel %vm2603, %v2580, %v2218
        %v2614 = vsel %vm2603, %v2581, %v2220
        %v2615 = vsel %vm2603, %v2582, %v2222
        %v2616 = vsel %vm2603, %v2583, %v2224
        %v2617 = vsel %vm2603, %v2584, %v2226
        %v2618 = vsel %vm2603, %v2585, %v2228
        %v2619 = vsel %vm2603, %v2586, %v2230
        %v2620 = vsel %vm2603, %v2587, %v2232
        %v2621 = vsel %vm2603, %v2588, %v2234
        %v2622 = vsel %vm2603, %v2589, %v2236
        %v2623 = vsel %vm2603, %v2590, %v2238
        %v2624 = vsel %vm2603, %v2591, %v2240
        %v2625 = vsel %vm2603, %v2592, %v2242
        %v2626 = vsel %vm2603, %v2593, %v2244
        %v2627 = vsel %vm2603, %v2594, %v2246
        %v2628 = vsel %vm2603, %v2595, %v2248
        %v2629 = vsel %vm2603, %v2596, %v2250
        %v2630 = vsel %vm2603, %v2597, %v2252
        %v2631 = vsel %vm2603, %v2598, %v2254
        %v2632 = vsel %vm2603, %v2599, %v2256
        %v2633 = vsel %vm2603, %v2600, %v2258
        %v2634 = vsel %vm2603, %v2601, %v2260
        %v2635 = vsel %vm2603, %v2602, %v2262
        %vm2636 = vcmask 392192
        %v2637 = vsel %vm2636, %v2604, %v2376
        %v2638 = vsel %vm2636, %v2605, %v2378
        %v2639 = vsel %vm2636, %v2606, %v2380
        %v2640 = vsel %vm2636, %v2607, %v2382
        %v2641 = vsel %vm2636, %v2608, %v2384
        %v2642 = vsel %vm2636, %v2609, %v2386
        %v2643 = vsel %vm2636, %v2610, %v2388
        %v2644 = vsel %vm2636, %v2611, %v2390
        %v2645 = vsel %vm2636, %v2612, %v2392
        %v2646 = vsel %vm2636, %v2613, %v2394
        %v2647 = vsel %vm2636, %v2614, %v2396
        %v2648 = vsel %vm2636, %v2615, %v2398
        %v2649 = vsel %vm2636, %v2616, %v2400
        %v2650 = vsel %vm2636, %v2617, %v2402
        %v2651 = vsel %vm2636, %v2618, %v2404
        %v2652 = vsel %vm2636, %v2619, %v2406
        %v2653 = vsel %vm2636, %v2620, %v2408
        %v2654 = vsel %vm2636, %v2621, %v2410
        %v2655 = vsel %vm2636, %v2622, %v2412
        %v2656 = vsel %vm2636, %v2623, %v2414
        %v2657 = vsel %vm2636, %v2624, %v2416
        %v2658 = vsel %vm2636, %v2625, %v2418
        %v2659 = vsel %vm2636, %v2626, %v2420
        %v2660 = vsel %vm2636, %v2627, %v2422
        %v2661 = vsel %vm2636, %v2628, %v2424
        %v2662 = vsel %vm2636, %v2629, %v2426
        %v2663 = vsel %vm2636, %v2630, %v2428
        %v2664 = vsel %vm2636, %v2631, %v2430
        %v2665 = vsel %vm2636, %v2632, %v2432
        %v2666 = vsel %vm2636, %v2633, %v2434
        %v2667 = vsel %vm2636, %v2634, %v2436
        %v2668 = vsel %vm2636, %v2635, %v2438
        %v2669 = vld [vmem:[%s3] sm:$0xff]
        %v2670 = vld [vmem:[%s3 + $0x8] sm:$0xff]
        %v2671 = vld [vmem:[%s3 + $0x10] sm:$0xff]
        %v2672 = vld [vmem:[%s3 + $0x18] sm:$0xff]
        %v2673 = vld [vmem:[%s3 + $0x20] sm:$0xff]
        %v2674 = vld [vmem:[%s3 + $0x28] sm:$0xff]
        %v2675 = vld [vmem:[%s3 + $0x30] sm:$0xff]
        %v2676 = vld [vmem:[%s4] sm:$0x1]
        %v2678 = vlaneseq
        %v2679 = vshrl.u32 %v2678, 7
        %v2680 = vsub.s32 0, %v2679
        %v2681 = vrot.slane %v2676, %v2680
        %vm2683 = vcmask 457728
        %v2685 = vsel %vm2683, %v2637, 0
        %v2688 = vsel %vm2683, %v2638, 0
        %v2691 = vsel %vm2683, %v2639, 0
        %v2694 = vsel %vm2683, %v2640, 0
        %v2697 = vsel %vm2683, %v2641, 0
        %v2700 = vsel %vm2683, %v2642, 0
        %v2703 = vsel %vm2683, %v2643, 0
        %v2706 = vsel %vm2683, %v2644, 0
        %v2709 = vsel %vm2683, %v2645, 0
        %v2712 = vsel %vm2683, %v2646, 0
        %v2715 = vsel %vm2683, %v2647, 0
        %v2718 = vsel %vm2683, %v2648, 0
        %v2721 = vsel %vm2683, %v2649, 0
        %v2724 = vsel %vm2683, %v2650, 0
        %v2727 = vsel %vm2683, %v2651, 0
        %v2730 = vsel %vm2683, %v2652, 0
        %v2733 = vsel %vm2683, %v2653, 0
        %v2736 = vsel %vm2683, %v2654, 0
        %v2739 = vsel %vm2683, %v2655, 0
        %v2742 = vsel %vm2683, %v2656, 0
        %v2745 = vsel %vm2683, %v2657, 0
        %v2748 = vsel %vm2683, %v2658, 0
        %v2751 = vsel %vm2683, %v2659, 0
        %v2754 = vsel %vm2683, %v2660, 0
        %v2757 = vsel %vm2683, %v2661, 0
        %v2760 = vsel %vm2683, %v2662, 0
        %v2763 = vsel %vm2683, %v2663, 0
        %v2766 = vsel %vm2683, %v2664, 0
        %v2769 = vsel %vm2683, %v2665, 0
        %v2772 = vsel %vm2683, %v2666, 0
        %v2775 = vsel %vm2683, %v2667, 0
        %v2778 = vsel %vm2683, %v2668, 0
        %2780 = vmatprep.subr.mxu0 0.0
        %2781 = vmatpush1.msra.mxu0 %v2669
        %2782 = vmatprep.subr.mxu0 0.0
        %2783 = vmatpush1.msra.mxu0 %v2670
        %2784 = vmatprep.subr.mxu0 0.0
        %2785 = vmatpush1.msra.mxu0 %v2671
        %2786 = vmatprep.subr.mxu0 0.0
        %2787 = vmatpush1.msra.mxu0 %v2672
        %2788 = vmatprep.subr.mxu0 0.0
        %2789 = vmatpush1.msra.mxu0 %v2673
        %2790 = vmatprep.subr.mxu0 0.0
        %2791 = vmatpush1.msra.mxu0 %v2674
        %2792 = vmatprep.subr.mxu0 0.0
        %2793 = vmatpush1.msra.mxu0 %v2675
        %2794 = vmatprep.subr.mxu0 0.0
        %2795 = vmatpush1.msra.mxu0 0.0
        %2796 = vmatprep.subr.mxu0 0.0
        %2797 = vmatpush1.msra.mxu0 0.0
        %2798 = vmatprep.subr.mxu0 0.0
        %2799 = vmatpush1.msra.mxu0 0.0
        %2800 = vmatprep.subr.mxu0 0.0
        %2801 = vmatpush1.msra.mxu0 0.0
        %2802 = vmatprep.subr.mxu0 0.0
        %2803 = vmatpush1.msra.mxu0 0.0
        %2804 = vmatprep.subr.mxu0 0.0
        %2805 = vmatpush1.msra.mxu0 0.0
        %2806 = vmatprep.subr.mxu0 0.0
        %2807 = vmatpush1.msra.mxu0 0.0
        %2808 = vmatprep.subr.mxu0 0.0
        %2809 = vmatpush1.msra.mxu0 0.0
        %2810 = vmatprep.subr.mxu0 0.0
        %2811 = vmatpush1.msra.mxu0 0.0
        %2812 = vmatprep.subr.mxu0 0.0
        %2813 = vmatpush1.msra.mxu0 0.0
        %2814 = vmatprep.subr.mxu0 0.0
        %2815 = vmatpush1.msra.mxu0 0.0
        %2816 = vmatprep.subr.mxu0 0.0
        %2817 = vmatpush1.msra.mxu0 0.0
        %2818 = vmatprep.subr.mxu0 0.0
        %2819 = vmatpush1.msra.mxu0 0.0
        %2820 = vmatprep.subr.mxu0 0.0
        %2821 = vmatpush1.msra.mxu0 0.0
        %2822 = vmatprep.subr.mxu0 0.0
        %2823 = vmatpush1.msra.mxu0 0.0
        %2824 = vmatprep.subr.mxu0 0.0
        %2825 = vmatpush1.msra.mxu0 0.0
        %2826 = vmatprep.subr.mxu0 0.0
        %2827 = vmatpush1.msra.mxu0 0.0
        %2828 = vmatprep.subr.mxu0 0.0
        %2829 = vmatpush1.msra.mxu0 0.0
        %2830 = vmatprep.subr.mxu0 0.0
        %2831 = vmatpush1.msra.mxu0 0.0
        %2832 = vmatprep.subr.mxu0 0.0
        %2833 = vmatpush1.msra.mxu0 0.0
        %2834 = vmatprep.subr.mxu0 0.0
        %2835 = vmatpush1.msra.mxu0 0.0
        %2836 = vmatprep.subr.mxu0 0.0
        %2837 = vmatpush1.msra.mxu0 0.0
        %2838 = vmatprep.subr.mxu0 0.0
        %2839 = vmatpush1.msra.mxu0 0.0
        %2840 = vmatprep.subr.mxu0 0.0
        %2841 = vmatpush1.msra.mxu0 0.0
        %2842 = vmatprep.subr.mxu0 0.0
        %2843 = vmatpush1.msra.mxu0 0.0
        %2844 = vmatprep.mubr.f32.mxu0 0.0
        %2845 = vmatmul.mubr.f32.gmra.mrb[0].mxu0 %v2685
        %v2846 = vpop.f32.mrb[0].mxu0
        %v2847 = vadd.f32 %v2681, %v2846
        %v2848 = vpop.f32.mrb[0].mxu0
        %2849 = vmatprep.mubr.f32.mxu0 0.0
        %2850 = vmatmul.mubr.f32.gmra.mrb[0].mxu0 %v2688
        %v2851 = vpop.f32.mrb[0].mxu0
        %v2852 = vadd.f32 %v2681, %v2851
        %v2853 = vpop.f32.mrb[0].mxu0
        %2854 = vmatprep.mubr.f32.mxu0 0.0
        %2855 = vmatmul.mubr.f32.gmra.mrb[0].mxu0 %v2691
        %v2856 = vpop.f32.mrb[0].mxu0
        %v2857 = vadd.f32 %v2681, %v2856
        %v2858 = vpop.f32.mrb[0].mxu0
        %2859 = vmatprep.mubr.f32.mxu0 0.0
        %2860 = vmatmul.mubr.f32.gmra.mrb[0].mxu0 %v2694
        %v2861 = vpop.f32.mrb[0].mxu0
        %v2862 = vadd.f32 %v2681, %v2861
        %v2863 = vpop.f32.mrb[0].mxu0
        %2864 = vmatprep.mubr.f32.mxu0 0.0
        %2865 = vmatmul.mubr.f32.gmra.mrb[0].mxu0 %v2697
        %v2866 = vpop.f32.mrb[0].mxu0
        %v2867 = vadd.f32 %v2681, %v2866
        %v2868 = vpop.f32.mrb[0].mxu0
        %2869 = vmatprep.mubr.f32.mxu0 0.0
        %2870 = vmatmul.mubr.f32.gmra.mrb[0].mxu0 %v2700
        %v2871 = vpop.f32.mrb[0].mxu0
        %v2872 = vadd.f32 %v2681, %v2871
        %v2873 = vpop.f32.mrb[0].mxu0
        %2874 = vmatprep.mubr.f32.mxu0 0.0
        %2875 = vmatmul.mubr.f32.gmra.mrb[0].mxu0 %v2703
        %v2876 = vpop.f32.mrb[0].mxu0
        %v2877 = vadd.f32 %v2681, %v2876
        %v2878 = vpop.f32.mrb[0].mxu0
        %2879 = vmatprep.mubr.f32.mxu0 0.0
        %2880 = vmatmul.mubr.f32.gmra.mrb[0].mxu0 %v2706
        %v2881 = vpop.f32.mrb[0].mxu0
        %v2882 = vadd.f32 %v2681, %v2881
        %v2883 = vpop.f32.mrb[0].mxu0
        %2884 = vmatprep.mubr.f32.mxu0 0.0
        %2885 = vmatmul.mubr.f32.gmra.mrb[0].mxu0 %v2709
        %v2886 = vpop.f32.mrb[0].mxu0
        %v2887 = vadd.f32 %v2681, %v2886
        %v2888 = vpop.f32.mrb[0].mxu0
        %2889 = vmatprep.mubr.f32.mxu0 0.0
        %2890 = vmatmul.mubr.f32.gmra.mrb[0].mxu0 %v2712
        %v2891 = vpop.f32.mrb[0].mxu0
        %v2892 = vadd.f32 %v2681, %v2891
        %v2893 = vpop.f32.mrb[0].mxu0
        %2894 = vmatprep.mubr.f32.mxu0 0.0
        %2895 = vmatmul.mubr.f32.gmra.mrb[0].mxu0 %v2715
        %v2896 = vpop.f32.mrb[0].mxu0
        %v2897 = vadd.f32 %v2681, %v2896
        %v2898 = vpop.f32.mrb[0].mxu0
        %2899 = vmatprep.mubr.f32.mxu0 0.0
        %2900 = vmatmul.mubr.f32.gmra.mrb[0].mxu0 %v2718
        %v2901 = vpop.f32.mrb[0].mxu0
        %v2902 = vadd.f32 %v2681, %v2901
        %v2903 = vpop.f32.mrb[0].mxu0
        %2904 = vmatprep.mubr.f32.mxu0 0.0
        %2905 = vmatmul.mubr.f32.gmra.mrb[0].mxu0 %v2721
        %v2906 = vpop.f32.mrb[0].mxu0
        %v2907 = vadd.f32 %v2681, %v2906
        %v2908 = vpop.f32.mrb[0].mxu0
        %2909 = vmatprep.mubr.f32.mxu0 0.0
        %2910 = vmatmul.mubr.f32.gmra.mrb[0].mxu0 %v2724
        %v2911 = vpop.f32.mrb[0].mxu0
        %v2912 = vadd.f32 %v2681, %v2911
        %v2913 = vpop.f32.mrb[0].mxu0
        %2914 = vmatprep.mubr.f32.mxu0 0.0
        %2915 = vmatmul.mubr.f32.gmra.mrb[0].mxu0 %v2727
        %v2916 = vpop.f32.mrb[0].mxu0
        %v2917 = vadd.f32 %v2681, %v2916
        %v2918 = vpop.f32.mrb[0].mxu0
        %2919 = vmatprep.mubr.f32.mxu0 0.0
        %2920 = vmatmul.mubr.f32.gmra.mrb[0].mxu0 %v2730
        %v2921 = vpop.f32.mrb[0].mxu0
        %v2922 = vadd.f32 %v2681, %v2921
        %v2923 = vpop.f32.mrb[0].mxu0
        %2924 = vmatprep.mubr.f32.mxu0 0.0
        %2925 = vmatmul.mubr.f32.gmra.mrb[0].mxu0 %v2733
        %v2926 = vpop.f32.mrb[0].mxu0
        %v2927 = vadd.f32 %v2681, %v2926
        %v2928 = vpop.f32.mrb[0].mxu0
        %2929 = vmatprep.mubr.f32.mxu0 0.0
        %2930 = vmatmul.mubr.f32.gmra.mrb[0].mxu0 %v2736
        %v2931 = vpop.f32.mrb[0].mxu0
        %v2932 = vadd.f32 %v2681, %v2931
        %v2933 = vpop.f32.mrb[0].mxu0
        %2934 = vmatprep.mubr.f32.mxu0 0.0
        %2935 = vmatmul.mubr.f32.gmra.mrb[0].mxu0 %v2739
        %v2936 = vpop.f32.mrb[0].mxu0
        %v2937 = vadd.f32 %v2681, %v2936
        %v2938 = vpop.f32.mrb[0].mxu0
        %2939 = vmatprep.mubr.f32.mxu0 0.0
        %2940 = vmatmul.mubr.f32.gmra.mrb[0].mxu0 %v2742
        %v2941 = vpop.f32.mrb[0].mxu0
        %v2942 = vadd.f32 %v2681, %v2941
        %v2943 = vpop.f32.mrb[0].mxu0
        %2944 = vmatprep.mubr.f32.mxu0 0.0
        %2945 = vmatmul.mubr.f32.gmra.mrb[0].mxu0 %v2745
        %v2946 = vpop.f32.mrb[0].mxu0
        %v2947 = vadd.f32 %v2681, %v2946
        %v2948 = vpop.f32.mrb[0].mxu0
        %2949 = vmatprep.mubr.f32.mxu0 0.0
        %2950 = vmatmul.mubr.f32.gmra.mrb[0].mxu0 %v2748
        %v2951 = vpop.f32.mrb[0].mxu0
        %v2952 = vadd.f32 %v2681, %v2951
        %v2953 = vpop.f32.mrb[0].mxu0
        %2954 = vmatprep.mubr.f32.mxu0 0.0
        %2955 = vmatmul.mubr.f32.gmra.mrb[0].mxu0 %v2751
        %v2956 = vpop.f32.mrb[0].mxu0
        %v2957 = vadd.f32 %v2681, %v2956
        %v2958 = vpop.f32.mrb[0].mxu0
        %2959 = vmatprep.mubr.f32.mxu0 0.0
        %2960 = vmatmul.mubr.f32.gmra.mrb[0].mxu0 %v2754
        %v2961 = vpop.f32.mrb[0].mxu0
        %v2962 = vadd.f32 %v2681, %v2961
        %v2963 = vpop.f32.mrb[0].mxu0
        %2964 = vmatprep.mubr.f32.mxu0 0.0
        %2965 = vmatmul.mubr.f32.gmra.mrb[0].mxu0 %v2757
        %v2966 = vpop.f32.mrb[0].mxu0
        %v2967 = vadd.f32 %v2681, %v2966
        %v2968 = vpop.f32.mrb[0].mxu0
        %2969 = vmatprep.mubr.f32.mxu0 0.0
        %2970 = vmatmul.mubr.f32.gmra.mrb[0].mxu0 %v2760
        %v2971 = vpop.f32.mrb[0].mxu0
        %v2972 = vadd.f32 %v2681, %v2971
        %v2973 = vpop.f32.mrb[0].mxu0
        %2974 = vmatprep.mubr.f32.mxu0 0.0
        %2975 = vmatmul.mubr.f32.gmra.mrb[0].mxu0 %v2763
        %v2976 = vpop.f32.mrb[0].mxu0
        %v2977 = vadd.f32 %v2681, %v2976
        %v2978 = vpop.f32.mrb[0].mxu0
        %2979 = vmatprep.mubr.f32.mxu0 0.0
        %2980 = vmatmul.mubr.f32.gmra.mrb[0].mxu0 %v2766
        %v2981 = vpop.f32.mrb[0].mxu0
        %v2982 = vadd.f32 %v2681, %v2981
        %v2983 = vpop.f32.mrb[0].mxu0
        %2984 = vmatprep.mubr.f32.mxu0 0.0
        %2985 = vmatmul.mubr.f32.gmra.mrb[0].mxu0 %v2769
        %v2986 = vpop.f32.mrb[0].mxu0
        %v2987 = vadd.f32 %v2681, %v2986
        %v2988 = vpop.f32.mrb[0].mxu0
        %2989 = vmatprep.mubr.f32.mxu0 0.0
        %2990 = vmatmul.mubr.f32.gmra.mrb[0].mxu0 %v2772
        %v2991 = vpop.f32.mrb[0].mxu0
        %v2992 = vadd.f32 %v2681, %v2991
        %v2993 = vpop.f32.mrb[0].mxu0
        %2994 = vmatprep.mubr.f32.mxu0 0.0
        %2995 = vmatmul.mubr.f32.gmra.mrb[0].mxu0 %v2775
        %v2996 = vpop.f32.mrb[0].mxu0
        %v2997 = vadd.f32 %v2681, %v2996
        %v2998 = vpop.f32.mrb[0].mxu0
        %2999 = vmatprep.mubr.f32.mxu0 0.0
        %3000 = vmatmul.mubr.f32.gmra.mrb[0].mxu0 %v2778
        %v3001 = vpop.f32.mrb[0].mxu0
        %v3002 = vadd.f32 %v2681, %v3001
        %v3003 = vpop.f32.mrb[0].mxu0
        %3004 = vdwg.mxu0
        %v3005 = vmax.f32 %v2847, 0.0
        %v3006 = vmax.f32 %v2852, 0.0
        %v3007 = vmax.f32 %v2857, 0.0
        %v3008 = vmax.f32 %v2862, 0.0
        %v3009 = vmax.f32 %v2867, 0.0
        %v3010 = vmax.f32 %v2872, 0.0
        %v3011 = vmax.f32 %v2877, 0.0
        %v3012 = vmax.f32 %v2882, 0.0
        %v3013 = vmax.f32 %v2887, 0.0
        %v3014 = vmax.f32 %v2892, 0.0
        %v3015 = vmax.f32 %v2897, 0.0
        %v3016 = vmax.f32 %v2902, 0.0
        %v3017 = vmax.f32 %v2907, 0.0
        %v3018 = vmax.f32 %v2912, 0.0
        %v3019 = vmax.f32 %v2917, 0.0
        %v3020 = vmax.f32 %v2922, 0.0
        %v3021 = vmax.f32 %v2927, 0.0
        %v3022 = vmax.f32 %v2932, 0.0
        %v3023 = vmax.f32 %v2937, 0.0
        %v3024 = vmax.f32 %v2942, 0.0
        %v3025 = vmax.f32 %v2947, 0.0
        %v3026 = vmax.f32 %v2952, 0.0
        %v3027 = vmax.f32 %v2957, 0.0
        %v3028 = vmax.f32 %v2962, 0.0
        %v3029 = vmax.f32 %v2967, 0.0
        %v3030 = vmax.f32 %v2972, 0.0
        %v3031 = vmax.f32 %v2977, 0.0
        %v3032 = vmax.f32 %v2982, 0.0
        %v3033 = vmax.f32 %v2987, 0.0
        %v3034 = vmax.f32 %v2992, 0.0
        %v3035 = vmax.f32 %v2997, 0.0
        %v3036 = vmax.f32 %v3002, 0.0
        %3065 = vrot.lane.b32.xlu0 %v3009, 8
        %v3066 = vpop.permute.xlu0 %3065
        %3067 = vrot.lane.b32.xlu0 %v3010, 8
        %v3068 = vpop.permute.xlu0 %3067
        %3069 = vrot.lane.b32.xlu0 %v3007, 8
        %v3070 = vpop.permute.xlu0 %3069
        %3071 = vrot.lane.b32.xlu0 %v3008, 8
        %v3072 = vpop.permute.xlu0 %3071
        %3073 = vrot.lane.b32.xlu0 %v3005, 8
        %v3074 = vpop.permute.xlu0 %3073
        %3075 = vrot.lane.b32.xlu0 %v3006, 8
        %v3076 = vpop.permute.xlu0 %3075
        %3077 = vrot.lane.b32.xlu0 %v3011, 8
        %v3078 = vpop.permute.xlu0 %3077
        %3079 = vrot.lane.b32.xlu0 %v3012, 8
        %v3080 = vpop.permute.xlu0 %3079
        %3081 = vrot.lane.b32.xlu0 %v3013, 8
        %v3082 = vpop.permute.xlu0 %3081
        %3083 = vrot.lane.b32.xlu0 %v3014, 8
        %v3084 = vpop.permute.xlu0 %3083
        %3085 = vrot.lane.b32.xlu0 %v3015, 8
        %v3086 = vpop.permute.xlu0 %3085
        %3087 = vrot.lane.b32.xlu0 %v3016, 8
        %v3088 = vpop.permute.xlu0 %3087
        %3089 = vrot.lane.b32.xlu0 %v3017, 8
        %v3090 = vpop.permute.xlu0 %3089
        %3091 = vrot.lane.b32.xlu0 %v3018, 8
        %v3092 = vpop.permute.xlu0 %3091
        %3093 = vrot.lane.b32.xlu0 %v3019, 8
        %v3094 = vpop.permute.xlu0 %3093
        %3095 = vrot.lane.b32.xlu0 %v3020, 8
        %v3096 = vpop.permute.xlu0 %3095
        %3097 = vrot.lane.b32.xlu0 %v3021, 8
        %v3098 = vpop.permute.xlu0 %3097
        %3099 = vrot.lane.b32.xlu0 %v3022, 8
        %v3100 = vpop.permute.xlu0 %3099
        %3101 = vrot.lane.b32.xlu0 %v3023, 8
        %v3102 = vpop.permute.xlu0 %3101
        %3103 = vrot.lane.b32.xlu0 %v3024, 8
        %v3104 = vpop.permute.xlu0 %3103
        %3105 = vrot.lane.b32.xlu0 %v3025, 8
        %v3106 = vpop.permute.xlu0 %3105
        %3107 = vrot.lane.b32.xlu0 %v3026, 8
        %v3108 = vpop.permute.xlu0 %3107
        %3109 = vrot.lane.b32.xlu0 %v3027, 8
        %v3110 = vpop.permute.xlu0 %3109
        %3111 = vrot.lane.b32.xlu0 %v3028, 8
        %v3112 = vpop.permute.xlu0 %3111
        %3113 = vrot.lane.b32.xlu0 %v3029, 8
        %v3114 = vpop.permute.xlu0 %3113
        %3115 = vrot.lane.b32.xlu0 %v3030, 8
        %v3116 = vpop.permute.xlu0 %3115
        %3117 = vrot.lane.b32.xlu0 %v3031, 8
        %v3118 = vpop.permute.xlu0 %3117
        %3119 = vrot.lane.b32.xlu0 %v3032, 8
        %v3120 = vpop.permute.xlu0 %3119
        %3151 = vrot.lane.b32.xlu0 %v3007, 16
        %v3152 = vpop.permute.xlu0 %3151
        %3153 = vrot.lane.b32.xlu0 %v3008, 16
        %v3154 = vpop.permute.xlu0 %3153
        %3155 = vrot.lane.b32.xlu0 %v3005, 16
        %v3156 = vpop.permute.xlu0 %3155
        %3157 = vrot.lane.b32.xlu0 %v3006, 16
        %v3158 = vpop.permute.xlu0 %3157
        %3159 = vrot.lane.b32.xlu0 %v3009, 16
        %v3160 = vpop.permute.xlu0 %3159
        %3161 = vrot.lane.b32.xlu0 %v3010, 16
        %v3162 = vpop.permute.xlu0 %3161
        %3163 = vrot.lane.b32.xlu0 %v3011, 16
        %v3164 = vpop.permute.xlu0 %3163
        %3165 = vrot.lane.b32.xlu0 %v3012, 16
        %v3166 = vpop.permute.xlu0 %3165
        %3167 = vrot.lane.b32.xlu0 %v3013, 16
        %v3168 = vpop.permute.xlu0 %3167
        %3169 = vrot.lane.b32.xlu0 %v3014, 16
        %v3170 = vpop.permute.xlu0 %3169
        %3171 = vrot.lane.b32.xlu0 %v3015, 16
        %v3172 = vpop.permute.xlu0 %3171
        %3173 = vrot.lane.b32.xlu0 %v3016, 16
        %v3174 = vpop.permute.xlu0 %3173
        %3175 = vrot.lane.b32.xlu0 %v3017, 16
        %v3176 = vpop.permute.xlu0 %3175
        %3177 = vrot.lane.b32.xlu0 %v3018, 16
        %v3178 = vpop.permute.xlu0 %3177
        %3179 = vrot.lane.b32.xlu0 %v3019, 16
        %v3180 = vpop.permute.xlu0 %3179
        %3181 = vrot.lane.b32.xlu0 %v3020, 16
        %v3182 = vpop.permute.xlu0 %3181
        %3183 = vrot.lane.b32.xlu0 %v3021, 16
        %v3184 = vpop.permute.xlu0 %3183
        %3185 = vrot.lane.b32.xlu0 %v3022, 16
        %v3186 = vpop.permute.xlu0 %3185
        %3187 = vrot.lane.b32.xlu0 %v3023, 16
        %v3188 = vpop.permute.xlu0 %3187
        %3189 = vrot.lane.b32.xlu0 %v3024, 16
        %v3190 = vpop.permute.xlu0 %3189
        %3191 = vrot.lane.b32.xlu0 %v3025, 16
        %v3192 = vpop.permute.xlu0 %3191
        %3193 = vrot.lane.b32.xlu0 %v3026, 16
        %v3194 = vpop.permute.xlu0 %3193
        %3195 = vrot.lane.b32.xlu0 %v3027, 16
        %v3196 = vpop.permute.xlu0 %3195
        %3197 = vrot.lane.b32.xlu0 %v3028, 16
        %v3198 = vpop.permute.xlu0 %3197
        %3199 = vrot.lane.b32.xlu0 %v3029, 16
        %v3200 = vpop.permute.xlu0 %3199
        %3201 = vrot.lane.b32.xlu0 %v3030, 16
        %v3202 = vpop.permute.xlu0 %3201
        %3203 = vrot.lane.b32.xlu0 %v3031, 16
        %v3204 = vpop.permute.xlu0 %3203
        %3205 = vrot.lane.b32.xlu0 %v3032, 16
        %v3206 = vpop.permute.xlu0 %3205
        %3207 = vrot.lane.b32.xlu0 %v3033, 16
        %v3208 = vpop.permute.xlu0 %3207
        %3209 = vrot.lane.b32.xlu0 %v3034, 16
        %v3210 = vpop.permute.xlu0 %3209
        %3243 = vrot.lane.b32.xlu0 %v3005, 24
        %v3244 = vpop.permute.xlu0 %3243
        %3245 = vrot.lane.b32.xlu0 %v3006, 24
        %v3246 = vpop.permute.xlu0 %3245
        %3247 = vrot.lane.b32.xlu0 %v3007, 24
        %v3248 = vpop.permute.xlu0 %3247
        %3249 = vrot.lane.b32.xlu0 %v3008, 24
        %v3250 = vpop.permute.xlu0 %3249
        %3251 = vrot.lane.b32.xlu0 %v3009, 24
        %v3252 = vpop.permute.xlu0 %3251
        %3253 = vrot.lane.b32.xlu0 %v3010, 24
        %v3254 = vpop.permute.xlu0 %3253
        %3255 = vrot.lane.b32.xlu0 %v3011, 24
        %v3256 = vpop.permute.xlu0 %3255
        %3257 = vrot.lane.b32.xlu0 %v3012, 24
        %v3258 = vpop.permute.xlu0 %3257
        %3259 = vrot.lane.b32.xlu0 %v3013, 24
        %v3260 = vpop.permute.xlu0 %3259
        %3261 = vrot.lane.b32.xlu0 %v3014, 24
        %v3262 = vpop.permute.xlu0 %3261
        %3263 = vrot.lane.b32.xlu0 %v3015, 24
        %v3264 = vpop.permute.xlu0 %3263
        %3265 = vrot.lane.b32.xlu0 %v3016, 24
        %v3266 = vpop.permute.xlu0 %3265
        %3267 = vrot.lane.b32.xlu0 %v3017, 24
        %v3268 = vpop.permute.xlu0 %3267
        %3269 = vrot.lane.b32.xlu0 %v3018, 24
        %v3270 = vpop.permute.xlu0 %3269
        %3271 = vrot.lane.b32.xlu0 %v3019, 24
        %v3272 = vpop.permute.xlu0 %3271
        %3273 = vrot.lane.b32.xlu0 %v3020, 24
        %v3274 = vpop.permute.xlu0 %3273
        %3275 = vrot.lane.b32.xlu0 %v3021, 24
        %v3276 = vpop.permute.xlu0 %3275
        %3277 = vrot.lane.b32.xlu0 %v3022, 24
        %v3278 = vpop.permute.xlu0 %3277
        %3279 = vrot.lane.b32.xlu0 %v3023, 24
        %v3280 = vpop.permute.xlu0 %3279
        %3281 = vrot.lane.b32.xlu0 %v3024, 24
        %v3282 = vpop.permute.xlu0 %3281
        %3283 = vrot.lane.b32.xlu0 %v3025, 24
        %v3284 = vpop.permute.xlu0 %3283
        %3285 = vrot.lane.b32.xlu0 %v3026, 24
        %v3286 = vpop.permute.xlu0 %3285
        %3287 = vrot.lane.b32.xlu0 %v3027, 24
        %v3288 = vpop.permute.xlu0 %3287
        %3289 = vrot.lane.b32.xlu0 %v3028, 24
        %v3290 = vpop.permute.xlu0 %3289
        %3291 = vrot.lane.b32.xlu0 %v3029, 24
        %v3292 = vpop.permute.xlu0 %3291
        %3293 = vrot.lane.b32.xlu0 %v3030, 24
        %v3294 = vpop.permute.xlu0 %3293
        %3295 = vrot.lane.b32.xlu0 %v3031, 24
        %v3296 = vpop.permute.xlu0 %3295
        %3297 = vrot.lane.b32.xlu0 %v3032, 24
        %v3298 = vpop.permute.xlu0 %3297
        %3299 = vrot.lane.b32.xlu0 %v3033, 24
        %v3300 = vpop.permute.xlu0 %3299
        %3301 = vrot.lane.b32.xlu0 %v3034, 24
        %v3302 = vpop.permute.xlu0 %3301
        %3303 = vrot.lane.b32.xlu0 %v3035, 24
        %v3304 = vpop.permute.xlu0 %3303
        %3305 = vrot.lane.b32.xlu0 %v3036, 24
        %v3306 = vpop.permute.xlu0 %3305
        %3339 = vrot.lane.b32.xlu0 %v3007, 32
        %v3340 = vpop.permute.xlu0 %3339
        %3341 = vrot.lane.b32.xlu0 %v3008, 32
        %v3342 = vpop.permute.xlu0 %3341
        %3343 = vrot.lane.b32.xlu0 %v3009, 32
        %v3344 = vpop.permute.xlu0 %3343
        %3345 = vrot.lane.b32.xlu0 %v3010, 32
        %v3346 = vpop.permute.xlu0 %3345
        %3347 = vrot.lane.b32.xlu0 %v3011, 32
        %v3348 = vpop.permute.xlu0 %3347
        %3349 = vrot.lane.b32.xlu0 %v3012, 32
        %v3350 = vpop.permute.xlu0 %3349
        %3351 = vrot.lane.b32.xlu0 %v3013, 32
        %v3352 = vpop.permute.xlu0 %3351
        %3353 = vrot.lane.b32.xlu0 %v3014, 32
        %v3354 = vpop.permute.xlu0 %3353
        %3355 = vrot.lane.b32.xlu0 %v3015, 32
        %v3356 = vpop.permute.xlu0 %3355
        %3357 = vrot.lane.b32.xlu0 %v3016, 32
        %v3358 = vpop.permute.xlu0 %3357
        %3359 = vrot.lane.b32.xlu0 %v3017, 32
        %v3360 = vpop.permute.xlu0 %3359
        %3361 = vrot.lane.b32.xlu0 %v3018, 32
        %v3362 = vpop.permute.xlu0 %3361
        %3363 = vrot.lane.b32.xlu0 %v3019, 32
        %v3364 = vpop.permute.xlu0 %3363
        %3365 = vrot.lane.b32.xlu0 %v3020, 32
        %v3366 = vpop.permute.xlu0 %3365
        %3367 = vrot.lane.b32.xlu0 %v3021, 32
        %v3368 = vpop.permute.xlu0 %3367
        %3369 = vrot.lane.b32.xlu0 %v3022, 32
        %v3370 = vpop.permute.xlu0 %3369
        %3371 = vrot.lane.b32.xlu0 %v3023, 32
        %v3372 = vpop.permute.xlu0 %3371
        %3373 = vrot.lane.b32.xlu0 %v3024, 32
        %v3374 = vpop.permute.xlu0 %3373
        %3375 = vrot.lane.b32.xlu0 %v3025, 32
        %v3376 = vpop.permute.xlu0 %3375
        %3377 = vrot.lane.b32.xlu0 %v3026, 32
        %v3378 = vpop.permute.xlu0 %3377
        %3379 = vrot.lane.b32.xlu0 %v3027, 32
        %v3380 = vpop.permute.xlu0 %3379
        %3381 = vrot.lane.b32.xlu0 %v3028, 32
        %v3382 = vpop.permute.xlu0 %3381
        %3383 = vrot.lane.b32.xlu0 %v3029, 32
        %v3384 = vpop.permute.xlu0 %3383
        %3385 = vrot.lane.b32.xlu0 %v3030, 32
        %v3386 = vpop.permute.xlu0 %3385
        %3387 = vrot.lane.b32.xlu0 %v3031, 32
        %v3388 = vpop.permute.xlu0 %3387
        %3389 = vrot.lane.b32.xlu0 %v3032, 32
        %v3390 = vpop.permute.xlu0 %3389
        %3391 = vrot.lane.b32.xlu0 %v3033, 32
        %v3392 = vpop.permute.xlu0 %3391
        %3393 = vrot.lane.b32.xlu0 %v3034, 32
        %v3394 = vpop.permute.xlu0 %3393
        %3395 = vrot.lane.b32.xlu0 %v3035, 32
        %v3396 = vpop.permute.xlu0 %3395
        %3397 = vrot.lane.b32.xlu0 %v3036, 32
        %v3398 = vpop.permute.xlu0 %3397
        %3429 = vrot.lane.b32.xlu0 %v3009, 40
        %v3430 = vpop.permute.xlu0 %3429
        %3431 = vrot.lane.b32.xlu0 %v3010, 40
        %v3432 = vpop.permute.xlu0 %3431
        %3433 = vrot.lane.b32.xlu0 %v3011, 40
        %v3434 = vpop.permute.xlu0 %3433
        %3435 = vrot.lane.b32.xlu0 %v3012, 40
        %v3436 = vpop.permute.xlu0 %3435
        %3437 = vrot.lane.b32.xlu0 %v3013, 40
        %v3438 = vpop.permute.xlu0 %3437
        %3439 = vrot.lane.b32.xlu0 %v3014, 40
        %v3440 = vpop.permute.xlu0 %3439
        %3441 = vrot.lane.b32.xlu0 %v3015, 40
        %v3442 = vpop.permute.xlu0 %3441
        %3443 = vrot.lane.b32.xlu0 %v3016, 40
        %v3444 = vpop.permute.xlu0 %3443
        %3445 = vrot.lane.b32.xlu0 %v3017, 40
        %v3446 = vpop.permute.xlu0 %3445
        %3447 = vrot.lane.b32.xlu0 %v3018, 40
        %v3448 = vpop.permute.xlu0 %3447
        %3449 = vrot.lane.b32.xlu0 %v3019, 40
        %v3450 = vpop.permute.xlu0 %3449
        %3451 = vrot.lane.b32.xlu0 %v3020, 40
        %v3452 = vpop.permute.xlu0 %3451
        %3453 = vrot.lane.b32.xlu0 %v3021, 40
        %v3454 = vpop.permute.xlu0 %3453
        %3455 = vrot.lane.b32.xlu0 %v3022, 40
        %v3456 = vpop.permute.xlu0 %3455
        %3457 = vrot.lane.b32.xlu0 %v3023, 40
        %v3458 = vpop.permute.xlu0 %3457
        %3459 = vrot.lane.b32.xlu0 %v3024, 40
        %v3460 = vpop.permute.xlu0 %3459
        %3461 = vrot.lane.b32.xlu0 %v3025, 40
        %v3462 = vpop.permute.xlu0 %3461
        %3463 = vrot.lane.b32.xlu0 %v3026, 40
        %v3464 = vpop.permute.xlu0 %3463
        %3465 = vrot.lane.b32.xlu0 %v3027, 40
        %v3466 = vpop.permute.xlu0 %3465
        %3467 = vrot.lane.b32.xlu0 %v3028, 40
        %v3468 = vpop.permute.xlu0 %3467
        %3469 = vrot.lane.b32.xlu0 %v3029, 40
        %v3470 = vpop.permute.xlu0 %3469
        %3471 = vrot.lane.b32.xlu0 %v3030, 40
        %v3472 = vpop.permute.xlu0 %3471
        %3473 = vrot.lane.b32.xlu0 %v3031, 40
        %v3474 = vpop.permute.xlu0 %3473
        %3475 = vrot.lane.b32.xlu0 %v3032, 40
        %v3476 = vpop.permute.xlu0 %3475
        %3477 = vrot.lane.b32.xlu0 %v3033, 40
        %v3478 = vpop.permute.xlu0 %3477
        %3479 = vrot.lane.b32.xlu0 %v3034, 40
        %v3480 = vpop.permute.xlu0 %3479
        %3481 = vrot.lane.b32.xlu0 %v3035, 40
        %v3482 = vpop.permute.xlu0 %3481
        %3483 = vrot.lane.b32.xlu0 %v3036, 40
        %v3484 = vpop.permute.xlu0 %3483
        %3513 = vrot.lane.b32.xlu0 %v3011, 48
        %v3514 = vpop.permute.xlu0 %3513
        %3515 = vrot.lane.b32.xlu0 %v3012, 48
        %v3516 = vpop.permute.xlu0 %3515
        %3517 = vrot.lane.b32.xlu0 %v3013, 48
        %v3518 = vpop.permute.xlu0 %3517
        %3519 = vrot.lane.b32.xlu0 %v3014, 48
        %v3520 = vpop.permute.xlu0 %3519
        %3521 = vrot.lane.b32.xlu0 %v3015, 48
        %v3522 = vpop.permute.xlu0 %3521
        %3523 = vrot.lane.b32.xlu0 %v3016, 48
        %v3524 = vpop.permute.xlu0 %3523
        %3525 = vrot.lane.b32.xlu0 %v3017, 48
        %v3526 = vpop.permute.xlu0 %3525
        %3527 = vrot.lane.b32.xlu0 %v3018, 48
        %v3528 = vpop.permute.xlu0 %3527
        %3529 = vrot.lane.b32.xlu0 %v3019, 48
        %v3530 = vpop.permute.xlu0 %3529
        %3531 = vrot.lane.b32.xlu0 %v3020, 48
        %v3532 = vpop.permute.xlu0 %3531
        %3533 = vrot.lane.b32.xlu0 %v3021, 48
        %v3534 = vpop.permute.xlu0 %3533
        %3535 = vrot.lane.b32.xlu0 %v3022, 48
        %v3536 = vpop.permute.xlu0 %3535
        %3537 = vrot.lane.b32.xlu0 %v3023, 48
        %v3538 = vpop.permute.xlu0 %3537
        %3539 = vrot.lane.b32.xlu0 %v3024, 48
        %v3540 = vpop.permute.xlu0 %3539
        %3541 = vrot.lane.b32.xlu0 %v3025, 48
        %v3542 = vpop.permute.xlu0 %3541
        %3543 = vrot.lane.b32.xlu0 %v3026, 48
        %v3544 = vpop.permute.xlu0 %3543
        %3545 = vrot.lane.b32.xlu0 %v3027, 48
        %v3546 = vpop.permute.xlu0 %3545
        %3547 = vrot.lane.b32.xlu0 %v3028, 48
        %v3548 = vpop.permute.xlu0 %3547
        %3549 = vrot.lane.b32.xlu0 %v3029, 48
        %v3550 = vpop.permute.xlu0 %3549
        %3551 = vrot.lane.b32.xlu0 %v3030, 48
        %v3552 = vpop.permute.xlu0 %3551
        %3553 = vrot.lane.b32.xlu0 %v3031, 48
        %v3554 = vpop.permute.xlu0 %3553
        %3555 = vrot.lane.b32.xlu0 %v3032, 48
        %v3556 = vpop.permute.xlu0 %3555
        %3557 = vrot.lane.b32.xlu0 %v3033, 48
        %v3558 = vpop.permute.xlu0 %3557
        %3559 = vrot.lane.b32.xlu0 %v3034, 48
        %v3560 = vpop.permute.xlu0 %3559
        %3561 = vrot.lane.b32.xlu0 %v3035, 48
        %v3562 = vpop.permute.xlu0 %3561
        %3563 = vrot.lane.b32.xlu0 %v3036, 48
        %v3564 = vpop.permute.xlu0 %3563
        %v3591 = vsel %vm2471, %v3011, %v3066
        %v3592 = vsel %vm2471, %v3012, %v3068
        %v3593 = vsel %vm2471, %v3009, %v3070
        %v3594 = vsel %vm2471, %v3010, %v3072
        %v3595 = vsel %vm2471, %v3007, %v3074
        %v3596 = vsel %vm2471, %v3008, %v3076
        %v3597 = vsel %vm2471, %v3005, %v3070
        %v3598 = vsel %vm2471, %v3006, %v3072
        %v3599 = vsel %vm2471, %v3007, %v3066
        %v3600 = vsel %vm2471, %v3008, %v3068
        %v3601 = vsel %vm2471, %v3009, %v3078
        %v3602 = vsel %vm2471, %v3010, %v3080
        %v3603 = vsel %vm2471, %v3011, %v3082
        %v3604 = vsel %vm2471, %v3012, %v3084
        %v3605 = vsel %vm2471, %v3013, %v3086
        %v3606 = vsel %vm2471, %v3014, %v3088
        %v3607 = vsel %vm2471, %v3015, %v3090
        %v3608 = vsel %vm2471, %v3016, %v3092
        %v3609 = vsel %vm2471, %v3017, %v3094
        %v3610 = vsel %vm2471, %v3018, %v3096
        %v3611 = vsel %vm2471, %v3019, %v3098
        %v3612 = vsel %vm2471, %v3020, %v3100
        %v3613 = vsel %vm2471, %v3021, %v3102
        %v3614 = vsel %vm2471, %v3022, %v3104
        %v3615 = vsel %vm2471, %v3023, %v3106
        %v3616 = vsel %vm2471, %v3024, %v3108
        %v3617 = vsel %vm2471, %v3025, %v3110
        %v3618 = vsel %vm2471, %v3026, %v3112
        %v3619 = vsel %vm2471, %v3027, %v3114
        %v3620 = vsel %vm2471, %v3028, %v3116
        %v3621 = vsel %vm2471, %v3029, %v3118
        %v3622 = vsel %vm2471, %v3030, %v3120
        %v3623 = vsel %vm2504, %v3591, %v3152
        %v3624 = vsel %vm2504, %v3592, %v3154
        %v3625 = vsel %vm2504, %v3593, %v3156
        %v3626 = vsel %vm2504, %v3594, %v3158
        %v3627 = vsel %vm2504, %v3595, %v3152
        %v3628 = vsel %vm2504, %v3596, %v3154
        %v3629 = vsel %vm2504, %v3597, %v3160
        %v3630 = vsel %vm2504, %v3598, %v3162
        %v3631 = vsel %vm2504, %v3599, %v3164
        %v3632 = vsel %vm2504, %v3600, %v3166
        %v3633 = vsel %vm2504, %v3601, %v3168
        %v3634 = vsel %vm2504, %v3602, %v3170
        %v3635 = vsel %vm2504, %v3603, %v3172
        %v3636 = vsel %vm2504, %v3604, %v3174
        %v3637 = vsel %vm2504, %v3605, %v3176
        %v3638 = vsel %vm2504, %v3606, %v3178
        %v3639 = vsel %vm2504, %v3607, %v3180
        %v3640 = vsel %vm2504, %v3608, %v3182
        %v3641 = vsel %vm2504, %v3609, %v3184
        %v3642 = vsel %vm2504, %v3610, %v3186
        %v3643 = vsel %vm2504, %v3611, %v3188
        %v3644 = vsel %vm2504, %v3612, %v3190
        %v3645 = vsel %vm2504, %v3613, %v3192
        %v3646 = vsel %vm2504, %v3614, %v3194
        %v3647 = vsel %vm2504, %v3615, %v3196
        %v3648 = vsel %vm2504, %v3616, %v3198
        %v3649 = vsel %vm2504, %v3617, %v3200
        %v3650 = vsel %vm2504, %v3618, %v3202
        %v3651 = vsel %vm2504, %v3619, %v3204
        %v3652 = vsel %vm2504, %v3620, %v3206
        %v3653 = vsel %vm2504, %v3621, %v3208
        %v3654 = vsel %vm2504, %v3622, %v3210
        %v3655 = vsel %vm2537, %v3623, %v3244
        %v3656 = vsel %vm2537, %v3624, %v3246
        %v3657 = vsel %vm2537, %v3625, %v3248
        %v3658 = vsel %vm2537, %v3626, %v3250
        %v3659 = vsel %vm2537, %v3627, %v3252
        %v3660 = vsel %vm2537, %v3628, %v3254
        %v3661 = vsel %vm2537, %v3629, %v3256
        %v3662 = vsel %vm2537, %v3630, %v3258
        %v3663 = vsel %vm2537, %v3631, %v3260
        %v3664 = vsel %vm2537, %v3632, %v3262
        %v3665 = vsel %vm2537, %v3633, %v3264
        %v3666 = vsel %vm2537, %v3634, %v3266
        %v3667 = vsel %vm2537, %v3635, %v3268
        %v3668 = vsel %vm2537, %v3636, %v3270
        %v3669 = vsel %vm2537, %v3637, %v3272
        %v3670 = vsel %vm2537, %v3638, %v3274
        %v3671 = vsel %vm2537, %v3639, %v3276
        %v3672 = vsel %vm2537, %v3640, %v3278
        %v3673 = vsel %vm2537, %v3641, %v3280
        %v3674 = vsel %vm2537, %v3642, %v3282
        %v3675 = vsel %vm2537, %v3643, %v3284
        %v3676 = vsel %vm2537, %v3644, %v3286
        %v3677 = vsel %vm2537, %v3645, %v3288
        %v3678 = vsel %vm2537, %v3646, %v3290
        %v3679 = vsel %vm2537, %v3647, %v3292
        %v3680 = vsel %vm2537, %v3648, %v3294
        %v3681 = vsel %vm2537, %v3649, %v3296
        %v3682 = vsel %vm2537, %v3650, %v3298
        %v3683 = vsel %vm2537, %v3651, %v3300
        %v3684 = vsel %vm2537, %v3652, %v3302
        %v3685 = vsel %vm2537, %v3653, %v3304
        %v3686 = vsel %vm2537, %v3654, %v3306
        %v3687 = vsel %vm2570, %v3655, %v3340
        %v3688 = vsel %vm2570, %v3656, %v3342
        %v3689 = vsel %vm2570, %v3657, %v3344
        %v3690 = vsel %vm2570, %v3658, %v3346
        %v3691 = vsel %vm2570, %v3659, %v3348
        %v3692 = vsel %vm2570, %v3660, %v3350
        %v3693 = vsel %vm2570, %v3661, %v3352
        %v3694 = vsel %vm2570, %v3662, %v3354
        %v3695 = vsel %vm2570, %v3663, %v3356
        %v3696 = vsel %vm2570, %v3664, %v3358
        %v3697 = vsel %vm2570, %v3665, %v3360
        %v3698 = vsel %vm2570, %v3666, %v3362
        %v3699 = vsel %vm2570, %v3667, %v3364
        %v3700 = vsel %vm2570, %v3668, %v3366
        %v3701 = vsel %vm2570, %v3669, %v3368
        %v3702 = vsel %vm2570, %v3670, %v3370
        %v3703 = vsel %vm2570, %v3671, %v3372
        %v3704 = vsel %vm2570, %v3672, %v3374
        %v3705 = vsel %vm2570, %v3673, %v3376
        %v3706 = vsel %vm2570, %v3674, %v3378
        %v3707 = vsel %vm2570, %v3675, %v3380
        %v3708 = vsel %vm2570, %v3676, %v3382
        %v3709 = vsel %vm2570, %v3677, %v3384
        %v3710 = vsel %vm2570, %v3678, %v3386
        %v3711 = vsel %vm2570, %v3679, %v3388
        %v3712 = vsel %vm2570, %v3680, %v3390
        %v3713 = vsel %vm2570, %v3681, %v3392
        %v3714 = vsel %vm2570, %v3682, %v3394
        %v3715 = vsel %vm2570, %v3683, %v3396
        %v3716 = vsel %vm2570, %v3684, %v3398
        %v3717 = vsel %vm2570, %v3685, %v3392
        %v3718 = vsel %vm2570, %v3686, %v3394
        %v3719 = vsel %vm2603, %v3687, %v3430
        %v3720 = vsel %vm2603, %v3688, %v3432
        %v3721 = vsel %vm2603, %v3689, %v3434
        %v3722 = vsel %vm2603, %v3690, %v3436
        %v3723 = vsel %vm2603, %v3691, %v3438
        %v3724 = vsel %vm2603, %v3692, %v3440
        %v3725 = vsel %vm2603, %v3693, %v3442
        %v3726 = vsel %vm2603, %v3694, %v3444
        %v3727 = vsel %vm2603, %v3695, %v3446
        %v3728 = vsel %vm2603, %v3696, %v3448
        %v3729 = vsel %vm2603, %v3697, %v3450
        %v3730 = vsel %vm2603, %v3698, %v3452
        %v3731 = vsel %vm2603, %v3699, %v3454
        %v3732 = vsel %vm2603, %v3700, %v3456
        %v3733 = vsel %vm2603, %v3701, %v3458
        %v3734 = vsel %vm2603, %v3702, %v3460
        %v3735 = vsel %vm2603, %v3703, %v3462
        %v3736 = vsel %vm2603, %v3704, %v3464
        %v3737 = vsel %vm2603, %v3705, %v3466
        %v3738 = vsel %vm2603, %v3706, %v3468
        %v3739 = vsel %vm2603, %v3707, %v3470
        %v3740 = vsel %vm2603, %v3708, %v3472
        %v3741 = vsel %vm2603, %v3709, %v3474
        %v3742 = vsel %vm2603, %v3710, %v3476
        %v3743 = vsel %vm2603, %v3711, %v3478
        %v3744 = vsel %vm2603, %v3712, %v3480
        %v3745 = vsel %vm2603, %v3713, %v3482
        %v3746 = vsel %vm2603, %v3714, %v3484
        %v3747 = vsel %vm2603, %v3715, %v3478
        %v3748 = vsel %vm2603, %v3716, %v3480
        %v3749 = vsel %vm2603, %v3717, %v3474
        %v3750 = vsel %vm2603, %v3718, %v3476
        %v3751 = vsel %vm2636, %v3719, %v3514
        %v3752 = vsel %vm2636, %v3720, %v3516
        %v3753 = vsel %vm2636, %v3721, %v3518
        %v3754 = vsel %vm2636, %v3722, %v3520
        %v3755 = vsel %vm2636, %v3723, %v3522
        %v3756 = vsel %vm2636, %v3724, %v3524
        %v3757 = vsel %vm2636, %v3725, %v3526
        %v3758 = vsel %vm2636, %v3726, %v3528
        %v3759 = vsel %vm2636, %v3727, %v3530
        %v3760 = vsel %vm2636, %v3728, %v3532
        %v3761 = vsel %vm2636, %v3729, %v3534
        %v3762 = vsel %vm2636, %v3730, %v3536
        %v3763 = vsel %vm2636, %v3731, %v3538
        %v3764 = vsel %vm2636, %v3732, %v3540
        %v3765 = vsel %vm2636, %v3733, %v3542
        %v3766 = vsel %vm2636, %v3734, %v3544
        %v3767 = vsel %vm2636, %v3735, %v3546
        %v3768 = vsel %vm2636, %v3736, %v3548
        %v3769 = vsel %vm2636, %v3737, %v3550
        %v3770 = vsel %vm2636, %v3738, %v3552
        %v3771 = vsel %vm2636, %v3739, %v3554
        %v3772 = vsel %vm2636, %v3740, %v3556
        %v3773 = vsel %vm2636, %v3741, %v3558
        %v3774 = vsel %vm2636, %v3742, %v3560
        %v3775 = vsel %vm2636, %v3743, %v3562
        %v3776 = vsel %vm2636, %v3744, %v3564
        %v3777 = vsel %vm2636, %v3745, %v3558
        %v3778 = vsel %vm2636, %v3746, %v3560
        %v3779 = vsel %vm2636, %v3747, %v3554
        %v3780 = vsel %vm2636, %v3748, %v3556
        %v3781 = vsel %vm2636, %v3749, %v3550
        %v3782 = vsel %vm2636, %v3750, %v3552
        %v3783 = vld [vmem:[%s5] sm:$0xff]
        %v3784 = vld [vmem:[%s5 + $0x8] sm:$0xff]
        %v3785 = vld [vmem:[%s5 + $0x10] sm:$0xff]
        %v3786 = vld [vmem:[%s5 + $0x18] sm:$0xff]
        %v3787 = vld [vmem:[%s5 + $0x20] sm:$0xff]
        %v3788 = vld [vmem:[%s5 + $0x28] sm:$0xff]
        %v3789 = vld [vmem:[%s5 + $0x30] sm:$0xff]
        %v3790 = vld [vmem:[%s6] sm:$0x1]
        %v3792 = vlaneseq
        %v3793 = vshrl.u32 %v3792, 7
        %v3794 = vsub.s32 0, %v3793
        %v3795 = vrot.slane %v3790, %v3794
        %v3798 = vsel %vm2683, %v3751, 0
        %v3801 = vsel %vm2683, %v3752, 0
        %v3804 = vsel %vm2683, %v3753, 0
        %v3807 = vsel %vm2683, %v3754, 0
        %v3810 = vsel %vm2683, %v3755, 0
        %v3813 = vsel %vm2683, %v3756, 0
        %v3816 = vsel %vm2683, %v3757, 0
        %v3819 = vsel %vm2683, %v3758, 0
        %v3822 = vsel %vm2683, %v3759, 0
        %v3825 = vsel %vm2683, %v3760, 0
        %v3828 = vsel %vm2683, %v3761, 0
        %v3831 = vsel %vm2683, %v3762, 0
        %v3834 = vsel %vm2683, %v3763, 0
        %v3837 = vsel %vm2683, %v3764, 0
        %v3840 = vsel %vm2683, %v3765, 0
        %v3843 = vsel %vm2683, %v3766, 0
        %v3846 = vsel %vm2683, %v3767, 0
        %v3849 = vsel %vm2683, %v3768, 0
        %v3852 = vsel %vm2683, %v3769, 0
        %v3855 = vsel %vm2683, %v3770, 0
        %v3858 = vsel %vm2683, %v3771, 0
        %v3861 = vsel %vm2683, %v3772, 0
        %v3864 = vsel %vm2683, %v3773, 0
        %v3867 = vsel %vm2683, %v3774, 0
        %v3870 = vsel %vm2683, %v3775, 0
        %v3873 = vsel %vm2683, %v3776, 0
        %v3876 = vsel %vm2683, %v3777, 0
        %v3879 = vsel %vm2683, %v3778, 0
        %v3882 = vsel %vm2683, %v3779, 0
        %v3885 = vsel %vm2683, %v3780, 0
        %v3888 = vsel %vm2683, %v3781, 0
        %v3891 = vsel %vm2683, %v3782, 0
        %3893 = vmatprep.subr.mxu0 0.0
        %3894 = vmatpush1.msra.mxu0 %v3783
        %3895 = vmatprep.subr.mxu0 0.0
        %3896 = vmatpush1.msra.mxu0 %v3784
        %3897 = vmatprep.subr.mxu0 0.0
        %3898 = vmatpush1.msra.mxu0 %v3785
        %3899 = vmatprep.subr.mxu0 0.0
        %3900 = vmatpush1.msra.mxu0 %v3786
        %3901 = vmatprep.subr.mxu0 0.0
        %3902 = vmatpush1.msra.mxu0 %v3787
        %3903 = vmatprep.subr.mxu0 0.0
        %3904 = vmatpush1.msra.mxu0 %v3788
        %3905 = vmatprep.subr.mxu0 0.0
        %3906 = vmatpush1.msra.mxu0 %v3789
        %3907 = vmatprep.subr.mxu0 0.0
        %3908 = vmatpush1.msra.mxu0 0.0
        %3909 = vmatprep.subr.mxu0 0.0
        %3910 = vmatpush1.msra.mxu0 0.0
        %3911 = vmatprep.subr.mxu0 0.0
        %3912 = vmatpush1.msra.mxu0 0.0
        %3913 = vmatprep.subr.mxu0 0.0
        %3914 = vmatpush1.msra.mxu0 0.0
        %3915 = vmatprep.subr.mxu0 0.0
        %3916 = vmatpush1.msra.mxu0 0.0
        %3917 = vmatprep.subr.mxu0 0.0
        %3918 = vmatpush1.msra.mxu0 0.0
        %3919 = vmatprep.subr.mxu0 0.0
        %3920 = vmatpush1.msra.mxu0 0.0
        %3921 = vmatprep.subr.mxu0 0.0
        %3922 = vmatpush1.msra.mxu0 0.0
        %3923 = vmatprep.subr.mxu0 0.0
        %3924 = vmatpush1.msra.mxu0 0.0
        %3925 = vmatprep.subr.mxu0 0.0
        %3926 = vmatpush1.msra.mxu0 0.0
        %3927 = vmatprep.subr.mxu0 0.0
        %3928 = vmatpush1.msra.mxu0 0.0
        %3929 = vmatprep.subr.mxu0 0.0
        %3930 = vmatpush1.msra.mxu0 0.0
        %3931 = vmatprep.subr.mxu0 0.0
        %3932 = vmatpush1.msra.mxu0 0.0
        %3933 = vmatprep.subr.mxu0 0.0
        %3934 = vmatpush1.msra.mxu0 0.0
        %3935 = vmatprep.subr.mxu0 0.0
        %3936 = vmatpush1.msra.mxu0 0.0
        %3937 = vmatprep.subr.mxu0 0.0
        %3938 = vmatpush1.msra.mxu0 0.0
        %3939 = vmatprep.subr.mxu0 0.0
        %3940 = vmatpush1.msra.mxu0 0.0
        %3941 = vmatprep.subr.mxu0 0.0
        %3942 = vmatpush1.msra.mxu0 0.0
        %3943 = vmatprep.subr.mxu0 0.0
        %3944 = vmatpush1.msra.mxu0 0.0
        %3945 = vmatprep.subr.mxu0 0.0
        %3946 = vmatpush1.msra.mxu0 0.0
        %3947 = vmatprep.subr.mxu0 0.0
        %3948 = vmatpush1.msra.mxu0 0.0
        %3949 = vmatprep.subr.mxu0 0.0
        %3950 = vmatpush1.msra.mxu0 0.0
        %3951 = vmatprep.subr.mxu0 0.0
        %3952 = vmatpush1.msra.mxu0 0.0
        %3953 = vmatprep.subr.mxu0 0.0
        %3954 = vmatpush1.msra.mxu0 0.0
        %3955 = vmatprep.subr.mxu0 0.0
        %3956 = vmatpush1.msra.mxu0 0.0
        %3957 = vmatprep.mubr.f32.mxu0 0.0
        %3958 = vmatmul.mubr.f32.gmra.mrb[0].mxu0 %v3798
        %v3959 = vpop.f32.mrb[0].mxu0
        %v3960 = vadd.f32 %v3795, %v3959
        %v3961 = vpop.f32.mrb[0].mxu0
        %3962 = vmatprep.mubr.f32.mxu0 0.0
        %3963 = vmatmul.mubr.f32.gmra.mrb[0].mxu0 %v3801
        %v3964 = vpop.f32.mrb[0].mxu0
        %v3965 = vadd.f32 %v3795, %v3964
        %v3966 = vpop.f32.mrb[0].mxu0
        %3967 = vmatprep.mubr.f32.mxu0 0.0
        %3968 = vmatmul.mubr.f32.gmra.mrb[0].mxu0 %v3804
        %v3969 = vpop.f32.mrb[0].mxu0
        %v3970 = vadd.f32 %v3795, %v3969
        %v3971 = vpop.f32.mrb[0].mxu0
        %3972 = vmatprep.mubr.f32.mxu0 0.0
        %3973 = vmatmul.mubr.f32.gmra.mrb[0].mxu0 %v3807
        %v3974 = vpop.f32.mrb[0].mxu0
        %v3975 = vadd.f32 %v3795, %v3974
        %v3976 = vpop.f32.mrb[0].mxu0
        %3977 = vmatprep.mubr.f32.mxu0 0.0
        %3978 = vmatmul.mubr.f32.gmra.mrb[0].mxu0 %v3810
        %v3979 = vpop.f32.mrb[0].mxu0
        %v3980 = vadd.f32 %v3795, %v3979
        %v3981 = vpop.f32.mrb[0].mxu0
        %3982 = vmatprep.mubr.f32.mxu0 0.0
        %3983 = vmatmul.mubr.f32.gmra.mrb[0].mxu0 %v3813
        %v3984 = vpop.f32.mrb[0].mxu0
        %v3985 = vadd.f32 %v3795, %v3984
        %v3986 = vpop.f32.mrb[0].mxu0
        %3987 = vmatprep.mubr.f32.mxu0 0.0
        %3988 = vmatmul.mubr.f32.gmra.mrb[0].mxu0 %v3816
        %v3989 = vpop.f32.mrb[0].mxu0
        %v3990 = vadd.f32 %v3795, %v3989
        %v3991 = vpop.f32.mrb[0].mxu0
        %3992 = vmatprep.mubr.f32.mxu0 0.0
        %3993 = vmatmul.mubr.f32.gmra.mrb[0].mxu0 %v3819
        %v3994 = vpop.f32.mrb[0].mxu0
        %v3995 = vadd.f32 %v3795, %v3994
        %v3996 = vpop.f32.mrb[0].mxu0
        %3997 = vmatprep.mubr.f32.mxu0 0.0
        %3998 = vmatmul.mubr.f32.gmra.mrb[0].mxu0 %v3822
        %v3999 = vpop.f32.mrb[0].mxu0
        %v4000 = vadd.f32 %v3795, %v3999
        %v4001 = vpop.f32.mrb[0].mxu0
        %4002 = vmatprep.mubr.f32.mxu0 0.0
        %4003 = vmatmul.mubr.f32.gmra.mrb[0].mxu0 %v3825
        %v4004 = vpop.f32.mrb[0].mxu0
        %v4005 = vadd.f32 %v3795, %v4004
        %v4006 = vpop.f32.mrb[0].mxu0
        %4007 = vmatprep.mubr.f32.mxu0 0.0
        %4008 = vmatmul.mubr.f32.gmra.mrb[0].mxu0 %v3828
        %v4009 = vpop.f32.mrb[0].mxu0
        %v4010 = vadd.f32 %v3795, %v4009
        %v4011 = vpop.f32.mrb[0].mxu0
        %4012 = vmatprep.mubr.f32.mxu0 0.0
        %4013 = vmatmul.mubr.f32.gmra.mrb[0].mxu0 %v3831
        %v4014 = vpop.f32.mrb[0].mxu0
        %v4015 = vadd.f32 %v3795, %v4014
        %v4016 = vpop.f32.mrb[0].mxu0
        %4017 = vmatprep.mubr.f32.mxu0 0.0
        %4018 = vmatmul.mubr.f32.gmra.mrb[0].mxu0 %v3834
        %v4019 = vpop.f32.mrb[0].mxu0
        %v4020 = vadd.f32 %v3795, %v4019
        %v4021 = vpop.f32.mrb[0].mxu0
        %4022 = vmatprep.mubr.f32.mxu0 0.0
        %4023 = vmatmul.mubr.f32.gmra.mrb[0].mxu0 %v3837
        %v4024 = vpop.f32.mrb[0].mxu0
        %v4025 = vadd.f32 %v3795, %v4024
        %v4026 = vpop.f32.mrb[0].mxu0
        %4027 = vmatprep.mubr.f32.mxu0 0.0
        %4028 = vmatmul.mubr.f32.gmra.mrb[0].mxu0 %v3840
        %v4029 = vpop.f32.mrb[0].mxu0
        %v4030 = vadd.f32 %v3795, %v4029
        %v4031 = vpop.f32.mrb[0].mxu0
        %4032 = vmatprep.mubr.f32.mxu0 0.0
        %4033 = vmatmul.mubr.f32.gmra.mrb[0].mxu0 %v3843
        %v4034 = vpop.f32.mrb[0].mxu0
        %v4035 = vadd.f32 %v3795, %v4034
        %v4036 = vpop.f32.mrb[0].mxu0
        %4037 = vmatprep.mubr.f32.mxu0 0.0
        %4038 = vmatmul.mubr.f32.gmra.mrb[0].mxu0 %v3846
        %v4039 = vpop.f32.mrb[0].mxu0
        %v4040 = vadd.f32 %v3795, %v4039
        %v4041 = vpop.f32.mrb[0].mxu0
        %4042 = vmatprep.mubr.f32.mxu0 0.0
        %4043 = vmatmul.mubr.f32.gmra.mrb[0].mxu0 %v3849
        %v4044 = vpop.f32.mrb[0].mxu0
        %v4045 = vadd.f32 %v3795, %v4044
        %v4046 = vpop.f32.mrb[0].mxu0
        %4047 = vmatprep.mubr.f32.mxu0 0.0
        %4048 = vmatmul.mubr.f32.gmra.mrb[0].mxu0 %v3852
        %v4049 = vpop.f32.mrb[0].mxu0
        %v4050 = vadd.f32 %v3795, %v4049
        %v4051 = vpop.f32.mrb[0].mxu0
        %4052 = vmatprep.mubr.f32.mxu0 0.0
        %4053 = vmatmul.mubr.f32.gmra.mrb[0].mxu0 %v3855
        %v4054 = vpop.f32.mrb[0].mxu0
        %v4055 = vadd.f32 %v3795, %v4054
        %v4056 = vpop.f32.mrb[0].mxu0
        %4057 = vmatprep.mubr.f32.mxu0 0.0
        %4058 = vmatmul.mubr.f32.gmra.mrb[0].mxu0 %v3858
        %v4059 = vpop.f32.mrb[0].mxu0
        %v4060 = vadd.f32 %v3795, %v4059
        %v4061 = vpop.f32.mrb[0].mxu0
        %4062 = vmatprep.mubr.f32.mxu0 0.0
        %4063 = vmatmul.mubr.f32.gmra.mrb[0].mxu0 %v3861
        %v4064 = vpop.f32.mrb[0].mxu0
        %v4065 = vadd.f32 %v3795, %v4064
        %v4066 = vpop.f32.mrb[0].mxu0
        %4067 = vmatprep.mubr.f32.mxu0 0.0
        %4068 = vmatmul.mubr.f32.gmra.mrb[0].mxu0 %v3864
        %v4069 = vpop.f32.mrb[0].mxu0
        %v4070 = vadd.f32 %v3795, %v4069
        %v4071 = vpop.f32.mrb[0].mxu0
        %4072 = vmatprep.mubr.f32.mxu0 0.0
        %4073 = vmatmul.mubr.f32.gmra.mrb[0].mxu0 %v3867
        %v4074 = vpop.f32.mrb[0].mxu0
        %v4075 = vadd.f32 %v3795, %v4074
        %v4076 = vpop.f32.mrb[0].mxu0
        %4077 = vmatprep.mubr.f32.mxu0 0.0
        %4078 = vmatmul.mubr.f32.gmra.mrb[0].mxu0 %v3870
        %v4079 = vpop.f32.mrb[0].mxu0
        %v4080 = vadd.f32 %v3795, %v4079
        %v4081 = vpop.f32.mrb[0].mxu0
        %4082 = vmatprep.mubr.f32.mxu0 0.0
        %4083 = vmatmul.mubr.f32.gmra.mrb[0].mxu0 %v3873
        %v4084 = vpop.f32.mrb[0].mxu0
        %v4085 = vadd.f32 %v3795, %v4084
        %v4086 = vpop.f32.mrb[0].mxu0
        %4087 = vmatprep.mubr.f32.mxu0 0.0
        %4088 = vmatmul.mubr.f32.gmra.mrb[0].mxu0 %v3876
        %v4089 = vpop.f32.mrb[0].mxu0
        %v4090 = vadd.f32 %v3795, %v4089
        %v4091 = vpop.f32.mrb[0].mxu0
        %4092 = vmatprep.mubr.f32.mxu0 0.0
        %4093 = vmatmul.mubr.f32.gmra.mrb[0].mxu0 %v3879
        %v4094 = vpop.f32.mrb[0].mxu0
        %v4095 = vadd.f32 %v3795, %v4094
        %v4096 = vpop.f32.mrb[0].mxu0
        %4097 = vmatprep.mubr.f32.mxu0 0.0
        %4098 = vmatmul.mubr.f32.gmra.mrb[0].mxu0 %v3882
        %v4099 = vpop.f32.mrb[0].mxu0
        %v4100 = vadd.f32 %v3795, %v4099
        %v4101 = vpop.f32.mrb[0].mxu0
        %4102 = vmatprep.mubr.f32.mxu0 0.0
        %4103 = vmatmul.mubr.f32.gmra.mrb[0].mxu0 %v3885
        %v4104 = vpop.f32.mrb[0].mxu0
        %v4105 = vadd.f32 %v3795, %v4104
        %v4106 = vpop.f32.mrb[0].mxu0
        %4107 = vmatprep.mubr.f32.mxu0 0.0
        %4108 = vmatmul.mubr.f32.gmra.mrb[0].mxu0 %v3888
        %v4109 = vpop.f32.mrb[0].mxu0
        %v4110 = vadd.f32 %v3795, %v4109
        %v4111 = vpop.f32.mrb[0].mxu0
        %4112 = vmatprep.mubr.f32.mxu0 0.0
        %4113 = vmatmul.mubr.f32.gmra.mrb[0].mxu0 %v3891
        %v4114 = vpop.f32.mrb[0].mxu0
        %v4115 = vadd.f32 %v3795, %v4114
        %v4116 = vpop.f32.mrb[0].mxu0
        %4117 = vdwg.mxu0
        %v4118 = vmax.f32 %v3960, 0.0
        %v4119 = vmax.f32 %v3965, 0.0
        %v4120 = vmax.f32 %v3970, 0.0
        %v4121 = vmax.f32 %v3975, 0.0
        %v4122 = vmax.f32 %v3980, 0.0
        %v4123 = vmax.f32 %v3985, 0.0
        %v4124 = vmax.f32 %v3990, 0.0
        %v4125 = vmax.f32 %v3995, 0.0
        %v4126 = vmax.f32 %v4000, 0.0
        %v4127 = vmax.f32 %v4005, 0.0
        %v4128 = vmax.f32 %v4010, 0.0
        %v4129 = vmax.f32 %v4015, 0.0
        %v4130 = vmax.f32 %v4020, 0.0
        %v4131 = vmax.f32 %v4025, 0.0
        %v4132 = vmax.f32 %v4030, 0.0
        %v4133 = vmax.f32 %v4035, 0.0
        %v4134 = vmax.f32 %v4040, 0.0
        %v4135 = vmax.f32 %v4045, 0.0
        %v4136 = vmax.f32 %v4050, 0.0
        %v4137 = vmax.f32 %v4055, 0.0
        %v4138 = vmax.f32 %v4060, 0.0
        %v4139 = vmax.f32 %v4065, 0.0
        %v4140 = vmax.f32 %v4070, 0.0
        %v4141 = vmax.f32 %v4075, 0.0
        %v4142 = vmax.f32 %v4080, 0.0
        %v4143 = vmax.f32 %v4085, 0.0
        %v4144 = vmax.f32 %v4090, 0.0
        %v4145 = vmax.f32 %v4095, 0.0
        %v4146 = vmax.f32 %v4100, 0.0
        %v4147 = vmax.f32 %v4105, 0.0
        %v4148 = vmax.f32 %v4110, 0.0
        %v4149 = vmax.f32 %v4115, 0.0
        %4150 = vrot.lane.b32.xlu0 %v1284, 112
        %v4151 = vpop.permute.xlu0 %4150
        %4152 = vrot.lane.b32.xlu0 %v1076, 112
        %v4153 = vpop.permute.xlu0 %4152
        %4154 = vrot.lane.b32.xlu0 %v1285, 112
        %v4155 = vpop.permute.xlu0 %4154
        %4156 = vrot.lane.b32.xlu0 %v1079, 112
        %v4157 = vpop.permute.xlu0 %4156
        %4158 = vrot.lane.b32.xlu0 %v1286, 112
        %v4159 = vpop.permute.xlu0 %4158
        %4160 = vrot.lane.b32.xlu0 %v1082, 112
        %v4161 = vpop.permute.xlu0 %4160
        %4162 = vrot.lane.b32.xlu0 %v1287, 112
        %v4163 = vpop.permute.xlu0 %4162
        %4164 = vrot.lane.b32.xlu0 %v1085, 112
        %v4165 = vpop.permute.xlu0 %4164
        %4166 = vrot.lane.b32.xlu0 %v1288, 112
        %v4167 = vpop.permute.xlu0 %4166
        %4168 = vrot.lane.b32.xlu0 %v1088, 112
        %v4169 = vpop.permute.xlu0 %4168
        %4170 = vrot.lane.b32.xlu0 %v1289, 112
        %v4171 = vpop.permute.xlu0 %4170
        %4172 = vrot.lane.b32.xlu0 %v1091, 112
        %v4173 = vpop.permute.xlu0 %4172
        %4174 = vrot.lane.b32.xlu0 %v1290, 112
        %v4175 = vpop.permute.xlu0 %4174
        %4176 = vrot.lane.b32.xlu0 %v1094, 112
        %v4177 = vpop.permute.xlu0 %4176
        %4178 = vrot.lane.b32.xlu0 %v1291, 112
        %v4179 = vpop.permute.xlu0 %4178
        %4180 = vrot.lane.b32.xlu0 %v1097, 112
        %v4181 = vpop.permute.xlu0 %4180
        %4182 = vrot.lane.b32.xlu0 %v1292, 112
        %v4183 = vpop.permute.xlu0 %4182
        %4184 = vrot.lane.b32.xlu0 %v1100, 112
        %v4185 = vpop.permute.xlu0 %4184
        %4186 = vrot.lane.b32.xlu0 %v1293, 112
        %v4187 = vpop.permute.xlu0 %4186
        %4188 = vrot.lane.b32.xlu0 %v1103, 112
        %v4189 = vpop.permute.xlu0 %4188
        %4190 = vrot.lane.b32.xlu0 %v1294, 112
        %v4191 = vpop.permute.xlu0 %4190
        %4192 = vrot.lane.b32.xlu0 %v1106, 112
        %v4193 = vpop.permute.xlu0 %4192
        %4194 = vrot.lane.b32.xlu0 %v1295, 112
        %v4195 = vpop.permute.xlu0 %4194
        %4196 = vrot.lane.b32.xlu0 %v1109, 112
        %v4197 = vpop.permute.xlu0 %4196
        %4198 = vrot.lane.b32.xlu0 %v1296, 112
        %v4199 = vpop.permute.xlu0 %4198
        %4200 = vrot.lane.b32.xlu0 %v1112, 112
        %v4201 = vpop.permute.xlu0 %4200
        %4202 = vrot.lane.b32.xlu0 %v1297, 112
        %v4203 = vpop.permute.xlu0 %4202
        %4204 = vrot.lane.b32.xlu0 %v1115, 112
        %v4205 = vpop.permute.xlu0 %4204
        %4206 = vrot.lane.b32.xlu0 %v1298, 112
        %v4207 = vpop.permute.xlu0 %4206
        %4208 = vrot.lane.b32.xlu0 %v1118, 112
        %v4209 = vpop.permute.xlu0 %4208
        %4210 = vrot.lane.b32.xlu0 %v1299, 112
        %v4211 = vpop.permute.xlu0 %4210
        %4212 = vrot.lane.b32.xlu0 %v1121, 112
        %v4213 = vpop.permute.xlu0 %4212
        %4246 = vrot.lane.b32.xlu0 %v1480, 120
        %v4247 = vpop.permute.xlu0 %4246
        %4248 = vrot.lane.b32.xlu0 %v1482, 120
        %v4249 = vpop.permute.xlu0 %4248
        %4250 = vrot.lane.b32.xlu0 %v1485, 120
        %v4251 = vpop.permute.xlu0 %4250
        %4252 = vrot.lane.b32.xlu0 %v1487, 120
        %v4253 = vpop.permute.xlu0 %4252
        %4254 = vrot.lane.b32.xlu0 %v1490, 120
        %v4255 = vpop.permute.xlu0 %4254
        %4256 = vrot.lane.b32.xlu0 %v1492, 120
        %v4257 = vpop.permute.xlu0 %4256
        %4258 = vrot.lane.b32.xlu0 %v1495, 120
        %v4259 = vpop.permute.xlu0 %4258
        %4260 = vrot.lane.b32.xlu0 %v1497, 120
        %v4261 = vpop.permute.xlu0 %4260
        %4262 = vrot.lane.b32.xlu0 %v1500, 120
        %v4263 = vpop.permute.xlu0 %4262
        %4264 = vrot.lane.b32.xlu0 %v1502, 120
        %v4265 = vpop.permute.xlu0 %4264
        %4266 = vrot.lane.b32.xlu0 %v1505, 120
        %v4267 = vpop.permute.xlu0 %4266
        %4268 = vrot.lane.b32.xlu0 %v1507, 120
        %v4269 = vpop.permute.xlu0 %4268
        %4270 = vrot.lane.b32.xlu0 %v1510, 120
        %v4271 = vpop.permute.xlu0 %4270
        %4272 = vrot.lane.b32.xlu0 %v1512, 120
        %v4273 = vpop.permute.xlu0 %4272
        %4274 = vrot.lane.b32.xlu0 %v1515, 120
        %v4275 = vpop.permute.xlu0 %4274
        %4276 = vrot.lane.b32.xlu0 %v1517, 120
        %v4277 = vpop.permute.xlu0 %4276
        %4278 = vrot.lane.b32.xlu0 %v1520, 120
        %v4279 = vpop.permute.xlu0 %4278
        %4280 = vrot.lane.b32.xlu0 %v1522, 120
        %v4281 = vpop.permute.xlu0 %4280
        %4282 = vrot.lane.b32.xlu0 %v1525, 120
        %v4283 = vpop.permute.xlu0 %4282
        %4284 = vrot.lane.b32.xlu0 %v1527, 120
        %v4285 = vpop.permute.xlu0 %4284
        %4286 = vrot.lane.b32.xlu0 %v1530, 120
        %v4287 = vpop.permute.xlu0 %4286
        %4288 = vrot.lane.b32.xlu0 %v1532, 120
        %v4289 = vpop.permute.xlu0 %4288
        %4290 = vrot.lane.b32.xlu0 %v1535, 120
        %v4291 = vpop.permute.xlu0 %4290
        %4292 = vrot.lane.b32.xlu0 %v1537, 120
        %v4293 = vpop.permute.xlu0 %4292
        %4294 = vrot.lane.b32.xlu0 %v1540, 120
        %v4295 = vpop.permute.xlu0 %4294
        %4296 = vrot.lane.b32.xlu0 %v1542, 120
        %v4297 = vpop.permute.xlu0 %4296
        %4298 = vrot.lane.b32.xlu0 %v1545, 120
        %v4299 = vpop.permute.xlu0 %4298
        %4300 = vrot.lane.b32.xlu0 %v1547, 120
        %v4301 = vpop.permute.xlu0 %4300
        %4302 = vrot.lane.b32.xlu0 %v1550, 120
        %v4303 = vpop.permute.xlu0 %4302
        %4304 = vrot.lane.b32.xlu0 %v1552, 120
        %v4305 = vpop.permute.xlu0 %4304
        %4306 = vrot.lane.b32.xlu0 %v1555, 120
        %v4307 = vpop.permute.xlu0 %4306
        %4308 = vrot.lane.b32.xlu0 %v1557, 120
        %v4309 = vpop.permute.xlu0 %4308
        %4374 = vrot.lane.b32.xlu0 %v1769, 8
        %v4375 = vpop.permute.xlu0 %4374
        %4376 = vrot.lane.b32.xlu0 %v1771, 8
        %v4377 = vpop.permute.xlu0 %4376
        %4378 = vrot.lane.b32.xlu0 %v1774, 8
        %v4379 = vpop.permute.xlu0 %4378
        %4380 = vrot.lane.b32.xlu0 %v1776, 8
        %v4381 = vpop.permute.xlu0 %4380
        %4382 = vrot.lane.b32.xlu0 %v1779, 8
        %v4383 = vpop.permute.xlu0 %4382
        %4384 = vrot.lane.b32.xlu0 %v1781, 8
        %v4385 = vpop.permute.xlu0 %4384
        %4386 = vrot.lane.b32.xlu0 %v1784, 8
        %v4387 = vpop.permute.xlu0 %4386
        %4388 = vrot.lane.b32.xlu0 %v1786, 8
        %v4389 = vpop.permute.xlu0 %4388
        %4390 = vrot.lane.b32.xlu0 %v1789, 8
        %v4391 = vpop.permute.xlu0 %4390
        %4392 = vrot.lane.b32.xlu0 %v1791, 8
        %v4393 = vpop.permute.xlu0 %4392
        %4394 = vrot.lane.b32.xlu0 %v1794, 8
        %v4395 = vpop.permute.xlu0 %4394
        %4396 = vrot.lane.b32.xlu0 %v1796, 8
        %v4397 = vpop.permute.xlu0 %4396
        %4398 = vrot.lane.b32.xlu0 %v1799, 8
        %v4399 = vpop.permute.xlu0 %4398
        %4400 = vrot.lane.b32.xlu0 %v1801, 8
        %v4401 = vpop.permute.xlu0 %4400
        %4402 = vrot.lane.b32.xlu0 %v1804, 8
        %v4403 = vpop.permute.xlu0 %4402
        %4404 = vrot.lane.b32.xlu0 %v1806, 8
        %v4405 = vpop.permute.xlu0 %4404
        %4406 = vrot.lane.b32.xlu0 %v1809, 8
        %v4407 = vpop.permute.xlu0 %4406
        %4408 = vrot.lane.b32.xlu0 %v1811, 8
        %v4409 = vpop.permute.xlu0 %4408
        %4410 = vrot.lane.b32.xlu0 %v1814, 8
        %v4411 = vpop.permute.xlu0 %4410
        %4412 = vrot.lane.b32.xlu0 %v1816, 8
        %v4413 = vpop.permute.xlu0 %4412
        %4414 = vrot.lane.b32.xlu0 %v1819, 8
        %v4415 = vpop.permute.xlu0 %4414
        %4416 = vrot.lane.b32.xlu0 %v1821, 8
        %v4417 = vpop.permute.xlu0 %4416
        %4418 = vrot.lane.b32.xlu0 %v1824, 8
        %v4419 = vpop.permute.xlu0 %4418
        %4420 = vrot.lane.b32.xlu0 %v1826, 8
        %v4421 = vpop.permute.xlu0 %4420
        %4422 = vrot.lane.b32.xlu0 %v1829, 8
        %v4423 = vpop.permute.xlu0 %4422
        %4424 = vrot.lane.b32.xlu0 %v1831, 8
        %v4425 = vpop.permute.xlu0 %4424
        %4426 = vrot.lane.b32.xlu0 %v1834, 8
        %v4427 = vpop.permute.xlu0 %4426
        %4428 = vrot.lane.b32.xlu0 %v1836, 8
        %v4429 = vpop.permute.xlu0 %4428
        %4430 = vrot.lane.b32.xlu0 %v1839, 8
        %v4431 = vpop.permute.xlu0 %4430
        %4432 = vrot.lane.b32.xlu0 %v1841, 8
        %v4433 = vpop.permute.xlu0 %4432
        %4434 = vrot.lane.b32.xlu0 %v1844, 8
        %v4435 = vpop.permute.xlu0 %4434
        %4436 = vrot.lane.b32.xlu0 %v1846, 8
        %v4437 = vpop.permute.xlu0 %4436
        %4470 = vrot.lane.b32.xlu0 %v1945, 16
        %v4471 = vpop.permute.xlu0 %4470
        %4472 = vrot.lane.b32.xlu0 %v1947, 16
        %v4473 = vpop.permute.xlu0 %4472
        %4474 = vrot.lane.b32.xlu0 %v1950, 16
        %v4475 = vpop.permute.xlu0 %4474
        %4476 = vrot.lane.b32.xlu0 %v1952, 16
        %v4477 = vpop.permute.xlu0 %4476
        %4478 = vrot.lane.b32.xlu0 %v1955, 16
        %v4479 = vpop.permute.xlu0 %4478
        %4480 = vrot.lane.b32.xlu0 %v1957, 16
        %v4481 = vpop.permute.xlu0 %4480
        %4482 = vrot.lane.b32.xlu0 %v1960, 16
        %v4483 = vpop.permute.xlu0 %4482
        %4484 = vrot.lane.b32.xlu0 %v1962, 16
        %v4485 = vpop.permute.xlu0 %4484
        %4486 = vrot.lane.b32.xlu0 %v1965, 16
        %v4487 = vpop.permute.xlu0 %4486
        %4488 = vrot.lane.b32.xlu0 %v1967, 16
        %v4489 = vpop.permute.xlu0 %4488
        %4490 = vrot.lane.b32.xlu0 %v1970, 16
        %v4491 = vpop.permute.xlu0 %4490
        %4492 = vrot.lane.b32.xlu0 %v1972, 16
        %v4493 = vpop.permute.xlu0 %4492
        %4494 = vrot.lane.b32.xlu0 %v1975, 16
        %v4495 = vpop.permute.xlu0 %4494
        %4496 = vrot.lane.b32.xlu0 %v1977, 16
        %v4497 = vpop.permute.xlu0 %4496
        %4498 = vrot.lane.b32.xlu0 %v1980, 16
        %v4499 = vpop.permute.xlu0 %4498
        %4500 = vrot.lane.b32.xlu0 %v1982, 16
        %v4501 = vpop.permute.xlu0 %4500
        %4502 = vrot.lane.b32.xlu0 %v1985, 16
        %v4503 = vpop.permute.xlu0 %4502
        %4504 = vrot.lane.b32.xlu0 %v1987, 16
        %v4505 = vpop.permute.xlu0 %4504
        %4506 = vrot.lane.b32.xlu0 %v1990, 16
        %v4507 = vpop.permute.xlu0 %4506
        %4508 = vrot.lane.b32.xlu0 %v1992, 16
        %v4509 = vpop.permute.xlu0 %4508
        %4510 = vrot.lane.b32.xlu0 %v1995, 16
        %v4511 = vpop.permute.xlu0 %4510
        %4512 = vrot.lane.b32.xlu0 %v1997, 16
        %v4513 = vpop.permute.xlu0 %4512
        %4514 = vrot.lane.b32.xlu0 %v2000, 16
        %v4515 = vpop.permute.xlu0 %4514
        %4516 = vrot.lane.b32.xlu0 %v2002, 16
        %v4517 = vpop.permute.xlu0 %4516
        %4518 = vrot.lane.b32.xlu0 %v2005, 16
        %v4519 = vpop.permute.xlu0 %4518
        %4520 = vrot.lane.b32.xlu0 %v2007, 16
        %v4521 = vpop.permute.xlu0 %4520
        %4522 = vrot.lane.b32.xlu0 %v2010, 16
        %v4523 = vpop.permute.xlu0 %4522
        %4524 = vrot.lane.b32.xlu0 %v2012, 16
        %v4525 = vpop.permute.xlu0 %4524
        %4526 = vrot.lane.b32.xlu0 %v2015, 16
        %v4527 = vpop.permute.xlu0 %4526
        %4528 = vrot.lane.b32.xlu0 %v2017, 16
        %v4529 = vpop.permute.xlu0 %4528
        %4530 = vrot.lane.b32.xlu0 %v2020, 16
        %v4531 = vpop.permute.xlu0 %4530
        %4532 = vrot.lane.b32.xlu0 %v2022, 16
        %v4533 = vpop.permute.xlu0 %4532
        %4566 = vrot.lane.b32.xlu0 %v2121, 24
        %v4567 = vpop.permute.xlu0 %4566
        %4568 = vrot.lane.b32.xlu0 %v2123, 24
        %v4569 = vpop.permute.xlu0 %4568
        %4570 = vrot.lane.b32.xlu0 %v2126, 24
        %v4571 = vpop.permute.xlu0 %4570
        %4572 = vrot.lane.b32.xlu0 %v2128, 24
        %v4573 = vpop.permute.xlu0 %4572
        %4574 = vrot.lane.b32.xlu0 %v2131, 24
        %v4575 = vpop.permute.xlu0 %4574
        %4576 = vrot.lane.b32.xlu0 %v2133, 24
        %v4577 = vpop.permute.xlu0 %4576
        %4578 = vrot.lane.b32.xlu0 %v2136, 24
        %v4579 = vpop.permute.xlu0 %4578
        %4580 = vrot.lane.b32.xlu0 %v2138, 24
        %v4581 = vpop.permute.xlu0 %4580
        %4582 = vrot.lane.b32.xlu0 %v2141, 24
        %v4583 = vpop.permute.xlu0 %4582
        %4584 = vrot.lane.b32.xlu0 %v2143, 24
        %v4585 = vpop.permute.xlu0 %4584
        %4586 = vrot.lane.b32.xlu0 %v2146, 24
        %v4587 = vpop.permute.xlu0 %4586
        %4588 = vrot.lane.b32.xlu0 %v2148, 24
        %v4589 = vpop.permute.xlu0 %4588
        %4590 = vrot.lane.b32.xlu0 %v2151, 24
        %v4591 = vpop.permute.xlu0 %4590
        %4592 = vrot.lane.b32.xlu0 %v2153, 24
        %v4593 = vpop.permute.xlu0 %4592
        %4594 = vrot.lane.b32.xlu0 %v2156, 24
        %v4595 = vpop.permute.xlu0 %4594
        %4596 = vrot.lane.b32.xlu0 %v2158, 24
        %v4597 = vpop.permute.xlu0 %4596
        %4598 = vrot.lane.b32.xlu0 %v2161, 24
        %v4599 = vpop.permute.xlu0 %4598
        %4600 = vrot.lane.b32.xlu0 %v2163, 24
        %v4601 = vpop.permute.xlu0 %4600
        %4602 = vrot.lane.b32.xlu0 %v2166, 24
        %v4603 = vpop.permute.xlu0 %4602
        %4604 = vrot.lane.b32.xlu0 %v2168, 24
        %v4605 = vpop.permute.xlu0 %4604
        %4606 = vrot.lane.b32.xlu0 %v2171, 24
        %v4607 = vpop.permute.xlu0 %4606
        %4608 = vrot.lane.b32.xlu0 %v2173, 24
        %v4609 = vpop.permute.xlu0 %4608
        %4610 = vrot.lane.b32.xlu0 %v2176, 24
        %v4611 = vpop.permute.xlu0 %4610
        %4612 = vrot.lane.b32.xlu0 %v2178, 24
        %v4613 = vpop.permute.xlu0 %4612
        %4614 = vrot.lane.b32.xlu0 %v2181, 24
        %v4615 = vpop.permute.xlu0 %4614
        %4616 = vrot.lane.b32.xlu0 %v2183, 24
        %v4617 = vpop.permute.xlu0 %4616
        %4618 = vrot.lane.b32.xlu0 %v2186, 24
        %v4619 = vpop.permute.xlu0 %4618
        %4620 = vrot.lane.b32.xlu0 %v2188, 24
        %v4621 = vpop.permute.xlu0 %4620
        %4622 = vrot.lane.b32.xlu0 %v2191, 24
        %v4623 = vpop.permute.xlu0 %4622
        %4624 = vrot.lane.b32.xlu0 %v2193, 24
        %v4625 = vpop.permute.xlu0 %4624
        %4626 = vrot.lane.b32.xlu0 %v2196, 24
        %v4627 = vpop.permute.xlu0 %4626
        %4628 = vrot.lane.b32.xlu0 %v2198, 24
        %v4629 = vpop.permute.xlu0 %4628
        %4662 = vrot.lane.b32.xlu0 %v2297, 32
        %v4663 = vpop.permute.xlu0 %4662
        %4664 = vrot.lane.b32.xlu0 %v2299, 32
        %v4665 = vpop.permute.xlu0 %4664
        %4666 = vrot.lane.b32.xlu0 %v2302, 32
        %v4667 = vpop.permute.xlu0 %4666
        %4668 = vrot.lane.b32.xlu0 %v2304, 32
        %v4669 = vpop.permute.xlu0 %4668
        %4670 = vrot.lane.b32.xlu0 %v2307, 32
        %v4671 = vpop.permute.xlu0 %4670
        %4672 = vrot.lane.b32.xlu0 %v2309, 32
        %v4673 = vpop.permute.xlu0 %4672
        %4674 = vrot.lane.b32.xlu0 %v2312, 32
        %v4675 = vpop.permute.xlu0 %4674
        %4676 = vrot.lane.b32.xlu0 %v2314, 32
        %v4677 = vpop.permute.xlu0 %4676
        %4678 = vrot.lane.b32.xlu0 %v2317, 32
        %v4679 = vpop.permute.xlu0 %4678
        %4680 = vrot.lane.b32.xlu0 %v2319, 32
        %v4681 = vpop.permute.xlu0 %4680
        %4682 = vrot.lane.b32.xlu0 %v2322, 32
        %v4683 = vpop.permute.xlu0 %4682
        %4684 = vrot.lane.b32.xlu0 %v2324, 32
        %v4685 = vpop.permute.xlu0 %4684
        %4686 = vrot.lane.b32.xlu0 %v2327, 32
        %v4687 = vpop.permute.xlu0 %4686
        %4688 = vrot.lane.b32.xlu0 %v2329, 32
        %v4689 = vpop.permute.xlu0 %4688
        %4690 = vrot.lane.b32.xlu0 %v2332, 32
        %v4691 = vpop.permute.xlu0 %4690
        %4692 = vrot.lane.b32.xlu0 %v2334, 32
        %v4693 = vpop.permute.xlu0 %4692
        %4694 = vrot.lane.b32.xlu0 %v2337, 32
        %v4695 = vpop.permute.xlu0 %4694
        %4696 = vrot.lane.b32.xlu0 %v2339, 32
        %v4697 = vpop.permute.xlu0 %4696
        %4698 = vrot.lane.b32.xlu0 %v2342, 32
        %v4699 = vpop.permute.xlu0 %4698
        %4700 = vrot.lane.b32.xlu0 %v2344, 32
        %v4701 = vpop.permute.xlu0 %4700
        %4702 = vrot.lane.b32.xlu0 %v2347, 32
        %v4703 = vpop.permute.xlu0 %4702
        %4704 = vrot.lane.b32.xlu0 %v2349, 32
        %v4705 = vpop.permute.xlu0 %4704
        %4706 = vrot.lane.b32.xlu0 %v2352, 32
        %v4707 = vpop.permute.xlu0 %4706
        %4708 = vrot.lane.b32.xlu0 %v2354, 32
        %v4709 = vpop.permute.xlu0 %4708
        %4710 = vrot.lane.b32.xlu0 %v2357, 32
        %v4711 = vpop.permute.xlu0 %4710
        %4712 = vrot.lane.b32.xlu0 %v2359, 32
        %v4713 = vpop.permute.xlu0 %4712
        %4714 = vrot.lane.b32.xlu0 %v2362, 32
        %v4715 = vpop.permute.xlu0 %4714
        %4716 = vrot.lane.b32.xlu0 %v2364, 32
        %v4717 = vpop.permute.xlu0 %4716
        %4718 = vrot.lane.b32.xlu0 %v2367, 32
        %v4719 = vpop.permute.xlu0 %4718
        %4720 = vrot.lane.b32.xlu0 %v2369, 32
        %v4721 = vpop.permute.xlu0 %4720
        %4722 = vrot.lane.b32.xlu0 %v2372, 32
        %v4723 = vpop.permute.xlu0 %4722
        %4724 = vrot.lane.b32.xlu0 %v2374, 32
        %v4725 = vpop.permute.xlu0 %4724
        %v4758 = vsel %vm2471, %v4151, %v4247
        %v4759 = vsel %vm2471, %v4153, %v4249
        %v4760 = vsel %vm2471, %v4155, %v4251
        %v4761 = vsel %vm2471, %v4157, %v4253
        %v4762 = vsel %vm2471, %v4159, %v4255
        %v4763 = vsel %vm2471, %v4161, %v4257
        %v4764 = vsel %vm2471, %v4163, %v4259
        %v4765 = vsel %vm2471, %v4165, %v4261
        %v4766 = vsel %vm2471, %v4167, %v4263
        %v4767 = vsel %vm2471, %v4169, %v4265
        %v4768 = vsel %vm2471, %v4171, %v4267
        %v4769 = vsel %vm2471, %v4173, %v4269
        %v4770 = vsel %vm2471, %v4175, %v4271
        %v4771 = vsel %vm2471, %v4177, %v4273
        %v4772 = vsel %vm2471, %v4179, %v4275
        %v4773 = vsel %vm2471, %v4181, %v4277
        %v4774 = vsel %vm2471, %v4183, %v4279
        %v4775 = vsel %vm2471, %v4185, %v4281
        %v4776 = vsel %vm2471, %v4187, %v4283
        %v4777 = vsel %vm2471, %v4189, %v4285
        %v4778 = vsel %vm2471, %v4191, %v4287
        %v4779 = vsel %vm2471, %v4193, %v4289
        %v4780 = vsel %vm2471, %v4195, %v4291
        %v4781 = vsel %vm2471, %v4197, %v4293
        %v4782 = vsel %vm2471, %v4199, %v4295
        %v4783 = vsel %vm2471, %v4201, %v4297
        %v4784 = vsel %vm2471, %v4203, %v4299
        %v4785 = vsel %vm2471, %v4205, %v4301
        %v4786 = vsel %vm2471, %v4207, %v4303
        %v4787 = vsel %vm2471, %v4209, %v4305
        %v4788 = vsel %vm2471, %v4211, %v4307
        %v4789 = vsel %vm2471, %v4213, %v4309
        %v4790 = vsel %vm2504, %v4758, %v1593
        %v4791 = vsel %vm2504, %v4759, %v1595
        %v4792 = vsel %vm2504, %v4760, %v1598
        %v4793 = vsel %vm2504, %v4761, %v1600
        %v4794 = vsel %vm2504, %v4762, %v1603
        %v4795 = vsel %vm2504, %v4763, %v1605
        %v4796 = vsel %vm2504, %v4764, %v1608
        %v4797 = vsel %vm2504, %v4765, %v1610
        %v4798 = vsel %vm2504, %v4766, %v1613
        %v4799 = vsel %vm2504, %v4767, %v1615
        %v4800 = vsel %vm2504, %v4768, %v1618
        %v4801 = vsel %vm2504, %v4769, %v1620
        %v4802 = vsel %vm2504, %v4770, %v1623
        %v4803 = vsel %vm2504, %v4771, %v1625
        %v4804 = vsel %vm2504, %v4772, %v1628
        %v4805 = vsel %vm2504, %v4773, %v1630
        %v4806 = vsel %vm2504, %v4774, %v1633
        %v4807 = vsel %vm2504, %v4775, %v1635
        %v4808 = vsel %vm2504, %v4776, %v1638
        %v4809 = vsel %vm2504, %v4777, %v1640
        %v4810 = vsel %vm2504, %v4778, %v1643
        %v4811 = vsel %vm2504, %v4779, %v1645
        %v4812 = vsel %vm2504, %v4780, %v1648
        %v4813 = vsel %vm2504, %v4781, %v1650
        %v4814 = vsel %vm2504, %v4782, %v1653
        %v4815 = vsel %vm2504, %v4783, %v1655
        %v4816 = vsel %vm2504, %v4784, %v1658
        %v4817 = vsel %vm2504, %v4785, %v1660
        %v4818 = vsel %vm2504, %v4786, %v1663
        %v4819 = vsel %vm2504, %v4787, %v1665
        %v4820 = vsel %vm2504, %v4788, %v1668
        %v4821 = vsel %vm2504, %v4789, %v1670
        %v4822 = vsel %vm2537, %v4790, %v4375
        %v4823 = vsel %vm2537, %v4791, %v4377
        %v4824 = vsel %vm2537, %v4792, %v4379
        %v4825 = vsel %vm2537, %v4793, %v4381
        %v4826 = vsel %vm2537, %v4794, %v4383
        %v4827 = vsel %vm2537, %v4795, %v4385
        %v4828 = vsel %vm2537, %v4796, %v4387
        %v4829 = vsel %vm2537, %v4797, %v4389
        %v4830 = vsel %vm2537, %v4798, %v4391
        %v4831 = vsel %vm2537, %v4799, %v4393
        %v4832 = vsel %vm2537, %v4800, %v4395
        %v4833 = vsel %vm2537, %v4801, %v4397
        %v4834 = vsel %vm2537, %v4802, %v4399
        %v4835 = vsel %vm2537, %v4803, %v4401
        %v4836 = vsel %vm2537, %v4804, %v4403
        %v4837 = vsel %vm2537, %v4805, %v4405
        %v4838 = vsel %vm2537, %v4806, %v4407
        %v4839 = vsel %vm2537, %v4807, %v4409
        %v4840 = vsel %vm2537, %v4808, %v4411
        %v4841 = vsel %vm2537, %v4809, %v4413
        %v4842 = vsel %vm2537, %v4810, %v4415
        %v4843 = vsel %vm2537, %v4811, %v4417
        %v4844 = vsel %vm2537, %v4812, %v4419
        %v4845 = vsel %vm2537, %v4813, %v4421
        %v4846 = vsel %vm2537, %v4814, %v4423
        %v4847 = vsel %vm2537, %v4815, %v4425
        %v4848 = vsel %vm2537, %v4816, %v4427
        %v4849 = vsel %vm2537, %v4817, %v4429
        %v4850 = vsel %vm2537, %v4818, %v4431
        %v4851 = vsel %vm2537, %v4819, %v4433
        %v4852 = vsel %vm2537, %v4820, %v4435
        %v4853 = vsel %vm2537, %v4821, %v4437
        %v4854 = vsel %vm2570, %v4822, %v4471
        %v4855 = vsel %vm2570, %v4823, %v4473
        %v4856 = vsel %vm2570, %v4824, %v4475
        %v4857 = vsel %vm2570, %v4825, %v4477
        %v4858 = vsel %vm2570, %v4826, %v4479
        %v4859 = vsel %vm2570, %v4827, %v4481
        %v4860 = vsel %vm2570, %v4828, %v4483
        %v4861 = vsel %vm2570, %v4829, %v4485
        %v4862 = vsel %vm2570, %v4830, %v4487
        %v4863 = vsel %vm2570, %v4831, %v4489
        %v4864 = vsel %vm2570, %v4832, %v4491
        %v4865 = vsel %vm2570, %v4833, %v4493
        %v4866 = vsel %vm2570, %v4834, %v4495
        %v4867 = vsel %vm2570, %v4835, %v4497
        %v4868 = vsel %vm2570, %v4836, %v4499
        %v4869 = vsel %vm2570, %v4837, %v4501
        %v4870 = vsel %vm2570, %v4838, %v4503
        %v4871 = vsel %vm2570, %v4839, %v4505
        %v4872 = vsel %vm2570, %v4840, %v4507
        %v4873 = vsel %vm2570, %v4841, %v4509
        %v4874 = vsel %vm2570, %v4842, %v4511
        %v4875 = vsel %vm2570, %v4843, %v4513
        %v4876 = vsel %vm2570, %v4844, %v4515
        %v4877 = vsel %vm2570, %v4845, %v4517
        %v4878 = vsel %vm2570, %v4846, %v4519
        %v4879 = vsel %vm2570, %v4847, %v4521
        %v4880 = vsel %vm2570, %v4848, %v4523
        %v4881 = vsel %vm2570, %v4849, %v4525
        %v4882 = vsel %vm2570, %v4850, %v4527
        %v4883 = vsel %vm2570, %v4851, %v4529
        %v4884 = vsel %vm2570, %v4852, %v4531
        %v4885 = vsel %vm2570, %v4853, %v4533
        %v4886 = vsel %vm2603, %v4854, %v4567
        %v4887 = vsel %vm2603, %v4855, %v4569
        %v4888 = vsel %vm2603, %v4856, %v4571
        %v4889 = vsel %vm2603, %v4857, %v4573
        %v4890 = vsel %vm2603, %v4858, %v4575
        %v4891 = vsel %vm2603, %v4859, %v4577
        %v4892 = vsel %vm2603, %v4860, %v4579
        %v4893 = vsel %vm2603, %v4861, %v4581
        %v4894 = vsel %vm2603, %v4862, %v4583
        %v4895 = vsel %vm2603, %v4863, %v4585
        %v4896 = vsel %vm2603, %v4864, %v4587
        %v4897 = vsel %vm2603, %v4865, %v4589
        %v4898 = vsel %vm2603, %v4866, %v4591
        %v4899 = vsel %vm2603, %v4867, %v4593
        %v4900 = vsel %vm2603, %v4868, %v4595
        %v4901 = vsel %vm2603, %v4869, %v4597
        %v4902 = vsel %vm2603, %v4870, %v4599
        %v4903 = vsel %vm2603, %v4871, %v4601
        %v4904 = vsel %vm2603, %v4872, %v4603
        %v4905 = vsel %vm2603, %v4873, %v4605
        %v4906 = vsel %vm2603, %v4874, %v4607
        %v4907 = vsel %vm2603, %v4875, %v4609
        %v4908 = vsel %vm2603, %v4876, %v4611
        %v4909 = vsel %vm2603, %v4877, %v4613
        %v4910 = vsel %vm2603, %v4878, %v4615
        %v4911 = vsel %vm2603, %v4879, %v4617
        %v4912 = vsel %vm2603, %v4880, %v4619
        %v4913 = vsel %vm2603, %v4881, %v4621
        %v4914 = vsel %vm2603, %v4882, %v4623
        %v4915 = vsel %vm2603, %v4883, %v4625
        %v4916 = vsel %vm2603, %v4884, %v4627
        %v4917 = vsel %vm2603, %v4885, %v4629
        %v4918 = vsel %vm2636, %v4886, %v4663
        %v4919 = vsel %vm2636, %v4887, %v4665
        %v4920 = vsel %vm2636, %v4888, %v4667
        %v4921 = vsel %vm2636, %v4889, %v4669
        %v4922 = vsel %vm2636, %v4890, %v4671
        %v4923 = vsel %vm2636, %v4891, %v4673
        %v4924 = vsel %vm2636, %v4892, %v4675
        %v4925 = vsel %vm2636, %v4893, %v4677
        %v4926 = vsel %vm2636, %v4894, %v4679
        %v4927 = vsel %vm2636, %v4895, %v4681
        %v4928 = vsel %vm2636, %v4896, %v4683
        %v4929 = vsel %vm2636, %v4897, %v4685
        %v4930 = vsel %vm2636, %v4898, %v4687
        %v4931 = vsel %vm2636, %v4899, %v4689
        %v4932 = vsel %vm2636, %v4900, %v4691
        %v4933 = vsel %vm2636, %v4901, %v4693
        %v4934 = vsel %vm2636, %v4902, %v4695
        %v4935 = vsel %vm2636, %v4903, %v4697
        %v4936 = vsel %vm2636, %v4904, %v4699
        %v4937 = vsel %vm2636, %v4905, %v4701
        %v4938 = vsel %vm2636, %v4906, %v4703
        %v4939 = vsel %vm2636, %v4907, %v4705
        %v4940 = vsel %vm2636, %v4908, %v4707
        %v4941 = vsel %vm2636, %v4909, %v4709
        %v4942 = vsel %vm2636, %v4910, %v4711
        %v4943 = vsel %vm2636, %v4911, %v4713
        %v4944 = vsel %vm2636, %v4912, %v4715
        %v4945 = vsel %vm2636, %v4913, %v4717
        %v4946 = vsel %vm2636, %v4914, %v4719
        %v4947 = vsel %vm2636, %v4915, %v4721
        %v4948 = vsel %vm2636, %v4916, %v4723
        %v4949 = vsel %vm2636, %v4917, %v4725
        %v4950 = vld [vmem:[%s7] sm:$0xff]
        %v4951 = vld [vmem:[%s7 + $0x8] sm:$0xff]
        %v4952 = vld [vmem:[%s7 + $0x10] sm:$0xff]
        %v4953 = vld [vmem:[%s7 + $0x18] sm:$0xff]
        %v4954 = vld [vmem:[%s7 + $0x20] sm:$0xff]
        %v4955 = vld [vmem:[%s7 + $0x28] sm:$0xff]
        %v4956 = vld [vmem:[%s7 + $0x30] sm:$0xff]
        %v4957 = vld [vmem:[%s8] sm:$0x1]
        %v4959 = vlaneseq
        %v4960 = vshrl.u32 %v4959, 7
        %v4961 = vsub.s32 0, %v4960
        %v4962 = vrot.slane %v4957, %v4961
        %v4965 = vsel %vm2683, %v4918, 0
        %v4968 = vsel %vm2683, %v4919, 0
        %v4971 = vsel %vm2683, %v4920, 0
        %v4974 = vsel %vm2683, %v4921, 0
        %v4977 = vsel %vm2683, %v4922, 0
        %v4980 = vsel %vm2683, %v4923, 0
        %v4983 = vsel %vm2683, %v4924, 0
        %v4986 = vsel %vm2683, %v4925, 0
        %v4989 = vsel %vm2683, %v4926, 0
        %v4992 = vsel %vm2683, %v4927, 0
        %v4995 = vsel %vm2683, %v4928, 0
        %v4998 = vsel %vm2683, %v4929, 0
        %v5001 = vsel %vm2683, %v4930, 0
        %v5004 = vsel %vm2683, %v4931, 0
        %v5007 = vsel %vm2683, %v4932, 0
        %v5010 = vsel %vm2683, %v4933, 0
        %v5013 = vsel %vm2683, %v4934, 0
        %v5016 = vsel %vm2683, %v4935, 0
        %v5019 = vsel %vm2683, %v4936, 0
        %v5022 = vsel %vm2683, %v4937, 0
        %v5025 = vsel %vm2683, %v4938, 0
        %v5028 = vsel %vm2683, %v4939, 0
        %v5031 = vsel %vm2683, %v4940, 0
        %v5034 = vsel %vm2683, %v4941, 0
        %v5037 = vsel %vm2683, %v4942, 0
        %v5040 = vsel %vm2683, %v4943, 0
        %v5043 = vsel %vm2683, %v4944, 0
        %v5046 = vsel %vm2683, %v4945, 0
        %v5049 = vsel %vm2683, %v4946, 0
        %v5052 = vsel %vm2683, %v4947, 0
        %v5055 = vsel %vm2683, %v4948, 0
        %v5058 = vsel %vm2683, %v4949, 0
        %5060 = vmatprep.subr.mxu0 0.0
        %5061 = vmatpush1.msra.mxu0 %v4950
        %5062 = vmatprep.subr.mxu0 0.0
        %5063 = vmatpush1.msra.mxu0 %v4951
        %5064 = vmatprep.subr.mxu0 0.0
        %5065 = vmatpush1.msra.mxu0 %v4952
        %5066 = vmatprep.subr.mxu0 0.0
        %5067 = vmatpush1.msra.mxu0 %v4953
        %5068 = vmatprep.subr.mxu0 0.0
        %5069 = vmatpush1.msra.mxu0 %v4954
        %5070 = vmatprep.subr.mxu0 0.0
        %5071 = vmatpush1.msra.mxu0 %v4955
        %5072 = vmatprep.subr.mxu0 0.0
        %5073 = vmatpush1.msra.mxu0 %v4956
        %5074 = vmatprep.subr.mxu0 0.0
        %5075 = vmatpush1.msra.mxu0 0.0
        %5076 = vmatprep.subr.mxu0 0.0
        %5077 = vmatpush1.msra.mxu0 0.0
        %5078 = vmatprep.subr.mxu0 0.0
        %5079 = vmatpush1.msra.mxu0 0.0
        %5080 = vmatprep.subr.mxu0 0.0
        %5081 = vmatpush1.msra.mxu0 0.0
        %5082 = vmatprep.subr.mxu0 0.0
        %5083 = vmatpush1.msra.mxu0 0.0
        %5084 = vmatprep.subr.mxu0 0.0
        %5085 = vmatpush1.msra.mxu0 0.0
        %5086 = vmatprep.subr.mxu0 0.0
        %5087 = vmatpush1.msra.mxu0 0.0
        %5088 = vmatprep.subr.mxu0 0.0
        %5089 = vmatpush1.msra.mxu0 0.0
        %5090 = vmatprep.subr.mxu0 0.0
        %5091 = vmatpush1.msra.mxu0 0.0
        %5092 = vmatprep.subr.mxu0 0.0
        %5093 = vmatpush1.msra.mxu0 0.0
        %5094 = vmatprep.subr.mxu0 0.0
        %5095 = vmatpush1.msra.mxu0 0.0
        %5096 = vmatprep.subr.mxu0 0.0
        %5097 = vmatpush1.msra.mxu0 0.0
        %5098 = vmatprep.subr.mxu0 0.0
        %5099 = vmatpush1.msra.mxu0 0.0
        %5100 = vmatprep.subr.mxu0 0.0
        %5101 = vmatpush1.msra.mxu0 0.0
        %5102 = vmatprep.subr.mxu0 0.0
        %5103 = vmatpush1.msra.mxu0 0.0
        %5104 = vmatprep.subr.mxu0 0.0
        %5105 = vmatpush1.msra.mxu0 0.0
        %5106 = vmatprep.subr.mxu0 0.0
        %5107 = vmatpush1.msra.mxu0 0.0
        %5108 = vmatprep.subr.mxu0 0.0
        %5109 = vmatpush1.msra.mxu0 0.0
        %5110 = vmatprep.subr.mxu0 0.0
        %5111 = vmatpush1.msra.mxu0 0.0
        %5112 = vmatprep.subr.mxu0 0.0
        %5113 = vmatpush1.msra.mxu0 0.0
        %5114 = vmatprep.subr.mxu0 0.0
        %5115 = vmatpush1.msra.mxu0 0.0
        %5116 = vmatprep.subr.mxu0 0.0
        %5117 = vmatpush1.msra.mxu0 0.0
        %5118 = vmatprep.subr.mxu0 0.0
        %5119 = vmatpush1.msra.mxu0 0.0
        %5120 = vmatprep.subr.mxu0 0.0
        %5121 = vmatpush1.msra.mxu0 0.0
        %5122 = vmatprep.subr.mxu0 0.0
        %5123 = vmatpush1.msra.mxu0 0.0
        %5124 = vmatprep.mubr.f32.mxu0 0.0
        %5125 = vmatmul.mubr.f32.gmra.mrb[0].mxu0 %v4965
        %v5126 = vpop.f32.mrb[0].mxu0
        %v5127 = vadd.f32 %v4962, %v5126
        %v5128 = vpop.f32.mrb[0].mxu0
        %5129 = vmatprep.mubr.f32.mxu0 0.0
        %5130 = vmatmul.mubr.f32.gmra.mrb[0].mxu0 %v4968
        %v5131 = vpop.f32.mrb[0].mxu0
        %v5132 = vadd.f32 %v4962, %v5131
        %v5133 = vpop.f32.mrb[0].mxu0
        %5134 = vmatprep.mubr.f32.mxu0 0.0
        %5135 = vmatmul.mubr.f32.gmra.mrb[0].mxu0 %v4971
        %v5136 = vpop.f32.mrb[0].mxu0
        %v5137 = vadd.f32 %v4962, %v5136
        %v5138 = vpop.f32.mrb[0].mxu0
        %5139 = vmatprep.mubr.f32.mxu0 0.0
        %5140 = vmatmul.mubr.f32.gmra.mrb[0].mxu0 %v4974
        %v5141 = vpop.f32.mrb[0].mxu0
        %v5142 = vadd.f32 %v4962, %v5141
        %v5143 = vpop.f32.mrb[0].mxu0
        %5144 = vmatprep.mubr.f32.mxu0 0.0
        %5145 = vmatmul.mubr.f32.gmra.mrb[0].mxu0 %v4977
        %v5146 = vpop.f32.mrb[0].mxu0
        %v5147 = vadd.f32 %v4962, %v5146
        %v5148 = vpop.f32.mrb[0].mxu0
        %5149 = vmatprep.mubr.f32.mxu0 0.0
        %5150 = vmatmul.mubr.f32.gmra.mrb[0].mxu0 %v4980
        %v5151 = vpop.f32.mrb[0].mxu0
        %v5152 = vadd.f32 %v4962, %v5151
        %v5153 = vpop.f32.mrb[0].mxu0
        %5154 = vmatprep.mubr.f32.mxu0 0.0
        %5155 = vmatmul.mubr.f32.gmra.mrb[0].mxu0 %v4983
        %v5156 = vpop.f32.mrb[0].mxu0
        %v5157 = vadd.f32 %v4962, %v5156
        %v5158 = vpop.f32.mrb[0].mxu0
        %5159 = vmatprep.mubr.f32.mxu0 0.0
        %5160 = vmatmul.mubr.f32.gmra.mrb[0].mxu0 %v4986
        %v5161 = vpop.f32.mrb[0].mxu0
        %v5162 = vadd.f32 %v4962, %v5161
        %v5163 = vpop.f32.mrb[0].mxu0
        %5164 = vmatprep.mubr.f32.mxu0 0.0
        %5165 = vmatmul.mubr.f32.gmra.mrb[0].mxu0 %v4989
        %v5166 = vpop.f32.mrb[0].mxu0
        %v5167 = vadd.f32 %v4962, %v5166
        %v5168 = vpop.f32.mrb[0].mxu0
        %5169 = vmatprep.mubr.f32.mxu0 0.0
        %5170 = vmatmul.mubr.f32.gmra.mrb[0].mxu0 %v4992
        %v5171 = vpop.f32.mrb[0].mxu0
        %v5172 = vadd.f32 %v4962, %v5171
        %v5173 = vpop.f32.mrb[0].mxu0
        %5174 = vmatprep.mubr.f32.mxu0 0.0
        %5175 = vmatmul.mubr.f32.gmra.mrb[0].mxu0 %v4995
        %v5176 = vpop.f32.mrb[0].mxu0
        %v5177 = vadd.f32 %v4962, %v5176
        %v5178 = vpop.f32.mrb[0].mxu0
        %5179 = vmatprep.mubr.f32.mxu0 0.0
        %5180 = vmatmul.mubr.f32.gmra.mrb[0].mxu0 %v4998
        %v5181 = vpop.f32.mrb[0].mxu0
        %v5182 = vadd.f32 %v4962, %v5181
        %v5183 = vpop.f32.mrb[0].mxu0
        %5184 = vmatprep.mubr.f32.mxu0 0.0
        %5185 = vmatmul.mubr.f32.gmra.mrb[0].mxu0 %v5001
        %v5186 = vpop.f32.mrb[0].mxu0
        %v5187 = vadd.f32 %v4962, %v5186
        %v5188 = vpop.f32.mrb[0].mxu0
        %5189 = vmatprep.mubr.f32.mxu0 0.0
        %5190 = vmatmul.mubr.f32.gmra.mrb[0].mxu0 %v5004
        %v5191 = vpop.f32.mrb[0].mxu0
        %v5192 = vadd.f32 %v4962, %v5191
        %v5193 = vpop.f32.mrb[0].mxu0
        %5194 = vmatprep.mubr.f32.mxu0 0.0
        %5195 = vmatmul.mubr.f32.gmra.mrb[0].mxu0 %v5007
        %v5196 = vpop.f32.mrb[0].mxu0
        %v5197 = vadd.f32 %v4962, %v5196
        %v5198 = vpop.f32.mrb[0].mxu0
        %5199 = vmatprep.mubr.f32.mxu0 0.0
        %5200 = vmatmul.mubr.f32.gmra.mrb[0].mxu0 %v5010
        %v5201 = vpop.f32.mrb[0].mxu0
        %v5202 = vadd.f32 %v4962, %v5201
        %v5203 = vpop.f32.mrb[0].mxu0
        %5204 = vmatprep.mubr.f32.mxu0 0.0
        %5205 = vmatmul.mubr.f32.gmra.mrb[0].mxu0 %v5013
        %v5206 = vpop.f32.mrb[0].mxu0
        %v5207 = vadd.f32 %v4962, %v5206
        %v5208 = vpop.f32.mrb[0].mxu0
        %5209 = vmatprep.mubr.f32.mxu0 0.0
        %5210 = vmatmul.mubr.f32.gmra.mrb[0].mxu0 %v5016
        %v5211 = vpop.f32.mrb[0].mxu0
        %v5212 = vadd.f32 %v4962, %v5211
        %v5213 = vpop.f32.mrb[0].mxu0
        %5214 = vmatprep.mubr.f32.mxu0 0.0
        %5215 = vmatmul.mubr.f32.gmra.mrb[0].mxu0 %v5019
        %v5216 = vpop.f32.mrb[0].mxu0
        %v5217 = vadd.f32 %v4962, %v5216
        %v5218 = vpop.f32.mrb[0].mxu0
        %5219 = vmatprep.mubr.f32.mxu0 0.0
        %5220 = vmatmul.mubr.f32.gmra.mrb[0].mxu0 %v5022
        %v5221 = vpop.f32.mrb[0].mxu0
        %v5222 = vadd.f32 %v4962, %v5221
        %v5223 = vpop.f32.mrb[0].mxu0
        %5224 = vmatprep.mubr.f32.mxu0 0.0
        %5225 = vmatmul.mubr.f32.gmra.mrb[0].mxu0 %v5025
        %v5226 = vpop.f32.mrb[0].mxu0
        %v5227 = vadd.f32 %v4962, %v5226
        %v5228 = vpop.f32.mrb[0].mxu0
        %5229 = vmatprep.mubr.f32.mxu0 0.0
        %5230 = vmatmul.mubr.f32.gmra.mrb[0].mxu0 %v5028
        %v5231 = vpop.f32.mrb[0].mxu0
        %v5232 = vadd.f32 %v4962, %v5231
        %v5233 = vpop.f32.mrb[0].mxu0
        %5234 = vmatprep.mubr.f32.mxu0 0.0
        %5235 = vmatmul.mubr.f32.gmra.mrb[0].mxu0 %v5031
        %v5236 = vpop.f32.mrb[0].mxu0
        %v5237 = vadd.f32 %v4962, %v5236
        %v5238 = vpop.f32.mrb[0].mxu0
        %5239 = vmatprep.mubr.f32.mxu0 0.0
        %5240 = vmatmul.mubr.f32.gmra.mrb[0].mxu0 %v5034
        %v5241 = vpop.f32.mrb[0].mxu0
        %v5242 = vadd.f32 %v4962, %v5241
        %v5243 = vpop.f32.mrb[0].mxu0
        %5244 = vmatprep.mubr.f32.mxu0 0.0
        %5245 = vmatmul.mubr.f32.gmra.mrb[0].mxu0 %v5037
        %v5246 = vpop.f32.mrb[0].mxu0
        %v5247 = vadd.f32 %v4962, %v5246
        %v5248 = vpop.f32.mrb[0].mxu0
        %5249 = vmatprep.mubr.f32.mxu0 0.0
        %5250 = vmatmul.mubr.f32.gmra.mrb[0].mxu0 %v5040
        %v5251 = vpop.f32.mrb[0].mxu0
        %v5252 = vadd.f32 %v4962, %v5251
        %v5253 = vpop.f32.mrb[0].mxu0
        %5254 = vmatprep.mubr.f32.mxu0 0.0
        %5255 = vmatmul.mubr.f32.gmra.mrb[0].mxu0 %v5043
        %v5256 = vpop.f32.mrb[0].mxu0
        %v5257 = vadd.f32 %v4962, %v5256
        %v5258 = vpop.f32.mrb[0].mxu0
        %5259 = vmatprep.mubr.f32.mxu0 0.0
        %5260 = vmatmul.mubr.f32.gmra.mrb[0].mxu0 %v5046
        %v5261 = vpop.f32.mrb[0].mxu0
        %v5262 = vadd.f32 %v4962, %v5261
        %v5263 = vpop.f32.mrb[0].mxu0
        %5264 = vmatprep.mubr.f32.mxu0 0.0
        %5265 = vmatmul.mubr.f32.gmra.mrb[0].mxu0 %v5049
        %v5266 = vpop.f32.mrb[0].mxu0
        %v5267 = vadd.f32 %v4962, %v5266
        %v5268 = vpop.f32.mrb[0].mxu0
        %5269 = vmatprep.mubr.f32.mxu0 0.0
        %5270 = vmatmul.mubr.f32.gmra.mrb[0].mxu0 %v5052
        %v5271 = vpop.f32.mrb[0].mxu0
        %v5272 = vadd.f32 %v4962, %v5271
        %v5273 = vpop.f32.mrb[0].mxu0
        %5274 = vmatprep.mubr.f32.mxu0 0.0
        %5275 = vmatmul.mubr.f32.gmra.mrb[0].mxu0 %v5055
        %v5276 = vpop.f32.mrb[0].mxu0
        %v5277 = vadd.f32 %v4962, %v5276
        %v5278 = vpop.f32.mrb[0].mxu0
        %5279 = vmatprep.mubr.f32.mxu0 0.0
        %5280 = vmatmul.mubr.f32.gmra.mrb[0].mxu0 %v5058
        %v5281 = vpop.f32.mrb[0].mxu0
        %v5282 = vadd.f32 %v4962, %v5281
        %v5283 = vpop.f32.mrb[0].mxu0
        %5284 = vdwg.mxu0
        %v5285 = vmax.f32 %v5127, 0.0
        %v5286 = vmax.f32 %v5132, 0.0
        %v5287 = vmax.f32 %v5137, 0.0
        %v5288 = vmax.f32 %v5142, 0.0
        %v5289 = vmax.f32 %v5147, 0.0
        %v5290 = vmax.f32 %v5152, 0.0
        %v5291 = vmax.f32 %v5157, 0.0
        %v5292 = vmax.f32 %v5162, 0.0
        %v5293 = vmax.f32 %v5167, 0.0
        %v5294 = vmax.f32 %v5172, 0.0
        %v5295 = vmax.f32 %v5177, 0.0
        %v5296 = vmax.f32 %v5182, 0.0
        %v5297 = vmax.f32 %v5187, 0.0
        %v5298 = vmax.f32 %v5192, 0.0
        %v5299 = vmax.f32 %v5197, 0.0
        %v5300 = vmax.f32 %v5202, 0.0
        %v5301 = vmax.f32 %v5207, 0.0
        %v5302 = vmax.f32 %v5212, 0.0
        %v5303 = vmax.f32 %v5217, 0.0
        %v5304 = vmax.f32 %v5222, 0.0
        %v5305 = vmax.f32 %v5227, 0.0
        %v5306 = vmax.f32 %v5232, 0.0
        %v5307 = vmax.f32 %v5237, 0.0
        %v5308 = vmax.f32 %v5242, 0.0
        %v5309 = vmax.f32 %v5247, 0.0
        %v5310 = vmax.f32 %v5252, 0.0
        %v5311 = vmax.f32 %v5257, 0.0
        %v5312 = vmax.f32 %v5262, 0.0
        %v5313 = vmax.f32 %v5267, 0.0
        %v5314 = vmax.f32 %v5272, 0.0
        %v5315 = vmax.f32 %v5277, 0.0
        %v5316 = vmax.f32 %v5282, 0.0
        %5345 = vrot.lane.b32.xlu0 %v5289, 8
        %v5346 = vpop.permute.xlu0 %5345
        %5347 = vrot.lane.b32.xlu0 %v5290, 8
        %v5348 = vpop.permute.xlu0 %5347
        %5349 = vrot.lane.b32.xlu0 %v5287, 8
        %v5350 = vpop.permute.xlu0 %5349
        %5351 = vrot.lane.b32.xlu0 %v5288, 8
        %v5352 = vpop.permute.xlu0 %5351
        %5353 = vrot.lane.b32.xlu0 %v5285, 8
        %v5354 = vpop.permute.xlu0 %5353
        %5355 = vrot.lane.b32.xlu0 %v5286, 8
        %v5356 = vpop.permute.xlu0 %5355
        %5357 = vrot.lane.b32.xlu0 %v5291, 8
        %v5358 = vpop.permute.xlu0 %5357
        %5359 = vrot.lane.b32.xlu0 %v5292, 8
        %v5360 = vpop.permute.xlu0 %5359
        %5361 = vrot.lane.b32.xlu0 %v5293, 8
        %v5362 = vpop.permute.xlu0 %5361
        %5363 = vrot.lane.b32.xlu0 %v5294, 8
        %v5364 = vpop.permute.xlu0 %5363
        %5365 = vrot.lane.b32.xlu0 %v5295, 8
        %v5366 = vpop.permute.xlu0 %5365
        %5367 = vrot.lane.b32.xlu0 %v5296, 8
        %v5368 = vpop.permute.xlu0 %5367
        %5369 = vrot.lane.b32.xlu0 %v5297, 8
        %v5370 = vpop.permute.xlu0 %5369
        %5371 = vrot.lane.b32.xlu0 %v5298, 8
        %v5372 = vpop.permute.xlu0 %5371
        %5373 = vrot.lane.b32.xlu0 %v5299, 8
        %v5374 = vpop.permute.xlu0 %5373
        %5375 = vrot.lane.b32.xlu0 %v5300, 8
        %v5376 = vpop.permute.xlu0 %5375
        %5377 = vrot.lane.b32.xlu0 %v5301, 8
        %v5378 = vpop.permute.xlu0 %5377
        %5379 = vrot.lane.b32.xlu0 %v5302, 8
        %v5380 = vpop.permute.xlu0 %5379
        %5381 = vrot.lane.b32.xlu0 %v5303, 8
        %v5382 = vpop.permute.xlu0 %5381
        %5383 = vrot.lane.b32.xlu0 %v5304, 8
        %v5384 = vpop.permute.xlu0 %5383
        %5385 = vrot.lane.b32.xlu0 %v5305, 8
        %v5386 = vpop.permute.xlu0 %5385
        %5387 = vrot.lane.b32.xlu0 %v5306, 8
        %v5388 = vpop.permute.xlu0 %5387
        %5389 = vrot.lane.b32.xlu0 %v5307, 8
        %v5390 = vpop.permute.xlu0 %5389
        %5391 = vrot.lane.b32.xlu0 %v5308, 8
        %v5392 = vpop.permute.xlu0 %5391
        %5393 = vrot.lane.b32.xlu0 %v5309, 8
        %v5394 = vpop.permute.xlu0 %5393
        %5395 = vrot.lane.b32.xlu0 %v5310, 8
        %v5396 = vpop.permute.xlu0 %5395
        %5397 = vrot.lane.b32.xlu0 %v5311, 8
        %v5398 = vpop.permute.xlu0 %5397
        %5399 = vrot.lane.b32.xlu0 %v5312, 8
        %v5400 = vpop.permute.xlu0 %5399
        %5431 = vrot.lane.b32.xlu0 %v5287, 16
        %v5432 = vpop.permute.xlu0 %5431
        %5433 = vrot.lane.b32.xlu0 %v5288, 16
        %v5434 = vpop.permute.xlu0 %5433
        %5435 = vrot.lane.b32.xlu0 %v5285, 16
        %v5436 = vpop.permute.xlu0 %5435
        %5437 = vrot.lane.b32.xlu0 %v5286, 16
        %v5438 = vpop.permute.xlu0 %5437
        %5439 = vrot.lane.b32.xlu0 %v5289, 16
        %v5440 = vpop.permute.xlu0 %5439
        %5441 = vrot.lane.b32.xlu0 %v5290, 16
        %v5442 = vpop.permute.xlu0 %5441
        %5443 = vrot.lane.b32.xlu0 %v5291, 16
        %v5444 = vpop.permute.xlu0 %5443
        %5445 = vrot.lane.b32.xlu0 %v5292, 16
        %v5446 = vpop.permute.xlu0 %5445
        %5447 = vrot.lane.b32.xlu0 %v5293, 16
        %v5448 = vpop.permute.xlu0 %5447
        %5449 = vrot.lane.b32.xlu0 %v5294, 16
        %v5450 = vpop.permute.xlu0 %5449
        %5451 = vrot.lane.b32.xlu0 %v5295, 16
        %v5452 = vpop.permute.xlu0 %5451
        %5453 = vrot.lane.b32.xlu0 %v5296, 16
        %v5454 = vpop.permute.xlu0 %5453
        %5455 = vrot.lane.b32.xlu0 %v5297, 16
        %v5456 = vpop.permute.xlu0 %5455
        %5457 = vrot.lane.b32.xlu0 %v5298, 16
        %v5458 = vpop.permute.xlu0 %5457
        %5459 = vrot.lane.b32.xlu0 %v5299, 16
        %v5460 = vpop.permute.xlu0 %5459
        %5461 = vrot.lane.b32.xlu0 %v5300, 16
        %v5462 = vpop.permute.xlu0 %5461
        %5463 = vrot.lane.b32.xlu0 %v5301, 16
        %v5464 = vpop.permute.xlu0 %5463
        %5465 = vrot.lane.b32.xlu0 %v5302, 16
        %v5466 = vpop.permute.xlu0 %5465
        %5467 = vrot.lane.b32.xlu0 %v5303, 16
        %v5468 = vpop.permute.xlu0 %5467
        %5469 = vrot.lane.b32.xlu0 %v5304, 16
        %v5470 = vpop.permute.xlu0 %5469
        %5471 = vrot.lane.b32.xlu0 %v5305, 16
        %v5472 = vpop.permute.xlu0 %5471
        %5473 = vrot.lane.b32.xlu0 %v5306, 16
        %v5474 = vpop.permute.xlu0 %5473
        %5475 = vrot.lane.b32.xlu0 %v5307, 16
        %v5476 = vpop.permute.xlu0 %5475
        %5477 = vrot.lane.b32.xlu0 %v5308, 16
        %v5478 = vpop.permute.xlu0 %5477
        %5479 = vrot.lane.b32.xlu0 %v5309, 16
        %v5480 = vpop.permute.xlu0 %5479
        %5481 = vrot.lane.b32.xlu0 %v5310, 16
        %v5482 = vpop.permute.xlu0 %5481
        %5483 = vrot.lane.b32.xlu0 %v5311, 16
        %v5484 = vpop.permute.xlu0 %5483
        %5485 = vrot.lane.b32.xlu0 %v5312, 16
        %v5486 = vpop.permute.xlu0 %5485
        %5487 = vrot.lane.b32.xlu0 %v5313, 16
        %v5488 = vpop.permute.xlu0 %5487
        %5489 = vrot.lane.b32.xlu0 %v5314, 16
        %v5490 = vpop.permute.xlu0 %5489
        %5523 = vrot.lane.b32.xlu0 %v5285, 24
        %v5524 = vpop.permute.xlu0 %5523
        %5525 = vrot.lane.b32.xlu0 %v5286, 24
        %v5526 = vpop.permute.xlu0 %5525
        %5527 = vrot.lane.b32.xlu0 %v5287, 24
        %v5528 = vpop.permute.xlu0 %5527
        %5529 = vrot.lane.b32.xlu0 %v5288, 24
        %v5530 = vpop.permute.xlu0 %5529
        %5531 = vrot.lane.b32.xlu0 %v5289, 24
        %v5532 = vpop.permute.xlu0 %5531
        %5533 = vrot.lane.b32.xlu0 %v5290, 24
        %v5534 = vpop.permute.xlu0 %5533
        %5535 = vrot.lane.b32.xlu0 %v5291, 24
        %v5536 = vpop.permute.xlu0 %5535
        %5537 = vrot.lane.b32.xlu0 %v5292, 24
        %v5538 = vpop.permute.xlu0 %5537
        %5539 = vrot.lane.b32.xlu0 %v5293, 24
        %v5540 = vpop.permute.xlu0 %5539
        %5541 = vrot.lane.b32.xlu0 %v5294, 24
        %v5542 = vpop.permute.xlu0 %5541
        %5543 = vrot.lane.b32.xlu0 %v5295, 24
        %v5544 = vpop.permute.xlu0 %5543
        %5545 = vrot.lane.b32.xlu0 %v5296, 24
        %v5546 = vpop.permute.xlu0 %5545
        %5547 = vrot.lane.b32.xlu0 %v5297, 24
        %v5548 = vpop.permute.xlu0 %5547
        %5549 = vrot.lane.b32.xlu0 %v5298, 24
        %v5550 = vpop.permute.xlu0 %5549
        %5551 = vrot.lane.b32.xlu0 %v5299, 24
        %v5552 = vpop.permute.xlu0 %5551
        %5553 = vrot.lane.b32.xlu0 %v5300, 24
        %v5554 = vpop.permute.xlu0 %5553
        %5555 = vrot.lane.b32.xlu0 %v5301, 24
        %v5556 = vpop.permute.xlu0 %5555
        %5557 = vrot.lane.b32.xlu0 %v5302, 24
        %v5558 = vpop.permute.xlu0 %5557
        %5559 = vrot.lane.b32.xlu0 %v5303, 24
        %v5560 = vpop.permute.xlu0 %5559
        %5561 = vrot.lane.b32.xlu0 %v5304, 24
        %v5562 = vpop.permute.xlu0 %5561
        %5563 = vrot.lane.b32.xlu0 %v5305, 24
        %v5564 = vpop.permute.xlu0 %5563
        %5565 = vrot.lane.b32.xlu0 %v5306, 24
        %v5566 = vpop.permute.xlu0 %5565
        %5567 = vrot.lane.b32.xlu0 %v5307, 24
        %v5568 = vpop.permute.xlu0 %5567
        %5569 = vrot.lane.b32.xlu0 %v5308, 24
        %v5570 = vpop.permute.xlu0 %5569
        %5571 = vrot.lane.b32.xlu0 %v5309, 24
        %v5572 = vpop.permute.xlu0 %5571
        %5573 = vrot.lane.b32.xlu0 %v5310, 24
        %v5574 = vpop.permute.xlu0 %5573
        %5575 = vrot.lane.b32.xlu0 %v5311, 24
        %v5576 = vpop.permute.xlu0 %5575
        %5577 = vrot.lane.b32.xlu0 %v5312, 24
        %v5578 = vpop.permute.xlu0 %5577
        %5579 = vrot.lane.b32.xlu0 %v5313, 24
        %v5580 = vpop.permute.xlu0 %5579
        %5581 = vrot.lane.b32.xlu0 %v5314, 24
        %v5582 = vpop.permute.xlu0 %5581
        %5583 = vrot.lane.b32.xlu0 %v5315, 24
        %v5584 = vpop.permute.xlu0 %5583
        %5585 = vrot.lane.b32.xlu0 %v5316, 24
        %v5586 = vpop.permute.xlu0 %5585
        %5619 = vrot.lane.b32.xlu0 %v5287, 32
        %v5620 = vpop.permute.xlu0 %5619
        %5621 = vrot.lane.b32.xlu0 %v5288, 32
        %v5622 = vpop.permute.xlu0 %5621
        %5623 = vrot.lane.b32.xlu0 %v5289, 32
        %v5624 = vpop.permute.xlu0 %5623
        %5625 = vrot.lane.b32.xlu0 %v5290, 32
        %v5626 = vpop.permute.xlu0 %5625
        %5627 = vrot.lane.b32.xlu0 %v5291, 32
        %v5628 = vpop.permute.xlu0 %5627
        %5629 = vrot.lane.b32.xlu0 %v5292, 32
        %v5630 = vpop.permute.xlu0 %5629
        %5631 = vrot.lane.b32.xlu0 %v5293, 32
        %v5632 = vpop.permute.xlu0 %5631
        %5633 = vrot.lane.b32.xlu0 %v5294, 32
        %v5634 = vpop.permute.xlu0 %5633
        %5635 = vrot.lane.b32.xlu0 %v5295, 32
        %v5636 = vpop.permute.xlu0 %5635
        %5637 = vrot.lane.b32.xlu0 %v5296, 32
        %v5638 = vpop.permute.xlu0 %5637
        %5639 = vrot.lane.b32.xlu0 %v5297, 32
        %v5640 = vpop.permute.xlu0 %5639
        %5641 = vrot.lane.b32.xlu0 %v5298, 32
        %v5642 = vpop.permute.xlu0 %5641
        %5643 = vrot.lane.b32.xlu0 %v5299, 32
        %v5644 = vpop.permute.xlu0 %5643
        %5645 = vrot.lane.b32.xlu0 %v5300, 32
        %v5646 = vpop.permute.xlu0 %5645
        %5647 = vrot.lane.b32.xlu0 %v5301, 32
        %v5648 = vpop.permute.xlu0 %5647
        %5649 = vrot.lane.b32.xlu0 %v5302, 32
        %v5650 = vpop.permute.xlu0 %5649
        %5651 = vrot.lane.b32.xlu0 %v5303, 32
        %v5652 = vpop.permute.xlu0 %5651
        %5653 = vrot.lane.b32.xlu0 %v5304, 32
        %v5654 = vpop.permute.xlu0 %5653
        %5655 = vrot.lane.b32.xlu0 %v5305, 32
        %v5656 = vpop.permute.xlu0 %5655
        %5657 = vrot.lane.b32.xlu0 %v5306, 32
        %v5658 = vpop.permute.xlu0 %5657
        %5659 = vrot.lane.b32.xlu0 %v5307, 32
        %v5660 = vpop.permute.xlu0 %5659
        %5661 = vrot.lane.b32.xlu0 %v5308, 32
        %v5662 = vpop.permute.xlu0 %5661
        %5663 = vrot.lane.b32.xlu0 %v5309, 32
        %v5664 = vpop.permute.xlu0 %5663
        %5665 = vrot.lane.b32.xlu0 %v5310, 32
        %v5666 = vpop.permute.xlu0 %5665
        %5667 = vrot.lane.b32.xlu0 %v5311, 32
        %v5668 = vpop.permute.xlu0 %5667
        %5669 = vrot.lane.b32.xlu0 %v5312, 32
        %v5670 = vpop.permute.xlu0 %5669
        %5671 = vrot.lane.b32.xlu0 %v5313, 32
        %v5672 = vpop.permute.xlu0 %5671
        %5673 = vrot.lane.b32.xlu0 %v5314, 32
        %v5674 = vpop.permute.xlu0 %5673
        %5675 = vrot.lane.b32.xlu0 %v5315, 32
        %v5676 = vpop.permute.xlu0 %5675
        %5677 = vrot.lane.b32.xlu0 %v5316, 32
        %v5678 = vpop.permute.xlu0 %5677
        %5709 = vrot.lane.b32.xlu0 %v5289, 40
        %v5710 = vpop.permute.xlu0 %5709
        %5711 = vrot.lane.b32.xlu0 %v5290, 40
        %v5712 = vpop.permute.xlu0 %5711
        %5713 = vrot.lane.b32.xlu0 %v5291, 40
        %v5714 = vpop.permute.xlu0 %5713
        %5715 = vrot.lane.b32.xlu0 %v5292, 40
        %v5716 = vpop.permute.xlu0 %5715
        %5717 = vrot.lane.b32.xlu0 %v5293, 40
        %v5718 = vpop.permute.xlu0 %5717
        %5719 = vrot.lane.b32.xlu0 %v5294, 40
        %v5720 = vpop.permute.xlu0 %5719
        %5721 = vrot.lane.b32.xlu0 %v5295, 40
        %v5722 = vpop.permute.xlu0 %5721
        %5723 = vrot.lane.b32.xlu0 %v5296, 40
        %v5724 = vpop.permute.xlu0 %5723
        %5725 = vrot.lane.b32.xlu0 %v5297, 40
        %v5726 = vpop.permute.xlu0 %5725
        %5727 = vrot.lane.b32.xlu0 %v5298, 40
        %v5728 = vpop.permute.xlu0 %5727
        %5729 = vrot.lane.b32.xlu0 %v5299, 40
        %v5730 = vpop.permute.xlu0 %5729
        %5731 = vrot.lane.b32.xlu0 %v5300, 40
        %v5732 = vpop.permute.xlu0 %5731
        %5733 = vrot.lane.b32.xlu0 %v5301, 40
        %v5734 = vpop.permute.xlu0 %5733
        %5735 = vrot.lane.b32.xlu0 %v5302, 40
        %v5736 = vpop.permute.xlu0 %5735
        %5737 = vrot.lane.b32.xlu0 %v5303, 40
        %v5738 = vpop.permute.xlu0 %5737
        %5739 = vrot.lane.b32.xlu0 %v5304, 40
        %v5740 = vpop.permute.xlu0 %5739
        %5741 = vrot.lane.b32.xlu0 %v5305, 40
        %v5742 = vpop.permute.xlu0 %5741
        %5743 = vrot.lane.b32.xlu0 %v5306, 40
        %v5744 = vpop.permute.xlu0 %5743
        %5745 = vrot.lane.b32.xlu0 %v5307, 40
        %v5746 = vpop.permute.xlu0 %5745
        %5747 = vrot.lane.b32.xlu0 %v5308, 40
        %v5748 = vpop.permute.xlu0 %5747
        %5749 = vrot.lane.b32.xlu0 %v5309, 40
        %v5750 = vpop.permute.xlu0 %5749
        %5751 = vrot.lane.b32.xlu0 %v5310, 40
        %v5752 = vpop.permute.xlu0 %5751
        %5753 = vrot.lane.b32.xlu0 %v5311, 40
        %v5754 = vpop.permute.xlu0 %5753
        %5755 = vrot.lane.b32.xlu0 %v5312, 40
        %v5756 = vpop.permute.xlu0 %5755
        %5757 = vrot.lane.b32.xlu0 %v5313, 40
        %v5758 = vpop.permute.xlu0 %5757
        %5759 = vrot.lane.b32.xlu0 %v5314, 40
        %v5760 = vpop.permute.xlu0 %5759
        %5761 = vrot.lane.b32.xlu0 %v5315, 40
        %v5762 = vpop.permute.xlu0 %5761
        %5763 = vrot.lane.b32.xlu0 %v5316, 40
        %v5764 = vpop.permute.xlu0 %5763
        %5793 = vrot.lane.b32.xlu0 %v5291, 48
        %v5794 = vpop.permute.xlu0 %5793
        %5795 = vrot.lane.b32.xlu0 %v5292, 48
        %v5796 = vpop.permute.xlu0 %5795
        %5797 = vrot.lane.b32.xlu0 %v5293, 48
        %v5798 = vpop.permute.xlu0 %5797
        %5799 = vrot.lane.b32.xlu0 %v5294, 48
        %v5800 = vpop.permute.xlu0 %5799
        %5801 = vrot.lane.b32.xlu0 %v5295, 48
        %v5802 = vpop.permute.xlu0 %5801
        %5803 = vrot.lane.b32.xlu0 %v5296, 48
        %v5804 = vpop.permute.xlu0 %5803
        %5805 = vrot.lane.b32.xlu0 %v5297, 48
        %v5806 = vpop.permute.xlu0 %5805
        %5807 = vrot.lane.b32.xlu0 %v5298, 48
        %v5808 = vpop.permute.xlu0 %5807
        %5809 = vrot.lane.b32.xlu0 %v5299, 48
        %v5810 = vpop.permute.xlu0 %5809
        %5811 = vrot.lane.b32.xlu0 %v5300, 48
        %v5812 = vpop.permute.xlu0 %5811
        %5813 = vrot.lane.b32.xlu0 %v5301, 48
        %v5814 = vpop.permute.xlu0 %5813
        %5815 = vrot.lane.b32.xlu0 %v5302, 48
        %v5816 = vpop.permute.xlu0 %5815
        %5817 = vrot.lane.b32.xlu0 %v5303, 48
        %v5818 = vpop.permute.xlu0 %5817
        %5819 = vrot.lane.b32.xlu0 %v5304, 48
        %v5820 = vpop.permute.xlu0 %5819
        %5821 = vrot.lane.b32.xlu0 %v5305, 48
        %v5822 = vpop.permute.xlu0 %5821
        %5823 = vrot.lane.b32.xlu0 %v5306, 48
        %v5824 = vpop.permute.xlu0 %5823
        %5825 = vrot.lane.b32.xlu0 %v5307, 48
        %v5826 = vpop.permute.xlu0 %5825
        %5827 = vrot.lane.b32.xlu0 %v5308, 48
        %v5828 = vpop.permute.xlu0 %5827
        %5829 = vrot.lane.b32.xlu0 %v5309, 48
        %v5830 = vpop.permute.xlu0 %5829
        %5831 = vrot.lane.b32.xlu0 %v5310, 48
        %v5832 = vpop.permute.xlu0 %5831
        %5833 = vrot.lane.b32.xlu0 %v5311, 48
        %v5834 = vpop.permute.xlu0 %5833
        %5835 = vrot.lane.b32.xlu0 %v5312, 48
        %v5836 = vpop.permute.xlu0 %5835
        %5837 = vrot.lane.b32.xlu0 %v5313, 48
        %v5838 = vpop.permute.xlu0 %5837
        %5839 = vrot.lane.b32.xlu0 %v5314, 48
        %v5840 = vpop.permute.xlu0 %5839
        %5841 = vrot.lane.b32.xlu0 %v5315, 48
        %v5842 = vpop.permute.xlu0 %5841
        %5843 = vrot.lane.b32.xlu0 %v5316, 48
        %v5844 = vpop.permute.xlu0 %5843
        %v5871 = vsel %vm2471, %v5291, %v5346
        %v5872 = vsel %vm2471, %v5292, %v5348
        %v5873 = vsel %vm2471, %v5289, %v5350
        %v5874 = vsel %vm2471, %v5290, %v5352
        %v5875 = vsel %vm2471, %v5287, %v5354
        %v5876 = vsel %vm2471, %v5288, %v5356
        %v5877 = vsel %vm2471, %v5285, %v5350
        %v5878 = vsel %vm2471, %v5286, %v5352
        %v5879 = vsel %vm2471, %v5287, %v5346
        %v5880 = vsel %vm2471, %v5288, %v5348
        %v5881 = vsel %vm2471, %v5289, %v5358
        %v5882 = vsel %vm2471, %v5290, %v5360
        %v5883 = vsel %vm2471, %v5291, %v5362
        %v5884 = vsel %vm2471, %v5292, %v5364
        %v5885 = vsel %vm2471, %v5293, %v5366
        %v5886 = vsel %vm2471, %v5294, %v5368
        %v5887 = vsel %vm2471, %v5295, %v5370
        %v5888 = vsel %vm2471, %v5296, %v5372
        %v5889 = vsel %vm2471, %v5297, %v5374
        %v5890 = vsel %vm2471, %v5298, %v5376
        %v5891 = vsel %vm2471, %v5299, %v5378
        %v5892 = vsel %vm2471, %v5300, %v5380
        %v5893 = vsel %vm2471, %v5301, %v5382
        %v5894 = vsel %vm2471, %v5302, %v5384
        %v5895 = vsel %vm2471, %v5303, %v5386
        %v5896 = vsel %vm2471, %v5304, %v5388
        %v5897 = vsel %vm2471, %v5305, %v5390
        %v5898 = vsel %vm2471, %v5306, %v5392
        %v5899 = vsel %vm2471, %v5307, %v5394
        %v5900 = vsel %vm2471, %v5308, %v5396
        %v5901 = vsel %vm2471, %v5309, %v5398
        %v5902 = vsel %vm2471, %v5310, %v5400
        %v5903 = vsel %vm2504, %v5871, %v5432
        %v5904 = vsel %vm2504, %v5872, %v5434
        %v5905 = vsel %vm2504, %v5873, %v5436
        %v5906 = vsel %vm2504, %v5874, %v5438
        %v5907 = vsel %vm2504, %v5875, %v5432
        %v5908 = vsel %vm2504, %v5876, %v5434
        %v5909 = vsel %vm2504, %v5877, %v5440
        %v5910 = vsel %vm2504, %v5878, %v5442
        %v5911 = vsel %vm2504, %v5879, %v5444
        %v5912 = vsel %vm2504, %v5880, %v5446
        %v5913 = vsel %vm2504, %v5881, %v5448
        %v5914 = vsel %vm2504, %v5882, %v5450
        %v5915 = vsel %vm2504, %v5883, %v5452
        %v5916 = vsel %vm2504, %v5884, %v5454
        %v5917 = vsel %vm2504, %v5885, %v5456
        %v5918 = vsel %vm2504, %v5886, %v5458
        %v5919 = vsel %vm2504, %v5887, %v5460
        %v5920 = vsel %vm2504, %v5888, %v5462
        %v5921 = vsel %vm2504, %v5889, %v5464
        %v5922 = vsel %vm2504, %v5890, %v5466
        %v5923 = vsel %vm2504, %v5891, %v5468
        %v5924 = vsel %vm2504, %v5892, %v5470
        %v5925 = vsel %vm2504, %v5893, %v5472
        %v5926 = vsel %vm2504, %v5894, %v5474
        %v5927 = vsel %vm2504, %v5895, %v5476
        %v5928 = vsel %vm2504, %v5896, %v5478
        %v5929 = vsel %vm2504, %v5897, %v5480
        %v5930 = vsel %vm2504, %v5898, %v5482
        %v5931 = vsel %vm2504, %v5899, %v5484
        %v5932 = vsel %vm2504, %v5900, %v5486
        %v5933 = vsel %vm2504, %v5901, %v5488
        %v5934 = vsel %vm2504, %v5902, %v5490
        %v5935 = vsel %vm2537, %v5903, %v5524
        %v5936 = vsel %vm2537, %v5904, %v5526
        %v5937 = vsel %vm2537, %v5905, %v5528
        %v5938 = vsel %vm2537, %v5906, %v5530
        %v5939 = vsel %vm2537, %v5907, %v5532
        %v5940 = vsel %vm2537, %v5908, %v5534
        %v5941 = vsel %vm2537, %v5909, %v5536
        %v5942 = vsel %vm2537, %v5910, %v5538
        %v5943 = vsel %vm2537, %v5911, %v5540
        %v5944 = vsel %vm2537, %v5912, %v5542
        %v5945 = vsel %vm2537, %v5913, %v5544
        %v5946 = vsel %vm2537, %v5914, %v5546
        %v5947 = vsel %vm2537, %v5915, %v5548
        %v5948 = vsel %vm2537, %v5916, %v5550
        %v5949 = vsel %vm2537, %v5917, %v5552
        %v5950 = vsel %vm2537, %v5918, %v5554
        %v5951 = vsel %vm2537, %v5919, %v5556
        %v5952 = vsel %vm2537, %v5920, %v5558
        %v5953 = vsel %vm2537, %v5921, %v5560
        %v5954 = vsel %vm2537, %v5922, %v5562
        %v5955 = vsel %vm2537, %v5923, %v5564
        %v5956 = vsel %vm2537, %v5924, %v5566
        %v5957 = vsel %vm2537, %v5925, %v5568
        %v5958 = vsel %vm2537, %v5926, %v5570
        %v5959 = vsel %vm2537, %v5927, %v5572
        %v5960 = vsel %vm2537, %v5928, %v5574
        %v5961 = vsel %vm2537, %v5929, %v5576
        %v5962 = vsel %vm2537, %v5930, %v5578
        %v5963 = vsel %vm2537, %v5931, %v5580
        %v5964 = vsel %vm2537, %v5932, %v5582
        %v5965 = vsel %vm2537, %v5933, %v5584
        %v5966 = vsel %vm2537, %v5934, %v5586
        %v5967 = vsel %vm2570, %v5935, %v5620
        %v5968 = vsel %vm2570, %v5936, %v5622
        %v5969 = vsel %vm2570, %v5937, %v5624
        %v5970 = vsel %vm2570, %v5938, %v5626
        %v5971 = vsel %vm2570, %v5939, %v5628
        %v5972 = vsel %vm2570, %v5940, %v5630
        %v5973 = vsel %vm2570, %v5941, %v5632
        %v5974 = vsel %vm2570, %v5942, %v5634
        %v5975 = vsel %vm2570, %v5943, %v5636
        %v5976 = vsel %vm2570, %v5944, %v5638
        %v5977 = vsel %vm2570, %v5945, %v5640
        %v5978 = vsel %vm2570, %v5946, %v5642
        %v5979 = vsel %vm2570, %v5947, %v5644
        %v5980 = vsel %vm2570, %v5948, %v5646
        %v5981 = vsel %vm2570, %v5949, %v5648
        %v5982 = vsel %vm2570, %v5950, %v5650
        %v5983 = vsel %vm2570, %v5951, %v5652
        %v5984 = vsel %vm2570, %v5952, %v5654
        %v5985 = vsel %vm2570, %v5953, %v5656
        %v5986 = vsel %vm2570, %v5954, %v5658
        %v5987 = vsel %vm2570, %v5955, %v5660
        %v5988 = vsel %vm2570, %v5956, %v5662
        %v5989 = vsel %vm2570, %v5957, %v5664
        %v5990 = vsel %vm2570, %v5958, %v5666
        %v5991 = vsel %vm2570, %v5959, %v5668
        %v5992 = vsel %vm2570, %v5960, %v5670
        %v5993 = vsel %vm2570, %v5961, %v5672
        %v5994 = vsel %vm2570, %v5962, %v5674
        %v5995 = vsel %vm2570, %v5963, %v5676
        %v5996 = vsel %vm2570, %v5964, %v5678
        %v5997 = vsel %vm2570, %v5965, %v5672
        %v5998 = vsel %vm2570, %v5966, %v5674
        %v5999 = vsel %vm2603, %v5967, %v5710
        %v6000 = vsel %vm2603, %v5968, %v5712
        %v6001 = vsel %vm2603, %v5969, %v5714
        %v6002 = vsel %vm2603, %v5970, %v5716
        %v6003 = vsel %vm2603, %v5971, %v5718
        %v6004 = vsel %vm2603, %v5972, %v5720
        %v6005 = vsel %vm2603, %v5973, %v5722
        %v6006 = vsel %vm2603, %v5974, %v5724
        %v6007 = vsel %vm2603, %v5975, %v5726
        %v6008 = vsel %vm2603, %v5976, %v5728
        %v6009 = vsel %vm2603, %v5977, %v5730
        %v6010 = vsel %vm2603, %v5978, %v5732
        %v6011 = vsel %vm2603, %v5979, %v5734
        %v6012 = vsel %vm2603, %v5980, %v5736
        %v6013 = vsel %vm2603, %v5981, %v5738
        %v6014 = vsel %vm2603, %v5982, %v5740
        %v6015 = vsel %vm2603, %v5983, %v5742
        %v6016 = vsel %vm2603, %v5984, %v5744
        %v6017 = vsel %vm2603, %v5985, %v5746
        %v6018 = vsel %vm2603, %v5986, %v5748
        %v6019 = vsel %vm2603, %v5987, %v5750
        %v6020 = vsel %vm2603, %v5988, %v5752
        %v6021 = vsel %vm2603, %v5989, %v5754
        %v6022 = vsel %vm2603, %v5990, %v5756
        %v6023 = vsel %vm2603, %v5991, %v5758
        %v6024 = vsel %vm2603, %v5992, %v5760
        %v6025 = vsel %vm2603, %v5993, %v5762
        %v6026 = vsel %vm2603, %v5994, %v5764
        %v6027 = vsel %vm2603, %v5995, %v5758
        %v6028 = vsel %vm2603, %v5996, %v5760
        %v6029 = vsel %vm2603, %v5997, %v5754
        %v6030 = vsel %vm2603, %v5998, %v5756
        %v6031 = vsel %vm2636, %v5999, %v5794
        %v6032 = vsel %vm2636, %v6000, %v5796
        %v6033 = vsel %vm2636, %v6001, %v5798
        %v6034 = vsel %vm2636, %v6002, %v5800
        %v6035 = vsel %vm2636, %v6003, %v5802
        %v6036 = vsel %vm2636, %v6004, %v5804
        %v6037 = vsel %vm2636, %v6005, %v5806
        %v6038 = vsel %vm2636, %v6006, %v5808
        %v6039 = vsel %vm2636, %v6007, %v5810
        %v6040 = vsel %vm2636, %v6008, %v5812
        %v6041 = vsel %vm2636, %v6009, %v5814
        %v6042 = vsel %vm2636, %v6010, %v5816
        %v6043 = vsel %vm2636, %v6011, %v5818
        %v6044 = vsel %vm2636, %v6012, %v5820
        %v6045 = vsel %vm2636, %v6013, %v5822
        %v6046 = vsel %vm2636, %v6014, %v5824
        %v6047 = vsel %vm2636, %v6015, %v5826
        %v6048 = vsel %vm2636, %v6016, %v5828
        %v6049 = vsel %vm2636, %v6017, %v5830
        %v6050 = vsel %vm2636, %v6018, %v5832
        %v6051 = vsel %vm2636, %v6019, %v5834
        %v6052 = vsel %vm2636, %v6020, %v5836
        %v6053 = vsel %vm2636, %v6021, %v5838
        %v6054 = vsel %vm2636, %v6022, %v5840
        %v6055 = vsel %vm2636, %v6023, %v5842
        %v6056 = vsel %vm2636, %v6024, %v5844
        %v6057 = vsel %vm2636, %v6025, %v5838
        %v6058 = vsel %vm2636, %v6026, %v5840
        %v6059 = vsel %vm2636, %v6027, %v5834
        %v6060 = vsel %vm2636, %v6028, %v5836
        %v6061 = vsel %vm2636, %v6029, %v5830
        %v6062 = vsel %vm2636, %v6030, %v5832
        %v6063 = vld [vmem:[%s9] sm:$0xff]
        %v6064 = vld [vmem:[%s9 + $0x8] sm:$0xff]
        %v6065 = vld [vmem:[%s9 + $0x10] sm:$0xff]
        %v6066 = vld [vmem:[%s9 + $0x18] sm:$0xff]
        %v6067 = vld [vmem:[%s9 + $0x20] sm:$0xff]
        %v6068 = vld [vmem:[%s9 + $0x28] sm:$0xff]
        %v6069 = vld [vmem:[%s9 + $0x30] sm:$0xff]
        %v6070 = vld [vmem:[%s10] sm:$0x1]
        %v6072 = vlaneseq
        %v6073 = vshrl.u32 %v6072, 7
        %v6074 = vsub.s32 0, %v6073
        %v6075 = vrot.slane %v6070, %v6074
        %v6078 = vsel %vm2683, %v6031, 0
        %v6081 = vsel %vm2683, %v6032, 0
        %v6084 = vsel %vm2683, %v6033, 0
        %v6087 = vsel %vm2683, %v6034, 0
        %v6090 = vsel %vm2683, %v6035, 0
        %v6093 = vsel %vm2683, %v6036, 0
        %v6096 = vsel %vm2683, %v6037, 0
        %v6099 = vsel %vm2683, %v6038, 0
        %v6102 = vsel %vm2683, %v6039, 0
        %v6105 = vsel %vm2683, %v6040, 0
        %v6108 = vsel %vm2683, %v6041, 0
        %v6111 = vsel %vm2683, %v6042, 0
        %v6114 = vsel %vm2683, %v6043, 0
        %v6117 = vsel %vm2683, %v6044, 0
        %v6120 = vsel %vm2683, %v6045, 0
        %v6123 = vsel %vm2683, %v6046, 0
        %v6126 = vsel %vm2683, %v6047, 0
        %v6129 = vsel %vm2683, %v6048, 0
        %v6132 = vsel %vm2683, %v6049, 0
        %v6135 = vsel %vm2683, %v6050, 0
        %v6138 = vsel %vm2683, %v6051, 0
        %v6141 = vsel %vm2683, %v6052, 0
        %v6144 = vsel %vm2683, %v6053, 0
        %v6147 = vsel %vm2683, %v6054, 0
        %v6150 = vsel %vm2683, %v6055, 0
        %v6153 = vsel %vm2683, %v6056, 0
        %v6156 = vsel %vm2683, %v6057, 0
        %v6159 = vsel %vm2683, %v6058, 0
        %v6162 = vsel %vm2683, %v6059, 0
        %v6165 = vsel %vm2683, %v6060, 0
        %v6168 = vsel %vm2683, %v6061, 0
        %v6171 = vsel %vm2683, %v6062, 0
        %6173 = vmatprep.subr.mxu0 0.0
        %6174 = vmatpush1.msra.mxu0 %v6063
        %6175 = vmatprep.subr.mxu0 0.0
        %6176 = vmatpush1.msra.mxu0 %v6064
        %6177 = vmatprep.subr.mxu0 0.0
        %6178 = vmatpush1.msra.mxu0 %v6065
        %6179 = vmatprep.subr.mxu0 0.0
        %6180 = vmatpush1.msra.mxu0 %v6066
        %6181 = vmatprep.subr.mxu0 0.0
        %6182 = vmatpush1.msra.mxu0 %v6067
        %6183 = vmatprep.subr.mxu0 0.0
        %6184 = vmatpush1.msra.mxu0 %v6068
        %6185 = vmatprep.subr.mxu0 0.0
        %6186 = vmatpush1.msra.mxu0 %v6069
        %6187 = vmatprep.subr.mxu0 0.0
        %6188 = vmatpush1.msra.mxu0 0.0
        %6189 = vmatprep.subr.mxu0 0.0
        %6190 = vmatpush1.msra.mxu0 0.0
        %6191 = vmatprep.subr.mxu0 0.0
        %6192 = vmatpush1.msra.mxu0 0.0
        %6193 = vmatprep.subr.mxu0 0.0
        %6194 = vmatpush1.msra.mxu0 0.0
        %6195 = vmatprep.subr.mxu0 0.0
        %6196 = vmatpush1.msra.mxu0 0.0
        %6197 = vmatprep.subr.mxu0 0.0
        %6198 = vmatpush1.msra.mxu0 0.0
        %6199 = vmatprep.subr.mxu0 0.0
        %6200 = vmatpush1.msra.mxu0 0.0
        %6201 = vmatprep.subr.mxu0 0.0
        %6202 = vmatpush1.msra.mxu0 0.0
        %6203 = vmatprep.subr.mxu0 0.0
        %6204 = vmatpush1.msra.mxu0 0.0
        %6205 = vmatprep.subr.mxu0 0.0
        %6206 = vmatpush1.msra.mxu0 0.0
        %6207 = vmatprep.subr.mxu0 0.0
        %6208 = vmatpush1.msra.mxu0 0.0
        %6209 = vmatprep.subr.mxu0 0.0
        %6210 = vmatpush1.msra.mxu0 0.0
        %6211 = vmatprep.subr.mxu0 0.0
        %6212 = vmatpush1.msra.mxu0 0.0
        %6213 = vmatprep.subr.mxu0 0.0
        %6214 = vmatpush1.msra.mxu0 0.0
        %6215 = vmatprep.subr.mxu0 0.0
        %6216 = vmatpush1.msra.mxu0 0.0
        %6217 = vmatprep.subr.mxu0 0.0
        %6218 = vmatpush1.msra.mxu0 0.0
        %6219 = vmatprep.subr.mxu0 0.0
        %6220 = vmatpush1.msra.mxu0 0.0
        %6221 = vmatprep.subr.mxu0 0.0
        %6222 = vmatpush1.msra.mxu0 0.0
        %6223 = vmatprep.subr.mxu0 0.0
        %6224 = vmatpush1.msra.mxu0 0.0
        %6225 = vmatprep.subr.mxu0 0.0
        %6226 = vmatpush1.msra.mxu0 0.0
        %6227 = vmatprep.subr.mxu0 0.0
        %6228 = vmatpush1.msra.mxu0 0.0
        %6229 = vmatprep.subr.mxu0 0.0
        %6230 = vmatpush1.msra.mxu0 0.0
        %6231 = vmatprep.subr.mxu0 0.0
        %6232 = vmatpush1.msra.mxu0 0.0
        %6233 = vmatprep.subr.mxu0 0.0
        %6234 = vmatpush1.msra.mxu0 0.0
        %6235 = vmatprep.subr.mxu0 0.0
        %6236 = vmatpush1.msra.mxu0 0.0
        %6237 = vmatprep.mubr.f32.mxu0 0.0
        %6238 = vmatmul.mubr.f32.gmra.mrb[0].mxu0 %v6078
        %v6239 = vpop.f32.mrb[0].mxu0
        %v6240 = vadd.f32 %v6075, %v6239
        %v6241 = vpop.f32.mrb[0].mxu0
        %6242 = vmatprep.mubr.f32.mxu0 0.0
        %6243 = vmatmul.mubr.f32.gmra.mrb[0].mxu0 %v6081
        %v6244 = vpop.f32.mrb[0].mxu0
        %v6245 = vadd.f32 %v6075, %v6244
        %v6246 = vpop.f32.mrb[0].mxu0
        %6247 = vmatprep.mubr.f32.mxu0 0.0
        %6248 = vmatmul.mubr.f32.gmra.mrb[0].mxu0 %v6084
        %v6249 = vpop.f32.mrb[0].mxu0
        %v6250 = vadd.f32 %v6075, %v6249
        %v6251 = vpop.f32.mrb[0].mxu0
        %6252 = vmatprep.mubr.f32.mxu0 0.0
        %6253 = vmatmul.mubr.f32.gmra.mrb[0].mxu0 %v6087
        %v6254 = vpop.f32.mrb[0].mxu0
        %v6255 = vadd.f32 %v6075, %v6254
        %v6256 = vpop.f32.mrb[0].mxu0
        %6257 = vmatprep.mubr.f32.mxu0 0.0
        %6258 = vmatmul.mubr.f32.gmra.mrb[0].mxu0 %v6090
        %v6259 = vpop.f32.mrb[0].mxu0
        %v6260 = vadd.f32 %v6075, %v6259
        %v6261 = vpop.f32.mrb[0].mxu0
        %6262 = vmatprep.mubr.f32.mxu0 0.0
        %6263 = vmatmul.mubr.f32.gmra.mrb[0].mxu0 %v6093
        %v6264 = vpop.f32.mrb[0].mxu0
        %v6265 = vadd.f32 %v6075, %v6264
        %v6266 = vpop.f32.mrb[0].mxu0
        %6267 = vmatprep.mubr.f32.mxu0 0.0
        %6268 = vmatmul.mubr.f32.gmra.mrb[0].mxu0 %v6096
        %v6269 = vpop.f32.mrb[0].mxu0
        %v6270 = vadd.f32 %v6075, %v6269
        %v6271 = vpop.f32.mrb[0].mxu0
        %6272 = vmatprep.mubr.f32.mxu0 0.0
        %6273 = vmatmul.mubr.f32.gmra.mrb[0].mxu0 %v6099
        %v6274 = vpop.f32.mrb[0].mxu0
        %v6275 = vadd.f32 %v6075, %v6274
        %v6276 = vpop.f32.mrb[0].mxu0
        %6277 = vmatprep.mubr.f32.mxu0 0.0
        %6278 = vmatmul.mubr.f32.gmra.mrb[0].mxu0 %v6102
        %v6279 = vpop.f32.mrb[0].mxu0
        %v6280 = vadd.f32 %v6075, %v6279
        %v6281 = vpop.f32.mrb[0].mxu0
        %6282 = vmatprep.mubr.f32.mxu0 0.0
        %6283 = vmatmul.mubr.f32.gmra.mrb[0].mxu0 %v6105
        %v6284 = vpop.f32.mrb[0].mxu0
        %v6285 = vadd.f32 %v6075, %v6284
        %v6286 = vpop.f32.mrb[0].mxu0
        %6287 = vmatprep.mubr.f32.mxu0 0.0
        %6288 = vmatmul.mubr.f32.gmra.mrb[0].mxu0 %v6108
        %v6289 = vpop.f32.mrb[0].mxu0
        %v6290 = vadd.f32 %v6075, %v6289
        %v6291 = vpop.f32.mrb[0].mxu0
        %6292 = vmatprep.mubr.f32.mxu0 0.0
        %6293 = vmatmul.mubr.f32.gmra.mrb[0].mxu0 %v6111
        %v6294 = vpop.f32.mrb[0].mxu0
        %v6295 = vadd.f32 %v6075, %v6294
        %v6296 = vpop.f32.mrb[0].mxu0
        %6297 = vmatprep.mubr.f32.mxu0 0.0
        %6298 = vmatmul.mubr.f32.gmra.mrb[0].mxu0 %v6114
        %v6299 = vpop.f32.mrb[0].mxu0
        %v6300 = vadd.f32 %v6075, %v6299
        %v6301 = vpop.f32.mrb[0].mxu0
        %6302 = vmatprep.mubr.f32.mxu0 0.0
        %6303 = vmatmul.mubr.f32.gmra.mrb[0].mxu0 %v6117
        %v6304 = vpop.f32.mrb[0].mxu0
        %v6305 = vadd.f32 %v6075, %v6304
        %v6306 = vpop.f32.mrb[0].mxu0
        %6307 = vmatprep.mubr.f32.mxu0 0.0
        %6308 = vmatmul.mubr.f32.gmra.mrb[0].mxu0 %v6120
        %v6309 = vpop.f32.mrb[0].mxu0
        %v6310 = vadd.f32 %v6075, %v6309
        %v6311 = vpop.f32.mrb[0].mxu0
        %6312 = vmatprep.mubr.f32.mxu0 0.0
        %6313 = vmatmul.mubr.f32.gmra.mrb[0].mxu0 %v6123
        %v6314 = vpop.f32.mrb[0].mxu0
        %v6315 = vadd.f32 %v6075, %v6314
        %v6316 = vpop.f32.mrb[0].mxu0
        %6317 = vmatprep.mubr.f32.mxu0 0.0
        %6318 = vmatmul.mubr.f32.gmra.mrb[0].mxu0 %v6126
        %v6319 = vpop.f32.mrb[0].mxu0
        %v6320 = vadd.f32 %v6075, %v6319
        %v6321 = vpop.f32.mrb[0].mxu0
        %6322 = vmatprep.mubr.f32.mxu0 0.0
        %6323 = vmatmul.mubr.f32.gmra.mrb[0].mxu0 %v6129
        %v6324 = vpop.f32.mrb[0].mxu0
        %v6325 = vadd.f32 %v6075, %v6324
        %v6326 = vpop.f32.mrb[0].mxu0
        %6327 = vmatprep.mubr.f32.mxu0 0.0
        %6328 = vmatmul.mubr.f32.gmra.mrb[0].mxu0 %v6132
        %v6329 = vpop.f32.mrb[0].mxu0
        %v6330 = vadd.f32 %v6075, %v6329
        %v6331 = vpop.f32.mrb[0].mxu0
        %6332 = vmatprep.mubr.f32.mxu0 0.0
        %6333 = vmatmul.mubr.f32.gmra.mrb[0].mxu0 %v6135
        %v6334 = vpop.f32.mrb[0].mxu0
        %v6335 = vadd.f32 %v6075, %v6334
        %v6336 = vpop.f32.mrb[0].mxu0
        %6337 = vmatprep.mubr.f32.mxu0 0.0
        %6338 = vmatmul.mubr.f32.gmra.mrb[0].mxu0 %v6138
        %v6339 = vpop.f32.mrb[0].mxu0
        %v6340 = vadd.f32 %v6075, %v6339
        %v6341 = vpop.f32.mrb[0].mxu0
        %6342 = vmatprep.mubr.f32.mxu0 0.0
        %6343 = vmatmul.mubr.f32.gmra.mrb[0].mxu0 %v6141
        %v6344 = vpop.f32.mrb[0].mxu0
        %v6345 = vadd.f32 %v6075, %v6344
        %v6346 = vpop.f32.mrb[0].mxu0
        %6347 = vmatprep.mubr.f32.mxu0 0.0
        %6348 = vmatmul.mubr.f32.gmra.mrb[0].mxu0 %v6144
        %v6349 = vpop.f32.mrb[0].mxu0
        %v6350 = vadd.f32 %v6075, %v6349
        %v6351 = vpop.f32.mrb[0].mxu0
        %6352 = vmatprep.mubr.f32.mxu0 0.0
        %6353 = vmatmul.mubr.f32.gmra.mrb[0].mxu0 %v6147
        %v6354 = vpop.f32.mrb[0].mxu0
        %v6355 = vadd.f32 %v6075, %v6354
        %v6356 = vpop.f32.mrb[0].mxu0
        %6357 = vmatprep.mubr.f32.mxu0 0.0
        %6358 = vmatmul.mubr.f32.gmra.mrb[0].mxu0 %v6150
        %v6359 = vpop.f32.mrb[0].mxu0
        %v6360 = vadd.f32 %v6075, %v6359
        %v6361 = vpop.f32.mrb[0].mxu0
        %6362 = vmatprep.mubr.f32.mxu0 0.0
        %6363 = vmatmul.mubr.f32.gmra.mrb[0].mxu0 %v6153
        %v6364 = vpop.f32.mrb[0].mxu0
        %v6365 = vadd.f32 %v6075, %v6364
        %v6366 = vpop.f32.mrb[0].mxu0
        %6367 = vmatprep.mubr.f32.mxu0 0.0
        %6368 = vmatmul.mubr.f32.gmra.mrb[0].mxu0 %v6156
        %v6369 = vpop.f32.mrb[0].mxu0
        %v6370 = vadd.f32 %v6075, %v6369
        %v6371 = vpop.f32.mrb[0].mxu0
        %6372 = vmatprep.mubr.f32.mxu0 0.0
        %6373 = vmatmul.mubr.f32.gmra.mrb[0].mxu0 %v6159
        %v6374 = vpop.f32.mrb[0].mxu0
        %v6375 = vadd.f32 %v6075, %v6374
        %v6376 = vpop.f32.mrb[0].mxu0
        %6377 = vmatprep.mubr.f32.mxu0 0.0
        %6378 = vmatmul.mubr.f32.gmra.mrb[0].mxu0 %v6162
        %v6379 = vpop.f32.mrb[0].mxu0
        %v6380 = vadd.f32 %v6075, %v6379
        %v6381 = vpop.f32.mrb[0].mxu0
        %6382 = vmatprep.mubr.f32.mxu0 0.0
        %6383 = vmatmul.mubr.f32.gmra.mrb[0].mxu0 %v6165
        %v6384 = vpop.f32.mrb[0].mxu0
        %v6385 = vadd.f32 %v6075, %v6384
        %v6386 = vpop.f32.mrb[0].mxu0
        %6387 = vmatprep.mubr.f32.mxu0 0.0
        %6388 = vmatmul.mubr.f32.gmra.mrb[0].mxu0 %v6168
        %v6389 = vpop.f32.mrb[0].mxu0
        %v6390 = vadd.f32 %v6075, %v6389
        %v6391 = vpop.f32.mrb[0].mxu0
        %6392 = vmatprep.mubr.f32.mxu0 0.0
        %6393 = vmatmul.mubr.f32.gmra.mrb[0].mxu0 %v6171
        %v6394 = vpop.f32.mrb[0].mxu0
        %v6395 = vadd.f32 %v6075, %v6394
        %v6396 = vpop.f32.mrb[0].mxu0
        %6397 = vdwg.mxu0
        %v6398 = vmax.f32 %v6240, 0.0
        %v6399 = vmax.f32 %v6245, 0.0
        %v6400 = vmax.f32 %v6250, 0.0
        %v6401 = vmax.f32 %v6255, 0.0
        %v6402 = vmax.f32 %v6260, 0.0
        %v6403 = vmax.f32 %v6265, 0.0
        %v6404 = vmax.f32 %v6270, 0.0
        %v6405 = vmax.f32 %v6275, 0.0
        %v6406 = vmax.f32 %v6280, 0.0
        %v6407 = vmax.f32 %v6285, 0.0
        %v6408 = vmax.f32 %v6290, 0.0
        %v6409 = vmax.f32 %v6295, 0.0
        %v6410 = vmax.f32 %v6300, 0.0
        %v6411 = vmax.f32 %v6305, 0.0
        %v6412 = vmax.f32 %v6310, 0.0
        %v6413 = vmax.f32 %v6315, 0.0
        %v6414 = vmax.f32 %v6320, 0.0
        %v6415 = vmax.f32 %v6325, 0.0
        %v6416 = vmax.f32 %v6330, 0.0
        %v6417 = vmax.f32 %v6335, 0.0
        %v6418 = vmax.f32 %v6340, 0.0
        %v6419 = vmax.f32 %v6345, 0.0
        %v6420 = vmax.f32 %v6350, 0.0
        %v6421 = vmax.f32 %v6355, 0.0
        %v6422 = vmax.f32 %v6360, 0.0
        %v6423 = vmax.f32 %v6365, 0.0
        %v6424 = vmax.f32 %v6370, 0.0
        %v6425 = vmax.f32 %v6375, 0.0
        %v6426 = vmax.f32 %v6380, 0.0
        %v6427 = vmax.f32 %v6385, 0.0
        %v6428 = vmax.f32 %v6390, 0.0
        %v6429 = vmax.f32 %v6395, 0.0
        %v6446 = vrot.slane %v6398, 3
        %v6447 = vrot.slane %v6400, 3
        %v6448 = vrot.slane %v6402, 3
        %v6449 = vrot.slane %v6404, 3
        %v6450 = vrot.slane %v6406, 3
        %v6451 = vrot.slane %v6408, 3
        %v6452 = vrot.slane %v6410, 3
        %v6453 = vrot.slane %v6412, 3
        %v6454 = vrot.slane %v6414, 3
        %v6455 = vrot.slane %v6416, 3
        %v6456 = vrot.slane %v6418, 3
        %v6457 = vrot.slane %v6420, 3
        %v6458 = vrot.slane %v6422, 3
        %v6459 = vrot.slane %v6424, 3
        %v6460 = vrot.slane %v6426, 3
        %v6461 = vrot.slane %v6428, 3
        %v6478 = vrot.slane %v6398, 1
        %v6479 = vrot.slane %v6400, 1
        %v6480 = vrot.slane %v6402, 1
        %v6481 = vrot.slane %v6404, 1
        %v6482 = vrot.slane %v6406, 1
        %v6483 = vrot.slane %v6408, 1
        %v6484 = vrot.slane %v6410, 1
        %v6485 = vrot.slane %v6412, 1
        %v6486 = vrot.slane %v6414, 1
        %v6487 = vrot.slane %v6416, 1
        %v6488 = vrot.slane %v6418, 1
        %v6489 = vrot.slane %v6420, 1
        %v6490 = vrot.slane %v6422, 1
        %v6491 = vrot.slane %v6424, 1
        %v6492 = vrot.slane %v6426, 1
        %v6493 = vrot.slane %v6428, 1
        %v6510 = vrot.slane %v6398, 7
        %v6511 = vrot.slane %v6400, 7
        %v6512 = vrot.slane %v6402, 7
        %v6513 = vrot.slane %v6404, 7
        %v6514 = vrot.slane %v6406, 7
        %v6515 = vrot.slane %v6408, 7
        %v6516 = vrot.slane %v6410, 7
        %v6517 = vrot.slane %v6412, 7
        %v6518 = vrot.slane %v6414, 7
        %v6519 = vrot.slane %v6416, 7
        %v6520 = vrot.slane %v6418, 7
        %v6521 = vrot.slane %v6420, 7
        %v6522 = vrot.slane %v6422, 7
        %v6523 = vrot.slane %v6424, 7
        %v6524 = vrot.slane %v6426, 7
        %v6525 = vrot.slane %v6428, 7
        %v6558 = vrot.slane %v6398, 5
        %v6559 = vrot.slane %v6399, 5
        %v6560 = vsel %vm1073, %v6558, %v6559
        %v6561 = vrot.slane %v6400, 5
        %v6562 = vrot.slane %v6401, 5
        %v6563 = vsel %vm1073, %v6561, %v6562
        %v6564 = vrot.slane %v6402, 5
        %v6565 = vrot.slane %v6403, 5
        %v6566 = vsel %vm1073, %v6564, %v6565
        %v6567 = vrot.slane %v6404, 5
        %v6568 = vrot.slane %v6405, 5
        %v6569 = vsel %vm1073, %v6567, %v6568
        %v6570 = vrot.slane %v6406, 5
        %v6571 = vrot.slane %v6407, 5
        %v6572 = vsel %vm1073, %v6570, %v6571
        %v6573 = vrot.slane %v6408, 5
        %v6574 = vrot.slane %v6409, 5
        %v6575 = vsel %vm1073, %v6573, %v6574
        %v6576 = vrot.slane %v6410, 5
        %v6577 = vrot.slane %v6411, 5
        %v6578 = vsel %vm1073, %v6576, %v6577
        %v6579 = vrot.slane %v6412, 5
        %v6580 = vrot.slane %v6413, 5
        %v6581 = vsel %vm1073, %v6579, %v6580
        %v6582 = vrot.slane %v6414, 5
        %v6583 = vrot.slane %v6415, 5
        %v6584 = vsel %vm1073, %v6582, %v6583
        %v6585 = vrot.slane %v6416, 5
        %v6586 = vrot.slane %v6417, 5
        %v6587 = vsel %vm1073, %v6585, %v6586
        %v6588 = vrot.slane %v6418, 5
        %v6589 = vrot.slane %v6419, 5
        %v6590 = vsel %vm1073, %v6588, %v6589
        %v6591 = vrot.slane %v6420, 5
        %v6592 = vrot.slane %v6421, 5
        %v6593 = vsel %vm1073, %v6591, %v6592
        %v6594 = vrot.slane %v6422, 5
        %v6595 = vrot.slane %v6423, 5
        %v6596 = vsel %vm1073, %v6594, %v6595
        %v6597 = vrot.slane %v6424, 5
        %v6598 = vrot.slane %v6425, 5
        %v6599 = vsel %vm1073, %v6597, %v6598
        %v6600 = vrot.slane %v6426, 5
        %v6601 = vrot.slane %v6427, 5
        %v6602 = vsel %vm1073, %v6600, %v6601
        %v6603 = vrot.slane %v6428, 5
        %v6604 = vrot.slane %v6429, 5
        %v6605 = vsel %vm1073, %v6603, %v6604
        %v6654 = vrot.slane %v6399, 3
        %v6655 = vrot.slane %v6401, 3
        %v6656 = vrot.slane %v6403, 3
        %v6657 = vrot.slane %v6405, 3
        %v6658 = vrot.slane %v6407, 3
        %v6659 = vrot.slane %v6409, 3
        %v6660 = vrot.slane %v6411, 3
        %v6661 = vrot.slane %v6413, 3
        %v6662 = vrot.slane %v6415, 3
        %v6663 = vrot.slane %v6417, 3
        %v6664 = vrot.slane %v6419, 3
        %v6665 = vrot.slane %v6421, 3
        %v6666 = vrot.slane %v6423, 3
        %v6667 = vrot.slane %v6425, 3
        %v6668 = vrot.slane %v6427, 3
        %v6669 = vrot.slane %v6429, 3
        %v6686 = vrot.slane %v6399, 1
        %v6687 = vrot.slane %v6401, 1
        %v6688 = vrot.slane %v6403, 1
        %v6689 = vrot.slane %v6405, 1
        %v6690 = vrot.slane %v6407, 1
        %v6691 = vrot.slane %v6409, 1
        %v6692 = vrot.slane %v6411, 1
        %v6693 = vrot.slane %v6413, 1
        %v6694 = vrot.slane %v6415, 1
        %v6695 = vrot.slane %v6417, 1
        %v6696 = vrot.slane %v6419, 1
        %v6697 = vrot.slane %v6421, 1
        %v6698 = vrot.slane %v6423, 1
        %v6699 = vrot.slane %v6425, 1
        %v6700 = vrot.slane %v6427, 1
        %v6701 = vrot.slane %v6429, 1
        %v6718 = vrot.slane %v6399, 7
        %v6719 = vrot.slane %v6401, 7
        %v6720 = vrot.slane %v6403, 7
        %v6721 = vrot.slane %v6405, 7
        %v6722 = vrot.slane %v6407, 7
        %v6723 = vrot.slane %v6409, 7
        %v6724 = vrot.slane %v6411, 7
        %v6725 = vrot.slane %v6413, 7
        %v6726 = vrot.slane %v6415, 7
        %v6727 = vrot.slane %v6417, 7
        %v6728 = vrot.slane %v6419, 7
        %v6729 = vrot.slane %v6421, 7
        %v6730 = vrot.slane %v6423, 7
        %v6731 = vrot.slane %v6425, 7
        %v6732 = vrot.slane %v6427, 7
        %v6733 = vrot.slane %v6429, 7
        %v6750 = vsel %vm1250, %v6446, %v6478
        %v6751 = vsel %vm1250, %v6447, %v6479
        %v6752 = vsel %vm1250, %v6448, %v6480
        %v6753 = vsel %vm1250, %v6449, %v6481
        %v6754 = vsel %vm1250, %v6450, %v6482
        %v6755 = vsel %vm1250, %v6451, %v6483
        %v6756 = vsel %vm1250, %v6452, %v6484
        %v6757 = vsel %vm1250, %v6453, %v6485
        %v6758 = vsel %vm1250, %v6454, %v6486
        %v6759 = vsel %vm1250, %v6455, %v6487
        %v6760 = vsel %vm1250, %v6456, %v6488
        %v6761 = vsel %vm1250, %v6457, %v6489
        %v6762 = vsel %vm1250, %v6458, %v6490
        %v6763 = vsel %vm1250, %v6459, %v6491
        %v6764 = vsel %vm1250, %v6460, %v6492
        %v6765 = vsel %vm1250, %v6461, %v6493
        %v6766 = vsel %vm1267, %v6750, %v6510
        %v6767 = vsel %vm1267, %v6751, %v6511
        %v6768 = vsel %vm1267, %v6752, %v6512
        %v6769 = vsel %vm1267, %v6753, %v6513
        %v6770 = vsel %vm1267, %v6754, %v6514
        %v6771 = vsel %vm1267, %v6755, %v6515
        %v6772 = vsel %vm1267, %v6756, %v6516
        %v6773 = vsel %vm1267, %v6757, %v6517
        %v6774 = vsel %vm1267, %v6758, %v6518
        %v6775 = vsel %vm1267, %v6759, %v6519
        %v6776 = vsel %vm1267, %v6760, %v6520
        %v6777 = vsel %vm1267, %v6761, %v6521
        %v6778 = vsel %vm1267, %v6762, %v6522
        %v6779 = vsel %vm1267, %v6763, %v6523
        %v6780 = vsel %vm1267, %v6764, %v6524
        %v6781 = vsel %vm1267, %v6765, %v6525
        %v6782 = vsel %vm1073, %v6766, %v6558
        %v6783 = vsel %vm1073, %v6767, %v6561
        %v6784 = vsel %vm1073, %v6768, %v6564
        %v6785 = vsel %vm1073, %v6769, %v6567
        %v6786 = vsel %vm1073, %v6770, %v6570
        %v6787 = vsel %vm1073, %v6771, %v6573
        %v6788 = vsel %vm1073, %v6772, %v6576
        %v6789 = vsel %vm1073, %v6773, %v6579
        %v6790 = vsel %vm1073, %v6774, %v6582
        %v6791 = vsel %vm1073, %v6775, %v6585
        %v6792 = vsel %vm1073, %v6776, %v6588
        %v6793 = vsel %vm1073, %v6777, %v6591
        %v6794 = vsel %vm1073, %v6778, %v6594
        %v6795 = vsel %vm1073, %v6779, %v6597
        %v6796 = vsel %vm1073, %v6780, %v6600
        %v6797 = vsel %vm1073, %v6781, %v6603
        %v6798 = vsel %vm1073, %v6559, %v6654
        %v6799 = vsel %vm1073, %v6562, %v6655
        %v6800 = vsel %vm1073, %v6565, %v6656
        %v6801 = vsel %vm1073, %v6568, %v6657
        %v6802 = vsel %vm1073, %v6571, %v6658
        %v6803 = vsel %vm1073, %v6574, %v6659
        %v6804 = vsel %vm1073, %v6577, %v6660
        %v6805 = vsel %vm1073, %v6580, %v6661
        %v6806 = vsel %vm1073, %v6583, %v6662
        %v6807 = vsel %vm1073, %v6586, %v6663
        %v6808 = vsel %vm1073, %v6589, %v6664
        %v6809 = vsel %vm1073, %v6592, %v6665
        %v6810 = vsel %vm1073, %v6595, %v6666
        %v6811 = vsel %vm1073, %v6598, %v6667
        %v6812 = vsel %vm1073, %v6601, %v6668
        %v6813 = vsel %vm1073, %v6604, %v6669
        %v6814 = vsel %vm684, %v6798, %v6686
        %v6815 = vsel %vm684, %v6799, %v6687
        %v6816 = vsel %vm684, %v6800, %v6688
        %v6817 = vsel %vm684, %v6801, %v6689
        %v6818 = vsel %vm684, %v6802, %v6690
        %v6819 = vsel %vm684, %v6803, %v6691
        %v6820 = vsel %vm684, %v6804, %v6692
        %v6821 = vsel %vm684, %v6805, %v6693
        %v6822 = vsel %vm684, %v6806, %v6694
        %v6823 = vsel %vm684, %v6807, %v6695
        %v6824 = vsel %vm684, %v6808, %v6696
        %v6825 = vsel %vm684, %v6809, %v6697
        %v6826 = vsel %vm684, %v6810, %v6698
        %v6827 = vsel %vm684, %v6811, %v6699
        %v6828 = vsel %vm684, %v6812, %v6700
        %v6829 = vsel %vm684, %v6813, %v6701
        %v6830 = vsel %vm1332, %v6814, %v6718
        %v6831 = vsel %vm1332, %v6815, %v6719
        %v6832 = vsel %vm1332, %v6816, %v6720
        %v6833 = vsel %vm1332, %v6817, %v6721
        %v6834 = vsel %vm1332, %v6818, %v6722
        %v6835 = vsel %vm1332, %v6819, %v6723
        %v6836 = vsel %vm1332, %v6820, %v6724
        %v6837 = vsel %vm1332, %v6821, %v6725
        %v6838 = vsel %vm1332, %v6822, %v6726
        %v6839 = vsel %vm1332, %v6823, %v6727
        %v6840 = vsel %vm1332, %v6824, %v6728
        %v6841 = vsel %vm1332, %v6825, %v6729
        %v6842 = vsel %vm1332, %v6826, %v6730
        %v6843 = vsel %vm1332, %v6827, %v6731
        %v6844 = vsel %vm1332, %v6828, %v6732
        %v6845 = vsel %vm1332, %v6829, %v6733
        %v6878 = vrot.slane %v6782, 1
        %v6879 = vrot.slane %v6560, 1
        %v6880 = vsel %vm1477, %v6878, %v6879
        %v6881 = vrot.slane %v6830, 1
        %v6882 = vsel %vm1477, %v6879, %v6881
        %v6883 = vrot.slane %v6783, 1
        %v6884 = vrot.slane %v6563, 1
        %v6885 = vsel %vm1477, %v6883, %v6884
        %v6886 = vrot.slane %v6831, 1
        %v6887 = vsel %vm1477, %v6884, %v6886
        %v6888 = vrot.slane %v6784, 1
        %v6889 = vrot.slane %v6566, 1
        %v6890 = vsel %vm1477, %v6888, %v6889
        %v6891 = vrot.slane %v6832, 1
        %v6892 = vsel %vm1477, %v6889, %v6891
        %v6893 = vrot.slane %v6785, 1
        %v6894 = vrot.slane %v6569, 1
        %v6895 = vsel %vm1477, %v6893, %v6894
        %v6896 = vrot.slane %v6833, 1
        %v6897 = vsel %vm1477, %v6894, %v6896
        %v6898 = vrot.slane %v6786, 1
        %v6899 = vrot.slane %v6572, 1
        %v6900 = vsel %vm1477, %v6898, %v6899
        %v6901 = vrot.slane %v6834, 1
        %v6902 = vsel %vm1477, %v6899, %v6901
        %v6903 = vrot.slane %v6787, 1
        %v6904 = vrot.slane %v6575, 1
        %v6905 = vsel %vm1477, %v6903, %v6904
        %v6906 = vrot.slane %v6835, 1
        %v6907 = vsel %vm1477, %v6904, %v6906
        %v6908 = vrot.slane %v6788, 1
        %v6909 = vrot.slane %v6578, 1
        %v6910 = vsel %vm1477, %v6908, %v6909
        %v6911 = vrot.slane %v6836, 1
        %v6912 = vsel %vm1477, %v6909, %v6911
        %v6913 = vrot.slane %v6789, 1
        %v6914 = vrot.slane %v6581, 1
        %v6915 = vsel %vm1477, %v6913, %v6914
        %v6916 = vrot.slane %v6837, 1
        %v6917 = vsel %vm1477, %v6914, %v6916
        %v6918 = vrot.slane %v6790, 1
        %v6919 = vrot.slane %v6584, 1
        %v6920 = vsel %vm1477, %v6918, %v6919
        %v6921 = vrot.slane %v6838, 1
        %v6922 = vsel %vm1477, %v6919, %v6921
        %v6923 = vrot.slane %v6791, 1
        %v6924 = vrot.slane %v6587, 1
        %v6925 = vsel %vm1477, %v6923, %v6924
        %v6926 = vrot.slane %v6839, 1
        %v6927 = vsel %vm1477, %v6924, %v6926
        %v6928 = vrot.slane %v6792, 1
        %v6929 = vrot.slane %v6590, 1
        %v6930 = vsel %vm1477, %v6928, %v6929
        %v6931 = vrot.slane %v6840, 1
        %v6932 = vsel %vm1477, %v6929, %v6931
        %v6933 = vrot.slane %v6793, 1
        %v6934 = vrot.slane %v6593, 1
        %v6935 = vsel %vm1477, %v6933, %v6934
        %v6936 = vrot.slane %v6841, 1
        %v6937 = vsel %vm1477, %v6934, %v6936
        %v6938 = vrot.slane %v6794, 1
        %v6939 = vrot.slane %v6596, 1
        %v6940 = vsel %vm1477, %v6938, %v6939
        %v6941 = vrot.slane %v6842, 1
        %v6942 = vsel %vm1477, %v6939, %v6941
        %v6943 = vrot.slane %v6795, 1
        %v6944 = vrot.slane %v6599, 1
        %v6945 = vsel %vm1477, %v6943, %v6944
        %v6946 = vrot.slane %v6843, 1
        %v6947 = vsel %vm1477, %v6944, %v6946
        %v6948 = vrot.slane %v6796, 1
        %v6949 = vrot.slane %v6602, 1
        %v6950 = vsel %vm1477, %v6948, %v6949
        %v6951 = vrot.slane %v6844, 1
        %v6952 = vsel %vm1477, %v6949, %v6951
        %v6953 = vrot.slane %v6797, 1
        %v6954 = vrot.slane %v6605, 1
        %v6955 = vsel %vm1477, %v6953, %v6954
        %v6956 = vrot.slane %v6845, 1
        %v6957 = vsel %vm1477, %v6954, %v6956
        %6958 = vrot.lane.b32.xlu0 %v6880, 8
        %v6959 = vpop.permute.xlu0 %6958
        %6960 = vrot.lane.b32.xlu0 %v6882, 8
        %v6961 = vpop.permute.xlu0 %6960
        %6962 = vrot.lane.b32.xlu0 %v6885, 8
        %v6963 = vpop.permute.xlu0 %6962
        %6964 = vrot.lane.b32.xlu0 %v6887, 8
        %v6965 = vpop.permute.xlu0 %6964
        %6966 = vrot.lane.b32.xlu0 %v6890, 8
        %v6967 = vpop.permute.xlu0 %6966
        %6968 = vrot.lane.b32.xlu0 %v6892, 8
        %v6969 = vpop.permute.xlu0 %6968
        %6970 = vrot.lane.b32.xlu0 %v6895, 8
        %v6971 = vpop.permute.xlu0 %6970
        %6972 = vrot.lane.b32.xlu0 %v6897, 8
        %v6973 = vpop.permute.xlu0 %6972
        %6974 = vrot.lane.b32.xlu0 %v6900, 8
        %v6975 = vpop.permute.xlu0 %6974
        %6976 = vrot.lane.b32.xlu0 %v6902, 8
        %v6977 = vpop.permute.xlu0 %6976
        %6978 = vrot.lane.b32.xlu0 %v6905, 8
        %v6979 = vpop.permute.xlu0 %6978
        %6980 = vrot.lane.b32.xlu0 %v6907, 8
        %v6981 = vpop.permute.xlu0 %6980
        %6982 = vrot.lane.b32.xlu0 %v6910, 8
        %v6983 = vpop.permute.xlu0 %6982
        %6984 = vrot.lane.b32.xlu0 %v6912, 8
        %v6985 = vpop.permute.xlu0 %6984
        %6986 = vrot.lane.b32.xlu0 %v6915, 8
        %v6987 = vpop.permute.xlu0 %6986
        %6988 = vrot.lane.b32.xlu0 %v6917, 8
        %v6989 = vpop.permute.xlu0 %6988
        %6990 = vrot.lane.b32.xlu0 %v6920, 8
        %v6991 = vpop.permute.xlu0 %6990
        %6992 = vrot.lane.b32.xlu0 %v6922, 8
        %v6993 = vpop.permute.xlu0 %6992
        %6994 = vrot.lane.b32.xlu0 %v6925, 8
        %v6995 = vpop.permute.xlu0 %6994
        %6996 = vrot.lane.b32.xlu0 %v6927, 8
        %v6997 = vpop.permute.xlu0 %6996
        %6998 = vrot.lane.b32.xlu0 %v6930, 8
        %v6999 = vpop.permute.xlu0 %6998
        %7000 = vrot.lane.b32.xlu0 %v6932, 8
        %v7001 = vpop.permute.xlu0 %7000
        %7002 = vrot.lane.b32.xlu0 %v6935, 8
        %v7003 = vpop.permute.xlu0 %7002
        %7004 = vrot.lane.b32.xlu0 %v6937, 8
        %v7005 = vpop.permute.xlu0 %7004
        %7006 = vrot.lane.b32.xlu0 %v6940, 8
        %v7007 = vpop.permute.xlu0 %7006
        %7008 = vrot.lane.b32.xlu0 %v6942, 8
        %v7009 = vpop.permute.xlu0 %7008
        %7010 = vrot.lane.b32.xlu0 %v6945, 8
        %v7011 = vpop.permute.xlu0 %7010
        %7012 = vrot.lane.b32.xlu0 %v6947, 8
        %v7013 = vpop.permute.xlu0 %7012
        %7014 = vrot.lane.b32.xlu0 %v6950, 8
        %v7015 = vpop.permute.xlu0 %7014
        %7016 = vrot.lane.b32.xlu0 %v6952, 8
        %v7017 = vpop.permute.xlu0 %7016
        %7018 = vrot.lane.b32.xlu0 %v6955, 8
        %v7019 = vpop.permute.xlu0 %7018
        %7020 = vrot.lane.b32.xlu0 %v6957, 8
        %v7021 = vpop.permute.xlu0 %7020
        %v7054 = vrot.slane %v6782, 2
        %v7055 = vrot.slane %v6560, 2
        %v7056 = vsel %vm1590, %v7054, %v7055
        %v7057 = vrot.slane %v6830, 2
        %v7058 = vsel %vm1590, %v7055, %v7057
        %v7059 = vrot.slane %v6783, 2
        %v7060 = vrot.slane %v6563, 2
        %v7061 = vsel %vm1590, %v7059, %v7060
        %v7062 = vrot.slane %v6831, 2
        %v7063 = vsel %vm1590, %v7060, %v7062
        %v7064 = vrot.slane %v6784, 2
        %v7065 = vrot.slane %v6566, 2
        %v7066 = vsel %vm1590, %v7064, %v7065
        %v7067 = vrot.slane %v6832, 2
        %v7068 = vsel %vm1590, %v7065, %v7067
        %v7069 = vrot.slane %v6785, 2
        %v7070 = vrot.slane %v6569, 2
        %v7071 = vsel %vm1590, %v7069, %v7070
        %v7072 = vrot.slane %v6833, 2
        %v7073 = vsel %vm1590, %v7070, %v7072
        %v7074 = vrot.slane %v6786, 2
        %v7075 = vrot.slane %v6572, 2
        %v7076 = vsel %vm1590, %v7074, %v7075
        %v7077 = vrot.slane %v6834, 2
        %v7078 = vsel %vm1590, %v7075, %v7077
        %v7079 = vrot.slane %v6787, 2
        %v7080 = vrot.slane %v6575, 2
        %v7081 = vsel %vm1590, %v7079, %v7080
        %v7082 = vrot.slane %v6835, 2
        %v7083 = vsel %vm1590, %v7080, %v7082
        %v7084 = vrot.slane %v6788, 2
        %v7085 = vrot.slane %v6578, 2
        %v7086 = vsel %vm1590, %v7084, %v7085
        %v7087 = vrot.slane %v6836, 2
        %v7088 = vsel %vm1590, %v7085, %v7087
        %v7089 = vrot.slane %v6789, 2
        %v7090 = vrot.slane %v6581, 2
        %v7091 = vsel %vm1590, %v7089, %v7090
        %v7092 = vrot.slane %v6837, 2
        %v7093 = vsel %vm1590, %v7090, %v7092
        %v7094 = vrot.slane %v6790, 2
        %v7095 = vrot.slane %v6584, 2
        %v7096 = vsel %vm1590, %v7094, %v7095
        %v7097 = vrot.slane %v6838, 2
        %v7098 = vsel %vm1590, %v7095, %v7097
        %v7099 = vrot.slane %v6791, 2
        %v7100 = vrot.slane %v6587, 2
        %v7101 = vsel %vm1590, %v7099, %v7100
        %v7102 = vrot.slane %v6839, 2
        %v7103 = vsel %vm1590, %v7100, %v7102
        %v7104 = vrot.slane %v6792, 2
        %v7105 = vrot.slane %v6590, 2
        %v7106 = vsel %vm1590, %v7104, %v7105
        %v7107 = vrot.slane %v6840, 2
        %v7108 = vsel %vm1590, %v7105, %v7107
        %v7109 = vrot.slane %v6793, 2
        %v7110 = vrot.slane %v6593, 2
        %v7111 = vsel %vm1590, %v7109, %v7110
        %v7112 = vrot.slane %v6841, 2
        %v7113 = vsel %vm1590, %v7110, %v7112
        %v7114 = vrot.slane %v6794, 2
        %v7115 = vrot.slane %v6596, 2
        %v7116 = vsel %vm1590, %v7114, %v7115
        %v7117 = vrot.slane %v6842, 2
        %v7118 = vsel %vm1590, %v7115, %v7117
        %v7119 = vrot.slane %v6795, 2
        %v7120 = vrot.slane %v6599, 2
        %v7121 = vsel %vm1590, %v7119, %v7120
        %v7122 = vrot.slane %v6843, 2
        %v7123 = vsel %vm1590, %v7120, %v7122
        %v7124 = vrot.slane %v6796, 2
        %v7125 = vrot.slane %v6602, 2
        %v7126 = vsel %vm1590, %v7124, %v7125
        %v7127 = vrot.slane %v6844, 2
        %v7128 = vsel %vm1590, %v7125, %v7127
        %v7129 = vrot.slane %v6797, 2
        %v7130 = vrot.slane %v6605, 2
        %v7131 = vsel %vm1590, %v7129, %v7130
        %v7132 = vrot.slane %v6845, 2
        %v7133 = vsel %vm1590, %v7130, %v7132
        %7134 = vrot.lane.b32.xlu0 %v7056, 16
        %v7135 = vpop.permute.xlu0 %7134
        %7136 = vrot.lane.b32.xlu0 %v7058, 16
        %v7137 = vpop.permute.xlu0 %7136
        %7138 = vrot.lane.b32.xlu0 %v7061, 16
        %v7139 = vpop.permute.xlu0 %7138
        %7140 = vrot.lane.b32.xlu0 %v7063, 16
        %v7141 = vpop.permute.xlu0 %7140
        %7142 = vrot.lane.b32.xlu0 %v7066, 16
        %v7143 = vpop.permute.xlu0 %7142
        %7144 = vrot.lane.b32.xlu0 %v7068, 16
        %v7145 = vpop.permute.xlu0 %7144
        %7146 = vrot.lane.b32.xlu0 %v7071, 16
        %v7147 = vpop.permute.xlu0 %7146
        %7148 = vrot.lane.b32.xlu0 %v7073, 16
        %v7149 = vpop.permute.xlu0 %7148
        %7150 = vrot.lane.b32.xlu0 %v7076, 16
        %v7151 = vpop.permute.xlu0 %7150
        %7152 = vrot.lane.b32.xlu0 %v7078, 16
        %v7153 = vpop.permute.xlu0 %7152
        %7154 = vrot.lane.b32.xlu0 %v7081, 16
        %v7155 = vpop.permute.xlu0 %7154
        %7156 = vrot.lane.b32.xlu0 %v7083, 16
        %v7157 = vpop.permute.xlu0 %7156
        %7158 = vrot.lane.b32.xlu0 %v7086, 16
        %v7159 = vpop.permute.xlu0 %7158
        %7160 = vrot.lane.b32.xlu0 %v7088, 16
        %v7161 = vpop.permute.xlu0 %7160
        %7162 = vrot.lane.b32.xlu0 %v7091, 16
        %v7163 = vpop.permute.xlu0 %7162
        %7164 = vrot.lane.b32.xlu0 %v7093, 16
        %v7165 = vpop.permute.xlu0 %7164
        %7166 = vrot.lane.b32.xlu0 %v7096, 16
        %v7167 = vpop.permute.xlu0 %7166
        %7168 = vrot.lane.b32.xlu0 %v7098, 16
        %v7169 = vpop.permute.xlu0 %7168
        %7170 = vrot.lane.b32.xlu0 %v7101, 16
        %v7171 = vpop.permute.xlu0 %7170
        %7172 = vrot.lane.b32.xlu0 %v7103, 16
        %v7173 = vpop.permute.xlu0 %7172
        %7174 = vrot.lane.b32.xlu0 %v7106, 16
        %v7175 = vpop.permute.xlu0 %7174
        %7176 = vrot.lane.b32.xlu0 %v7108, 16
        %v7177 = vpop.permute.xlu0 %7176
        %7178 = vrot.lane.b32.xlu0 %v7111, 16
        %v7179 = vpop.permute.xlu0 %7178
        %7180 = vrot.lane.b32.xlu0 %v7113, 16
        %v7181 = vpop.permute.xlu0 %7180
        %7182 = vrot.lane.b32.xlu0 %v7116, 16
        %v7183 = vpop.permute.xlu0 %7182
        %7184 = vrot.lane.b32.xlu0 %v7118, 16
        %v7185 = vpop.permute.xlu0 %7184
        %7186 = vrot.lane.b32.xlu0 %v7121, 16
        %v7187 = vpop.permute.xlu0 %7186
        %7188 = vrot.lane.b32.xlu0 %v7123, 16
        %v7189 = vpop.permute.xlu0 %7188
        %7190 = vrot.lane.b32.xlu0 %v7126, 16
        %v7191 = vpop.permute.xlu0 %7190
        %7192 = vrot.lane.b32.xlu0 %v7128, 16
        %v7193 = vpop.permute.xlu0 %7192
        %7194 = vrot.lane.b32.xlu0 %v7131, 16
        %v7195 = vpop.permute.xlu0 %7194
        %7196 = vrot.lane.b32.xlu0 %v7133, 16
        %v7197 = vpop.permute.xlu0 %7196
        %v7230 = vrot.slane %v6782, 3
        %v7231 = vrot.slane %v6560, 3
        %v7232 = vsel %vm1332, %v7230, %v7231
        %v7233 = vrot.slane %v6830, 3
        %v7234 = vsel %vm1332, %v7231, %v7233
        %v7235 = vrot.slane %v6783, 3
        %v7236 = vrot.slane %v6563, 3
        %v7237 = vsel %vm1332, %v7235, %v7236
        %v7238 = vrot.slane %v6831, 3
        %v7239 = vsel %vm1332, %v7236, %v7238
        %v7240 = vrot.slane %v6784, 3
        %v7241 = vrot.slane %v6566, 3
        %v7242 = vsel %vm1332, %v7240, %v7241
        %v7243 = vrot.slane %v6832, 3
        %v7244 = vsel %vm1332, %v7241, %v7243
        %v7245 = vrot.slane %v6785, 3
        %v7246 = vrot.slane %v6569, 3
        %v7247 = vsel %vm1332, %v7245, %v7246
        %v7248 = vrot.slane %v6833, 3
        %v7249 = vsel %vm1332, %v7246, %v7248
        %v7250 = vrot.slane %v6786, 3
        %v7251 = vrot.slane %v6572, 3
        %v7252 = vsel %vm1332, %v7250, %v7251
        %v7253 = vrot.slane %v6834, 3
        %v7254 = vsel %vm1332, %v7251, %v7253
        %v7255 = vrot.slane %v6787, 3
        %v7256 = vrot.slane %v6575, 3
        %v7257 = vsel %vm1332, %v7255, %v7256
        %v7258 = vrot.slane %v6835, 3
        %v7259 = vsel %vm1332, %v7256, %v7258
        %v7260 = vrot.slane %v6788, 3
        %v7261 = vrot.slane %v6578, 3
        %v7262 = vsel %vm1332, %v7260, %v7261
        %v7263 = vrot.slane %v6836, 3
        %v7264 = vsel %vm1332, %v7261, %v7263
        %v7265 = vrot.slane %v6789, 3
        %v7266 = vrot.slane %v6581, 3
        %v7267 = vsel %vm1332, %v7265, %v7266
        %v7268 = vrot.slane %v6837, 3
        %v7269 = vsel %vm1332, %v7266, %v7268
        %v7270 = vrot.slane %v6790, 3
        %v7271 = vrot.slane %v6584, 3
        %v7272 = vsel %vm1332, %v7270, %v7271
        %v7273 = vrot.slane %v6838, 3
        %v7274 = vsel %vm1332, %v7271, %v7273
        %v7275 = vrot.slane %v6791, 3
        %v7276 = vrot.slane %v6587, 3
        %v7277 = vsel %vm1332, %v7275, %v7276
        %v7278 = vrot.slane %v6839, 3
        %v7279 = vsel %vm1332, %v7276, %v7278
        %v7280 = vrot.slane %v6792, 3
        %v7281 = vrot.slane %v6590, 3
        %v7282 = vsel %vm1332, %v7280, %v7281
        %v7283 = vrot.slane %v6840, 3
        %v7284 = vsel %vm1332, %v7281, %v7283
        %v7285 = vrot.slane %v6793, 3
        %v7286 = vrot.slane %v6593, 3
        %v7287 = vsel %vm1332, %v7285, %v7286
        %v7288 = vrot.slane %v6841, 3
        %v7289 = vsel %vm1332, %v7286, %v7288
        %v7290 = vrot.slane %v6794, 3
        %v7291 = vrot.slane %v6596, 3
        %v7292 = vsel %vm1332, %v7290, %v7291
        %v7293 = vrot.slane %v6842, 3
        %v7294 = vsel %vm1332, %v7291, %v7293
        %v7295 = vrot.slane %v6795, 3
        %v7296 = vrot.slane %v6599, 3
        %v7297 = vsel %vm1332, %v7295, %v7296
        %v7298 = vrot.slane %v6843, 3
        %v7299 = vsel %vm1332, %v7296, %v7298
        %v7300 = vrot.slane %v6796, 3
        %v7301 = vrot.slane %v6602, 3
        %v7302 = vsel %vm1332, %v7300, %v7301
        %v7303 = vrot.slane %v6844, 3
        %v7304 = vsel %vm1332, %v7301, %v7303
        %v7305 = vrot.slane %v6797, 3
        %v7306 = vrot.slane %v6605, 3
        %v7307 = vsel %vm1332, %v7305, %v7306
        %v7308 = vrot.slane %v6845, 3
        %v7309 = vsel %vm1332, %v7306, %v7308
        %7310 = vrot.lane.b32.xlu0 %v7232, 24
        %v7311 = vpop.permute.xlu0 %7310
        %7312 = vrot.lane.b32.xlu0 %v7234, 24
        %v7313 = vpop.permute.xlu0 %7312
        %7314 = vrot.lane.b32.xlu0 %v7237, 24
        %v7315 = vpop.permute.xlu0 %7314
        %7316 = vrot.lane.b32.xlu0 %v7239, 24
        %v7317 = vpop.permute.xlu0 %7316
        %7318 = vrot.lane.b32.xlu0 %v7242, 24
        %v7319 = vpop.permute.xlu0 %7318
        %7320 = vrot.lane.b32.xlu0 %v7244, 24
        %v7321 = vpop.permute.xlu0 %7320
        %7322 = vrot.lane.b32.xlu0 %v7247, 24
        %v7323 = vpop.permute.xlu0 %7322
        %7324 = vrot.lane.b32.xlu0 %v7249, 24
        %v7325 = vpop.permute.xlu0 %7324
        %7326 = vrot.lane.b32.xlu0 %v7252, 24
        %v7327 = vpop.permute.xlu0 %7326
        %7328 = vrot.lane.b32.xlu0 %v7254, 24
        %v7329 = vpop.permute.xlu0 %7328
        %7330 = vrot.lane.b32.xlu0 %v7257, 24
        %v7331 = vpop.permute.xlu0 %7330
        %7332 = vrot.lane.b32.xlu0 %v7259, 24
        %v7333 = vpop.permute.xlu0 %7332
        %7334 = vrot.lane.b32.xlu0 %v7262, 24
        %v7335 = vpop.permute.xlu0 %7334
        %7336 = vrot.lane.b32.xlu0 %v7264, 24
        %v7337 = vpop.permute.xlu0 %7336
        %7338 = vrot.lane.b32.xlu0 %v7267, 24
        %v7339 = vpop.permute.xlu0 %7338
        %7340 = vrot.lane.b32.xlu0 %v7269, 24
        %v7341 = vpop.permute.xlu0 %7340
        %7342 = vrot.lane.b32.xlu0 %v7272, 24
        %v7343 = vpop.permute.xlu0 %7342
        %7344 = vrot.lane.b32.xlu0 %v7274, 24
        %v7345 = vpop.permute.xlu0 %7344
        %7346 = vrot.lane.b32.xlu0 %v7277, 24
        %v7347 = vpop.permute.xlu0 %7346
        %7348 = vrot.lane.b32.xlu0 %v7279, 24
        %v7349 = vpop.permute.xlu0 %7348
        %7350 = vrot.lane.b32.xlu0 %v7282, 24
        %v7351 = vpop.permute.xlu0 %7350
        %7352 = vrot.lane.b32.xlu0 %v7284, 24
        %v7353 = vpop.permute.xlu0 %7352
        %7354 = vrot.lane.b32.xlu0 %v7287, 24
        %v7355 = vpop.permute.xlu0 %7354
        %7356 = vrot.lane.b32.xlu0 %v7289, 24
        %v7357 = vpop.permute.xlu0 %7356
        %7358 = vrot.lane.b32.xlu0 %v7292, 24
        %v7359 = vpop.permute.xlu0 %7358
        %7360 = vrot.lane.b32.xlu0 %v7294, 24
        %v7361 = vpop.permute.xlu0 %7360
        %7362 = vrot.lane.b32.xlu0 %v7297, 24
        %v7363 = vpop.permute.xlu0 %7362
        %7364 = vrot.lane.b32.xlu0 %v7299, 24
        %v7365 = vpop.permute.xlu0 %7364
        %7366 = vrot.lane.b32.xlu0 %v7302, 24
        %v7367 = vpop.permute.xlu0 %7366
        %7368 = vrot.lane.b32.xlu0 %v7304, 24
        %v7369 = vpop.permute.xlu0 %7368
        %7370 = vrot.lane.b32.xlu0 %v7307, 24
        %v7371 = vpop.permute.xlu0 %7370
        %7372 = vrot.lane.b32.xlu0 %v7309, 24
        %v7373 = vpop.permute.xlu0 %7372
        %v7406 = vrot.slane %v6782, 4
        %v7407 = vrot.slane %v6560, 4
        %v7408 = vsel %vm684, %v7406, %v7407
        %v7409 = vrot.slane %v6830, 4
        %v7410 = vsel %vm684, %v7407, %v7409
        %v7411 = vrot.slane %v6783, 4
        %v7412 = vrot.slane %v6563, 4
        %v7413 = vsel %vm684, %v7411, %v7412
        %v7414 = vrot.slane %v6831, 4
        %v7415 = vsel %vm684, %v7412, %v7414
        %v7416 = vrot.slane %v6784, 4
        %v7417 = vrot.slane %v6566, 4
        %v7418 = vsel %vm684, %v7416, %v7417
        %v7419 = vrot.slane %v6832, 4
        %v7420 = vsel %vm684, %v7417, %v7419
        %v7421 = vrot.slane %v6785, 4
        %v7422 = vrot.slane %v6569, 4
        %v7423 = vsel %vm684, %v7421, %v7422
        %v7424 = vrot.slane %v6833, 4
        %v7425 = vsel %vm684, %v7422, %v7424
        %v7426 = vrot.slane %v6786, 4
        %v7427 = vrot.slane %v6572, 4
        %v7428 = vsel %vm684, %v7426, %v7427
        %v7429 = vrot.slane %v6834, 4
        %v7430 = vsel %vm684, %v7427, %v7429
        %v7431 = vrot.slane %v6787, 4
        %v7432 = vrot.slane %v6575, 4
        %v7433 = vsel %vm684, %v7431, %v7432
        %v7434 = vrot.slane %v6835, 4
        %v7435 = vsel %vm684, %v7432, %v7434
        %v7436 = vrot.slane %v6788, 4
        %v7437 = vrot.slane %v6578, 4
        %v7438 = vsel %vm684, %v7436, %v7437
        %v7439 = vrot.slane %v6836, 4
        %v7440 = vsel %vm684, %v7437, %v7439
        %v7441 = vrot.slane %v6789, 4
        %v7442 = vrot.slane %v6581, 4
        %v7443 = vsel %vm684, %v7441, %v7442
        %v7444 = vrot.slane %v6837, 4
        %v7445 = vsel %vm684, %v7442, %v7444
        %v7446 = vrot.slane %v6790, 4
        %v7447 = vrot.slane %v6584, 4
        %v7448 = vsel %vm684, %v7446, %v7447
        %v7449 = vrot.slane %v6838, 4
        %v7450 = vsel %vm684, %v7447, %v7449
        %v7451 = vrot.slane %v6791, 4
        %v7452 = vrot.slane %v6587, 4
        %v7453 = vsel %vm684, %v7451, %v7452
        %v7454 = vrot.slane %v6839, 4
        %v7455 = vsel %vm684, %v7452, %v7454
        %v7456 = vrot.slane %v6792, 4
        %v7457 = vrot.slane %v6590, 4
        %v7458 = vsel %vm684, %v7456, %v7457
        %v7459 = vrot.slane %v6840, 4
        %v7460 = vsel %vm684, %v7457, %v7459
        %v7461 = vrot.slane %v6793, 4
        %v7462 = vrot.slane %v6593, 4
        %v7463 = vsel %vm684, %v7461, %v7462
        %v7464 = vrot.slane %v6841, 4
        %v7465 = vsel %vm684, %v7462, %v7464
        %v7466 = vrot.slane %v6794, 4
        %v7467 = vrot.slane %v6596, 4
        %v7468 = vsel %vm684, %v7466, %v7467
        %v7469 = vrot.slane %v6842, 4
        %v7470 = vsel %vm684, %v7467, %v7469
        %v7471 = vrot.slane %v6795, 4
        %v7472 = vrot.slane %v6599, 4
        %v7473 = vsel %vm684, %v7471, %v7472
        %v7474 = vrot.slane %v6843, 4
        %v7475 = vsel %vm684, %v7472, %v7474
        %v7476 = vrot.slane %v6796, 4
        %v7477 = vrot.slane %v6602, 4
        %v7478 = vsel %vm684, %v7476, %v7477
        %v7479 = vrot.slane %v6844, 4
        %v7480 = vsel %vm684, %v7477, %v7479
        %v7481 = vrot.slane %v6797, 4
        %v7482 = vrot.slane %v6605, 4
        %v7483 = vsel %vm684, %v7481, %v7482
        %v7484 = vrot.slane %v6845, 4
        %v7485 = vsel %vm684, %v7482, %v7484
        %7486 = vrot.lane.b32.xlu0 %v7408, 32
        %v7487 = vpop.permute.xlu0 %7486
        %7488 = vrot.lane.b32.xlu0 %v7410, 32
        %v7489 = vpop.permute.xlu0 %7488
        %7490 = vrot.lane.b32.xlu0 %v7413, 32
        %v7491 = vpop.permute.xlu0 %7490
        %7492 = vrot.lane.b32.xlu0 %v7415, 32
        %v7493 = vpop.permute.xlu0 %7492
        %7494 = vrot.lane.b32.xlu0 %v7418, 32
        %v7495 = vpop.permute.xlu0 %7494
        %7496 = vrot.lane.b32.xlu0 %v7420, 32
        %v7497 = vpop.permute.xlu0 %7496
        %7498 = vrot.lane.b32.xlu0 %v7423, 32
        %v7499 = vpop.permute.xlu0 %7498
        %7500 = vrot.lane.b32.xlu0 %v7425, 32
        %v7501 = vpop.permute.xlu0 %7500
        %7502 = vrot.lane.b32.xlu0 %v7428, 32
        %v7503 = vpop.permute.xlu0 %7502
        %7504 = vrot.lane.b32.xlu0 %v7430, 32
        %v7505 = vpop.permute.xlu0 %7504
        %7506 = vrot.lane.b32.xlu0 %v7433, 32
        %v7507 = vpop.permute.xlu0 %7506
        %7508 = vrot.lane.b32.xlu0 %v7435, 32
        %v7509 = vpop.permute.xlu0 %7508
        %7510 = vrot.lane.b32.xlu0 %v7438, 32
        %v7511 = vpop.permute.xlu0 %7510
        %7512 = vrot.lane.b32.xlu0 %v7440, 32
        %v7513 = vpop.permute.xlu0 %7512
        %7514 = vrot.lane.b32.xlu0 %v7443, 32
        %v7515 = vpop.permute.xlu0 %7514
        %7516 = vrot.lane.b32.xlu0 %v7445, 32
        %v7517 = vpop.permute.xlu0 %7516
        %7518 = vrot.lane.b32.xlu0 %v7448, 32
        %v7519 = vpop.permute.xlu0 %7518
        %7520 = vrot.lane.b32.xlu0 %v7450, 32
        %v7521 = vpop.permute.xlu0 %7520
        %7522 = vrot.lane.b32.xlu0 %v7453, 32
        %v7523 = vpop.permute.xlu0 %7522
        %7524 = vrot.lane.b32.xlu0 %v7455, 32
        %v7525 = vpop.permute.xlu0 %7524
        %7526 = vrot.lane.b32.xlu0 %v7458, 32
        %v7527 = vpop.permute.xlu0 %7526
        %7528 = vrot.lane.b32.xlu0 %v7460, 32
        %v7529 = vpop.permute.xlu0 %7528
        %7530 = vrot.lane.b32.xlu0 %v7463, 32
        %v7531 = vpop.permute.xlu0 %7530
        %7532 = vrot.lane.b32.xlu0 %v7465, 32
        %v7533 = vpop.permute.xlu0 %7532
        %7534 = vrot.lane.b32.xlu0 %v7468, 32
        %v7535 = vpop.permute.xlu0 %7534
        %7536 = vrot.lane.b32.xlu0 %v7470, 32
        %v7537 = vpop.permute.xlu0 %7536
        %7538 = vrot.lane.b32.xlu0 %v7473, 32
        %v7539 = vpop.permute.xlu0 %7538
        %7540 = vrot.lane.b32.xlu0 %v7475, 32
        %v7541 = vpop.permute.xlu0 %7540
        %7542 = vrot.lane.b32.xlu0 %v7478, 32
        %v7543 = vpop.permute.xlu0 %7542
        %7544 = vrot.lane.b32.xlu0 %v7480, 32
        %v7545 = vpop.permute.xlu0 %7544
        %7546 = vrot.lane.b32.xlu0 %v7483, 32
        %v7547 = vpop.permute.xlu0 %7546
        %7548 = vrot.lane.b32.xlu0 %v7485, 32
        %v7549 = vpop.permute.xlu0 %7548
        %v7582 = vrot.slane %v6782, 5
        %v7583 = vrot.slane %v6560, 5
        %v7584 = vsel %vm1073, %v7582, %v7583
        %v7585 = vrot.slane %v6830, 5
        %v7586 = vsel %vm1073, %v7583, %v7585
        %v7587 = vrot.slane %v6783, 5
        %v7588 = vrot.slane %v6563, 5
        %v7589 = vsel %vm1073, %v7587, %v7588
        %v7590 = vrot.slane %v6831, 5
        %v7591 = vsel %vm1073, %v7588, %v7590
        %v7592 = vrot.slane %v6784, 5
        %v7593 = vrot.slane %v6566, 5
        %v7594 = vsel %vm1073, %v7592, %v7593
        %v7595 = vrot.slane %v6832, 5
        %v7596 = vsel %vm1073, %v7593, %v7595
        %v7597 = vrot.slane %v6785, 5
        %v7598 = vrot.slane %v6569, 5
        %v7599 = vsel %vm1073, %v7597, %v7598
        %v7600 = vrot.slane %v6833, 5
        %v7601 = vsel %vm1073, %v7598, %v7600
        %v7602 = vrot.slane %v6786, 5
        %v7603 = vrot.slane %v6572, 5
        %v7604 = vsel %vm1073, %v7602, %v7603
        %v7605 = vrot.slane %v6834, 5
        %v7606 = vsel %vm1073, %v7603, %v7605
        %v7607 = vrot.slane %v6787, 5
        %v7608 = vrot.slane %v6575, 5
        %v7609 = vsel %vm1073, %v7607, %v7608
        %v7610 = vrot.slane %v6835, 5
        %v7611 = vsel %vm1073, %v7608, %v7610
        %v7612 = vrot.slane %v6788, 5
        %v7613 = vrot.slane %v6578, 5
        %v7614 = vsel %vm1073, %v7612, %v7613
        %v7615 = vrot.slane %v6836, 5
        %v7616 = vsel %vm1073, %v7613, %v7615
        %v7617 = vrot.slane %v6789, 5
        %v7618 = vrot.slane %v6581, 5
        %v7619 = vsel %vm1073, %v7617, %v7618
        %v7620 = vrot.slane %v6837, 5
        %v7621 = vsel %vm1073, %v7618, %v7620
        %v7622 = vrot.slane %v6790, 5
        %v7623 = vrot.slane %v6584, 5
        %v7624 = vsel %vm1073, %v7622, %v7623
        %v7625 = vrot.slane %v6838, 5
        %v7626 = vsel %vm1073, %v7623, %v7625
        %v7627 = vrot.slane %v6791, 5
        %v7628 = vrot.slane %v6587, 5
        %v7629 = vsel %vm1073, %v7627, %v7628
        %v7630 = vrot.slane %v6839, 5
        %v7631 = vsel %vm1073, %v7628, %v7630
        %v7632 = vrot.slane %v6792, 5
        %v7633 = vrot.slane %v6590, 5
        %v7634 = vsel %vm1073, %v7632, %v7633
        %v7635 = vrot.slane %v6840, 5
        %v7636 = vsel %vm1073, %v7633, %v7635
        %v7637 = vrot.slane %v6793, 5
        %v7638 = vrot.slane %v6593, 5
        %v7639 = vsel %vm1073, %v7637, %v7638
        %v7640 = vrot.slane %v6841, 5
        %v7641 = vsel %vm1073, %v7638, %v7640
        %v7642 = vrot.slane %v6794, 5
        %v7643 = vrot.slane %v6596, 5
        %v7644 = vsel %vm1073, %v7642, %v7643
        %v7645 = vrot.slane %v6842, 5
        %v7646 = vsel %vm1073, %v7643, %v7645
        %v7647 = vrot.slane %v6795, 5
        %v7648 = vrot.slane %v6599, 5
        %v7649 = vsel %vm1073, %v7647, %v7648
        %v7650 = vrot.slane %v6843, 5
        %v7651 = vsel %vm1073, %v7648, %v7650
        %v7652 = vrot.slane %v6796, 5
        %v7653 = vrot.slane %v6602, 5
        %v7654 = vsel %vm1073, %v7652, %v7653
        %v7655 = vrot.slane %v6844, 5
        %v7656 = vsel %vm1073, %v7653, %v7655
        %v7657 = vrot.slane %v6797, 5
        %v7658 = vrot.slane %v6605, 5
        %v7659 = vsel %vm1073, %v7657, %v7658
        %v7660 = vrot.slane %v6845, 5
        %v7661 = vsel %vm1073, %v7658, %v7660
        %7662 = vrot.lane.b32.xlu0 %v7584, 40
        %v7663 = vpop.permute.xlu0 %7662
        %7664 = vrot.lane.b32.xlu0 %v7586, 40
        %v7665 = vpop.permute.xlu0 %7664
        %7666 = vrot.lane.b32.xlu0 %v7589, 40
        %v7667 = vpop.permute.xlu0 %7666
        %7668 = vrot.lane.b32.xlu0 %v7591, 40
        %v7669 = vpop.permute.xlu0 %7668
        %7670 = vrot.lane.b32.xlu0 %v7594, 40
        %v7671 = vpop.permute.xlu0 %7670
        %7672 = vrot.lane.b32.xlu0 %v7596, 40
        %v7673 = vpop.permute.xlu0 %7672
        %7674 = vrot.lane.b32.xlu0 %v7599, 40
        %v7675 = vpop.permute.xlu0 %7674
        %7676 = vrot.lane.b32.xlu0 %v7601, 40
        %v7677 = vpop.permute.xlu0 %7676
        %7678 = vrot.lane.b32.xlu0 %v7604, 40
        %v7679 = vpop.permute.xlu0 %7678
        %7680 = vrot.lane.b32.xlu0 %v7606, 40
        %v7681 = vpop.permute.xlu0 %7680
        %7682 = vrot.lane.b32.xlu0 %v7609, 40
        %v7683 = vpop.permute.xlu0 %7682
        %7684 = vrot.lane.b32.xlu0 %v7611, 40
        %v7685 = vpop.permute.xlu0 %7684
        %7686 = vrot.lane.b32.xlu0 %v7614, 40
        %v7687 = vpop.permute.xlu0 %7686
        %7688 = vrot.lane.b32.xlu0 %v7616, 40
        %v7689 = vpop.permute.xlu0 %7688
        %7690 = vrot.lane.b32.xlu0 %v7619, 40
        %v7691 = vpop.permute.xlu0 %7690
        %7692 = vrot.lane.b32.xlu0 %v7621, 40
        %v7693 = vpop.permute.xlu0 %7692
        %7694 = vrot.lane.b32.xlu0 %v7624, 40
        %v7695 = vpop.permute.xlu0 %7694
        %7696 = vrot.lane.b32.xlu0 %v7626, 40
        %v7697 = vpop.permute.xlu0 %7696
        %7698 = vrot.lane.b32.xlu0 %v7629, 40
        %v7699 = vpop.permute.xlu0 %7698
        %7700 = vrot.lane.b32.xlu0 %v7631, 40
        %v7701 = vpop.permute.xlu0 %7700
        %7702 = vrot.lane.b32.xlu0 %v7634, 40
        %v7703 = vpop.permute.xlu0 %7702
        %7704 = vrot.lane.b32.xlu0 %v7636, 40
        %v7705 = vpop.permute.xlu0 %7704
        %7706 = vrot.lane.b32.xlu0 %v7639, 40
        %v7707 = vpop.permute.xlu0 %7706
        %7708 = vrot.lane.b32.xlu0 %v7641, 40
        %v7709 = vpop.permute.xlu0 %7708
        %7710 = vrot.lane.b32.xlu0 %v7644, 40
        %v7711 = vpop.permute.xlu0 %7710
        %7712 = vrot.lane.b32.xlu0 %v7646, 40
        %v7713 = vpop.permute.xlu0 %7712
        %7714 = vrot.lane.b32.xlu0 %v7649, 40
        %v7715 = vpop.permute.xlu0 %7714
        %7716 = vrot.lane.b32.xlu0 %v7651, 40
        %v7717 = vpop.permute.xlu0 %7716
        %7718 = vrot.lane.b32.xlu0 %v7654, 40
        %v7719 = vpop.permute.xlu0 %7718
        %7720 = vrot.lane.b32.xlu0 %v7656, 40
        %v7721 = vpop.permute.xlu0 %7720
        %7722 = vrot.lane.b32.xlu0 %v7659, 40
        %v7723 = vpop.permute.xlu0 %7722
        %7724 = vrot.lane.b32.xlu0 %v7661, 40
        %v7725 = vpop.permute.xlu0 %7724
        %v7758 = vrot.slane %v6782, 6
        %v7759 = vrot.slane %v6560, 6
        %v7760 = vsel %vm1267, %v7758, %v7759
        %v7761 = vrot.slane %v6830, 6
        %v7762 = vsel %vm1267, %v7759, %v7761
        %v7763 = vrot.slane %v6783, 6
        %v7764 = vrot.slane %v6563, 6
        %v7765 = vsel %vm1267, %v7763, %v7764
        %v7766 = vrot.slane %v6831, 6
        %v7767 = vsel %vm1267, %v7764, %v7766
        %v7768 = vrot.slane %v6784, 6
        %v7769 = vrot.slane %v6566, 6
        %v7770 = vsel %vm1267, %v7768, %v7769
        %v7771 = vrot.slane %v6832, 6
        %v7772 = vsel %vm1267, %v7769, %v7771
        %v7773 = vrot.slane %v6785, 6
        %v7774 = vrot.slane %v6569, 6
        %v7775 = vsel %vm1267, %v7773, %v7774
        %v7776 = vrot.slane %v6833, 6
        %v7777 = vsel %vm1267, %v7774, %v7776
        %v7778 = vrot.slane %v6786, 6
        %v7779 = vrot.slane %v6572, 6
        %v7780 = vsel %vm1267, %v7778, %v7779
        %v7781 = vrot.slane %v6834, 6
        %v7782 = vsel %vm1267, %v7779, %v7781
        %v7783 = vrot.slane %v6787, 6
        %v7784 = vrot.slane %v6575, 6
        %v7785 = vsel %vm1267, %v7783, %v7784
        %v7786 = vrot.slane %v6835, 6
        %v7787 = vsel %vm1267, %v7784, %v7786
        %v7788 = vrot.slane %v6788, 6
        %v7789 = vrot.slane %v6578, 6
        %v7790 = vsel %vm1267, %v7788, %v7789
        %v7791 = vrot.slane %v6836, 6
        %v7792 = vsel %vm1267, %v7789, %v7791
        %v7793 = vrot.slane %v6789, 6
        %v7794 = vrot.slane %v6581, 6
        %v7795 = vsel %vm1267, %v7793, %v7794
        %v7796 = vrot.slane %v6837, 6
        %v7797 = vsel %vm1267, %v7794, %v7796
        %v7798 = vrot.slane %v6790, 6
        %v7799 = vrot.slane %v6584, 6
        %v7800 = vsel %vm1267, %v7798, %v7799
        %v7801 = vrot.slane %v6838, 6
        %v7802 = vsel %vm1267, %v7799, %v7801
        %v7803 = vrot.slane %v6791, 6
        %v7804 = vrot.slane %v6587, 6
        %v7805 = vsel %vm1267, %v7803, %v7804
        %v7806 = vrot.slane %v6839, 6
        %v7807 = vsel %vm1267, %v7804, %v7806
        %v7808 = vrot.slane %v6792, 6
        %v7809 = vrot.slane %v6590, 6
        %v7810 = vsel %vm1267, %v7808, %v7809
        %v7811 = vrot.slane %v6840, 6
        %v7812 = vsel %vm1267, %v7809, %v7811
        %v7813 = vrot.slane %v6793, 6
        %v7814 = vrot.slane %v6593, 6
        %v7815 = vsel %vm1267, %v7813, %v7814
        %v7816 = vrot.slane %v6841, 6
        %v7817 = vsel %vm1267, %v7814, %v7816
        %v7818 = vrot.slane %v6794, 6
        %v7819 = vrot.slane %v6596, 6
        %v7820 = vsel %vm1267, %v7818, %v7819
        %v7821 = vrot.slane %v6842, 6
        %v7822 = vsel %vm1267, %v7819, %v7821
        %v7823 = vrot.slane %v6795, 6
        %v7824 = vrot.slane %v6599, 6
        %v7825 = vsel %vm1267, %v7823, %v7824
        %v7826 = vrot.slane %v6843, 6
        %v7827 = vsel %vm1267, %v7824, %v7826
        %v7828 = vrot.slane %v6796, 6
        %v7829 = vrot.slane %v6602, 6
        %v7830 = vsel %vm1267, %v7828, %v7829
        %v7831 = vrot.slane %v6844, 6
        %v7832 = vsel %vm1267, %v7829, %v7831
        %v7833 = vrot.slane %v6797, 6
        %v7834 = vrot.slane %v6605, 6
        %v7835 = vsel %vm1267, %v7833, %v7834
        %v7836 = vrot.slane %v6845, 6
        %v7837 = vsel %vm1267, %v7834, %v7836
        %7838 = vrot.lane.b32.xlu0 %v7760, 48
        %v7839 = vpop.permute.xlu0 %7838
        %7840 = vrot.lane.b32.xlu0 %v7762, 48
        %v7841 = vpop.permute.xlu0 %7840
        %7842 = vrot.lane.b32.xlu0 %v7765, 48
        %v7843 = vpop.permute.xlu0 %7842
        %7844 = vrot.lane.b32.xlu0 %v7767, 48
        %v7845 = vpop.permute.xlu0 %7844
        %7846 = vrot.lane.b32.xlu0 %v7770, 48
        %v7847 = vpop.permute.xlu0 %7846
        %7848 = vrot.lane.b32.xlu0 %v7772, 48
        %v7849 = vpop.permute.xlu0 %7848
        %7850 = vrot.lane.b32.xlu0 %v7775, 48
        %v7851 = vpop.permute.xlu0 %7850
        %7852 = vrot.lane.b32.xlu0 %v7777, 48
        %v7853 = vpop.permute.xlu0 %7852
        %7854 = vrot.lane.b32.xlu0 %v7780, 48
        %v7855 = vpop.permute.xlu0 %7854
        %7856 = vrot.lane.b32.xlu0 %v7782, 48
        %v7857 = vpop.permute.xlu0 %7856
        %7858 = vrot.lane.b32.xlu0 %v7785, 48
        %v7859 = vpop.permute.xlu0 %7858
        %7860 = vrot.lane.b32.xlu0 %v7787, 48
        %v7861 = vpop.permute.xlu0 %7860
        %7862 = vrot.lane.b32.xlu0 %v7790, 48
        %v7863 = vpop.permute.xlu0 %7862
        %7864 = vrot.lane.b32.xlu0 %v7792, 48
        %v7865 = vpop.permute.xlu0 %7864
        %7866 = vrot.lane.b32.xlu0 %v7795, 48
        %v7867 = vpop.permute.xlu0 %7866
        %7868 = vrot.lane.b32.xlu0 %v7797, 48
        %v7869 = vpop.permute.xlu0 %7868
        %7870 = vrot.lane.b32.xlu0 %v7800, 48
        %v7871 = vpop.permute.xlu0 %7870
        %7872 = vrot.lane.b32.xlu0 %v7802, 48
        %v7873 = vpop.permute.xlu0 %7872
        %7874 = vrot.lane.b32.xlu0 %v7805, 48
        %v7875 = vpop.permute.xlu0 %7874
        %7876 = vrot.lane.b32.xlu0 %v7807, 48
        %v7877 = vpop.permute.xlu0 %7876
        %7878 = vrot.lane.b32.xlu0 %v7810, 48
        %v7879 = vpop.permute.xlu0 %7878
        %7880 = vrot.lane.b32.xlu0 %v7812, 48
        %v7881 = vpop.permute.xlu0 %7880
        %7882 = vrot.lane.b32.xlu0 %v7815, 48
        %v7883 = vpop.permute.xlu0 %7882
        %7884 = vrot.lane.b32.xlu0 %v7817, 48
        %v7885 = vpop.permute.xlu0 %7884
        %7886 = vrot.lane.b32.xlu0 %v7820, 48
        %v7887 = vpop.permute.xlu0 %7886
        %7888 = vrot.lane.b32.xlu0 %v7822, 48
        %v7889 = vpop.permute.xlu0 %7888
        %7890 = vrot.lane.b32.xlu0 %v7825, 48
        %v7891 = vpop.permute.xlu0 %7890
        %7892 = vrot.lane.b32.xlu0 %v7827, 48
        %v7893 = vpop.permute.xlu0 %7892
        %7894 = vrot.lane.b32.xlu0 %v7830, 48
        %v7895 = vpop.permute.xlu0 %7894
        %7896 = vrot.lane.b32.xlu0 %v7832, 48
        %v7897 = vpop.permute.xlu0 %7896
        %7898 = vrot.lane.b32.xlu0 %v7835, 48
        %v7899 = vpop.permute.xlu0 %7898
        %7900 = vrot.lane.b32.xlu0 %v7837, 48
        %v7901 = vpop.permute.xlu0 %7900
        %v7934 = vsel %vm2471, %v6782, %v6959
        %v7935 = vsel %vm2471, %v6560, %v6961
        %v7936 = vsel %vm2471, %v6783, %v6963
        %v7937 = vsel %vm2471, %v6563, %v6965
        %v7938 = vsel %vm2471, %v6784, %v6967
        %v7939 = vsel %vm2471, %v6566, %v6969
        %v7940 = vsel %vm2471, %v6785, %v6971
        %v7941 = vsel %vm2471, %v6569, %v6973
        %v7942 = vsel %vm2471, %v6786, %v6975
        %v7943 = vsel %vm2471, %v6572, %v6977
        %v7944 = vsel %vm2471, %v6787, %v6979
        %v7945 = vsel %vm2471, %v6575, %v6981
        %v7946 = vsel %vm2471, %v6788, %v6983
        %v7947 = vsel %vm2471, %v6578, %v6985
        %v7948 = vsel %vm2471, %v6789, %v6987
        %v7949 = vsel %vm2471, %v6581, %v6989
        %v7950 = vsel %vm2471, %v6790, %v6991
        %v7951 = vsel %vm2471, %v6584, %v6993
        %v7952 = vsel %vm2471, %v6791, %v6995
        %v7953 = vsel %vm2471, %v6587, %v6997
        %v7954 = vsel %vm2471, %v6792, %v6999
        %v7955 = vsel %vm2471, %v6590, %v7001
        %v7956 = vsel %vm2471, %v6793, %v7003
        %v7957 = vsel %vm2471, %v6593, %v7005
        %v7958 = vsel %vm2471, %v6794, %v7007
        %v7959 = vsel %vm2471, %v6596, %v7009
        %v7960 = vsel %vm2471, %v6795, %v7011
        %v7961 = vsel %vm2471, %v6599, %v7013
        %v7962 = vsel %vm2471, %v6796, %v7015
        %v7963 = vsel %vm2471, %v6602, %v7017
        %v7964 = vsel %vm2471, %v6797, %v7019
        %v7965 = vsel %vm2471, %v6605, %v7021
        %v7966 = vsel %vm2504, %v7934, %v7135
        %v7967 = vsel %vm2504, %v7935, %v7137
        %v7968 = vsel %vm2504, %v7936, %v7139
        %v7969 = vsel %vm2504, %v7937, %v7141
        %v7970 = vsel %vm2504, %v7938, %v7143
        %v7971 = vsel %vm2504, %v7939, %v7145
        %v7972 = vsel %vm2504, %v7940, %v7147
        %v7973 = vsel %vm2504, %v7941, %v7149
        %v7974 = vsel %vm2504, %v7942, %v7151
        %v7975 = vsel %vm2504, %v7943, %v7153
        %v7976 = vsel %vm2504, %v7944, %v7155
        %v7977 = vsel %vm2504, %v7945, %v7157
        %v7978 = vsel %vm2504, %v7946, %v7159
        %v7979 = vsel %vm2504, %v7947, %v7161
        %v7980 = vsel %vm2504, %v7948, %v7163
        %v7981 = vsel %vm2504, %v7949, %v7165
        %v7982 = vsel %vm2504, %v7950, %v7167
        %v7983 = vsel %vm2504, %v7951, %v7169
        %v7984 = vsel %vm2504, %v7952, %v7171
        %v7985 = vsel %vm2504, %v7953, %v7173
        %v7986 = vsel %vm2504, %v7954, %v7175
        %v7987 = vsel %vm2504, %v7955, %v7177
        %v7988 = vsel %vm2504, %v7956, %v7179
        %v7989 = vsel %vm2504, %v7957, %v7181
        %v7990 = vsel %vm2504, %v7958, %v7183
        %v7991 = vsel %vm2504, %v7959, %v7185
        %v7992 = vsel %vm2504, %v7960, %v7187
        %v7993 = vsel %vm2504, %v7961, %v7189
        %v7994 = vsel %vm2504, %v7962, %v7191
        %v7995 = vsel %vm2504, %v7963, %v7193
        %v7996 = vsel %vm2504, %v7964, %v7195
        %v7997 = vsel %vm2504, %v7965, %v7197
        %v7998 = vsel %vm2537, %v7966, %v7311
        %v7999 = vsel %vm2537, %v7967, %v7313
        %v8000 = vsel %vm2537, %v7968, %v7315
        %v8001 = vsel %vm2537, %v7969, %v7317
        %v8002 = vsel %vm2537, %v7970, %v7319
        %v8003 = vsel %vm2537, %v7971, %v7321
        %v8004 = vsel %vm2537, %v7972, %v7323
        %v8005 = vsel %vm2537, %v7973, %v7325
        %v8006 = vsel %vm2537, %v7974, %v7327
        %v8007 = vsel %vm2537, %v7975, %v7329
        %v8008 = vsel %vm2537, %v7976, %v7331
        %v8009 = vsel %vm2537, %v7977, %v7333
        %v8010 = vsel %vm2537, %v7978, %v7335
        %v8011 = vsel %vm2537, %v7979, %v7337
        %v8012 = vsel %vm2537, %v7980, %v7339
        %v8013 = vsel %vm2537, %v7981, %v7341
        %v8014 = vsel %vm2537, %v7982, %v7343
        %v8015 = vsel %vm2537, %v7983, %v7345
        %v8016 = vsel %vm2537, %v7984, %v7347
        %v8017 = vsel %vm2537, %v7985, %v7349
        %v8018 = vsel %vm2537, %v7986, %v7351
        %v8019 = vsel %vm2537, %v7987, %v7353
        %v8020 = vsel %vm2537, %v7988, %v7355
        %v8021 = vsel %vm2537, %v7989, %v7357
        %v8022 = vsel %vm2537, %v7990, %v7359
        %v8023 = vsel %vm2537, %v7991, %v7361
        %v8024 = vsel %vm2537, %v7992, %v7363
        %v8025 = vsel %vm2537, %v7993, %v7365
        %v8026 = vsel %vm2537, %v7994, %v7367
        %v8027 = vsel %vm2537, %v7995, %v7369
        %v8028 = vsel %vm2537, %v7996, %v7371
        %v8029 = vsel %vm2537, %v7997, %v7373
        %v8030 = vsel %vm2570, %v7998, %v7487
        %v8031 = vsel %vm2570, %v7999, %v7489
        %v8032 = vsel %vm2570, %v8000, %v7491
        %v8033 = vsel %vm2570, %v8001, %v7493
        %v8034 = vsel %vm2570, %v8002, %v7495
        %v8035 = vsel %vm2570, %v8003, %v7497
        %v8036 = vsel %vm2570, %v8004, %v7499
        %v8037 = vsel %vm2570, %v8005, %v7501
        %v8038 = vsel %vm2570, %v8006, %v7503
        %v8039 = vsel %vm2570, %v8007, %v7505
        %v8040 = vsel %vm2570, %v8008, %v7507
        %v8041 = vsel %vm2570, %v8009, %v7509
        %v8042 = vsel %vm2570, %v8010, %v7511
        %v8043 = vsel %vm2570, %v8011, %v7513
        %v8044 = vsel %vm2570, %v8012, %v7515
        %v8045 = vsel %vm2570, %v8013, %v7517
        %v8046 = vsel %vm2570, %v8014, %v7519
        %v8047 = vsel %vm2570, %v8015, %v7521
        %v8048 = vsel %vm2570, %v8016, %v7523
        %v8049 = vsel %vm2570, %v8017, %v7525
        %v8050 = vsel %vm2570, %v8018, %v7527
        %v8051 = vsel %vm2570, %v8019, %v7529
        %v8052 = vsel %vm2570, %v8020, %v7531
        %v8053 = vsel %vm2570, %v8021, %v7533
        %v8054 = vsel %vm2570, %v8022, %v7535
        %v8055 = vsel %vm2570, %v8023, %v7537
        %v8056 = vsel %vm2570, %v8024, %v7539
        %v8057 = vsel %vm2570, %v8025, %v7541
        %v8058 = vsel %vm2570, %v8026, %v7543
        %v8059 = vsel %vm2570, %v8027, %v7545
        %v8060 = vsel %vm2570, %v8028, %v7547
        %v8061 = vsel %vm2570, %v8029, %v7549
        %v8062 = vsel %vm2603, %v8030, %v7663
        %v8063 = vsel %vm2603, %v8031, %v7665
        %v8064 = vsel %vm2603, %v8032, %v7667
        %v8065 = vsel %vm2603, %v8033, %v7669
        %v8066 = vsel %vm2603, %v8034, %v7671
        %v8067 = vsel %vm2603, %v8035, %v7673
        %v8068 = vsel %vm2603, %v8036, %v7675
        %v8069 = vsel %vm2603, %v8037, %v7677
        %v8070 = vsel %vm2603, %v8038, %v7679
        %v8071 = vsel %vm2603, %v8039, %v7681
        %v8072 = vsel %vm2603, %v8040, %v7683
        %v8073 = vsel %vm2603, %v8041, %v7685
        %v8074 = vsel %vm2603, %v8042, %v7687
        %v8075 = vsel %vm2603, %v8043, %v7689
        %v8076 = vsel %vm2603, %v8044, %v7691
        %v8077 = vsel %vm2603, %v8045, %v7693
        %v8078 = vsel %vm2603, %v8046, %v7695
        %v8079 = vsel %vm2603, %v8047, %v7697
        %v8080 = vsel %vm2603, %v8048, %v7699
        %v8081 = vsel %vm2603, %v8049, %v7701
        %v8082 = vsel %vm2603, %v8050, %v7703
        %v8083 = vsel %vm2603, %v8051, %v7705
        %v8084 = vsel %vm2603, %v8052, %v7707
        %v8085 = vsel %vm2603, %v8053, %v7709
        %v8086 = vsel %vm2603, %v8054, %v7711
        %v8087 = vsel %vm2603, %v8055, %v7713
        %v8088 = vsel %vm2603, %v8056, %v7715
        %v8089 = vsel %vm2603, %v8057, %v7717
        %v8090 = vsel %vm2603, %v8058, %v7719
        %v8091 = vsel %vm2603, %v8059, %v7721
        %v8092 = vsel %vm2603, %v8060, %v7723
        %v8093 = vsel %vm2603, %v8061, %v7725
        %v8094 = vsel %vm2636, %v8062, %v7839
        %v8095 = vsel %vm2636, %v8063, %v7841
        %v8096 = vsel %vm2636, %v8064, %v7843
        %v8097 = vsel %vm2636, %v8065, %v7845
        %v8098 = vsel %vm2636, %v8066, %v7847
        %v8099 = vsel %vm2636, %v8067, %v7849
        %v8100 = vsel %vm2636, %v8068, %v7851
        %v8101 = vsel %vm2636, %v8069, %v7853
        %v8102 = vsel %vm2636, %v8070, %v7855
        %v8103 = vsel %vm2636, %v8071, %v7857
        %v8104 = vsel %vm2636, %v8072, %v7859
        %v8105 = vsel %vm2636, %v8073, %v7861
        %v8106 = vsel %vm2636, %v8074, %v7863
        %v8107 = vsel %vm2636, %v8075, %v7865
        %v8108 = vsel %vm2636, %v8076, %v7867
        %v8109 = vsel %vm2636, %v8077, %v7869
        %v8110 = vsel %vm2636, %v8078, %v7871
        %v8111 = vsel %vm2636, %v8079, %v7873
        %v8112 = vsel %vm2636, %v8080, %v7875
        %v8113 = vsel %vm2636, %v8081, %v7877
        %v8114 = vsel %vm2636, %v8082, %v7879
        %v8115 = vsel %vm2636, %v8083, %v7881
        %v8116 = vsel %vm2636, %v8084, %v7883
        %v8117 = vsel %vm2636, %v8085, %v7885
        %v8118 = vsel %vm2636, %v8086, %v7887
        %v8119 = vsel %vm2636, %v8087, %v7889
        %v8120 = vsel %vm2636, %v8088, %v7891
        %v8121 = vsel %vm2636, %v8089, %v7893
        %v8122 = vsel %vm2636, %v8090, %v7895
        %v8123 = vsel %vm2636, %v8091, %v7897
        %v8124 = vsel %vm2636, %v8092, %v7899
        %v8125 = vsel %vm2636, %v8093, %v7901
        %v8126 = vld [vmem:[%s11] sm:$0xff]
        %v8127 = vld [vmem:[%s11 + $0x8] sm:$0xff]
        %v8128 = vld [vmem:[%s11 + $0x10] sm:$0xff]
        %v8129 = vld [vmem:[%s11 + $0x18] sm:$0xff]
        %v8130 = vld [vmem:[%s11 + $0x20] sm:$0xff]
        %v8131 = vld [vmem:[%s11 + $0x28] sm:$0xff]
        %v8132 = vld [vmem:[%s11 + $0x30] sm:$0xff]
        %v8133 = vld [vmem:[%s12] sm:$0x1]
        %v8135 = vlaneseq
        %v8136 = vshrl.u32 %v8135, 7
        %v8137 = vsub.s32 0, %v8136
        %v8138 = vrot.slane %v8133, %v8137
        %v8141 = vsel %vm2683, %v8094, 0
        %v8144 = vsel %vm2683, %v8095, 0
        %v8147 = vsel %vm2683, %v8096, 0
        %v8150 = vsel %vm2683, %v8097, 0
        %v8153 = vsel %vm2683, %v8098, 0
        %v8156 = vsel %vm2683, %v8099, 0
        %v8159 = vsel %vm2683, %v8100, 0
        %v8162 = vsel %vm2683, %v8101, 0
        %v8165 = vsel %vm2683, %v8102, 0
        %v8168 = vsel %vm2683, %v8103, 0
        %v8171 = vsel %vm2683, %v8104, 0
        %v8174 = vsel %vm2683, %v8105, 0
        %v8177 = vsel %vm2683, %v8106, 0
        %v8180 = vsel %vm2683, %v8107, 0
        %v8183 = vsel %vm2683, %v8108, 0
        %v8186 = vsel %vm2683, %v8109, 0
        %v8189 = vsel %vm2683, %v8110, 0
        %v8192 = vsel %vm2683, %v8111, 0
        %v8195 = vsel %vm2683, %v8112, 0
        %v8198 = vsel %vm2683, %v8113, 0
        %v8201 = vsel %vm2683, %v8114, 0
        %v8204 = vsel %vm2683, %v8115, 0
        %v8207 = vsel %vm2683, %v8116, 0
        %v8210 = vsel %vm2683, %v8117, 0
        %v8213 = vsel %vm2683, %v8118, 0
        %v8216 = vsel %vm2683, %v8119, 0
        %v8219 = vsel %vm2683, %v8120, 0
        %v8222 = vsel %vm2683, %v8121, 0
        %v8225 = vsel %vm2683, %v8122, 0
        %v8228 = vsel %vm2683, %v8123, 0
        %v8231 = vsel %vm2683, %v8124, 0
        %v8234 = vsel %vm2683, %v8125, 0
        %8236 = vmatprep.subr.mxu0 0.0
        %8237 = vmatpush1.msra.mxu0 %v8126
        %8238 = vmatprep.subr.mxu0 0.0
        %8239 = vmatpush1.msra.mxu0 %v8127
        %8240 = vmatprep.subr.mxu0 0.0
        %8241 = vmatpush1.msra.mxu0 %v8128
        %8242 = vmatprep.subr.mxu0 0.0
        %8243 = vmatpush1.msra.mxu0 %v8129
        %8244 = vmatprep.subr.mxu0 0.0
        %8245 = vmatpush1.msra.mxu0 %v8130
        %8246 = vmatprep.subr.mxu0 0.0
        %8247 = vmatpush1.msra.mxu0 %v8131
        %8248 = vmatprep.subr.mxu0 0.0
        %8249 = vmatpush1.msra.mxu0 %v8132
        %8250 = vmatprep.subr.mxu0 0.0
        %8251 = vmatpush1.msra.mxu0 0.0
        %8252 = vmatprep.subr.mxu0 0.0
        %8253 = vmatpush1.msra.mxu0 0.0
        %8254 = vmatprep.subr.mxu0 0.0
        %8255 = vmatpush1.msra.mxu0 0.0
        %8256 = vmatprep.subr.mxu0 0.0
        %8257 = vmatpush1.msra.mxu0 0.0
        %8258 = vmatprep.subr.mxu0 0.0
        %8259 = vmatpush1.msra.mxu0 0.0
        %8260 = vmatprep.subr.mxu0 0.0
        %8261 = vmatpush1.msra.mxu0 0.0
        %8262 = vmatprep.subr.mxu0 0.0
        %8263 = vmatpush1.msra.mxu0 0.0
        %8264 = vmatprep.subr.mxu0 0.0
        %8265 = vmatpush1.msra.mxu0 0.0
        %8266 = vmatprep.subr.mxu0 0.0
        %8267 = vmatpush1.msra.mxu0 0.0
        %8268 = vmatprep.subr.mxu0 0.0
        %8269 = vmatpush1.msra.mxu0 0.0
        %8270 = vmatprep.subr.mxu0 0.0
        %8271 = vmatpush1.msra.mxu0 0.0
        %8272 = vmatprep.subr.mxu0 0.0
        %8273 = vmatpush1.msra.mxu0 0.0
        %8274 = vmatprep.subr.mxu0 0.0
        %8275 = vmatpush1.msra.mxu0 0.0
        %8276 = vmatprep.subr.mxu0 0.0
        %8277 = vmatpush1.msra.mxu0 0.0
        %8278 = vmatprep.subr.mxu0 0.0
        %8279 = vmatpush1.msra.mxu0 0.0
        %8280 = vmatprep.subr.mxu0 0.0
        %8281 = vmatpush1.msra.mxu0 0.0
        %8282 = vmatprep.subr.mxu0 0.0
        %8283 = vmatpush1.msra.mxu0 0.0
        %8284 = vmatprep.subr.mxu0 0.0
        %8285 = vmatpush1.msra.mxu0 0.0
        %8286 = vmatprep.subr.mxu0 0.0
        %8287 = vmatpush1.msra.mxu0 0.0
        %8288 = vmatprep.subr.mxu0 0.0
        %8289 = vmatpush1.msra.mxu0 0.0
        %8290 = vmatprep.subr.mxu0 0.0
        %8291 = vmatpush1.msra.mxu0 0.0
        %8292 = vmatprep.subr.mxu0 0.0
        %8293 = vmatpush1.msra.mxu0 0.0
        %8294 = vmatprep.subr.mxu0 0.0
        %8295 = vmatpush1.msra.mxu0 0.0
        %8296 = vmatprep.subr.mxu0 0.0
        %8297 = vmatpush1.msra.mxu0 0.0
        %8298 = vmatprep.subr.mxu0 0.0
        %8299 = vmatpush1.msra.mxu0 0.0
        %8300 = vmatprep.mubr.f32.mxu0 0.0
        %8301 = vmatmul.mubr.f32.gmra.mrb[0].mxu0 %v8141
        %v8302 = vpop.f32.mrb[0].mxu0
        %v8303 = vadd.f32 %v8138, %v8302
        %v8304 = vpop.f32.mrb[0].mxu0
        %8305 = vmatprep.mubr.f32.mxu0 0.0
        %8306 = vmatmul.mubr.f32.gmra.mrb[0].mxu0 %v8144
        %v8307 = vpop.f32.mrb[0].mxu0
        %v8308 = vadd.f32 %v8138, %v8307
        %v8309 = vpop.f32.mrb[0].mxu0
        %8310 = vmatprep.mubr.f32.mxu0 0.0
        %8311 = vmatmul.mubr.f32.gmra.mrb[0].mxu0 %v8147
        %v8312 = vpop.f32.mrb[0].mxu0
        %v8313 = vadd.f32 %v8138, %v8312
        %v8314 = vpop.f32.mrb[0].mxu0
        %8315 = vmatprep.mubr.f32.mxu0 0.0
        %8316 = vmatmul.mubr.f32.gmra.mrb[0].mxu0 %v8150
        %v8317 = vpop.f32.mrb[0].mxu0
        %v8318 = vadd.f32 %v8138, %v8317
        %v8319 = vpop.f32.mrb[0].mxu0
        %8320 = vmatprep.mubr.f32.mxu0 0.0
        %8321 = vmatmul.mubr.f32.gmra.mrb[0].mxu0 %v8153
        %v8322 = vpop.f32.mrb[0].mxu0
        %v8323 = vadd.f32 %v8138, %v8322
        %v8324 = vpop.f32.mrb[0].mxu0
        %8325 = vmatprep.mubr.f32.mxu0 0.0
        %8326 = vmatmul.mubr.f32.gmra.mrb[0].mxu0 %v8156
        %v8327 = vpop.f32.mrb[0].mxu0
        %v8328 = vadd.f32 %v8138, %v8327
        %v8329 = vpop.f32.mrb[0].mxu0
        %8330 = vmatprep.mubr.f32.mxu0 0.0
        %8331 = vmatmul.mubr.f32.gmra.mrb[0].mxu0 %v8159
        %v8332 = vpop.f32.mrb[0].mxu0
        %v8333 = vadd.f32 %v8138, %v8332
        %v8334 = vpop.f32.mrb[0].mxu0
        %8335 = vmatprep.mubr.f32.mxu0 0.0
        %8336 = vmatmul.mubr.f32.gmra.mrb[0].mxu0 %v8162
        %v8337 = vpop.f32.mrb[0].mxu0
        %v8338 = vadd.f32 %v8138, %v8337
        %v8339 = vpop.f32.mrb[0].mxu0
        %8340 = vmatprep.mubr.f32.mxu0 0.0
        %8341 = vmatmul.mubr.f32.gmra.mrb[0].mxu0 %v8165
        %v8342 = vpop.f32.mrb[0].mxu0
        %v8343 = vadd.f32 %v8138, %v8342
        %v8344 = vpop.f32.mrb[0].mxu0
        %8345 = vmatprep.mubr.f32.mxu0 0.0
        %8346 = vmatmul.mubr.f32.gmra.mrb[0].mxu0 %v8168
        %v8347 = vpop.f32.mrb[0].mxu0
        %v8348 = vadd.f32 %v8138, %v8347
        %v8349 = vpop.f32.mrb[0].mxu0
        %8350 = vmatprep.mubr.f32.mxu0 0.0
        %8351 = vmatmul.mubr.f32.gmra.mrb[0].mxu0 %v8171
        %v8352 = vpop.f32.mrb[0].mxu0
        %v8353 = vadd.f32 %v8138, %v8352
        %v8354 = vpop.f32.mrb[0].mxu0
        %8355 = vmatprep.mubr.f32.mxu0 0.0
        %8356 = vmatmul.mubr.f32.gmra.mrb[0].mxu0 %v8174
        %v8357 = vpop.f32.mrb[0].mxu0
        %v8358 = vadd.f32 %v8138, %v8357
        %v8359 = vpop.f32.mrb[0].mxu0
        %8360 = vmatprep.mubr.f32.mxu0 0.0
        %8361 = vmatmul.mubr.f32.gmra.mrb[0].mxu0 %v8177
        %v8362 = vpop.f32.mrb[0].mxu0
        %v8363 = vadd.f32 %v8138, %v8362
        %v8364 = vpop.f32.mrb[0].mxu0
        %8365 = vmatprep.mubr.f32.mxu0 0.0
        %8366 = vmatmul.mubr.f32.gmra.mrb[0].mxu0 %v8180
        %v8367 = vpop.f32.mrb[0].mxu0
        %v8368 = vadd.f32 %v8138, %v8367
        %v8369 = vpop.f32.mrb[0].mxu0
        %8370 = vmatprep.mubr.f32.mxu0 0.0
        %8371 = vmatmul.mubr.f32.gmra.mrb[0].mxu0 %v8183
        %v8372 = vpop.f32.mrb[0].mxu0
        %v8373 = vadd.f32 %v8138, %v8372
        %v8374 = vpop.f32.mrb[0].mxu0
        %8375 = vmatprep.mubr.f32.mxu0 0.0
        %8376 = vmatmul.mubr.f32.gmra.mrb[0].mxu0 %v8186
        %v8377 = vpop.f32.mrb[0].mxu0
        %v8378 = vadd.f32 %v8138, %v8377
        %v8379 = vpop.f32.mrb[0].mxu0
        %8380 = vmatprep.mubr.f32.mxu0 0.0
        %8381 = vmatmul.mubr.f32.gmra.mrb[0].mxu0 %v8189
        %v8382 = vpop.f32.mrb[0].mxu0
        %v8383 = vadd.f32 %v8138, %v8382
        %v8384 = vpop.f32.mrb[0].mxu0
        %8385 = vmatprep.mubr.f32.mxu0 0.0
        %8386 = vmatmul.mubr.f32.gmra.mrb[0].mxu0 %v8192
        %v8387 = vpop.f32.mrb[0].mxu0
        %v8388 = vadd.f32 %v8138, %v8387
        %v8389 = vpop.f32.mrb[0].mxu0
        %8390 = vmatprep.mubr.f32.mxu0 0.0
        %8391 = vmatmul.mubr.f32.gmra.mrb[0].mxu0 %v8195
        %v8392 = vpop.f32.mrb[0].mxu0
        %v8393 = vadd.f32 %v8138, %v8392
        %v8394 = vpop.f32.mrb[0].mxu0
        %8395 = vmatprep.mubr.f32.mxu0 0.0
        %8396 = vmatmul.mubr.f32.gmra.mrb[0].mxu0 %v8198
        %v8397 = vpop.f32.mrb[0].mxu0
        %v8398 = vadd.f32 %v8138, %v8397
        %v8399 = vpop.f32.mrb[0].mxu0
        %8400 = vmatprep.mubr.f32.mxu0 0.0
        %8401 = vmatmul.mubr.f32.gmra.mrb[0].mxu0 %v8201
        %v8402 = vpop.f32.mrb[0].mxu0
        %v8403 = vadd.f32 %v8138, %v8402
        %v8404 = vpop.f32.mrb[0].mxu0
        %8405 = vmatprep.mubr.f32.mxu0 0.0
        %8406 = vmatmul.mubr.f32.gmra.mrb[0].mxu0 %v8204
        %v8407 = vpop.f32.mrb[0].mxu0
        %v8408 = vadd.f32 %v8138, %v8407
        %v8409 = vpop.f32.mrb[0].mxu0
        %8410 = vmatprep.mubr.f32.mxu0 0.0
        %8411 = vmatmul.mubr.f32.gmra.mrb[0].mxu0 %v8207
        %v8412 = vpop.f32.mrb[0].mxu0
        %v8413 = vadd.f32 %v8138, %v8412
        %v8414 = vpop.f32.mrb[0].mxu0
        %8415 = vmatprep.mubr.f32.mxu0 0.0
        %8416 = vmatmul.mubr.f32.gmra.mrb[0].mxu0 %v8210
        %v8417 = vpop.f32.mrb[0].mxu0
        %v8418 = vadd.f32 %v8138, %v8417
        %v8419 = vpop.f32.mrb[0].mxu0
        %8420 = vmatprep.mubr.f32.mxu0 0.0
        %8421 = vmatmul.mubr.f32.gmra.mrb[0].mxu0 %v8213
        %v8422 = vpop.f32.mrb[0].mxu0
        %v8423 = vadd.f32 %v8138, %v8422
        %v8424 = vpop.f32.mrb[0].mxu0
        %8425 = vmatprep.mubr.f32.mxu0 0.0
        %8426 = vmatmul.mubr.f32.gmra.mrb[0].mxu0 %v8216
        %v8427 = vpop.f32.mrb[0].mxu0
        %v8428 = vadd.f32 %v8138, %v8427
        %v8429 = vpop.f32.mrb[0].mxu0
        %8430 = vmatprep.mubr.f32.mxu0 0.0
        %8431 = vmatmul.mubr.f32.gmra.mrb[0].mxu0 %v8219
        %v8432 = vpop.f32.mrb[0].mxu0
        %v8433 = vadd.f32 %v8138, %v8432
        %v8434 = vpop.f32.mrb[0].mxu0
        %8435 = vmatprep.mubr.f32.mxu0 0.0
        %8436 = vmatmul.mubr.f32.gmra.mrb[0].mxu0 %v8222
        %v8437 = vpop.f32.mrb[0].mxu0
        %v8438 = vadd.f32 %v8138, %v8437
        %v8439 = vpop.f32.mrb[0].mxu0
        %8440 = vmatprep.mubr.f32.mxu0 0.0
        %8441 = vmatmul.mubr.f32.gmra.mrb[0].mxu0 %v8225
        %v8442 = vpop.f32.mrb[0].mxu0
        %v8443 = vadd.f32 %v8138, %v8442
        %v8444 = vpop.f32.mrb[0].mxu0
        %8445 = vmatprep.mubr.f32.mxu0 0.0
        %8446 = vmatmul.mubr.f32.gmra.mrb[0].mxu0 %v8228
        %v8447 = vpop.f32.mrb[0].mxu0
        %v8448 = vadd.f32 %v8138, %v8447
        %v8449 = vpop.f32.mrb[0].mxu0
        %8450 = vmatprep.mubr.f32.mxu0 0.0
        %8451 = vmatmul.mubr.f32.gmra.mrb[0].mxu0 %v8231
        %v8452 = vpop.f32.mrb[0].mxu0
        %v8453 = vadd.f32 %v8138, %v8452
        %v8454 = vpop.f32.mrb[0].mxu0
        %8455 = vmatprep.mubr.f32.mxu0 0.0
        %8456 = vmatmul.mubr.f32.gmra.mrb[0].mxu0 %v8234
        %v8457 = vpop.f32.mrb[0].mxu0
        %v8458 = vadd.f32 %v8138, %v8457
        %v8459 = vpop.f32.mrb[0].mxu0
        %8460 = vdwg.mxu0
        %v8461 = vmax.f32 %v8303, 0.0
        %v8462 = vmax.f32 %v8308, 0.0
        %v8463 = vmax.f32 %v8313, 0.0
        %v8464 = vmax.f32 %v8318, 0.0
        %v8465 = vmax.f32 %v8323, 0.0
        %v8466 = vmax.f32 %v8328, 0.0
        %v8467 = vmax.f32 %v8333, 0.0
        %v8468 = vmax.f32 %v8338, 0.0
        %v8469 = vmax.f32 %v8343, 0.0
        %v8470 = vmax.f32 %v8348, 0.0
        %v8471 = vmax.f32 %v8353, 0.0
        %v8472 = vmax.f32 %v8358, 0.0
        %v8473 = vmax.f32 %v8363, 0.0
        %v8474 = vmax.f32 %v8368, 0.0
        %v8475 = vmax.f32 %v8373, 0.0
        %v8476 = vmax.f32 %v8378, 0.0
        %v8477 = vmax.f32 %v8383, 0.0
        %v8478 = vmax.f32 %v8388, 0.0
        %v8479 = vmax.f32 %v8393, 0.0
        %v8480 = vmax.f32 %v8398, 0.0
        %v8481 = vmax.f32 %v8403, 0.0
        %v8482 = vmax.f32 %v8408, 0.0
        %v8483 = vmax.f32 %v8413, 0.0
        %v8484 = vmax.f32 %v8418, 0.0
        %v8485 = vmax.f32 %v8423, 0.0
        %v8486 = vmax.f32 %v8428, 0.0
        %v8487 = vmax.f32 %v8433, 0.0
        %v8488 = vmax.f32 %v8438, 0.0
        %v8489 = vmax.f32 %v8443, 0.0
        %v8490 = vmax.f32 %v8448, 0.0
        %v8491 = vmax.f32 %v8453, 0.0
        %v8492 = vmax.f32 %v8458, 0.0
        %8521 = vrot.lane.b32.xlu0 %v8465, 8
        %v8522 = vpop.permute.xlu0 %8521
        %8523 = vrot.lane.b32.xlu0 %v8466, 8
        %v8524 = vpop.permute.xlu0 %8523
        %8525 = vrot.lane.b32.xlu0 %v8463, 8
        %v8526 = vpop.permute.xlu0 %8525
        %8527 = vrot.lane.b32.xlu0 %v8464, 8
        %v8528 = vpop.permute.xlu0 %8527
        %8529 = vrot.lane.b32.xlu0 %v8461, 8
        %v8530 = vpop.permute.xlu0 %8529
        %8531 = vrot.lane.b32.xlu0 %v8462, 8
        %v8532 = vpop.permute.xlu0 %8531
        %8533 = vrot.lane.b32.xlu0 %v8467, 8
        %v8534 = vpop.permute.xlu0 %8533
        %8535 = vrot.lane.b32.xlu0 %v8468, 8
        %v8536 = vpop.permute.xlu0 %8535
        %8537 = vrot.lane.b32.xlu0 %v8469, 8
        %v8538 = vpop.permute.xlu0 %8537
        %8539 = vrot.lane.b32.xlu0 %v8470, 8
        %v8540 = vpop.permute.xlu0 %8539
        %8541 = vrot.lane.b32.xlu0 %v8471, 8
        %v8542 = vpop.permute.xlu0 %8541
        %8543 = vrot.lane.b32.xlu0 %v8472, 8
        %v8544 = vpop.permute.xlu0 %8543
        %8545 = vrot.lane.b32.xlu0 %v8473, 8
        %v8546 = vpop.permute.xlu0 %8545
        %8547 = vrot.lane.b32.xlu0 %v8474, 8
        %v8548 = vpop.permute.xlu0 %8547
        %8549 = vrot.lane.b32.xlu0 %v8475, 8
        %v8550 = vpop.permute.xlu0 %8549
        %8551 = vrot.lane.b32.xlu0 %v8476, 8
        %v8552 = vpop.permute.xlu0 %8551
        %8553 = vrot.lane.b32.xlu0 %v8477, 8
        %v8554 = vpop.permute.xlu0 %8553
        %8555 = vrot.lane.b32.xlu0 %v8478, 8
        %v8556 = vpop.permute.xlu0 %8555
        %8557 = vrot.lane.b32.xlu0 %v8479, 8
        %v8558 = vpop.permute.xlu0 %8557
        %8559 = vrot.lane.b32.xlu0 %v8480, 8
        %v8560 = vpop.permute.xlu0 %8559
        %8561 = vrot.lane.b32.xlu0 %v8481, 8
        %v8562 = vpop.permute.xlu0 %8561
        %8563 = vrot.lane.b32.xlu0 %v8482, 8
        %v8564 = vpop.permute.xlu0 %8563
        %8565 = vrot.lane.b32.xlu0 %v8483, 8
        %v8566 = vpop.permute.xlu0 %8565
        %8567 = vrot.lane.b32.xlu0 %v8484, 8
        %v8568 = vpop.permute.xlu0 %8567
        %8569 = vrot.lane.b32.xlu0 %v8485, 8
        %v8570 = vpop.permute.xlu0 %8569
        %8571 = vrot.lane.b32.xlu0 %v8486, 8
        %v8572 = vpop.permute.xlu0 %8571
        %8573 = vrot.lane.b32.xlu0 %v8487, 8
        %v8574 = vpop.permute.xlu0 %8573
        %8575 = vrot.lane.b32.xlu0 %v8488, 8
        %v8576 = vpop.permute.xlu0 %8575
        %8607 = vrot.lane.b32.xlu0 %v8463, 16
        %v8608 = vpop.permute.xlu0 %8607
        %8609 = vrot.lane.b32.xlu0 %v8464, 16
        %v8610 = vpop.permute.xlu0 %8609
        %8611 = vrot.lane.b32.xlu0 %v8461, 16
        %v8612 = vpop.permute.xlu0 %8611
        %8613 = vrot.lane.b32.xlu0 %v8462, 16
        %v8614 = vpop.permute.xlu0 %8613
        %8615 = vrot.lane.b32.xlu0 %v8465, 16
        %v8616 = vpop.permute.xlu0 %8615
        %8617 = vrot.lane.b32.xlu0 %v8466, 16
        %v8618 = vpop.permute.xlu0 %8617
        %8619 = vrot.lane.b32.xlu0 %v8467, 16
        %v8620 = vpop.permute.xlu0 %8619
        %8621 = vrot.lane.b32.xlu0 %v8468, 16
        %v8622 = vpop.permute.xlu0 %8621
        %8623 = vrot.lane.b32.xlu0 %v8469, 16
        %v8624 = vpop.permute.xlu0 %8623
        %8625 = vrot.lane.b32.xlu0 %v8470, 16
        %v8626 = vpop.permute.xlu0 %8625
        %8627 = vrot.lane.b32.xlu0 %v8471, 16
        %v8628 = vpop.permute.xlu0 %8627
        %8629 = vrot.lane.b32.xlu0 %v8472, 16
        %v8630 = vpop.permute.xlu0 %8629
        %8631 = vrot.lane.b32.xlu0 %v8473, 16
        %v8632 = vpop.permute.xlu0 %8631
        %8633 = vrot.lane.b32.xlu0 %v8474, 16
        %v8634 = vpop.permute.xlu0 %8633
        %8635 = vrot.lane.b32.xlu0 %v8475, 16
        %v8636 = vpop.permute.xlu0 %8635
        %8637 = vrot.lane.b32.xlu0 %v8476, 16
        %v8638 = vpop.permute.xlu0 %8637
        %8639 = vrot.lane.b32.xlu0 %v8477, 16
        %v8640 = vpop.permute.xlu0 %8639
        %8641 = vrot.lane.b32.xlu0 %v8478, 16
        %v8642 = vpop.permute.xlu0 %8641
        %8643 = vrot.lane.b32.xlu0 %v8479, 16
        %v8644 = vpop.permute.xlu0 %8643
        %8645 = vrot.lane.b32.xlu0 %v8480, 16
        %v8646 = vpop.permute.xlu0 %8645
        %8647 = vrot.lane.b32.xlu0 %v8481, 16
        %v8648 = vpop.permute.xlu0 %8647
        %8649 = vrot.lane.b32.xlu0 %v8482, 16
        %v8650 = vpop.permute.xlu0 %8649
        %8651 = vrot.lane.b32.xlu0 %v8483, 16
        %v8652 = vpop.permute.xlu0 %8651
        %8653 = vrot.lane.b32.xlu0 %v8484, 16
        %v8654 = vpop.permute.xlu0 %8653
        %8655 = vrot.lane.b32.xlu0 %v8485, 16
        %v8656 = vpop.permute.xlu0 %8655
        %8657 = vrot.lane.b32.xlu0 %v8486, 16
        %v8658 = vpop.permute.xlu0 %8657
        %8659 = vrot.lane.b32.xlu0 %v8487, 16
        %v8660 = vpop.permute.xlu0 %8659
        %8661 = vrot.lane.b32.xlu0 %v8488, 16
        %v8662 = vpop.permute.xlu0 %8661
        %8663 = vrot.lane.b32.xlu0 %v8489, 16
        %v8664 = vpop.permute.xlu0 %8663
        %8665 = vrot.lane.b32.xlu0 %v8490, 16
        %v8666 = vpop.permute.xlu0 %8665
        %8699 = vrot.lane.b32.xlu0 %v8461, 24
        %v8700 = vpop.permute.xlu0 %8699
        %8701 = vrot.lane.b32.xlu0 %v8462, 24
        %v8702 = vpop.permute.xlu0 %8701
        %8703 = vrot.lane.b32.xlu0 %v8463, 24
        %v8704 = vpop.permute.xlu0 %8703
        %8705 = vrot.lane.b32.xlu0 %v8464, 24
        %v8706 = vpop.permute.xlu0 %8705
        %8707 = vrot.lane.b32.xlu0 %v8465, 24
        %v8708 = vpop.permute.xlu0 %8707
        %8709 = vrot.lane.b32.xlu0 %v8466, 24
        %v8710 = vpop.permute.xlu0 %8709
        %8711 = vrot.lane.b32.xlu0 %v8467, 24
        %v8712 = vpop.permute.xlu0 %8711
        %8713 = vrot.lane.b32.xlu0 %v8468, 24
        %v8714 = vpop.permute.xlu0 %8713
        %8715 = vrot.lane.b32.xlu0 %v8469, 24
        %v8716 = vpop.permute.xlu0 %8715
        %8717 = vrot.lane.b32.xlu0 %v8470, 24
        %v8718 = vpop.permute.xlu0 %8717
        %8719 = vrot.lane.b32.xlu0 %v8471, 24
        %v8720 = vpop.permute.xlu0 %8719
        %8721 = vrot.lane.b32.xlu0 %v8472, 24
        %v8722 = vpop.permute.xlu0 %8721
        %8723 = vrot.lane.b32.xlu0 %v8473, 24
        %v8724 = vpop.permute.xlu0 %8723
        %8725 = vrot.lane.b32.xlu0 %v8474, 24
        %v8726 = vpop.permute.xlu0 %8725
        %8727 = vrot.lane.b32.xlu0 %v8475, 24
        %v8728 = vpop.permute.xlu0 %8727
        %8729 = vrot.lane.b32.xlu0 %v8476, 24
        %v8730 = vpop.permute.xlu0 %8729
        %8731 = vrot.lane.b32.xlu0 %v8477, 24
        %v8732 = vpop.permute.xlu0 %8731
        %8733 = vrot.lane.b32.xlu0 %v8478, 24
        %v8734 = vpop.permute.xlu0 %8733
        %8735 = vrot.lane.b32.xlu0 %v8479, 24
        %v8736 = vpop.permute.xlu0 %8735
        %8737 = vrot.lane.b32.xlu0 %v8480, 24
        %v8738 = vpop.permute.xlu0 %8737
        %8739 = vrot.lane.b32.xlu0 %v8481, 24
        %v8740 = vpop.permute.xlu0 %8739
        %8741 = vrot.lane.b32.xlu0 %v8482, 24
        %v8742 = vpop.permute.xlu0 %8741
        %8743 = vrot.lane.b32.xlu0 %v8483, 24
        %v8744 = vpop.permute.xlu0 %8743
        %8745 = vrot.lane.b32.xlu0 %v8484, 24
        %v8746 = vpop.permute.xlu0 %8745
        %8747 = vrot.lane.b32.xlu0 %v8485, 24
        %v8748 = vpop.permute.xlu0 %8747
        %8749 = vrot.lane.b32.xlu0 %v8486, 24
        %v8750 = vpop.permute.xlu0 %8749
        %8751 = vrot.lane.b32.xlu0 %v8487, 24
        %v8752 = vpop.permute.xlu0 %8751
        %8753 = vrot.lane.b32.xlu0 %v8488, 24
        %v8754 = vpop.permute.xlu0 %8753
        %8755 = vrot.lane.b32.xlu0 %v8489, 24
        %v8756 = vpop.permute.xlu0 %8755
        %8757 = vrot.lane.b32.xlu0 %v8490, 24
        %v8758 = vpop.permute.xlu0 %8757
        %8759 = vrot.lane.b32.xlu0 %v8491, 24
        %v8760 = vpop.permute.xlu0 %8759
        %8761 = vrot.lane.b32.xlu0 %v8492, 24
        %v8762 = vpop.permute.xlu0 %8761
        %8795 = vrot.lane.b32.xlu0 %v8463, 32
        %v8796 = vpop.permute.xlu0 %8795
        %8797 = vrot.lane.b32.xlu0 %v8464, 32
        %v8798 = vpop.permute.xlu0 %8797
        %8799 = vrot.lane.b32.xlu0 %v8465, 32
        %v8800 = vpop.permute.xlu0 %8799
        %8801 = vrot.lane.b32.xlu0 %v8466, 32
        %v8802 = vpop.permute.xlu0 %8801
        %8803 = vrot.lane.b32.xlu0 %v8467, 32
        %v8804 = vpop.permute.xlu0 %8803
        %8805 = vrot.lane.b32.xlu0 %v8468, 32
        %v8806 = vpop.permute.xlu0 %8805
        %8807 = vrot.lane.b32.xlu0 %v8469, 32
        %v8808 = vpop.permute.xlu0 %8807
        %8809 = vrot.lane.b32.xlu0 %v8470, 32
        %v8810 = vpop.permute.xlu0 %8809
        %8811 = vrot.lane.b32.xlu0 %v8471, 32
        %v8812 = vpop.permute.xlu0 %8811
        %8813 = vrot.lane.b32.xlu0 %v8472, 32
        %v8814 = vpop.permute.xlu0 %8813
        %8815 = vrot.lane.b32.xlu0 %v8473, 32
        %v8816 = vpop.permute.xlu0 %8815
        %8817 = vrot.lane.b32.xlu0 %v8474, 32
        %v8818 = vpop.permute.xlu0 %8817
        %8819 = vrot.lane.b32.xlu0 %v8475, 32
        %v8820 = vpop.permute.xlu0 %8819
        %8821 = vrot.lane.b32.xlu0 %v8476, 32
        %v8822 = vpop.permute.xlu0 %8821
        %8823 = vrot.lane.b32.xlu0 %v8477, 32
        %v8824 = vpop.permute.xlu0 %8823
        %8825 = vrot.lane.b32.xlu0 %v8478, 32
        %v8826 = vpop.permute.xlu0 %8825
        %8827 = vrot.lane.b32.xlu0 %v8479, 32
        %v8828 = vpop.permute.xlu0 %8827
        %8829 = vrot.lane.b32.xlu0 %v8480, 32
        %v8830 = vpop.permute.xlu0 %8829
        %8831 = vrot.lane.b32.xlu0 %v8481, 32
        %v8832 = vpop.permute.xlu0 %8831
        %8833 = vrot.lane.b32.xlu0 %v8482, 32
        %v8834 = vpop.permute.xlu0 %8833
        %8835 = vrot.lane.b32.xlu0 %v8483, 32
        %v8836 = vpop.permute.xlu0 %8835
        %8837 = vrot.lane.b32.xlu0 %v8484, 32
        %v8838 = vpop.permute.xlu0 %8837
        %8839 = vrot.lane.b32.xlu0 %v8485, 32
        %v8840 = vpop.permute.xlu0 %8839
        %8841 = vrot.lane.b32.xlu0 %v8486, 32
        %v8842 = vpop.permute.xlu0 %8841
        %8843 = vrot.lane.b32.xlu0 %v8487, 32
        %v8844 = vpop.permute.xlu0 %8843
        %8845 = vrot.lane.b32.xlu0 %v8488, 32
        %v8846 = vpop.permute.xlu0 %8845
        %8847 = vrot.lane.b32.xlu0 %v8489, 32
        %v8848 = vpop.permute.xlu0 %8847
        %8849 = vrot.lane.b32.xlu0 %v8490, 32
        %v8850 = vpop.permute.xlu0 %8849
        %8851 = vrot.lane.b32.xlu0 %v8491, 32
        %v8852 = vpop.permute.xlu0 %8851
        %8853 = vrot.lane.b32.xlu0 %v8492, 32
        %v8854 = vpop.permute.xlu0 %8853
        %8885 = vrot.lane.b32.xlu0 %v8465, 40
        %v8886 = vpop.permute.xlu0 %8885
        %8887 = vrot.lane.b32.xlu0 %v8466, 40
        %v8888 = vpop.permute.xlu0 %8887
        %8889 = vrot.lane.b32.xlu0 %v8467, 40
        %v8890 = vpop.permute.xlu0 %8889
        %8891 = vrot.lane.b32.xlu0 %v8468, 40
        %v8892 = vpop.permute.xlu0 %8891
        %8893 = vrot.lane.b32.xlu0 %v8469, 40
        %v8894 = vpop.permute.xlu0 %8893
        %8895 = vrot.lane.b32.xlu0 %v8470, 40
        %v8896 = vpop.permute.xlu0 %8895
        %8897 = vrot.lane.b32.xlu0 %v8471, 40
        %v8898 = vpop.permute.xlu0 %8897
        %8899 = vrot.lane.b32.xlu0 %v8472, 40
        %v8900 = vpop.permute.xlu0 %8899
        %8901 = vrot.lane.b32.xlu0 %v8473, 40
        %v8902 = vpop.permute.xlu0 %8901
        %8903 = vrot.lane.b32.xlu0 %v8474, 40
        %v8904 = vpop.permute.xlu0 %8903
        %8905 = vrot.lane.b32.xlu0 %v8475, 40
        %v8906 = vpop.permute.xlu0 %8905
        %8907 = vrot.lane.b32.xlu0 %v8476, 40
        %v8908 = vpop.permute.xlu0 %8907
        %8909 = vrot.lane.b32.xlu0 %v8477, 40
        %v8910 = vpop.permute.xlu0 %8909
        %8911 = vrot.lane.b32.xlu0 %v8478, 40
        %v8912 = vpop.permute.xlu0 %8911
        %8913 = vrot.lane.b32.xlu0 %v8479, 40
        %v8914 = vpop.permute.xlu0 %8913
        %8915 = vrot.lane.b32.xlu0 %v8480, 40
        %v8916 = vpop.permute.xlu0 %8915
        %8917 = vrot.lane.b32.xlu0 %v8481, 40
        %v8918 = vpop.permute.xlu0 %8917
        %8919 = vrot.lane.b32.xlu0 %v8482, 40
        %v8920 = vpop.permute.xlu0 %8919
        %8921 = vrot.lane.b32.xlu0 %v8483, 40
        %v8922 = vpop.permute.xlu0 %8921
        %8923 = vrot.lane.b32.xlu0 %v8484, 40
        %v8924 = vpop.permute.xlu0 %8923
        %8925 = vrot.lane.b32.xlu0 %v8485, 40
        %v8926 = vpop.permute.xlu0 %8925
        %8927 = vrot.lane.b32.xlu0 %v8486, 40
        %v8928 = vpop.permute.xlu0 %8927
        %8929 = vrot.lane.b32.xlu0 %v8487, 40
        %v8930 = vpop.permute.xlu0 %8929
        %8931 = vrot.lane.b32.xlu0 %v8488, 40
        %v8932 = vpop.permute.xlu0 %8931
        %8933 = vrot.lane.b32.xlu0 %v8489, 40
        %v8934 = vpop.permute.xlu0 %8933
        %8935 = vrot.lane.b32.xlu0 %v8490, 40
        %v8936 = vpop.permute.xlu0 %8935
        %8937 = vrot.lane.b32.xlu0 %v8491, 40
        %v8938 = vpop.permute.xlu0 %8937
        %8939 = vrot.lane.b32.xlu0 %v8492, 40
        %v8940 = vpop.permute.xlu0 %8939
        %8969 = vrot.lane.b32.xlu0 %v8467, 48
        %v8970 = vpop.permute.xlu0 %8969
        %8971 = vrot.lane.b32.xlu0 %v8468, 48
        %v8972 = vpop.permute.xlu0 %8971
        %8973 = vrot.lane.b32.xlu0 %v8469, 48
        %v8974 = vpop.permute.xlu0 %8973
        %8975 = vrot.lane.b32.xlu0 %v8470, 48
        %v8976 = vpop.permute.xlu0 %8975
        %8977 = vrot.lane.b32.xlu0 %v8471, 48
        %v8978 = vpop.permute.xlu0 %8977
        %8979 = vrot.lane.b32.xlu0 %v8472, 48
        %v8980 = vpop.permute.xlu0 %8979
        %8981 = vrot.lane.b32.xlu0 %v8473, 48
        %v8982 = vpop.permute.xlu0 %8981
        %8983 = vrot.lane.b32.xlu0 %v8474, 48
        %v8984 = vpop.permute.xlu0 %8983
        %8985 = vrot.lane.b32.xlu0 %v8475, 48
        %v8986 = vpop.permute.xlu0 %8985
        %8987 = vrot.lane.b32.xlu0 %v8476, 48
        %v8988 = vpop.permute.xlu0 %8987
        %8989 = vrot.lane.b32.xlu0 %v8477, 48
        %v8990 = vpop.permute.xlu0 %8989
        %8991 = vrot.lane.b32.xlu0 %v8478, 48
        %v8992 = vpop.permute.xlu0 %8991
        %8993 = vrot.lane.b32.xlu0 %v8479, 48
        %v8994 = vpop.permute.xlu0 %8993
        %8995 = vrot.lane.b32.xlu0 %v8480, 48
        %v8996 = vpop.permute.xlu0 %8995
        %8997 = vrot.lane.b32.xlu0 %v8481, 48
        %v8998 = vpop.permute.xlu0 %8997
        %8999 = vrot.lane.b32.xlu0 %v8482, 48
        %v9000 = vpop.permute.xlu0 %8999
        %9001 = vrot.lane.b32.xlu0 %v8483, 48
        %v9002 = vpop.permute.xlu0 %9001
        %9003 = vrot.lane.b32.xlu0 %v8484, 48
        %v9004 = vpop.permute.xlu0 %9003
        %9005 = vrot.lane.b32.xlu0 %v8485, 48
        %v9006 = vpop.permute.xlu0 %9005
        %9007 = vrot.lane.b32.xlu0 %v8486, 48
        %v9008 = vpop.permute.xlu0 %9007
        %9009 = vrot.lane.b32.xlu0 %v8487, 48
        %v9010 = vpop.permute.xlu0 %9009
        %9011 = vrot.lane.b32.xlu0 %v8488, 48
        %v9012 = vpop.permute.xlu0 %9011
        %9013 = vrot.lane.b32.xlu0 %v8489, 48
        %v9014 = vpop.permute.xlu0 %9013
        %9015 = vrot.lane.b32.xlu0 %v8490, 48
        %v9016 = vpop.permute.xlu0 %9015
        %9017 = vrot.lane.b32.xlu0 %v8491, 48
        %v9018 = vpop.permute.xlu0 %9017
        %9019 = vrot.lane.b32.xlu0 %v8492, 48
        %v9020 = vpop.permute.xlu0 %9019
        %v9047 = vsel %vm2471, %v8467, %v8522
        %v9048 = vsel %vm2471, %v8468, %v8524
        %v9049 = vsel %vm2471, %v8465, %v8526
        %v9050 = vsel %vm2471, %v8466, %v8528
        %v9051 = vsel %vm2471, %v8463, %v8530
        %v9052 = vsel %vm2471, %v8464, %v8532
        %v9053 = vsel %vm2471, %v8461, %v8526
        %v9054 = vsel %vm2471, %v8462, %v8528
        %v9055 = vsel %vm2471, %v8463, %v8522
        %v9056 = vsel %vm2471, %v8464, %v8524
        %v9057 = vsel %vm2471, %v8465, %v8534
        %v9058 = vsel %vm2471, %v8466, %v8536
        %v9059 = vsel %vm2471, %v8467, %v8538
        %v9060 = vsel %vm2471, %v8468, %v8540
        %v9061 = vsel %vm2471, %v8469, %v8542
        %v9062 = vsel %vm2471, %v8470, %v8544
        %v9063 = vsel %vm2471, %v8471, %v8546
        %v9064 = vsel %vm2471, %v8472, %v8548
        %v9065 = vsel %vm2471, %v8473, %v8550
        %v9066 = vsel %vm2471, %v8474, %v8552
        %v9067 = vsel %vm2471, %v8475, %v8554
        %v9068 = vsel %vm2471, %v8476, %v8556
        %v9069 = vsel %vm2471, %v8477, %v8558
        %v9070 = vsel %vm2471, %v8478, %v8560
        %v9071 = vsel %vm2471, %v8479, %v8562
        %v9072 = vsel %vm2471, %v8480, %v8564
        %v9073 = vsel %vm2471, %v8481, %v8566
        %v9074 = vsel %vm2471, %v8482, %v8568
        %v9075 = vsel %vm2471, %v8483, %v8570
        %v9076 = vsel %vm2471, %v8484, %v8572
        %v9077 = vsel %vm2471, %v8485, %v8574
        %v9078 = vsel %vm2471, %v8486, %v8576
        %v9079 = vsel %vm2504, %v9047, %v8608
        %v9080 = vsel %vm2504, %v9048, %v8610
        %v9081 = vsel %vm2504, %v9049, %v8612
        %v9082 = vsel %vm2504, %v9050, %v8614
        %v9083 = vsel %vm2504, %v9051, %v8608
        %v9084 = vsel %vm2504, %v9052, %v8610
        %v9085 = vsel %vm2504, %v9053, %v8616
        %v9086 = vsel %vm2504, %v9054, %v8618
        %v9087 = vsel %vm2504, %v9055, %v8620
        %v9088 = vsel %vm2504, %v9056, %v8622
        %v9089 = vsel %vm2504, %v9057, %v8624
        %v9090 = vsel %vm2504, %v9058, %v8626
        %v9091 = vsel %vm2504, %v9059, %v8628
        %v9092 = vsel %vm2504, %v9060, %v8630
        %v9093 = vsel %vm2504, %v9061, %v8632
        %v9094 = vsel %vm2504, %v9062, %v8634
        %v9095 = vsel %vm2504, %v9063, %v8636
        %v9096 = vsel %vm2504, %v9064, %v8638
        %v9097 = vsel %vm2504, %v9065, %v8640
        %v9098 = vsel %vm2504, %v9066, %v8642
        %v9099 = vsel %vm2504, %v9067, %v8644
        %v9100 = vsel %vm2504, %v9068, %v8646
        %v9101 = vsel %vm2504, %v9069, %v8648
        %v9102 = vsel %vm2504, %v9070, %v8650
        %v9103 = vsel %vm2504, %v9071, %v8652
        %v9104 = vsel %vm2504, %v9072, %v8654
        %v9105 = vsel %vm2504, %v9073, %v8656
        %v9106 = vsel %vm2504, %v9074, %v8658
        %v9107 = vsel %vm2504, %v9075, %v8660
        %v9108 = vsel %vm2504, %v9076, %v8662
        %v9109 = vsel %vm2504, %v9077, %v8664
        %v9110 = vsel %vm2504, %v9078, %v8666
        %v9111 = vsel %vm2537, %v9079, %v8700
        %v9112 = vsel %vm2537, %v9080, %v8702
        %v9113 = vsel %vm2537, %v9081, %v8704
        %v9114 = vsel %vm2537, %v9082, %v8706
        %v9115 = vsel %vm2537, %v9083, %v8708
        %v9116 = vsel %vm2537, %v9084, %v8710
        %v9117 = vsel %vm2537, %v9085, %v8712
        %v9118 = vsel %vm2537, %v9086, %v8714
        %v9119 = vsel %vm2537, %v9087, %v8716
        %v9120 = vsel %vm2537, %v9088, %v8718
        %v9121 = vsel %vm2537, %v9089, %v8720
        %v9122 = vsel %vm2537, %v9090, %v8722
        %v9123 = vsel %vm2537, %v9091, %v8724
        %v9124 = vsel %vm2537, %v9092, %v8726
        %v9125 = vsel %vm2537, %v9093, %v8728
        %v9126 = vsel %vm2537, %v9094, %v8730
        %v9127 = vsel %vm2537, %v9095, %v8732
        %v9128 = vsel %vm2537, %v9096, %v8734
        %v9129 = vsel %vm2537, %v9097, %v8736
        %v9130 = vsel %vm2537, %v9098, %v8738
        %v9131 = vsel %vm2537, %v9099, %v8740
        %v9132 = vsel %vm2537, %v9100, %v8742
        %v9133 = vsel %vm2537, %v9101, %v8744
        %v9134 = vsel %vm2537, %v9102, %v8746
        %v9135 = vsel %vm2537, %v9103, %v8748
        %v9136 = vsel %vm2537, %v9104, %v8750
        %v9137 = vsel %vm2537, %v9105, %v8752
        %v9138 = vsel %vm2537, %v9106, %v8754
        %v9139 = vsel %vm2537, %v9107, %v8756
        %v9140 = vsel %vm2537, %v9108, %v8758
        %v9141 = vsel %vm2537, %v9109, %v8760
        %v9142 = vsel %vm2537, %v9110, %v8762
        %v9143 = vsel %vm2570, %v9111, %v8796
        %v9144 = vsel %vm2570, %v9112, %v8798
        %v9145 = vsel %vm2570, %v9113, %v8800
        %v9146 = vsel %vm2570, %v9114, %v8802
        %v9147 = vsel %vm2570, %v9115, %v8804
        %v9148 = vsel %vm2570, %v9116, %v8806
        %v9149 = vsel %vm2570, %v9117, %v8808
        %v9150 = vsel %vm2570, %v9118, %v8810
        %v9151 = vsel %vm2570, %v9119, %v8812
        %v9152 = vsel %vm2570, %v9120, %v8814
        %v9153 = vsel %vm2570, %v9121, %v8816
        %v9154 = vsel %vm2570, %v9122, %v8818
        %v9155 = vsel %vm2570, %v9123, %v8820
        %v9156 = vsel %vm2570, %v9124, %v8822
        %v9157 = vsel %vm2570, %v9125, %v8824
        %v9158 = vsel %vm2570, %v9126, %v8826
        %v9159 = vsel %vm2570, %v9127, %v8828
        %v9160 = vsel %vm2570, %v9128, %v8830
        %v9161 = vsel %vm2570, %v9129, %v8832
        %v9162 = vsel %vm2570, %v9130, %v8834
        %v9163 = vsel %vm2570, %v9131, %v8836
        %v9164 = vsel %vm2570, %v9132, %v8838
        %v9165 = vsel %vm2570, %v9133, %v8840
        %v9166 = vsel %vm2570, %v9134, %v8842
        %v9167 = vsel %vm2570, %v9135, %v8844
        %v9168 = vsel %vm2570, %v9136, %v8846
        %v9169 = vsel %vm2570, %v9137, %v8848
        %v9170 = vsel %vm2570, %v9138, %v8850
        %v9171 = vsel %vm2570, %v9139, %v8852
        %v9172 = vsel %vm2570, %v9140, %v8854
        %v9173 = vsel %vm2570, %v9141, %v8848
        %v9174 = vsel %vm2570, %v9142, %v8850
        %v9175 = vsel %vm2603, %v9143, %v8886
        %v9176 = vsel %vm2603, %v9144, %v8888
        %v9177 = vsel %vm2603, %v9145, %v8890
        %v9178 = vsel %vm2603, %v9146, %v8892
        %v9179 = vsel %vm2603, %v9147, %v8894
        %v9180 = vsel %vm2603, %v9148, %v8896
        %v9181 = vsel %vm2603, %v9149, %v8898
        %v9182 = vsel %vm2603, %v9150, %v8900
        %v9183 = vsel %vm2603, %v9151, %v8902
        %v9184 = vsel %vm2603, %v9152, %v8904
        %v9185 = vsel %vm2603, %v9153, %v8906
        %v9186 = vsel %vm2603, %v9154, %v8908
        %v9187 = vsel %vm2603, %v9155, %v8910
        %v9188 = vsel %vm2603, %v9156, %v8912
        %v9189 = vsel %vm2603, %v9157, %v8914
        %v9190 = vsel %vm2603, %v9158, %v8916
        %v9191 = vsel %vm2603, %v9159, %v8918
        %v9192 = vsel %vm2603, %v9160, %v8920
        %v9193 = vsel %vm2603, %v9161, %v8922
        %v9194 = vsel %vm2603, %v9162, %v8924
        %v9195 = vsel %vm2603, %v9163, %v8926
        %v9196 = vsel %vm2603, %v9164, %v8928
        %v9197 = vsel %vm2603, %v9165, %v8930
        %v9198 = vsel %vm2603, %v9166, %v8932
        %v9199 = vsel %vm2603, %v9167, %v8934
        %v9200 = vsel %vm2603, %v9168, %v8936
        %v9201 = vsel %vm2603, %v9169, %v8938
        %v9202 = vsel %vm2603, %v9170, %v8940
        %v9203 = vsel %vm2603, %v9171, %v8934
        %v9204 = vsel %vm2603, %v9172, %v8936
        %v9205 = vsel %vm2603, %v9173, %v8930
        %v9206 = vsel %vm2603, %v9174, %v8932
        %v9207 = vsel %vm2636, %v9175, %v8970
        %v9208 = vsel %vm2636, %v9176, %v8972
        %v9209 = vsel %vm2636, %v9177, %v8974
        %v9210 = vsel %vm2636, %v9178, %v8976
        %v9211 = vsel %vm2636, %v9179, %v8978
        %v9212 = vsel %vm2636, %v9180, %v8980
        %v9213 = vsel %vm2636, %v9181, %v8982
        %v9214 = vsel %vm2636, %v9182, %v8984
        %v9215 = vsel %vm2636, %v9183, %v8986
        %v9216 = vsel %vm2636, %v9184, %v8988
        %v9217 = vsel %vm2636, %v9185, %v8990
        %v9218 = vsel %vm2636, %v9186, %v8992
        %v9219 = vsel %vm2636, %v9187, %v8994
        %v9220 = vsel %vm2636, %v9188, %v8996
        %v9221 = vsel %vm2636, %v9189, %v8998
        %v9222 = vsel %vm2636, %v9190, %v9000
        %v9223 = vsel %vm2636, %v9191, %v9002
        %v9224 = vsel %vm2636, %v9192, %v9004
        %v9225 = vsel %vm2636, %v9193, %v9006
        %v9226 = vsel %vm2636, %v9194, %v9008
        %v9227 = vsel %vm2636, %v9195, %v9010
        %v9228 = vsel %vm2636, %v9196, %v9012
        %v9229 = vsel %vm2636, %v9197, %v9014
        %v9230 = vsel %vm2636, %v9198, %v9016
        %v9231 = vsel %vm2636, %v9199, %v9018
        %v9232 = vsel %vm2636, %v9200, %v9020
        %v9233 = vsel %vm2636, %v9201, %v9014
        %v9234 = vsel %vm2636, %v9202, %v9016
        %v9235 = vsel %vm2636, %v9203, %v9010
        %v9236 = vsel %vm2636, %v9204, %v9012
        %v9237 = vsel %vm2636, %v9205, %v9006
        %v9238 = vsel %vm2636, %v9206, %v9008
        %v9239 = vld [vmem:[%s13] sm:$0xff]
        %v9240 = vld [vmem:[%s13 + $0x8] sm:$0xff]
        %v9241 = vld [vmem:[%s13 + $0x10] sm:$0xff]
        %v9242 = vld [vmem:[%s13 + $0x18] sm:$0xff]
        %v9243 = vld [vmem:[%s13 + $0x20] sm:$0xff]
        %v9244 = vld [vmem:[%s13 + $0x28] sm:$0xff]
        %v9245 = vld [vmem:[%s13 + $0x30] sm:$0xff]
        %v9246 = vld [vmem:[%s14] sm:$0x1]
        %v9248 = vlaneseq
        %v9249 = vshrl.u32 %v9248, 7
        %v9250 = vsub.s32 0, %v9249
        %v9251 = vrot.slane %v9246, %v9250
        %v9254 = vsel %vm2683, %v9207, 0
        %v9257 = vsel %vm2683, %v9208, 0
        %v9260 = vsel %vm2683, %v9209, 0
        %v9263 = vsel %vm2683, %v9210, 0
        %v9266 = vsel %vm2683, %v9211, 0
        %v9269 = vsel %vm2683, %v9212, 0
        %v9272 = vsel %vm2683, %v9213, 0
        %v9275 = vsel %vm2683, %v9214, 0
        %v9278 = vsel %vm2683, %v9215, 0
        %v9281 = vsel %vm2683, %v9216, 0
        %v9284 = vsel %vm2683, %v9217, 0
        %v9287 = vsel %vm2683, %v9218, 0
        %v9290 = vsel %vm2683, %v9219, 0
        %v9293 = vsel %vm2683, %v9220, 0
        %v9296 = vsel %vm2683, %v9221, 0
        %v9299 = vsel %vm2683, %v9222, 0
        %v9302 = vsel %vm2683, %v9223, 0
        %v9305 = vsel %vm2683, %v9224, 0
        %v9308 = vsel %vm2683, %v9225, 0
        %v9311 = vsel %vm2683, %v9226, 0
        %v9314 = vsel %vm2683, %v9227, 0
        %v9317 = vsel %vm2683, %v9228, 0
        %v9320 = vsel %vm2683, %v9229, 0
        %v9323 = vsel %vm2683, %v9230, 0
        %v9326 = vsel %vm2683, %v9231, 0
        %v9329 = vsel %vm2683, %v9232, 0
        %v9332 = vsel %vm2683, %v9233, 0
        %v9335 = vsel %vm2683, %v9234, 0
        %v9338 = vsel %vm2683, %v9235, 0
        %v9341 = vsel %vm2683, %v9236, 0
        %v9344 = vsel %vm2683, %v9237, 0
        %v9347 = vsel %vm2683, %v9238, 0
        %9349 = vmatprep.subr.mxu0 0.0
        %9350 = vmatpush1.msra.mxu0 %v9239
        %9351 = vmatprep.subr.mxu0 0.0
        %9352 = vmatpush1.msra.mxu0 %v9240
        %9353 = vmatprep.subr.mxu0 0.0
        %9354 = vmatpush1.msra.mxu0 %v9241
        %9355 = vmatprep.subr.mxu0 0.0
        %9356 = vmatpush1.msra.mxu0 %v9242
        %9357 = vmatprep.subr.mxu0 0.0
        %9358 = vmatpush1.msra.mxu0 %v9243
        %9359 = vmatprep.subr.mxu0 0.0
        %9360 = vmatpush1.msra.mxu0 %v9244
        %9361 = vmatprep.subr.mxu0 0.0
        %9362 = vmatpush1.msra.mxu0 %v9245
        %9363 = vmatprep.subr.mxu0 0.0
        %9364 = vmatpush1.msra.mxu0 0.0
        %9365 = vmatprep.subr.mxu0 0.0
        %9366 = vmatpush1.msra.mxu0 0.0
        %9367 = vmatprep.subr.mxu0 0.0
        %9368 = vmatpush1.msra.mxu0 0.0
        %9369 = vmatprep.subr.mxu0 0.0
        %9370 = vmatpush1.msra.mxu0 0.0
        %9371 = vmatprep.subr.mxu0 0.0
        %9372 = vmatpush1.msra.mxu0 0.0
        %9373 = vmatprep.subr.mxu0 0.0
        %9374 = vmatpush1.msra.mxu0 0.0
        %9375 = vmatprep.subr.mxu0 0.0
        %9376 = vmatpush1.msra.mxu0 0.0
        %9377 = vmatprep.subr.mxu0 0.0
        %9378 = vmatpush1.msra.mxu0 0.0
        %9379 = vmatprep.subr.mxu0 0.0
        %9380 = vmatpush1.msra.mxu0 0.0
        %9381 = vmatprep.subr.mxu0 0.0
        %9382 = vmatpush1.msra.mxu0 0.0
        %9383 = vmatprep.subr.mxu0 0.0
        %9384 = vmatpush1.msra.mxu0 0.0
        %9385 = vmatprep.subr.mxu0 0.0
        %9386 = vmatpush1.msra.mxu0 0.0
        %9387 = vmatprep.subr.mxu0 0.0
        %9388 = vmatpush1.msra.mxu0 0.0
        %9389 = vmatprep.subr.mxu0 0.0
        %9390 = vmatpush1.msra.mxu0 0.0
        %9391 = vmatprep.subr.mxu0 0.0
        %9392 = vmatpush1.msra.mxu0 0.0
        %9393 = vmatprep.subr.mxu0 0.0
        %9394 = vmatpush1.msra.mxu0 0.0
        %9395 = vmatprep.subr.mxu0 0.0
        %9396 = vmatpush1.msra.mxu0 0.0
        %9397 = vmatprep.subr.mxu0 0.0
        %9398 = vmatpush1.msra.mxu0 0.0
        %9399 = vmatprep.subr.mxu0 0.0
        %9400 = vmatpush1.msra.mxu0 0.0
        %9401 = vmatprep.subr.mxu0 0.0
        %9402 = vmatpush1.msra.mxu0 0.0
        %9403 = vmatprep.subr.mxu0 0.0
        %9404 = vmatpush1.msra.mxu0 0.0
        %9405 = vmatprep.subr.mxu0 0.0
        %9406 = vmatpush1.msra.mxu0 0.0
        %9407 = vmatprep.subr.mxu0 0.0
        %9408 = vmatpush1.msra.mxu0 0.0
        %9409 = vmatprep.subr.mxu0 0.0
        %9410 = vmatpush1.msra.mxu0 0.0
        %9411 = vmatprep.subr.mxu0 0.0
        %9412 = vmatpush1.msra.mxu0 0.0
        %9413 = vmatprep.mubr.f32.mxu0 0.0
        %9414 = vmatmul.mubr.f32.gmra.mrb[0].mxu0 %v9254
        %v9415 = vpop.f32.mrb[0].mxu0
        %v9416 = vadd.f32 %v9251, %v9415
        %v9417 = vpop.f32.mrb[0].mxu0
        %9418 = vmatprep.mubr.f32.mxu0 0.0
        %9419 = vmatmul.mubr.f32.gmra.mrb[0].mxu0 %v9257
        %v9420 = vpop.f32.mrb[0].mxu0
        %v9421 = vadd.f32 %v9251, %v9420
        %v9422 = vpop.f32.mrb[0].mxu0
        %9423 = vmatprep.mubr.f32.mxu0 0.0
        %9424 = vmatmul.mubr.f32.gmra.mrb[0].mxu0 %v9260
        %v9425 = vpop.f32.mrb[0].mxu0
        %v9426 = vadd.f32 %v9251, %v9425
        %v9427 = vpop.f32.mrb[0].mxu0
        %9428 = vmatprep.mubr.f32.mxu0 0.0
        %9429 = vmatmul.mubr.f32.gmra.mrb[0].mxu0 %v9263
        %v9430 = vpop.f32.mrb[0].mxu0
        %v9431 = vadd.f32 %v9251, %v9430
        %v9432 = vpop.f32.mrb[0].mxu0
        %9433 = vmatprep.mubr.f32.mxu0 0.0
        %9434 = vmatmul.mubr.f32.gmra.mrb[0].mxu0 %v9266
        %v9435 = vpop.f32.mrb[0].mxu0
        %v9436 = vadd.f32 %v9251, %v9435
        %v9437 = vpop.f32.mrb[0].mxu0
        %9438 = vmatprep.mubr.f32.mxu0 0.0
        %9439 = vmatmul.mubr.f32.gmra.mrb[0].mxu0 %v9269
        %v9440 = vpop.f32.mrb[0].mxu0
        %v9441 = vadd.f32 %v9251, %v9440
        %v9442 = vpop.f32.mrb[0].mxu0
        %9443 = vmatprep.mubr.f32.mxu0 0.0
        %9444 = vmatmul.mubr.f32.gmra.mrb[0].mxu0 %v9272
        %v9445 = vpop.f32.mrb[0].mxu0
        %v9446 = vadd.f32 %v9251, %v9445
        %v9447 = vpop.f32.mrb[0].mxu0
        %9448 = vmatprep.mubr.f32.mxu0 0.0
        %9449 = vmatmul.mubr.f32.gmra.mrb[0].mxu0 %v9275
        %v9450 = vpop.f32.mrb[0].mxu0
        %v9451 = vadd.f32 %v9251, %v9450
        %v9452 = vpop.f32.mrb[0].mxu0
        %9453 = vmatprep.mubr.f32.mxu0 0.0
        %9454 = vmatmul.mubr.f32.gmra.mrb[0].mxu0 %v9278
        %v9455 = vpop.f32.mrb[0].mxu0
        %v9456 = vadd.f32 %v9251, %v9455
        %v9457 = vpop.f32.mrb[0].mxu0
        %9458 = vmatprep.mubr.f32.mxu0 0.0
        %9459 = vmatmul.mubr.f32.gmra.mrb[0].mxu0 %v9281
        %v9460 = vpop.f32.mrb[0].mxu0
        %v9461 = vadd.f32 %v9251, %v9460
        %v9462 = vpop.f32.mrb[0].mxu0
        %9463 = vmatprep.mubr.f32.mxu0 0.0
        %9464 = vmatmul.mubr.f32.gmra.mrb[0].mxu0 %v9284
        %v9465 = vpop.f32.mrb[0].mxu0
        %v9466 = vadd.f32 %v9251, %v9465
        %v9467 = vpop.f32.mrb[0].mxu0
        %9468 = vmatprep.mubr.f32.mxu0 0.0
        %9469 = vmatmul.mubr.f32.gmra.mrb[0].mxu0 %v9287
        %v9470 = vpop.f32.mrb[0].mxu0
        %v9471 = vadd.f32 %v9251, %v9470
        %v9472 = vpop.f32.mrb[0].mxu0
        %9473 = vmatprep.mubr.f32.mxu0 0.0
        %9474 = vmatmul.mubr.f32.gmra.mrb[0].mxu0 %v9290
        %v9475 = vpop.f32.mrb[0].mxu0
        %v9476 = vadd.f32 %v9251, %v9475
        %v9477 = vpop.f32.mrb[0].mxu0
        %9478 = vmatprep.mubr.f32.mxu0 0.0
        %9479 = vmatmul.mubr.f32.gmra.mrb[0].mxu0 %v9293
        %v9480 = vpop.f32.mrb[0].mxu0
        %v9481 = vadd.f32 %v9251, %v9480
        %v9482 = vpop.f32.mrb[0].mxu0
        %9483 = vmatprep.mubr.f32.mxu0 0.0
        %9484 = vmatmul.mubr.f32.gmra.mrb[0].mxu0 %v9296
        %v9485 = vpop.f32.mrb[0].mxu0
        %v9486 = vadd.f32 %v9251, %v9485
        %v9487 = vpop.f32.mrb[0].mxu0
        %9488 = vmatprep.mubr.f32.mxu0 0.0
        %9489 = vmatmul.mubr.f32.gmra.mrb[0].mxu0 %v9299
        %v9490 = vpop.f32.mrb[0].mxu0
        %v9491 = vadd.f32 %v9251, %v9490
        %v9492 = vpop.f32.mrb[0].mxu0
        %9493 = vmatprep.mubr.f32.mxu0 0.0
        %9494 = vmatmul.mubr.f32.gmra.mrb[0].mxu0 %v9302
        %v9495 = vpop.f32.mrb[0].mxu0
        %v9496 = vadd.f32 %v9251, %v9495
        %v9497 = vpop.f32.mrb[0].mxu0
        %9498 = vmatprep.mubr.f32.mxu0 0.0
        %9499 = vmatmul.mubr.f32.gmra.mrb[0].mxu0 %v9305
        %v9500 = vpop.f32.mrb[0].mxu0
        %v9501 = vadd.f32 %v9251, %v9500
        %v9502 = vpop.f32.mrb[0].mxu0
        %9503 = vmatprep.mubr.f32.mxu0 0.0
        %9504 = vmatmul.mubr.f32.gmra.mrb[0].mxu0 %v9308
        %v9505 = vpop.f32.mrb[0].mxu0
        %v9506 = vadd.f32 %v9251, %v9505
        %v9507 = vpop.f32.mrb[0].mxu0
        %9508 = vmatprep.mubr.f32.mxu0 0.0
        %9509 = vmatmul.mubr.f32.gmra.mrb[0].mxu0 %v9311
        %v9510 = vpop.f32.mrb[0].mxu0
        %v9511 = vadd.f32 %v9251, %v9510
        %v9512 = vpop.f32.mrb[0].mxu0
        %9513 = vmatprep.mubr.f32.mxu0 0.0
        %9514 = vmatmul.mubr.f32.gmra.mrb[0].mxu0 %v9314
        %v9515 = vpop.f32.mrb[0].mxu0
        %v9516 = vadd.f32 %v9251, %v9515
        %v9517 = vpop.f32.mrb[0].mxu0
        %9518 = vmatprep.mubr.f32.mxu0 0.0
        %9519 = vmatmul.mubr.f32.gmra.mrb[0].mxu0 %v9317
        %v9520 = vpop.f32.mrb[0].mxu0
        %v9521 = vadd.f32 %v9251, %v9520
        %v9522 = vpop.f32.mrb[0].mxu0
        %9523 = vmatprep.mubr.f32.mxu0 0.0
        %9524 = vmatmul.mubr.f32.gmra.mrb[0].mxu0 %v9320
        %v9525 = vpop.f32.mrb[0].mxu0
        %v9526 = vadd.f32 %v9251, %v9525
        %v9527 = vpop.f32.mrb[0].mxu0
        %9528 = vmatprep.mubr.f32.mxu0 0.0
        %9529 = vmatmul.mubr.f32.gmra.mrb[0].mxu0 %v9323
        %v9530 = vpop.f32.mrb[0].mxu0
        %v9531 = vadd.f32 %v9251, %v9530
        %v9532 = vpop.f32.mrb[0].mxu0
        %9533 = vmatprep.mubr.f32.mxu0 0.0
        %9534 = vmatmul.mubr.f32.gmra.mrb[0].mxu0 %v9326
        %v9535 = vpop.f32.mrb[0].mxu0
        %v9536 = vadd.f32 %v9251, %v9535
        %v9537 = vpop.f32.mrb[0].mxu0
        %9538 = vmatprep.mubr.f32.mxu0 0.0
        %9539 = vmatmul.mubr.f32.gmra.mrb[0].mxu0 %v9329
        %v9540 = vpop.f32.mrb[0].mxu0
        %v9541 = vadd.f32 %v9251, %v9540
        %v9542 = vpop.f32.mrb[0].mxu0
        %9543 = vmatprep.mubr.f32.mxu0 0.0
        %9544 = vmatmul.mubr.f32.gmra.mrb[0].mxu0 %v9332
        %v9545 = vpop.f32.mrb[0].mxu0
        %v9546 = vadd.f32 %v9251, %v9545
        %v9547 = vpop.f32.mrb[0].mxu0
        %9548 = vmatprep.mubr.f32.mxu0 0.0
        %9549 = vmatmul.mubr.f32.gmra.mrb[0].mxu0 %v9335
        %v9550 = vpop.f32.mrb[0].mxu0
        %v9551 = vadd.f32 %v9251, %v9550
        %v9552 = vpop.f32.mrb[0].mxu0
        %9553 = vmatprep.mubr.f32.mxu0 0.0
        %9554 = vmatmul.mubr.f32.gmra.mrb[0].mxu0 %v9338
        %v9555 = vpop.f32.mrb[0].mxu0
        %v9556 = vadd.f32 %v9251, %v9555
        %v9557 = vpop.f32.mrb[0].mxu0
        %9558 = vmatprep.mubr.f32.mxu0 0.0
        %9559 = vmatmul.mubr.f32.gmra.mrb[0].mxu0 %v9341
        %v9560 = vpop.f32.mrb[0].mxu0
        %v9561 = vadd.f32 %v9251, %v9560
        %v9562 = vpop.f32.mrb[0].mxu0
        %9563 = vmatprep.mubr.f32.mxu0 0.0
        %9564 = vmatmul.mubr.f32.gmra.mrb[0].mxu0 %v9344
        %v9565 = vpop.f32.mrb[0].mxu0
        %v9566 = vadd.f32 %v9251, %v9565
        %v9567 = vpop.f32.mrb[0].mxu0
        %9568 = vmatprep.mubr.f32.mxu0 0.0
        %9569 = vmatmul.mubr.f32.gmra.mrb[0].mxu0 %v9347
        %v9570 = vpop.f32.mrb[0].mxu0
        %v9571 = vadd.f32 %v9251, %v9570
        %v9572 = vpop.f32.mrb[0].mxu0
        %9573 = vdwg.mxu0
        %v9574 = vmax.f32 %v9416, 0.0
        %v9575 = vmax.f32 %v9421, 0.0
        %v9576 = vmax.f32 %v9426, 0.0
        %v9577 = vmax.f32 %v9431, 0.0
        %v9578 = vmax.f32 %v9436, 0.0
        %v9579 = vmax.f32 %v9441, 0.0
        %v9580 = vmax.f32 %v9446, 0.0
        %v9581 = vmax.f32 %v9451, 0.0
        %v9582 = vmax.f32 %v9456, 0.0
        %v9583 = vmax.f32 %v9461, 0.0
        %v9584 = vmax.f32 %v9466, 0.0
        %v9585 = vmax.f32 %v9471, 0.0
        %v9586 = vmax.f32 %v9476, 0.0
        %v9587 = vmax.f32 %v9481, 0.0
        %v9588 = vmax.f32 %v9486, 0.0
        %v9589 = vmax.f32 %v9491, 0.0
        %v9590 = vmax.f32 %v9496, 0.0
        %v9591 = vmax.f32 %v9501, 0.0
        %v9592 = vmax.f32 %v9506, 0.0
        %v9593 = vmax.f32 %v9511, 0.0
        %v9594 = vmax.f32 %v9516, 0.0
        %v9595 = vmax.f32 %v9521, 0.0
        %v9596 = vmax.f32 %v9526, 0.0
        %v9597 = vmax.f32 %v9531, 0.0
        %v9598 = vmax.f32 %v9536, 0.0
        %v9599 = vmax.f32 %v9541, 0.0
        %v9600 = vmax.f32 %v9546, 0.0
        %v9601 = vmax.f32 %v9551, 0.0
        %v9602 = vmax.f32 %v9556, 0.0
        %v9603 = vmax.f32 %v9561, 0.0
        %v9604 = vmax.f32 %v9566, 0.0
        %v9605 = vmax.f32 %v9571, 0.0
        %v9607 = vrot.slane -inf, 7
        %v9608 = vsel %vm1250, %v9607, %v9607
        %v9609 = vrot.slane %v547, 7
        %v9610 = vrot.slane %v548, 7
        %v9611 = vsel %vm1250, %v9609, %v9610
        %v9612 = vrot.slane %v549, 7
        %v9613 = vrot.slane %v550, 7
        %v9614 = vsel %vm1250, %v9612, %v9613
        %v9615 = vrot.slane %v551, 7
        %v9616 = vrot.slane %v552, 7
        %v9617 = vsel %vm1250, %v9615, %v9616
        %v9618 = vrot.slane %v553, 7
        %v9619 = vrot.slane %v554, 7
        %v9620 = vsel %vm1250, %v9618, %v9619
        %v9621 = vrot.slane %v555, 7
        %v9622 = vrot.slane %v556, 7
        %v9623 = vsel %vm1250, %v9621, %v9622
        %v9624 = vrot.slane %v557, 7
        %v9625 = vrot.slane %v558, 7
        %v9626 = vsel %vm1250, %v9624, %v9625
        %v9627 = vrot.slane %v559, 7
        %v9628 = vrot.slane %v560, 7
        %v9629 = vsel %vm1250, %v9627, %v9628
        %v9630 = vrot.slane %v561, 7
        %v9631 = vrot.slane %v562, 7
        %v9632 = vsel %vm1250, %v9630, %v9631
        %v9633 = vrot.slane %v563, 7
        %v9634 = vrot.slane %v564, 7
        %v9635 = vsel %vm1250, %v9633, %v9634
        %v9636 = vrot.slane %v565, 7
        %v9637 = vrot.slane %v566, 7
        %v9638 = vsel %vm1250, %v9636, %v9637
        %v9639 = vrot.slane %v567, 7
        %v9640 = vrot.slane %v568, 7
        %v9641 = vsel %vm1250, %v9639, %v9640
        %v9642 = vrot.slane %v569, 7
        %v9643 = vrot.slane %v570, 7
        %v9644 = vsel %vm1250, %v9642, %v9643
        %v9645 = vrot.slane %v571, 7
        %v9646 = vrot.slane %v572, 7
        %v9647 = vsel %vm1250, %v9645, %v9646
        %v9648 = vrot.slane %v573, 7
        %v9649 = vrot.slane %v574, 7
        %v9650 = vsel %vm1250, %v9648, %v9649
        %v9651 = vrot.slane %v575, 7
        %v9652 = vrot.slane %v576, 7
        %v9653 = vsel %vm1250, %v9651, %v9652
        %v9654 = vrot.slane %v577, 7
        %v9655 = vrot.slane %v578, 7
        %v9656 = vsel %vm1250, %v9654, %v9655
        %v9707 = vsel %vm1250, -inf, %v9607
        %v9708 = vsel %vm1250, -inf, %v9609
        %v9709 = vsel %vm1250, -inf, %v9612
        %v9710 = vsel %vm1250, -inf, %v9615
        %v9711 = vsel %vm1250, -inf, %v9618
        %v9712 = vsel %vm1250, -inf, %v9621
        %v9713 = vsel %vm1250, -inf, %v9624
        %v9714 = vsel %vm1250, -inf, %v9627
        %v9715 = vsel %vm1250, -inf, %v9630
        %v9716 = vsel %vm1250, -inf, %v9633
        %v9717 = vsel %vm1250, -inf, %v9636
        %v9718 = vsel %vm1250, -inf, %v9639
        %v9719 = vsel %vm1250, -inf, %v9642
        %v9720 = vsel %vm1250, -inf, %v9645
        %v9721 = vsel %vm1250, -inf, %v9648
        %v9722 = vsel %vm1250, -inf, %v9651
        %v9723 = vsel %vm1250, -inf, %v9654
        %v9724 = vsel %vm1250, %v9607, -inf
        %v9725 = vsel %vm1250, %v9610, -inf
        %v9726 = vsel %vm1250, %v9613, -inf
        %v9727 = vsel %vm1250, %v9616, -inf
        %v9728 = vsel %vm1250, %v9619, -inf
        %v9729 = vsel %vm1250, %v9622, -inf
        %v9730 = vsel %vm1250, %v9625, -inf
        %v9731 = vsel %vm1250, %v9628, -inf
        %v9732 = vsel %vm1250, %v9631, -inf
        %v9733 = vsel %vm1250, %v9634, -inf
        %v9734 = vsel %vm1250, %v9637, -inf
        %v9735 = vsel %vm1250, %v9640, -inf
        %v9736 = vsel %vm1250, %v9643, -inf
        %v9737 = vsel %vm1250, %v9646, -inf
        %v9738 = vsel %vm1250, %v9649, -inf
        %v9739 = vsel %vm1250, %v9652, -inf
        %v9740 = vsel %vm1250, %v9655, -inf
        %v9773 = vrot.slane %v9707, 1
        %v9774 = vrot.slane %v9608, 1
        %v9775 = vsel %vm1477, %v9773, %v9774
        %v9776 = vrot.slane %v9724, 1
        %v9777 = vsel %vm1477, %v9774, %v9776
        %v9778 = vrot.slane %v9708, 1
        %v9779 = vrot.slane %v9611, 1
        %v9780 = vsel %vm1477, %v9778, %v9779
        %v9781 = vrot.slane %v9725, 1
        %v9782 = vsel %vm1477, %v9779, %v9781
        %v9783 = vrot.slane %v9709, 1
        %v9784 = vrot.slane %v9614, 1
        %v9785 = vsel %vm1477, %v9783, %v9784
        %v9786 = vrot.slane %v9726, 1
        %v9787 = vsel %vm1477, %v9784, %v9786
        %v9788 = vrot.slane %v9710, 1
        %v9789 = vrot.slane %v9617, 1
        %v9790 = vsel %vm1477, %v9788, %v9789
        %v9791 = vrot.slane %v9727, 1
        %v9792 = vsel %vm1477, %v9789, %v9791
        %v9793 = vrot.slane %v9711, 1
        %v9794 = vrot.slane %v9620, 1
        %v9795 = vsel %vm1477, %v9793, %v9794
        %v9796 = vrot.slane %v9728, 1
        %v9797 = vsel %vm1477, %v9794, %v9796
        %v9798 = vrot.slane %v9712, 1
        %v9799 = vrot.slane %v9623, 1
        %v9800 = vsel %vm1477, %v9798, %v9799
        %v9801 = vrot.slane %v9729, 1
        %v9802 = vsel %vm1477, %v9799, %v9801
        %v9803 = vrot.slane %v9713, 1
        %v9804 = vrot.slane %v9626, 1
        %v9805 = vsel %vm1477, %v9803, %v9804
        %v9806 = vrot.slane %v9730, 1
        %v9807 = vsel %vm1477, %v9804, %v9806
        %v9808 = vrot.slane %v9714, 1
        %v9809 = vrot.slane %v9629, 1
        %v9810 = vsel %vm1477, %v9808, %v9809
        %v9811 = vrot.slane %v9731, 1
        %v9812 = vsel %vm1477, %v9809, %v9811
        %v9813 = vrot.slane %v9715, 1
        %v9814 = vrot.slane %v9632, 1
        %v9815 = vsel %vm1477, %v9813, %v9814
        %v9816 = vrot.slane %v9732, 1
        %v9817 = vsel %vm1477, %v9814, %v9816
        %v9818 = vrot.slane %v9716, 1
        %v9819 = vrot.slane %v9635, 1
        %v9820 = vsel %vm1477, %v9818, %v9819
        %v9821 = vrot.slane %v9733, 1
        %v9822 = vsel %vm1477, %v9819, %v9821
        %v9823 = vrot.slane %v9717, 1
        %v9824 = vrot.slane %v9638, 1
        %v9825 = vsel %vm1477, %v9823, %v9824
        %v9826 = vrot.slane %v9734, 1
        %v9827 = vsel %vm1477, %v9824, %v9826
        %v9828 = vrot.slane %v9718, 1
        %v9829 = vrot.slane %v9641, 1
        %v9830 = vsel %vm1477, %v9828, %v9829
        %v9831 = vrot.slane %v9735, 1
        %v9832 = vsel %vm1477, %v9829, %v9831
        %v9833 = vrot.slane %v9719, 1
        %v9834 = vrot.slane %v9644, 1
        %v9835 = vsel %vm1477, %v9833, %v9834
        %v9836 = vrot.slane %v9736, 1
        %v9837 = vsel %vm1477, %v9834, %v9836
        %v9838 = vrot.slane %v9720, 1
        %v9839 = vrot.slane %v9647, 1
        %v9840 = vsel %vm1477, %v9838, %v9839
        %v9841 = vrot.slane %v9737, 1
        %v9842 = vsel %vm1477, %v9839, %v9841
        %v9843 = vrot.slane %v9721, 1
        %v9844 = vrot.slane %v9650, 1
        %v9845 = vsel %vm1477, %v9843, %v9844
        %v9846 = vrot.slane %v9738, 1
        %v9847 = vsel %vm1477, %v9844, %v9846
        %v9848 = vrot.slane %v9722, 1
        %v9849 = vrot.slane %v9653, 1
        %v9850 = vsel %vm1477, %v9848, %v9849
        %v9851 = vrot.slane %v9739, 1
        %v9852 = vsel %vm1477, %v9849, %v9851
        %v9885 = vmax.f32 %v9707, %v9775
        %v9886 = vmax.f32 %v9608, %v9777
        %v9887 = vmax.f32 %v9708, %v9780
        %v9888 = vmax.f32 %v9611, %v9782
        %v9889 = vmax.f32 %v9709, %v9785
        %v9890 = vmax.f32 %v9614, %v9787
        %v9891 = vmax.f32 %v9710, %v9790
        %v9892 = vmax.f32 %v9617, %v9792
        %v9893 = vmax.f32 %v9711, %v9795
        %v9894 = vmax.f32 %v9620, %v9797
        %v9895 = vmax.f32 %v9712, %v9800
        %v9896 = vmax.f32 %v9623, %v9802
        %v9897 = vmax.f32 %v9713, %v9805
        %v9898 = vmax.f32 %v9626, %v9807
        %v9899 = vmax.f32 %v9714, %v9810
        %v9900 = vmax.f32 %v9629, %v9812
        %v9901 = vmax.f32 %v9715, %v9815
        %v9902 = vmax.f32 %v9632, %v9817
        %v9903 = vmax.f32 %v9716, %v9820
        %v9904 = vmax.f32 %v9635, %v9822
        %v9905 = vmax.f32 %v9717, %v9825
        %v9906 = vmax.f32 %v9638, %v9827
        %v9907 = vmax.f32 %v9718, %v9830
        %v9908 = vmax.f32 %v9641, %v9832
        %v9909 = vmax.f32 %v9719, %v9835
        %v9910 = vmax.f32 %v9644, %v9837
        %v9911 = vmax.f32 %v9720, %v9840
        %v9912 = vmax.f32 %v9647, %v9842
        %v9913 = vmax.f32 %v9721, %v9845
        %v9914 = vmax.f32 %v9650, %v9847
        %v9915 = vmax.f32 %v9722, %v9850
        %v9916 = vmax.f32 %v9653, %v9852
        %v9917 = vrot.slane %v9707, 2
        %v9918 = vrot.slane %v9608, 2
        %v9919 = vsel %vm1590, %v9917, %v9918
        %v9920 = vrot.slane %v9724, 2
        %v9921 = vsel %vm1590, %v9918, %v9920
        %v9922 = vrot.slane %v9708, 2
        %v9923 = vrot.slane %v9611, 2
        %v9924 = vsel %vm1590, %v9922, %v9923
        %v9925 = vrot.slane %v9725, 2
        %v9926 = vsel %vm1590, %v9923, %v9925
        %v9927 = vrot.slane %v9709, 2
        %v9928 = vrot.slane %v9614, 2
        %v9929 = vsel %vm1590, %v9927, %v9928
        %v9930 = vrot.slane %v9726, 2
        %v9931 = vsel %vm1590, %v9928, %v9930
        %v9932 = vrot.slane %v9710, 2
        %v9933 = vrot.slane %v9617, 2
        %v9934 = vsel %vm1590, %v9932, %v9933
        %v9935 = vrot.slane %v9727, 2
        %v9936 = vsel %vm1590, %v9933, %v9935
        %v9937 = vrot.slane %v9711, 2
        %v9938 = vrot.slane %v9620, 2
        %v9939 = vsel %vm1590, %v9937, %v9938
        %v9940 = vrot.slane %v9728, 2
        %v9941 = vsel %vm1590, %v9938, %v9940
        %v9942 = vrot.slane %v9712, 2
        %v9943 = vrot.slane %v9623, 2
        %v9944 = vsel %vm1590, %v9942, %v9943
        %v9945 = vrot.slane %v9729, 2
        %v9946 = vsel %vm1590, %v9943, %v9945
        %v9947 = vrot.slane %v9713, 2
        %v9948 = vrot.slane %v9626, 2
        %v9949 = vsel %vm1590, %v9947, %v9948
        %v9950 = vrot.slane %v9730, 2
        %v9951 = vsel %vm1590, %v9948, %v9950
        %v9952 = vrot.slane %v9714, 2
        %v9953 = vrot.slane %v9629, 2
        %v9954 = vsel %vm1590, %v9952, %v9953
        %v9955 = vrot.slane %v9731, 2
        %v9956 = vsel %vm1590, %v9953, %v9955
        %v9957 = vrot.slane %v9715, 2
        %v9958 = vrot.slane %v9632, 2
        %v9959 = vsel %vm1590, %v9957, %v9958
        %v9960 = vrot.slane %v9732, 2
        %v9961 = vsel %vm1590, %v9958, %v9960
        %v9962 = vrot.slane %v9716, 2
        %v9963 = vrot.slane %v9635, 2
        %v9964 = vsel %vm1590, %v9962, %v9963
        %v9965 = vrot.slane %v9733, 2
        %v9966 = vsel %vm1590, %v9963, %v9965
        %v9967 = vrot.slane %v9717, 2
        %v9968 = vrot.slane %v9638, 2
        %v9969 = vsel %vm1590, %v9967, %v9968
        %v9970 = vrot.slane %v9734, 2
        %v9971 = vsel %vm1590, %v9968, %v9970
        %v9972 = vrot.slane %v9718, 2
        %v9973 = vrot.slane %v9641, 2
        %v9974 = vsel %vm1590, %v9972, %v9973
        %v9975 = vrot.slane %v9735, 2
        %v9976 = vsel %vm1590, %v9973, %v9975
        %v9977 = vrot.slane %v9719, 2
        %v9978 = vrot.slane %v9644, 2
        %v9979 = vsel %vm1590, %v9977, %v9978
        %v9980 = vrot.slane %v9736, 2
        %v9981 = vsel %vm1590, %v9978, %v9980
        %v9982 = vrot.slane %v9720, 2
        %v9983 = vrot.slane %v9647, 2
        %v9984 = vsel %vm1590, %v9982, %v9983
        %v9985 = vrot.slane %v9737, 2
        %v9986 = vsel %vm1590, %v9983, %v9985
        %v9987 = vrot.slane %v9721, 2
        %v9988 = vrot.slane %v9650, 2
        %v9989 = vsel %vm1590, %v9987, %v9988
        %v9990 = vrot.slane %v9738, 2
        %v9991 = vsel %vm1590, %v9988, %v9990
        %v9992 = vrot.slane %v9722, 2
        %v9993 = vrot.slane %v9653, 2
        %v9994 = vsel %vm1590, %v9992, %v9993
        %v9995 = vrot.slane %v9739, 2
        %v9996 = vsel %vm1590, %v9993, %v9995
        %v10029 = vmax.f32 %v9885, %v9919
        %v10030 = vmax.f32 %v9886, %v9921
        %v10031 = vmax.f32 %v9887, %v9924
        %v10032 = vmax.f32 %v9888, %v9926
        %v10033 = vmax.f32 %v9889, %v9929
        %v10034 = vmax.f32 %v9890, %v9931
        %v10035 = vmax.f32 %v9891, %v9934
        %v10036 = vmax.f32 %v9892, %v9936
        %v10037 = vmax.f32 %v9893, %v9939
        %v10038 = vmax.f32 %v9894, %v9941
        %v10039 = vmax.f32 %v9895, %v9944
        %v10040 = vmax.f32 %v9896, %v9946
        %v10041 = vmax.f32 %v9897, %v9949
        %v10042 = vmax.f32 %v9898, %v9951
        %v10043 = vmax.f32 %v9899, %v9954
        %v10044 = vmax.f32 %v9900, %v9956
        %v10045 = vmax.f32 %v9901, %v9959
        %v10046 = vmax.f32 %v9902, %v9961
        %v10047 = vmax.f32 %v9903, %v9964
        %v10048 = vmax.f32 %v9904, %v9966
        %v10049 = vmax.f32 %v9905, %v9969
        %v10050 = vmax.f32 %v9906, %v9971
        %v10051 = vmax.f32 %v9907, %v9974
        %v10052 = vmax.f32 %v9908, %v9976
        %v10053 = vmax.f32 %v9909, %v9979
        %v10054 = vmax.f32 %v9910, %v9981
        %v10055 = vmax.f32 %v9911, %v9984
        %v10056 = vmax.f32 %v9912, %v9986
        %v10057 = vmax.f32 %v9913, %v9989
        %v10058 = vmax.f32 %v9914, %v9991
        %v10059 = vmax.f32 %v9915, %v9994
        %v10060 = vmax.f32 %v9916, %v9996
        %v10061 = vmax.f32 %v10029, %v9708
        %v10062 = vmax.f32 %v10030, %v9611
        %v10063 = vmax.f32 %v10031, %v9709
        %v10064 = vmax.f32 %v10032, %v9614
        %v10065 = vmax.f32 %v10033, %v9710
        %v10066 = vmax.f32 %v10034, %v9617
        %v10067 = vmax.f32 %v10035, %v9711
        %v10068 = vmax.f32 %v10036, %v9620
        %v10069 = vmax.f32 %v10037, %v9712
        %v10070 = vmax.f32 %v10038, %v9623
        %v10071 = vmax.f32 %v10039, %v9713
        %v10072 = vmax.f32 %v10040, %v9626
        %v10073 = vmax.f32 %v10041, %v9714
        %v10074 = vmax.f32 %v10042, %v9629
        %v10075 = vmax.f32 %v10043, %v9715
        %v10076 = vmax.f32 %v10044, %v9632
        %v10077 = vmax.f32 %v10045, %v9716
        %v10078 = vmax.f32 %v10046, %v9635
        %v10079 = vmax.f32 %v10047, %v9717
        %v10080 = vmax.f32 %v10048, %v9638
        %v10081 = vmax.f32 %v10049, %v9718
        %v10082 = vmax.f32 %v10050, %v9641
        %v10083 = vmax.f32 %v10051, %v9719
        %v10084 = vmax.f32 %v10052, %v9644
        %v10085 = vmax.f32 %v10053, %v9720
        %v10086 = vmax.f32 %v10054, %v9647
        %v10087 = vmax.f32 %v10055, %v9721
        %v10088 = vmax.f32 %v10056, %v9650
        %v10089 = vmax.f32 %v10057, %v9722
        %v10090 = vmax.f32 %v10058, %v9653
        %v10091 = vmax.f32 %v10059, %v9723
        %v10092 = vmax.f32 %v10060, %v9656
        %v10095 = vrot.slane %v9723, 1
        %v10096 = vrot.slane %v9656, 1
        %v10097 = vsel %vm1477, %v10095, %v10096
        %v10098 = vrot.slane %v9740, 1
        %v10099 = vsel %vm1477, %v10096, %v10098
        %v10102 = vmax.f32 %v10061, %v9780
        %v10103 = vmax.f32 %v10062, %v9782
        %v10104 = vmax.f32 %v10063, %v9785
        %v10105 = vmax.f32 %v10064, %v9787
        %v10106 = vmax.f32 %v10065, %v9790
        %v10107 = vmax.f32 %v10066, %v9792
        %v10108 = vmax.f32 %v10067, %v9795
        %v10109 = vmax.f32 %v10068, %v9797
        %v10110 = vmax.f32 %v10069, %v9800
        %v10111 = vmax.f32 %v10070, %v9802
        %v10112 = vmax.f32 %v10071, %v9805
        %v10113 = vmax.f32 %v10072, %v9807
        %v10114 = vmax.f32 %v10073, %v9810
        %v10115 = vmax.f32 %v10074, %v9812
        %v10116 = vmax.f32 %v10075, %v9815
        %v10117 = vmax.f32 %v10076, %v9817
        %v10118 = vmax.f32 %v10077, %v9820
        %v10119 = vmax.f32 %v10078, %v9822
        %v10120 = vmax.f32 %v10079, %v9825
        %v10121 = vmax.f32 %v10080, %v9827
        %v10122 = vmax.f32 %v10081, %v9830
        %v10123 = vmax.f32 %v10082, %v9832
        %v10124 = vmax.f32 %v10083, %v9835
        %v10125 = vmax.f32 %v10084, %v9837
        %v10126 = vmax.f32 %v10085, %v9840
        %v10127 = vmax.f32 %v10086, %v9842
        %v10128 = vmax.f32 %v10087, %v9845
        %v10129 = vmax.f32 %v10088, %v9847
        %v10130 = vmax.f32 %v10089, %v9850
        %v10131 = vmax.f32 %v10090, %v9852
        %v10132 = vmax.f32 %v10091, %v10097
        %v10133 = vmax.f32 %v10092, %v10099
        %v10134 = vrot.slane %v9723, 2
        %v10135 = vrot.slane %v9656, 2
        %v10136 = vsel %vm1590, %v10134, %v10135
        %v10137 = vrot.slane %v9740, 2
        %v10138 = vsel %vm1590, %v10135, %v10137
        %v10141 = vmax.f32 %v10102, %v9924
        %v10142 = vmax.f32 %v10103, %v9926
        %v10143 = vmax.f32 %v10104, %v9929
        %v10144 = vmax.f32 %v10105, %v9931
        %v10145 = vmax.f32 %v10106, %v9934
        %v10146 = vmax.f32 %v10107, %v9936
        %v10147 = vmax.f32 %v10108, %v9939
        %v10148 = vmax.f32 %v10109, %v9941
        %v10149 = vmax.f32 %v10110, %v9944
        %v10150 = vmax.f32 %v10111, %v9946
        %v10151 = vmax.f32 %v10112, %v9949
        %v10152 = vmax.f32 %v10113, %v9951
        %v10153 = vmax.f32 %v10114, %v9954
        %v10154 = vmax.f32 %v10115, %v9956
        %v10155 = vmax.f32 %v10116, %v9959
        %v10156 = vmax.f32 %v10117, %v9961
        %v10157 = vmax.f32 %v10118, %v9964
        %v10158 = vmax.f32 %v10119, %v9966
        %v10159 = vmax.f32 %v10120, %v9969
        %v10160 = vmax.f32 %v10121, %v9971
        %v10161 = vmax.f32 %v10122, %v9974
        %v10162 = vmax.f32 %v10123, %v9976
        %v10163 = vmax.f32 %v10124, %v9979
        %v10164 = vmax.f32 %v10125, %v9981
        %v10165 = vmax.f32 %v10126, %v9984
        %v10166 = vmax.f32 %v10127, %v9986
        %v10167 = vmax.f32 %v10128, %v9989
        %v10168 = vmax.f32 %v10129, %v9991
        %v10169 = vmax.f32 %v10130, %v9994
        %v10170 = vmax.f32 %v10131, %v9996
        %v10171 = vmax.f32 %v10132, %v10136
        %v10172 = vmax.f32 %v10133, %v10138
        %v10173 = vmax.f32 %v10141, %v9709
        %v10174 = vmax.f32 %v10142, %v9614
        %v10175 = vmax.f32 %v10143, %v9710
        %v10176 = vmax.f32 %v10144, %v9617
        %v10177 = vmax.f32 %v10145, %v9711
        %v10178 = vmax.f32 %v10146, %v9620
        %v10179 = vmax.f32 %v10147, %v9712
        %v10180 = vmax.f32 %v10148, %v9623
        %v10181 = vmax.f32 %v10149, %v9713
        %v10182 = vmax.f32 %v10150, %v9626
        %v10183 = vmax.f32 %v10151, %v9714
        %v10184 = vmax.f32 %v10152, %v9629
        %v10185 = vmax.f32 %v10153, %v9715
        %v10186 = vmax.f32 %v10154, %v9632
        %v10187 = vmax.f32 %v10155, %v9716
        %v10188 = vmax.f32 %v10156, %v9635
        %v10189 = vmax.f32 %v10157, %v9717
        %v10190 = vmax.f32 %v10158, %v9638
        %v10191 = vmax.f32 %v10159, %v9718
        %v10192 = vmax.f32 %v10160, %v9641
        %v10193 = vmax.f32 %v10161, %v9719
        %v10194 = vmax.f32 %v10162, %v9644
        %v10195 = vmax.f32 %v10163, %v9720
        %v10196 = vmax.f32 %v10164, %v9647
        %v10197 = vmax.f32 %v10165, %v9721
        %v10198 = vmax.f32 %v10166, %v9650
        %v10199 = vmax.f32 %v10167, %v9722
        %v10200 = vmax.f32 %v10168, %v9653
        %v10201 = vmax.f32 %v10169, %v9723
        %v10202 = vmax.f32 %v10170, %v9656
        %v10203 = vmax.f32 %v10171, %v9707
        %v10204 = vmax.f32 %v10172, %v9608
        %v10205 = vmax.f32 %v10173, %v9785
        %v10206 = vmax.f32 %v10174, %v9787
        %v10207 = vmax.f32 %v10175, %v9790
        %v10208 = vmax.f32 %v10176, %v9792
        %v10209 = vmax.f32 %v10177, %v9795
        %v10210 = vmax.f32 %v10178, %v9797
        %v10211 = vmax.f32 %v10179, %v9800
        %v10212 = vmax.f32 %v10180, %v9802
        %v10213 = vmax.f32 %v10181, %v9805
        %v10214 = vmax.f32 %v10182, %v9807
        %v10215 = vmax.f32 %v10183, %v9810
        %v10216 = vmax.f32 %v10184, %v9812
        %v10217 = vmax.f32 %v10185, %v9815
        %v10218 = vmax.f32 %v10186, %v9817
        %v10219 = vmax.f32 %v10187, %v9820
        %v10220 = vmax.f32 %v10188, %v9822
        %v10221 = vmax.f32 %v10189, %v9825
        %v10222 = vmax.f32 %v10190, %v9827
        %v10223 = vmax.f32 %v10191, %v9830
        %v10224 = vmax.f32 %v10192, %v9832
        %v10225 = vmax.f32 %v10193, %v9835
        %v10226 = vmax.f32 %v10194, %v9837
        %v10227 = vmax.f32 %v10195, %v9840
        %v10228 = vmax.f32 %v10196, %v9842
        %v10229 = vmax.f32 %v10197, %v9845
        %v10230 = vmax.f32 %v10198, %v9847
        %v10231 = vmax.f32 %v10199, %v9850
        %v10232 = vmax.f32 %v10200, %v9852
        %v10233 = vmax.f32 %v10201, %v10097
        %v10234 = vmax.f32 %v10202, %v10099
        %v10235 = vmax.f32 %v10203, %v9775
        %v10236 = vmax.f32 %v10204, %v9777
        %v10237 = vmax.f32 %v10205, %v9929
        %v10238 = vmax.f32 %v10206, %v9931
        %v10239 = vmax.f32 %v10207, %v9934
        %v10240 = vmax.f32 %v10208, %v9936
        %v10241 = vmax.f32 %v10209, %v9939
        %v10242 = vmax.f32 %v10210, %v9941
        %v10243 = vmax.f32 %v10211, %v9944
        %v10244 = vmax.f32 %v10212, %v9946
        %v10245 = vmax.f32 %v10213, %v9949
        %v10246 = vmax.f32 %v10214, %v9951
        %v10247 = vmax.f32 %v10215, %v9954
        %v10248 = vmax.f32 %v10216, %v9956
        %v10249 = vmax.f32 %v10217, %v9959
        %v10250 = vmax.f32 %v10218, %v9961
        %v10251 = vmax.f32 %v10219, %v9964
        %v10252 = vmax.f32 %v10220, %v9966
        %v10253 = vmax.f32 %v10221, %v9969
        %v10254 = vmax.f32 %v10222, %v9971
        %v10255 = vmax.f32 %v10223, %v9974
        %v10256 = vmax.f32 %v10224, %v9976
        %v10257 = vmax.f32 %v10225, %v9979
        %v10258 = vmax.f32 %v10226, %v9981
        %v10259 = vmax.f32 %v10227, %v9984
        %v10260 = vmax.f32 %v10228, %v9986
        %v10261 = vmax.f32 %v10229, %v9989
        %v10262 = vmax.f32 %v10230, %v9991
        %v10263 = vmax.f32 %v10231, %v9994
        %v10264 = vmax.f32 %v10232, %v9996
        %v10265 = vmax.f32 %v10233, %v10136
        %v10266 = vmax.f32 %v10234, %v10138
        %v10267 = vmax.f32 %v10235, %v9919
        %v10268 = vmax.f32 %v10236, %v9921
        %v10269 = vld [vmem:[%s15] sm:$0xf]
        %v10270 = vld [vmem:[%s16] sm:$0x1]
        %v10272 = vlaneseq
        %v10273 = vshrl.u32 %v10272, 7
        %v10274 = vsub.s32 0, %v10273
        %v10275 = vrot.slane %v10270, %v10274
        %v10278 = vsel %vm587, %v10237, 0
        %v10281 = vsel %vm587, %v10238, 0
        %v10284 = vsel %vm587, %v10239, 0
        %v10287 = vsel %vm587, %v10240, 0
        %v10290 = vsel %vm587, %v10241, 0
        %v10293 = vsel %vm587, %v10242, 0
        %v10296 = vsel %vm587, %v10243, 0
        %v10299 = vsel %vm587, %v10244, 0
        %v10302 = vsel %vm587, %v10245, 0
        %v10305 = vsel %vm587, %v10246, 0
        %v10308 = vsel %vm587, %v10247, 0
        %v10311 = vsel %vm587, %v10248, 0
        %v10314 = vsel %vm587, %v10249, 0
        %v10317 = vsel %vm587, %v10250, 0
        %v10320 = vsel %vm587, %v10251, 0
        %v10323 = vsel %vm587, %v10252, 0
        %v10326 = vsel %vm587, %v10253, 0
        %v10329 = vsel %vm587, %v10254, 0
        %v10332 = vsel %vm587, %v10255, 0
        %v10335 = vsel %vm587, %v10256, 0
        %v10338 = vsel %vm587, %v10257, 0
        %v10341 = vsel %vm587, %v10258, 0
        %v10344 = vsel %vm587, %v10259, 0
        %v10347 = vsel %vm587, %v10260, 0
        %v10350 = vsel %vm587, %v10261, 0
        %v10353 = vsel %vm587, %v10262, 0
        %v10356 = vsel %vm587, %v10263, 0
        %v10359 = vsel %vm587, %v10264, 0
        %v10362 = vsel %vm587, %v10265, 0
        %v10365 = vsel %vm587, %v10266, 0
        %v10368 = vsel %vm587, %v10267, 0
        %v10371 = vsel %vm587, %v10268, 0
        %v10374 = vsel %vm684, %v10269, 0
        %10376 = vmatprep.subr.mxu0 0.0
        %10377 = vmatpush1.msra.mxu0 %v10374
        %10378 = vmatprep.subr.mxu0 0.0
        %10379 = vmatpush1.msra.mxu0 0.0
        %10380 = vmatprep.subr.mxu0 0.0
        %10381 = vmatpush1.msra.mxu0 0.0
        %10382 = vmatprep.subr.mxu0 0.0
        %10383 = vmatpush1.msra.mxu0 0.0
        %10384 = vmatprep.subr.mxu0 0.0
        %10385 = vmatpush1.msra.mxu0 0.0
        %10386 = vmatprep.subr.mxu0 0.0
        %10387 = vmatpush1.msra.mxu0 0.0
        %10388 = vmatprep.subr.mxu0 0.0
        %10389 = vmatpush1.msra.mxu0 0.0
        %10390 = vmatprep.subr.mxu0 0.0
        %10391 = vmatpush1.msra.mxu0 0.0
        %10392 = vmatprep.subr.mxu0 0.0
        %10393 = vmatpush1.msra.mxu0 0.0
        %10394 = vmatprep.subr.mxu0 0.0
        %10395 = vmatpush1.msra.mxu0 0.0
        %10396 = vmatprep.subr.mxu0 0.0
        %10397 = vmatpush1.msra.mxu0 0.0
        %10398 = vmatprep.subr.mxu0 0.0
        %10399 = vmatpush1.msra.mxu0 0.0
        %10400 = vmatprep.subr.mxu0 0.0
        %10401 = vmatpush1.msra.mxu0 0.0
        %10402 = vmatprep.subr.mxu0 0.0
        %10403 = vmatpush1.msra.mxu0 0.0
        %10404 = vmatprep.subr.mxu0 0.0
        %10405 = vmatpush1.msra.mxu0 0.0
        %10406 = vmatprep.subr.mxu0 0.0
        %10407 = vmatpush1.msra.mxu0 0.0
        %10408 = vmatprep.subr.mxu0 0.0
        %10409 = vmatpush1.msra.mxu0 0.0
        %10410 = vmatprep.subr.mxu0 0.0
        %10411 = vmatpush1.msra.mxu0 0.0
        %10412 = vmatprep.subr.mxu0 0.0
        %10413 = vmatpush1.msra.mxu0 0.0
        %10414 = vmatprep.subr.mxu0 0.0
        %10415 = vmatpush1.msra.mxu0 0.0
        %10416 = vmatprep.subr.mxu0 0.0
        %10417 = vmatpush1.msra.mxu0 0.0
        %10418 = vmatprep.subr.mxu0 0.0
        %10419 = vmatpush1.msra.mxu0 0.0
        %10420 = vmatprep.subr.mxu0 0.0
        %10421 = vmatpush1.msra.mxu0 0.0
        %10422 = vmatprep.subr.mxu0 0.0
        %10423 = vmatpush1.msra.mxu0 0.0
        %10424 = vmatprep.subr.mxu0 0.0
        %10425 = vmatpush1.msra.mxu0 0.0
        %10426 = vmatprep.subr.mxu0 0.0
        %10427 = vmatpush1.msra.mxu0 0.0
        %10428 = vmatprep.subr.mxu0 0.0
        %10429 = vmatpush1.msra.mxu0 0.0
        %10430 = vmatprep.subr.mxu0 0.0
        %10431 = vmatpush1.msra.mxu0 0.0
        %10432 = vmatprep.subr.mxu0 0.0
        %10433 = vmatpush1.msra.mxu0 0.0
        %10434 = vmatprep.subr.mxu0 0.0
        %10435 = vmatpush1.msra.mxu0 0.0
        %10436 = vmatprep.subr.mxu0 0.0
        %10437 = vmatpush1.msra.mxu0 0.0
        %10438 = vmatprep.subr.mxu0 0.0
        %10439 = vmatpush1.msra.mxu0 0.0
        %10440 = vmatprep.mubr.f32.mxu0 0.0
        %10441 = vmatmul.mubr.f32.gmra.mrb[0].mxu0 %v10278
        %v10442 = vpop.f32.mrb[0].mxu0
        %v10443 = vadd.f32 %v10275, %v10442
        %v10444 = vpop.f32.mrb[0].mxu0
        %10445 = vmatprep.mubr.f32.mxu0 0.0
        %10446 = vmatmul.mubr.f32.gmra.mrb[0].mxu0 %v10281
        %v10447 = vpop.f32.mrb[0].mxu0
        %v10448 = vadd.f32 %v10275, %v10447
        %v10449 = vpop.f32.mrb[0].mxu0
        %10450 = vmatprep.mubr.f32.mxu0 0.0
        %10451 = vmatmul.mubr.f32.gmra.mrb[0].mxu0 %v10284
        %v10452 = vpop.f32.mrb[0].mxu0
        %v10453 = vadd.f32 %v10275, %v10452
        %v10454 = vpop.f32.mrb[0].mxu0
        %10455 = vmatprep.mubr.f32.mxu0 0.0
        %10456 = vmatmul.mubr.f32.gmra.mrb[0].mxu0 %v10287
        %v10457 = vpop.f32.mrb[0].mxu0
        %v10458 = vadd.f32 %v10275, %v10457
        %v10459 = vpop.f32.mrb[0].mxu0
        %10460 = vmatprep.mubr.f32.mxu0 0.0
        %10461 = vmatmul.mubr.f32.gmra.mrb[0].mxu0 %v10290
        %v10462 = vpop.f32.mrb[0].mxu0
        %v10463 = vadd.f32 %v10275, %v10462
        %v10464 = vpop.f32.mrb[0].mxu0
        %10465 = vmatprep.mubr.f32.mxu0 0.0
        %10466 = vmatmul.mubr.f32.gmra.mrb[0].mxu0 %v10293
        %v10467 = vpop.f32.mrb[0].mxu0
        %v10468 = vadd.f32 %v10275, %v10467
        %v10469 = vpop.f32.mrb[0].mxu0
        %10470 = vmatprep.mubr.f32.mxu0 0.0
        %10471 = vmatmul.mubr.f32.gmra.mrb[0].mxu0 %v10296
        %v10472 = vpop.f32.mrb[0].mxu0
        %v10473 = vadd.f32 %v10275, %v10472
        %v10474 = vpop.f32.mrb[0].mxu0
        %10475 = vmatprep.mubr.f32.mxu0 0.0
        %10476 = vmatmul.mubr.f32.gmra.mrb[0].mxu0 %v10299
        %v10477 = vpop.f32.mrb[0].mxu0
        %v10478 = vadd.f32 %v10275, %v10477
        %v10479 = vpop.f32.mrb[0].mxu0
        %10480 = vmatprep.mubr.f32.mxu0 0.0
        %10481 = vmatmul.mubr.f32.gmra.mrb[0].mxu0 %v10302
        %v10482 = vpop.f32.mrb[0].mxu0
        %v10483 = vadd.f32 %v10275, %v10482
        %v10484 = vpop.f32.mrb[0].mxu0
        %10485 = vmatprep.mubr.f32.mxu0 0.0
        %10486 = vmatmul.mubr.f32.gmra.mrb[0].mxu0 %v10305
        %v10487 = vpop.f32.mrb[0].mxu0
        %v10488 = vadd.f32 %v10275, %v10487
        %v10489 = vpop.f32.mrb[0].mxu0
        %10490 = vmatprep.mubr.f32.mxu0 0.0
        %10491 = vmatmul.mubr.f32.gmra.mrb[0].mxu0 %v10308
        %v10492 = vpop.f32.mrb[0].mxu0
        %v10493 = vadd.f32 %v10275, %v10492
        %v10494 = vpop.f32.mrb[0].mxu0
        %10495 = vmatprep.mubr.f32.mxu0 0.0
        %10496 = vmatmul.mubr.f32.gmra.mrb[0].mxu0 %v10311
        %v10497 = vpop.f32.mrb[0].mxu0
        %v10498 = vadd.f32 %v10275, %v10497
        %v10499 = vpop.f32.mrb[0].mxu0
        %10500 = vmatprep.mubr.f32.mxu0 0.0
        %10501 = vmatmul.mubr.f32.gmra.mrb[0].mxu0 %v10314
        %v10502 = vpop.f32.mrb[0].mxu0
        %v10503 = vadd.f32 %v10275, %v10502
        %v10504 = vpop.f32.mrb[0].mxu0
        %10505 = vmatprep.mubr.f32.mxu0 0.0
        %10506 = vmatmul.mubr.f32.gmra.mrb[0].mxu0 %v10317
        %v10507 = vpop.f32.mrb[0].mxu0
        %v10508 = vadd.f32 %v10275, %v10507
        %v10509 = vpop.f32.mrb[0].mxu0
        %10510 = vmatprep.mubr.f32.mxu0 0.0
        %10511 = vmatmul.mubr.f32.gmra.mrb[0].mxu0 %v10320
        %v10512 = vpop.f32.mrb[0].mxu0
        %v10513 = vadd.f32 %v10275, %v10512
        %v10514 = vpop.f32.mrb[0].mxu0
        %10515 = vmatprep.mubr.f32.mxu0 0.0
        %10516 = vmatmul.mubr.f32.gmra.mrb[0].mxu0 %v10323
        %v10517 = vpop.f32.mrb[0].mxu0
        %v10518 = vadd.f32 %v10275, %v10517
        %v10519 = vpop.f32.mrb[0].mxu0
        %10520 = vmatprep.mubr.f32.mxu0 0.0
        %10521 = vmatmul.mubr.f32.gmra.mrb[0].mxu0 %v10326
        %v10522 = vpop.f32.mrb[0].mxu0
        %v10523 = vadd.f32 %v10275, %v10522
        %v10524 = vpop.f32.mrb[0].mxu0
        %10525 = vmatprep.mubr.f32.mxu0 0.0
        %10526 = vmatmul.mubr.f32.gmra.mrb[0].mxu0 %v10329
        %v10527 = vpop.f32.mrb[0].mxu0
        %v10528 = vadd.f32 %v10275, %v10527
        %v10529 = vpop.f32.mrb[0].mxu0
        %10530 = vmatprep.mubr.f32.mxu0 0.0
        %10531 = vmatmul.mubr.f32.gmra.mrb[0].mxu0 %v10332
        %v10532 = vpop.f32.mrb[0].mxu0
        %v10533 = vadd.f32 %v10275, %v10532
        %v10534 = vpop.f32.mrb[0].mxu0
        %10535 = vmatprep.mubr.f32.mxu0 0.0
        %10536 = vmatmul.mubr.f32.gmra.mrb[0].mxu0 %v10335
        %v10537 = vpop.f32.mrb[0].mxu0
        %v10538 = vadd.f32 %v10275, %v10537
        %v10539 = vpop.f32.mrb[0].mxu0
        %10540 = vmatprep.mubr.f32.mxu0 0.0
        %10541 = vmatmul.mubr.f32.gmra.mrb[0].mxu0 %v10338
        %v10542 = vpop.f32.mrb[0].mxu0
        %v10543 = vadd.f32 %v10275, %v10542
        %v10544 = vpop.f32.mrb[0].mxu0
        %10545 = vmatprep.mubr.f32.mxu0 0.0
        %10546 = vmatmul.mubr.f32.gmra.mrb[0].mxu0 %v10341
        %v10547 = vpop.f32.mrb[0].mxu0
        %v10548 = vadd.f32 %v10275, %v10547
        %v10549 = vpop.f32.mrb[0].mxu0
        %10550 = vmatprep.mubr.f32.mxu0 0.0
        %10551 = vmatmul.mubr.f32.gmra.mrb[0].mxu0 %v10344
        %v10552 = vpop.f32.mrb[0].mxu0
        %v10553 = vadd.f32 %v10275, %v10552
        %v10554 = vpop.f32.mrb[0].mxu0
        %10555 = vmatprep.mubr.f32.mxu0 0.0
        %10556 = vmatmul.mubr.f32.gmra.mrb[0].mxu0 %v10347
        %v10557 = vpop.f32.mrb[0].mxu0
        %v10558 = vadd.f32 %v10275, %v10557
        %v10559 = vpop.f32.mrb[0].mxu0
        %10560 = vmatprep.mubr.f32.mxu0 0.0
        %10561 = vmatmul.mubr.f32.gmra.mrb[0].mxu0 %v10350
        %v10562 = vpop.f32.mrb[0].mxu0
        %v10563 = vadd.f32 %v10275, %v10562
        %v10564 = vpop.f32.mrb[0].mxu0
        %10565 = vmatprep.mubr.f32.mxu0 0.0
        %10566 = vmatmul.mubr.f32.gmra.mrb[0].mxu0 %v10353
        %v10567 = vpop.f32.mrb[0].mxu0
        %v10568 = vadd.f32 %v10275, %v10567
        %v10569 = vpop.f32.mrb[0].mxu0
        %10570 = vmatprep.mubr.f32.mxu0 0.0
        %10571 = vmatmul.mubr.f32.gmra.mrb[0].mxu0 %v10356
        %v10572 = vpop.f32.mrb[0].mxu0
        %v10573 = vadd.f32 %v10275, %v10572
        %v10574 = vpop.f32.mrb[0].mxu0
        %10575 = vmatprep.mubr.f32.mxu0 0.0
        %10576 = vmatmul.mubr.f32.gmra.mrb[0].mxu0 %v10359
        %v10577 = vpop.f32.mrb[0].mxu0
        %v10578 = vadd.f32 %v10275, %v10577
        %v10579 = vpop.f32.mrb[0].mxu0
        %10580 = vmatprep.mubr.f32.mxu0 0.0
        %10581 = vmatmul.mubr.f32.gmra.mrb[0].mxu0 %v10362
        %v10582 = vpop.f32.mrb[0].mxu0
        %v10583 = vadd.f32 %v10275, %v10582
        %v10584 = vpop.f32.mrb[0].mxu0
        %10585 = vmatprep.mubr.f32.mxu0 0.0
        %10586 = vmatmul.mubr.f32.gmra.mrb[0].mxu0 %v10365
        %v10587 = vpop.f32.mrb[0].mxu0
        %v10588 = vadd.f32 %v10275, %v10587
        %v10589 = vpop.f32.mrb[0].mxu0
        %10590 = vmatprep.mubr.f32.mxu0 0.0
        %10591 = vmatmul.mubr.f32.gmra.mrb[0].mxu0 %v10368
        %v10592 = vpop.f32.mrb[0].mxu0
        %v10593 = vadd.f32 %v10275, %v10592
        %v10594 = vpop.f32.mrb[0].mxu0
        %10595 = vmatprep.mubr.f32.mxu0 0.0
        %10596 = vmatmul.mubr.f32.gmra.mrb[0].mxu0 %v10371
        %v10597 = vpop.f32.mrb[0].mxu0
        %v10598 = vadd.f32 %v10275, %v10597
        %v10599 = vpop.f32.mrb[0].mxu0
        %10600 = vdwg.mxu0
        %v10601 = vmax.f32 %v10443, 0.0
        %v10602 = vmax.f32 %v10448, 0.0
        %v10603 = vmax.f32 %v10453, 0.0
        %v10604 = vmax.f32 %v10458, 0.0
        %v10605 = vmax.f32 %v10463, 0.0
        %v10606 = vmax.f32 %v10468, 0.0
        %v10607 = vmax.f32 %v10473, 0.0
        %v10608 = vmax.f32 %v10478, 0.0
        %v10609 = vmax.f32 %v10483, 0.0
        %v10610 = vmax.f32 %v10488, 0.0
        %v10611 = vmax.f32 %v10493, 0.0
        %v10612 = vmax.f32 %v10498, 0.0
        %v10613 = vmax.f32 %v10503, 0.0
        %v10614 = vmax.f32 %v10508, 0.0
        %v10615 = vmax.f32 %v10513, 0.0
        %v10616 = vmax.f32 %v10518, 0.0
        %v10617 = vmax.f32 %v10523, 0.0
        %v10618 = vmax.f32 %v10528, 0.0
        %v10619 = vmax.f32 %v10533, 0.0
        %v10620 = vmax.f32 %v10538, 0.0
        %v10621 = vmax.f32 %v10543, 0.0
        %v10622 = vmax.f32 %v10548, 0.0
        %v10623 = vmax.f32 %v10553, 0.0
        %v10624 = vmax.f32 %v10558, 0.0
        %v10625 = vmax.f32 %v10563, 0.0
        %v10626 = vmax.f32 %v10568, 0.0
        %v10627 = vmax.f32 %v10573, 0.0
        %v10628 = vmax.f32 %v10578, 0.0
        %v10629 = vmax.f32 %v10583, 0.0
        %v10630 = vmax.f32 %v10588, 0.0
        %v10631 = vmax.f32 %v10593, 0.0
        %v10632 = vmax.f32 %v10598, 0.0
        %10665 = vrot.lane.b32.xlu0 %v4118, 8
        %v10666 = vpop.permute.xlu0 %10665
        %10667 = vrot.lane.b32.xlu0 %v4119, 8
        %v10668 = vpop.permute.xlu0 %10667
        %10669 = vrot.lane.b32.xlu0 %v4120, 8
        %v10670 = vpop.permute.xlu0 %10669
        %10671 = vrot.lane.b32.xlu0 %v4121, 8
        %v10672 = vpop.permute.xlu0 %10671
        %10673 = vrot.lane.b32.xlu0 %v4122, 8
        %v10674 = vpop.permute.xlu0 %10673
        %10675 = vrot.lane.b32.xlu0 %v4123, 8
        %v10676 = vpop.permute.xlu0 %10675
        %10677 = vrot.lane.b32.xlu0 %v4124, 8
        %v10678 = vpop.permute.xlu0 %10677
        %10679 = vrot.lane.b32.xlu0 %v4125, 8
        %v10680 = vpop.permute.xlu0 %10679
        %10681 = vrot.lane.b32.xlu0 %v4126, 8
        %v10682 = vpop.permute.xlu0 %10681
        %10683 = vrot.lane.b32.xlu0 %v4127, 8
        %v10684 = vpop.permute.xlu0 %10683
        %10685 = vrot.lane.b32.xlu0 %v4128, 8
        %v10686 = vpop.permute.xlu0 %10685
        %10687 = vrot.lane.b32.xlu0 %v4129, 8
        %v10688 = vpop.permute.xlu0 %10687
        %10689 = vrot.lane.b32.xlu0 %v4130, 8
        %v10690 = vpop.permute.xlu0 %10689
        %10691 = vrot.lane.b32.xlu0 %v4131, 8
        %v10692 = vpop.permute.xlu0 %10691
        %10693 = vrot.lane.b32.xlu0 %v4132, 8
        %v10694 = vpop.permute.xlu0 %10693
        %10695 = vrot.lane.b32.xlu0 %v4133, 8
        %v10696 = vpop.permute.xlu0 %10695
        %10697 = vrot.lane.b32.xlu0 %v4134, 8
        %v10698 = vpop.permute.xlu0 %10697
        %10699 = vrot.lane.b32.xlu0 %v4135, 8
        %v10700 = vpop.permute.xlu0 %10699
        %10701 = vrot.lane.b32.xlu0 %v4136, 8
        %v10702 = vpop.permute.xlu0 %10701
        %10703 = vrot.lane.b32.xlu0 %v4137, 8
        %v10704 = vpop.permute.xlu0 %10703
        %10705 = vrot.lane.b32.xlu0 %v4138, 8
        %v10706 = vpop.permute.xlu0 %10705
        %10707 = vrot.lane.b32.xlu0 %v4139, 8
        %v10708 = vpop.permute.xlu0 %10707
        %10709 = vrot.lane.b32.xlu0 %v4140, 8
        %v10710 = vpop.permute.xlu0 %10709
        %10711 = vrot.lane.b32.xlu0 %v4141, 8
        %v10712 = vpop.permute.xlu0 %10711
        %10713 = vrot.lane.b32.xlu0 %v4142, 8
        %v10714 = vpop.permute.xlu0 %10713
        %10715 = vrot.lane.b32.xlu0 %v4143, 8
        %v10716 = vpop.permute.xlu0 %10715
        %10717 = vrot.lane.b32.xlu0 %v4144, 8
        %v10718 = vpop.permute.xlu0 %10717
        %10719 = vrot.lane.b32.xlu0 %v4145, 8
        %v10720 = vpop.permute.xlu0 %10719
        %10721 = vrot.lane.b32.xlu0 %v4146, 8
        %v10722 = vpop.permute.xlu0 %10721
        %10723 = vrot.lane.b32.xlu0 %v4147, 8
        %v10724 = vpop.permute.xlu0 %10723
        %10725 = vrot.lane.b32.xlu0 %v4148, 8
        %v10726 = vpop.permute.xlu0 %10725
        %10727 = vrot.lane.b32.xlu0 %v4149, 8
        %v10728 = vpop.permute.xlu0 %10727
        %10793 = vrot.lane.b32.xlu0 %v9574, 16
        %v10794 = vpop.permute.xlu0 %10793
        %10795 = vrot.lane.b32.xlu0 %v9575, 16
        %v10796 = vpop.permute.xlu0 %10795
        %10797 = vrot.lane.b32.xlu0 %v9576, 16
        %v10798 = vpop.permute.xlu0 %10797
        %10799 = vrot.lane.b32.xlu0 %v9577, 16
        %v10800 = vpop.permute.xlu0 %10799
        %10801 = vrot.lane.b32.xlu0 %v9578, 16
        %v10802 = vpop.permute.xlu0 %10801
        %10803 = vrot.lane.b32.xlu0 %v9579, 16
        %v10804 = vpop.permute.xlu0 %10803
        %10805 = vrot.lane.b32.xlu0 %v9580, 16
        %v10806 = vpop.permute.xlu0 %10805
        %10807 = vrot.lane.b32.xlu0 %v9581, 16
        %v10808 = vpop.permute.xlu0 %10807
        %10809 = vrot.lane.b32.xlu0 %v9582, 16
        %v10810 = vpop.permute.xlu0 %10809
        %10811 = vrot.lane.b32.xlu0 %v9583, 16
        %v10812 = vpop.permute.xlu0 %10811
        %10813 = vrot.lane.b32.xlu0 %v9584, 16
        %v10814 = vpop.permute.xlu0 %10813
        %10815 = vrot.lane.b32.xlu0 %v9585, 16
        %v10816 = vpop.permute.xlu0 %10815
        %10817 = vrot.lane.b32.xlu0 %v9586, 16
        %v10818 = vpop.permute.xlu0 %10817
        %10819 = vrot.lane.b32.xlu0 %v9587, 16
        %v10820 = vpop.permute.xlu0 %10819
        %10821 = vrot.lane.b32.xlu0 %v9588, 16
        %v10822 = vpop.permute.xlu0 %10821
        %10823 = vrot.lane.b32.xlu0 %v9589, 16
        %v10824 = vpop.permute.xlu0 %10823
        %10825 = vrot.lane.b32.xlu0 %v9590, 16
        %v10826 = vpop.permute.xlu0 %10825
        %10827 = vrot.lane.b32.xlu0 %v9591, 16
        %v10828 = vpop.permute.xlu0 %10827
        %10829 = vrot.lane.b32.xlu0 %v9592, 16
        %v10830 = vpop.permute.xlu0 %10829
        %10831 = vrot.lane.b32.xlu0 %v9593, 16
        %v10832 = vpop.permute.xlu0 %10831
        %10833 = vrot.lane.b32.xlu0 %v9594, 16
        %v10834 = vpop.permute.xlu0 %10833
        %10835 = vrot.lane.b32.xlu0 %v9595, 16
        %v10836 = vpop.permute.xlu0 %10835
        %10837 = vrot.lane.b32.xlu0 %v9596, 16
        %v10838 = vpop.permute.xlu0 %10837
        %10839 = vrot.lane.b32.xlu0 %v9597, 16
        %v10840 = vpop.permute.xlu0 %10839
        %10841 = vrot.lane.b32.xlu0 %v9598, 16
        %v10842 = vpop.permute.xlu0 %10841
        %10843 = vrot.lane.b32.xlu0 %v9599, 16
        %v10844 = vpop.permute.xlu0 %10843
        %10845 = vrot.lane.b32.xlu0 %v9600, 16
        %v10846 = vpop.permute.xlu0 %10845
        %10847 = vrot.lane.b32.xlu0 %v9601, 16
        %v10848 = vpop.permute.xlu0 %10847
        %10849 = vrot.lane.b32.xlu0 %v9602, 16
        %v10850 = vpop.permute.xlu0 %10849
        %10851 = vrot.lane.b32.xlu0 %v9603, 16
        %v10852 = vpop.permute.xlu0 %10851
        %10853 = vrot.lane.b32.xlu0 %v9604, 16
        %v10854 = vpop.permute.xlu0 %10853
        %10855 = vrot.lane.b32.xlu0 %v9605, 16
        %v10856 = vpop.permute.xlu0 %10855
        %10921 = vrot.lane.b32.xlu0 %v10601, 24
        %v10922 = vpop.permute.xlu0 %10921
        %10923 = vrot.lane.b32.xlu0 %v10602, 24
        %v10924 = vpop.permute.xlu0 %10923
        %10925 = vrot.lane.b32.xlu0 %v10603, 24
        %v10926 = vpop.permute.xlu0 %10925
        %10927 = vrot.lane.b32.xlu0 %v10604, 24
        %v10928 = vpop.permute.xlu0 %10927
        %10929 = vrot.lane.b32.xlu0 %v10605, 24
        %v10930 = vpop.permute.xlu0 %10929
        %10931 = vrot.lane.b32.xlu0 %v10606, 24
        %v10932 = vpop.permute.xlu0 %10931
        %10933 = vrot.lane.b32.xlu0 %v10607, 24
        %v10934 = vpop.permute.xlu0 %10933
        %10935 = vrot.lane.b32.xlu0 %v10608, 24
        %v10936 = vpop.permute.xlu0 %10935
        %10937 = vrot.lane.b32.xlu0 %v10609, 24
        %v10938 = vpop.permute.xlu0 %10937
        %10939 = vrot.lane.b32.xlu0 %v10610, 24
        %v10940 = vpop.permute.xlu0 %10939
        %10941 = vrot.lane.b32.xlu0 %v10611, 24
        %v10942 = vpop.permute.xlu0 %10941
        %10943 = vrot.lane.b32.xlu0 %v10612, 24
        %v10944 = vpop.permute.xlu0 %10943
        %10945 = vrot.lane.b32.xlu0 %v10613, 24
        %v10946 = vpop.permute.xlu0 %10945
        %10947 = vrot.lane.b32.xlu0 %v10614, 24
        %v10948 = vpop.permute.xlu0 %10947
        %10949 = vrot.lane.b32.xlu0 %v10615, 24
        %v10950 = vpop.permute.xlu0 %10949
        %10951 = vrot.lane.b32.xlu0 %v10616, 24
        %v10952 = vpop.permute.xlu0 %10951
        %10953 = vrot.lane.b32.xlu0 %v10617, 24
        %v10954 = vpop.permute.xlu0 %10953
        %10955 = vrot.lane.b32.xlu0 %v10618, 24
        %v10956 = vpop.permute.xlu0 %10955
        %10957 = vrot.lane.b32.xlu0 %v10619, 24
        %v10958 = vpop.permute.xlu0 %10957
        %10959 = vrot.lane.b32.xlu0 %v10620, 24
        %v10960 = vpop.permute.xlu0 %10959
        %10961 = vrot.lane.b32.xlu0 %v10621, 24
        %v10962 = vpop.permute.xlu0 %10961
        %10963 = vrot.lane.b32.xlu0 %v10622, 24
        %v10964 = vpop.permute.xlu0 %10963
        %10965 = vrot.lane.b32.xlu0 %v10623, 24
        %v10966 = vpop.permute.xlu0 %10965
        %10967 = vrot.lane.b32.xlu0 %v10624, 24
        %v10968 = vpop.permute.xlu0 %10967
        %10969 = vrot.lane.b32.xlu0 %v10625, 24
        %v10970 = vpop.permute.xlu0 %10969
        %10971 = vrot.lane.b32.xlu0 %v10626, 24
        %v10972 = vpop.permute.xlu0 %10971
        %10973 = vrot.lane.b32.xlu0 %v10627, 24
        %v10974 = vpop.permute.xlu0 %10973
        %10975 = vrot.lane.b32.xlu0 %v10628, 24
        %v10976 = vpop.permute.xlu0 %10975
        %10977 = vrot.lane.b32.xlu0 %v10629, 24
        %v10978 = vpop.permute.xlu0 %10977
        %10979 = vrot.lane.b32.xlu0 %v10630, 24
        %v10980 = vpop.permute.xlu0 %10979
        %10981 = vrot.lane.b32.xlu0 %v10631, 24
        %v10982 = vpop.permute.xlu0 %10981
        %10983 = vrot.lane.b32.xlu0 %v10632, 24
        %v10984 = vpop.permute.xlu0 %10983
        %v11017 = vsel %vm2471, %v913, %v10666
        %v11018 = vsel %vm2471, %v914, %v10668
        %v11019 = vsel %vm2471, %v915, %v10670
        %v11020 = vsel %vm2471, %v916, %v10672
        %v11021 = vsel %vm2471, %v917, %v10674
        %v11022 = vsel %vm2471, %v918, %v10676
        %v11023 = vsel %vm2471, %v919, %v10678
        %v11024 = vsel %vm2471, %v920, %v10680
        %v11025 = vsel %vm2471, %v921, %v10682
        %v11026 = vsel %vm2471, %v922, %v10684
        %v11027 = vsel %vm2471, %v923, %v10686
        %v11028 = vsel %vm2471, %v924, %v10688
        %v11029 = vsel %vm2471, %v925, %v10690
        %v11030 = vsel %vm2471, %v926, %v10692
        %v11031 = vsel %vm2471, %v927, %v10694
        %v11032 = vsel %vm2471, %v928, %v10696
        %v11033 = vsel %vm2471, %v929, %v10698
        %v11034 = vsel %vm2471, %v930, %v10700
        %v11035 = vsel %vm2471, %v931, %v10702
        %v11036 = vsel %vm2471, %v932, %v10704
        %v11037 = vsel %vm2471, %v933, %v10706
        %v11038 = vsel %vm2471, %v934, %v10708
        %v11039 = vsel %vm2471, %v935, %v10710
        %v11040 = vsel %vm2471, %v936, %v10712
        %v11041 = vsel %vm2471, %v937, %v10714
        %v11042 = vsel %vm2471, %v938, %v10716
        %v11043 = vsel %vm2471, %v939, %v10718
        %v11044 = vsel %vm2471, %v940, %v10720
        %v11045 = vsel %vm2471, %v941, %v10722
        %v11046 = vsel %vm2471, %v942, %v10724
        %v11047 = vsel %vm2471, %v943, %v10726
        %v11048 = vsel %vm2471, %v944, %v10728
        %v11049 = vsel %vm2504, %v11017, %v10794
        %v11050 = vsel %vm2504, %v11018, %v10796
        %v11051 = vsel %vm2504, %v11019, %v10798
        %v11052 = vsel %vm2504, %v11020, %v10800
        %v11053 = vsel %vm2504, %v11021, %v10802
        %v11054 = vsel %vm2504, %v11022, %v10804
        %v11055 = vsel %vm2504, %v11023, %v10806
        %v11056 = vsel %vm2504, %v11024, %v10808
        %v11057 = vsel %vm2504, %v11025, %v10810
        %v11058 = vsel %vm2504, %v11026, %v10812
        %v11059 = vsel %vm2504, %v11027, %v10814
        %v11060 = vsel %vm2504, %v11028, %v10816
        %v11061 = vsel %vm2504, %v11029, %v10818
        %v11062 = vsel %vm2504, %v11030, %v10820
        %v11063 = vsel %vm2504, %v11031, %v10822
        %v11064 = vsel %vm2504, %v11032, %v10824
        %v11065 = vsel %vm2504, %v11033, %v10826
        %v11066 = vsel %vm2504, %v11034, %v10828
        %v11067 = vsel %vm2504, %v11035, %v10830
        %v11068 = vsel %vm2504, %v11036, %v10832
        %v11069 = vsel %vm2504, %v11037, %v10834
        %v11070 = vsel %vm2504, %v11038, %v10836
        %v11071 = vsel %vm2504, %v11039, %v10838
        %v11072 = vsel %vm2504, %v11040, %v10840
        %v11073 = vsel %vm2504, %v11041, %v10842
        %v11074 = vsel %vm2504, %v11042, %v10844
        %v11075 = vsel %vm2504, %v11043, %v10846
        %v11076 = vsel %vm2504, %v11044, %v10848
        %v11077 = vsel %vm2504, %v11045, %v10850
        %v11078 = vsel %vm2504, %v11046, %v10852
        %v11079 = vsel %vm2504, %v11047, %v10854
        %v11080 = vsel %vm2504, %v11048, %v10856
        %v11081 = vsel %vm2537, %v11049, %v10922
        %v11082 = vsel %vm2537, %v11050, %v10924
        %v11083 = vsel %vm2537, %v11051, %v10926
        %v11084 = vsel %vm2537, %v11052, %v10928
        %v11085 = vsel %vm2537, %v11053, %v10930
        %v11086 = vsel %vm2537, %v11054, %v10932
        %v11087 = vsel %vm2537, %v11055, %v10934
        %v11088 = vsel %vm2537, %v11056, %v10936
        %v11089 = vsel %vm2537, %v11057, %v10938
        %v11090 = vsel %vm2537, %v11058, %v10940
        %v11091 = vsel %vm2537, %v11059, %v10942
        %v11092 = vsel %vm2537, %v11060, %v10944
        %v11093 = vsel %vm2537, %v11061, %v10946
        %v11094 = vsel %vm2537, %v11062, %v10948
        %v11095 = vsel %vm2537, %v11063, %v10950
        %v11096 = vsel %vm2537, %v11064, %v10952
        %v11097 = vsel %vm2537, %v11065, %v10954
        %v11098 = vsel %vm2537, %v11066, %v10956
        %v11099 = vsel %vm2537, %v11067, %v10958
        %v11100 = vsel %vm2537, %v11068, %v10960
        %v11101 = vsel %vm2537, %v11069, %v10962
        %v11102 = vsel %vm2537, %v11070, %v10964
        %v11103 = vsel %vm2537, %v11071, %v10966
        %v11104 = vsel %vm2537, %v11072, %v10968
        %v11105 = vsel %vm2537, %v11073, %v10970
        %v11106 = vsel %vm2537, %v11074, %v10972
        %v11107 = vsel %vm2537, %v11075, %v10974
        %v11108 = vsel %vm2537, %v11076, %v10976
        %v11109 = vsel %vm2537, %v11077, %v10978
        %v11110 = vsel %vm2537, %v11078, %v10980
        %v11111 = vsel %vm2537, %v11079, %v10982
        %v11112 = vsel %vm2537, %v11080, %v10984
        %11113 = vst.msk [vmem:[%s541] sm:$0xff] %vm2570, %v11081
        %11114 = vst.msk [vmem:[%s541 + $0x8] sm:$0xff] %vm2570, %v11082
        %11115 = vst.msk [vmem:[%s541 + $0x10] sm:$0xff] %vm2570, %v11083
        %11116 = vst.msk [vmem:[%s541 + $0x18] sm:$0xff] %vm2570, %v11084
        %11117 = vst.msk [vmem:[%s541 + $0x20] sm:$0xff] %vm2570, %v11085
        %11118 = vst.msk [vmem:[%s541 + $0x28] sm:$0xff] %vm2570, %v11086
        %11119 = vst.msk [vmem:[%s541 + $0x30] sm:$0xff] %vm2570, %v11087
        %11120 = vst.msk [vmem:[%s541 + $0x38] sm:$0xff] %vm2570, %v11088
        %11121 = vst.msk [vmem:[%s541 + $0x40] sm:$0xff] %vm2570, %v11089
        %11122 = vst.msk [vmem:[%s541 + $0x48] sm:$0xff] %vm2570, %v11090
        %11123 = vst.msk [vmem:[%s541 + $0x50] sm:$0xff] %vm2570, %v11091
        %11124 = vst.msk [vmem:[%s541 + $0x58] sm:$0xff] %vm2570, %v11092
        %11125 = vst.msk [vmem:[%s541 + $0x60] sm:$0xff] %vm2570, %v11093
        %11126 = vst.msk [vmem:[%s541 + $0x68] sm:$0xff] %vm2570, %v11094
        %11127 = vst.msk [vmem:[%s541 + $0x70] sm:$0xff] %vm2570, %v11095
        %11128 = vst.msk [vmem:[%s541 + $0x78] sm:$0xff] %vm2570, %v11096
        %11129 = vst.msk [vmem:[%s541 + $0x80] sm:$0xff] %vm2570, %v11097
        %11130 = vst.msk [vmem:[%s541 + $0x88] sm:$0xff] %vm2570, %v11098
        %11131 = vst.msk [vmem:[%s541 + $0x90] sm:$0xff] %vm2570, %v11099
        %11132 = vst.msk [vmem:[%s541 + $0x98] sm:$0xff] %vm2570, %v11100
        %11133 = vst.msk [vmem:[%s541 + $0xa0] sm:$0xff] %vm2570, %v11101
        %11134 = vst.msk [vmem:[%s541 + $0xa8] sm:$0xff] %vm2570, %v11102
        %11135 = vst.msk [vmem:[%s541 + $0xb0] sm:$0xff] %vm2570, %v11103
        %11136 = vst.msk [vmem:[%s541 + $0xb8] sm:$0xff] %vm2570, %v11104
        %11137 = vst.msk [vmem:[%s541 + $0xc0] sm:$0xff] %vm2570, %v11105
        %11138 = vst.msk [vmem:[%s541 + $0xc8] sm:$0xff] %vm2570, %v11106
        %11139 = vst.msk [vmem:[%s541 + $0xd0] sm:$0xff] %vm2570, %v11107
        %11140 = vst.msk [vmem:[%s541 + $0xd8] sm:$0xff] %vm2570, %v11108
        %11141 = vst.msk [vmem:[%s541 + $0xe0] sm:$0xff] %vm2570, %v11109
        %11142 = vst.msk [vmem:[%s541 + $0xe8] sm:$0xff] %vm2570, %v11110
        %11143 = vst.msk [vmem:[%s541 + $0xf0] sm:$0xff] %vm2570, %v11111
        %11144 = vst.msk [vmem:[%s541 + $0xf8] sm:$0xff] %vm2570, %v11112
        %s11145 = sand.u32 %s401, 1
        %s11146 = scalar_lea.sflag [#allocation3], %s11145
        %s11147 = sand.u32 %s401, 1
        %s11148 = smul.addr %s11147, 256
        %s11149 = scalar_lea.vmem [#allocation2], %s11148
        // Predicated region
        $region89: #{factor_inception_b_forward.1} parent=87 // pred_check
          %p11150 = pneg %p411
        $region90: #{factor_inception_b_forward.1} parent=87 // pred_check_branch
          %11152 = sbr.rel (%p11150) target = $region92
        $region91: #{factor_inception_b_forward.1} parent=87 // pred_region
          %s11154 = ssub.s32 4096, 4096
          %11155 = vsyncadd %s11146, %s11154
          %s11156 = smul.addr %s31, 32
          %s11157 = smul.addr %s11156, 128
          %s11158 = scalar_lea.hbm %s17, %s11157
          %s11159 = sshll.u32 %s11149, 4
          %s11160 = int_to_ptr.vmem [resolvable:$true] %s11159
          %11165 = dma.vmem_to_hbm [thread:$0]  %s11160, 4096, %s11158, %s11146, 128, 128, 8
        $region92: #{factor_inception_b_forward.1} parent=87 // pred_fallthru
          _
      $region88: #{factor_inception_b_forward.1} parent=5 // pred_fallthru
        _
      %p11166 = scmp.le.s32.totalorder 2, %s26
      // Predicated region
      $region93: #{factor_inception_b_forward.1} parent=5 // pred_check
        %p11167 = pneg %p11166
      $region94: #{factor_inception_b_forward.1} parent=5 // pred_check_branch
        %11169 = sbr.rel (%p11167) target = $region96
      $region95: #{factor_inception_b_forward.1} parent=5 // pred_region
        %s11170 = ssub.s32 %s26, 2
        // Predicated region
        $region97: #{factor_inception_b_forward.1} parent=95 // pred_check
          %p11171 = pneg %p417
        $region98: #{factor_inception_b_forward.1} parent=95 // pred_check_branch
          %11173 = sbr.rel (%p11171) target = $region100
        $region99: #{factor_inception_b_forward.1} parent=95 // pred_region
          %s11174 = sand.u32 %s402, 1
          %s11175 = scalar_lea.sflag [#allocation3], %s11174
          %s11176 = sand.u32 %s402, 1
          %s11177 = smul.addr %s11176, 256
          %s11178 = scalar_lea.vmem [#allocation2], %s11177
          %11179 = dma.done %s11175, 4096
        $region100: #{factor_inception_b_forward.1} parent=95 // pred_fallthru
          _
      $region96: #{factor_inception_b_forward.1} parent=5 // pred_fallthru
        _
    $region6: #{factor_inception_b_forward.1} parent=1 // loop_footer
      %s30 = sadd.s32 1, %s26
    $region7: #{factor_inception_b_forward.1} parent=1 // loop_footer_branch
      %25 = sbr.rel target = $region3
    $region8: #{factor_inception_b_forward.1} parent=1 // loop_exit
      _
    %11180 = vsyncpa [#allocation3], 1
    %s11181 = scalar_lea.sflag [#allocation3], 1
    %11182 = vsyncpa %s11181, 1

</llo_original>
